<compile_context>
chip_gen: v7x
topology: tpu7x:2x2x1
jax: 0.10.0
libtpu: 0.0.40
codegen_flags: <defaults>
</compile_context>

<pallas_src>
import functools

import jax
import jax.numpy as jnp
from jax.experimental import pallas as pl
from jax.experimental.pallas import tpu as pltpu


def _mlp_kernel(n_layers, sub_tile, x_ref, *refs):
    """Transposed fused MLP: activations are (features, batch_lane_tile).

    refs = (W_0, b_0, W_1, b_1, ..., W_{L-1}, b_{L-1}, out_ref)
    W_i is PyTorch-native (out_features, in_features); b_i is (out_features, 1).
    Tanh after every layer except the last, matching nn.Sequential.
    """
    out_ref = refs[-1]
    params = refs[:-1]
    in_dim = x_ref.shape[0]
    tile_n = x_ref.shape[1]
    out_dim = out_ref.shape[0]
    hidden = params[0].shape[0]
    n_sub = tile_n // sub_tile
    prec = jax.lax.Precision.HIGHEST

    def body(j, carry):
        col = pl.multiple_of(j * sub_tile, sub_tile)
        xt = x_ref[:, pl.ds(col, sub_tile)]            # (in_dim, sub) f32

        # --- Layer 0: K = in_dim (tiny) -> VPU broadcast multiply-adds, no MXU.
        w0 = params[0][...]                            # (hidden, in_dim)
        b0 = params[1][...]                            # (hidden, 1)
        acc = jnp.broadcast_to(b0, (hidden, sub_tile))
        for k in range(in_dim):                        # static, tiny unroll
            acc = acc + w0[:, k:k + 1] * xt[k:k + 1, :]
        h = jnp.tanh(acc)                              # (hidden, sub)

        # --- Hidden layers: lane-dense (hidden,hidden) @ (hidden,sub) on MXU.
        for i in range(1, n_layers - 1):
            w = params[2 * i][...]                     # (hidden, hidden)
            b = params[2 * i + 1][...]                 # (hidden, 1)
            h = jnp.tanh(
                jnp.dot(w, h, preferred_element_type=jnp.float32,
                        precision=prec) + b)

        # --- Output head: M = out_dim (tiny) -> VPU multiply + XLU reduce.
        w_last = params[2 * (n_layers - 1)][...]       # (out_dim, hidden)
        b_last = params[2 * (n_layers - 1) + 1][...]   # (out_dim, 1)
        if out_dim == 1:
            y = jnp.sum(w_last.T * h, axis=0, keepdims=True) + b_last
        else:
            y = jnp.dot(w_last, h, preferred_element_type=jnp.float32,
                        precision=prec) + b_last
        out_ref[:, pl.ds(col, sub_tile)] = y.astype(out_ref.dtype)
        return carry

    jax.lax.fori_loop(0, n_sub, body, 0, unroll=True)


def _round_up(a, b):
    return ((a + b - 1) // b) * b


def mlp_forward(x, weights, biases, *, tile_n=1024, sub_tile=512):
    """Run the fused MLP Pallas kernel.

    x:       (N, input_dim) float32
    weights: list of PyTorch-native (out_i, in_i) float32 arrays
    biases:  list of (out_i, 1) float32 arrays
    """
    n, in_dim = x.shape
    n_layers = len(weights)
    out_dim = weights[-1].shape[0]

    # Lane-aligned tile sizing; no batch-divisibility requirement (pad instead).
    tile_n = _round_up(max(int(tile_n), 128), 128)
    tile_n = min(tile_n, _round_up(n, 128))
    sub_tile = _round_up(max(min(int(sub_tile), tile_n), 128), 128)
    while tile_n % sub_tile:
        sub_tile -= 128

    n_tiles = pl.cdiv(n, tile_n)
    n_pad = n_tiles * tile_n

    # Transpose so batch is the lane (last) axis; pad batch to the tile.
    xT = x.T                                            # (in_dim, N)
    if n_pad != n:
        xT = jnp.pad(xT, ((0, 0), (0, n_pad - n)))

    in_specs = [pl.BlockSpec((in_dim, tile_n), lambda i: (0, i))]
    flat_params = []
    for w, b in zip(weights, biases):
        # Constant index_maps keep the (~KB-sized) params VMEM-resident.
        in_specs.append(pl.BlockSpec(w.shape, lambda i: (0, 0)))
        in_specs.append(pl.BlockSpec(b.shape, lambda i: (0, 0)))
        flat_params.append(w)
        flat_params.append(b)

    out_spec = pl.BlockSpec((out_dim, tile_n), lambda i: (0, i))

    kernel = functools.partial(_mlp_kernel, n_layers, sub_tile)

    yT = pl.pallas_call(
        kernel,
        out_shape=jax.ShapeDtypeStruct((out_dim, n_pad), jnp.float32),
        grid_spec=pltpu.PrefetchScalarGridSpec(
            num_scalar_prefetch=0,
            grid=(n_tiles,),
            in_specs=in_specs,
            out_specs=out_spec,
        ),
        compiler_params=pltpu.CompilerParams(
            dimension_semantics=("parallel",),
        ),
    )(xT, *flat_params)

    return yT[:, :n].T                                  # back to (N, out_dim)


def init_mlp_params(key, input_dim, hidden_dim, num_hidden, output_dim):
    """PyTorch nn.Linear-style init: U[-1/sqrt(fan_in), +1/sqrt(fan_in)].

    Weights are kept in PyTorch-native (out_features, in_features) layout;
    biases are (out_features, 1) so they broadcast along the lane/batch axis.
    """
    dims = [input_dim] + [hidden_dim] * num_hidden + [output_dim]
    weights, biases = [], []
    for i in range(len(dims) - 1):
        fan_in, fan_out = dims[i], dims[i + 1]
        key, wk, bk = jax.random.split(key, 3)
        bound = 1.0 / (float(fan_in) ** 0.5)
        w = jax.random.uniform(wk, (fan_out, fan_in), jnp.float32, -bound, bound)
        b = jax.random.uniform(bk, (fan_out, 1), jnp.float32, -bound, bound)
        weights.append(w)
        biases.append(b)
    return weights, biases


def mlp_reference(x, weights, biases):
    h = x
    n_layers = len(weights)
    for i, (w, b) in enumerate(zip(weights, biases)):
        h = jnp.dot(h, w.T, precision=jax.lax.Precision.HIGHEST) + b.T
        if i < n_layers - 1:
            h = jnp.tanh(h)
    return h


if __name__ == "__main__":
    # PINN-style MLP: 2 inputs (x, t), hidden 32 x 3, 1 output.
    # batch = 2048 collocation points -> 2 grid steps of 1024 lanes,
    # each processed as 2 x 512-lane sub-tiles inside the kernel.
    input_dim, hidden_dim, num_hidden, output_dim = 2, 32, 3, 1
    batch = 2048

    key = jax.random.PRNGKey(0)
    key, xk = jax.random.split(key)
    x = jax.random.normal(xk, (batch, input_dim), jnp.float32)

    weights, biases = init_mlp_params(key, input_dim, hidden_dim, num_hidden,
                                      output_dim)

    out = mlp_forward(x, weights, biases, tile_n=1024, sub_tile=512)
    out = jax.block_until_ready(out)

    ref = mlp_reference(x, weights, biases)
    assert out.shape == (batch, output_dim)
    assert jnp.allclose(out, ref, atol=1e-5, rtol=1e-5), "mismatch vs reference"

    print("KERNEL_OK")
</pallas_src>

<mosaic_0001>
module attributes {stable_mosaic.version = 11 : i64} {
  func.func @_mlp_kernel(%arg0: i32, %arg1: memref<2x1024xf32, #tpu.memory_space<vmem>>, %arg2: memref<32x2xf32, #tpu.memory_space<vmem>>, %arg3: memref<32x1xf32, #tpu.memory_space<vmem>>, %arg4: memref<32x32xf32, #tpu.memory_space<vmem>>, %arg5: memref<32x1xf32, #tpu.memory_space<vmem>>, %arg6: memref<32x32xf32, #tpu.memory_space<vmem>>, %arg7: memref<32x1xf32, #tpu.memory_space<vmem>>, %arg8: memref<1x32xf32, #tpu.memory_space<vmem>>, %arg9: memref<1x1xf32, #tpu.memory_space<vmem>>, %arg10: memref<1x1024xf32, #tpu.memory_space<vmem>>) attributes {dimension_semantics = [#tpu.dimension_semantics<parallel>], iteration_bounds = array<i64: 2>, scalar_prefetch = 0 : i64, scratch_operands = 0 : i64, tpu.core_type = #tpu.core_type<tc>, window_params = [{transform_indices = @transform_0, window_bounds = array<i64: 2, 1024>}, {pipeline_mode = #tpu.pipeline_mode<synchronous>, transform_indices = @transform_1, window_bounds = array<i64: 32, 2>}, {pipeline_mode = #tpu.pipeline_mode<synchronous>, transform_indices = @transform_2, window_bounds = array<i64: 32, 1>}, {pipeline_mode = #tpu.pipeline_mode<synchronous>, transform_indices = @transform_3, window_bounds = array<i64: 32, 32>}, {pipeline_mode = #tpu.pipeline_mode<synchronous>, transform_indices = @transform_4, window_bounds = array<i64: 32, 1>}, {pipeline_mode = #tpu.pipeline_mode<synchronous>, transform_indices = @transform_5, window_bounds = array<i64: 32, 32>}, {pipeline_mode = #tpu.pipeline_mode<synchronous>, transform_indices = @transform_6, window_bounds = array<i64: 32, 1>}, {pipeline_mode = #tpu.pipeline_mode<synchronous>, transform_indices = @transform_7, window_bounds = array<i64: 1, 32>}, {pipeline_mode = #tpu.pipeline_mode<synchronous>, transform_indices = @transform_8, window_bounds = array<i64: 1, 1>}, {transform_indices = @transform_9, window_bounds = array<i64: 1, 1024>}]} {
    %c0_i32 = arith.constant 0 : i32
    %c512_i32 = arith.constant 512 : i32
    %0 = arith.muli %c0_i32, %c512_i32 : i32
    %1 = tpu.assume_multiple %0, 512 : i32
    %c0 = arith.constant 0 : index
    %2 = arith.index_cast %1 : i32 to index
    %3 = vector.load %arg1[%c0, %2] : memref<2x1024xf32, #tpu.memory_space<vmem>>, vector<2x512xf32>
    %c0_0 = arith.constant 0 : index
    %c0_1 = arith.constant 0 : index
    %4 = vector.load %arg2[%c0_0, %c0_1] : memref<32x2xf32, #tpu.memory_space<vmem>>, vector<32x2xf32>
    %c0_2 = arith.constant 0 : index
    %c0_3 = arith.constant 0 : index
    %5 = vector.load %arg3[%c0_2, %c0_3] : memref<32x1xf32, #tpu.memory_space<vmem>>, vector<32x1xf32>
    %6 = vector.shape_cast %5 : vector<32x1xf32> to vector<32x1xf32>
    %7 = vector.broadcast %6 : vector<32x1xf32> to vector<32x512xf32>
    %8 = vector.extract_strided_slice %4 {offsets = [0, 0], sizes = [32, 1], strides = [1, 1]} : vector<32x2xf32> to vector<32x1xf32>
    %9 = vector.extract_strided_slice %3 {offsets = [0, 0], sizes = [1, 512], strides = [1, 1]} : vector<2x512xf32> to vector<1x512xf32>
    %10 = vector.broadcast %8 : vector<32x1xf32> to vector<32x512xf32>
    %11 = vector.broadcast %9 : vector<1x512xf32> to vector<32x512xf32>
    %12 = arith.mulf %10, %11 : vector<32x512xf32>
    %13 = arith.addf %7, %12 : vector<32x512xf32>
    %14 = vector.extract_strided_slice %4 {offsets = [0, 1], sizes = [32, 1], strides = [1, 1]} : vector<32x2xf32> to vector<32x1xf32>
    %15 = vector.extract_strided_slice %3 {offsets = [1, 0], sizes = [1, 512], strides = [1, 1]} : vector<2x512xf32> to vector<1x512xf32>
    %16 = vector.broadcast %14 : vector<32x1xf32> to vector<32x512xf32>
    %17 = vector.broadcast %15 : vector<1x512xf32> to vector<32x512xf32>
    %18 = arith.mulf %16, %17 : vector<32x512xf32>
    %19 = arith.addf %13, %18 : vector<32x512xf32>
    %20 = math.tanh %19 : vector<32x512xf32>
    %c0_4 = arith.constant 0 : index
    %c0_5 = arith.constant 0 : index
    %21 = vector.load %arg4[%c0_4, %c0_5] : memref<32x32xf32, #tpu.memory_space<vmem>>, vector<32x32xf32>
    %c0_6 = arith.constant 0 : index
    %c0_7 = arith.constant 0 : index
    %22 = vector.load %arg5[%c0_6, %c0_7] : memref<32x1xf32, #tpu.memory_space<vmem>>, vector<32x1xf32>
    %cst = arith.constant dense<0.000000e+00> : vector<32x512xf32>
    %23 = tpu.matmul %21, %20, %cst {dimension_numbers = #tpu.dot_dimension_numbers<[1], [0], [0], [1], [0, 0, 1, 1], [], []>, precision = #tpu.contract_precision<fp32>} : vector<32x32xf32>, vector<32x512xf32>, vector<32x512xf32> -> vector<32x512xf32>
    %24 = vector.broadcast %22 : vector<32x1xf32> to vector<32x512xf32>
    %25 = arith.addf %23, %24 : vector<32x512xf32>
    %26 = math.tanh %25 : vector<32x512xf32>
    %c0_8 = arith.constant 0 : index
    %c0_9 = arith.constant 0 : index
    %27 = vector.load %arg6[%c0_8, %c0_9] : memref<32x32xf32, #tpu.memory_space<vmem>>, vector<32x32xf32>
    %c0_10 = arith.constant 0 : index
    %c0_11 = arith.constant 0 : index
    %28 = vector.load %arg7[%c0_10, %c0_11] : memref<32x1xf32, #tpu.memory_space<vmem>>, vector<32x1xf32>
    %cst_12 = arith.constant dense<0.000000e+00> : vector<32x512xf32>
    %29 = tpu.matmul %27, %26, %cst_12 {dimension_numbers = #tpu.dot_dimension_numbers<[1], [0], [0], [1], [0, 0, 1, 1], [], []>, precision = #tpu.contract_precision<fp32>} : vector<32x32xf32>, vector<32x512xf32>, vector<32x512xf32> -> vector<32x512xf32>
    %30 = vector.broadcast %28 : vector<32x1xf32> to vector<32x512xf32>
    %31 = arith.addf %29, %30 : vector<32x512xf32>
    %32 = math.tanh %31 : vector<32x512xf32>
    %c0_13 = arith.constant 0 : index
    %c0_14 = arith.constant 0 : index
    %33 = vector.load %arg8[%c0_13, %c0_14] : memref<1x32xf32, #tpu.memory_space<vmem>>, vector<1x32xf32>
    %c0_15 = arith.constant 0 : index
    %c0_16 = arith.constant 0 : index
    %34 = vector.load %arg9[%c0_15, %c0_16] : memref<1x1xf32, #tpu.memory_space<vmem>>, vector<1x1xf32>
    %35 = tpu.transpose %33, [1, 0] : vector<1x32xf32> -> vector<32x1xf32>
    %36 = vector.broadcast %35 : vector<32x1xf32> to vector<32x512xf32>
    %37 = arith.mulf %36, %32 : vector<32x512xf32>
    %cst_17 = arith.constant dense<0.000000e+00> : vector<512xf32>
    %38 = vector.multi_reduction <add>, %37, %cst_17 [0] : vector<32x512xf32> to vector<512xf32>
    %39 = vector.shape_cast %38 : vector<512xf32> to vector<1x512xf32>
    %40 = vector.broadcast %34 : vector<1x1xf32> to vector<1x512xf32>
    %41 = arith.addf %39, %40 : vector<1x512xf32>
    %c0_18 = arith.constant 0 : index
    %42 = arith.index_cast %1 : i32 to index
    %43 = vector.load %arg10[%c0_18, %42] : memref<1x1024xf32, #tpu.memory_space<vmem>>, vector<1x512xf32>
    tpu.vector_store %arg10[%c0_18, %42], %41 {strides = array<i32>} : memref<1x1024xf32, #tpu.memory_space<vmem>>, vector<1x512xf32>,
    %c1_i32 = arith.constant 1 : i32
    %c512_i32_19 = arith.constant 512 : i32
    %44 = arith.muli %c1_i32, %c512_i32_19 : i32
    %45 = tpu.assume_multiple %44, 512 : i32
    %c0_20 = arith.constant 0 : index
    %46 = arith.index_cast %45 : i32 to index
    %47 = vector.load %arg1[%c0_20, %46] : memref<2x1024xf32, #tpu.memory_space<vmem>>, vector<2x512xf32>
    %c0_21 = arith.constant 0 : index
    %c0_22 = arith.constant 0 : index
    %48 = vector.load %arg2[%c0_21, %c0_22] : memref<32x2xf32, #tpu.memory_space<vmem>>, vector<32x2xf32>
    %c0_23 = arith.constant 0 : index
    %c0_24 = arith.constant 0 : index
    %49 = vector.load %arg3[%c0_23, %c0_24] : memref<32x1xf32, #tpu.memory_space<vmem>>, vector<32x1xf32>
    %50 = vector.shape_cast %49 : vector<32x1xf32> to vector<32x1xf32>
    %51 = vector.broadcast %50 : vector<32x1xf32> to vector<32x512xf32>
    %52 = vector.extract_strided_slice %48 {offsets = [0, 0], sizes = [32, 1], strides = [1, 1]} : vector<32x2xf32> to vector<32x1xf32>
    %53 = vector.extract_strided_slice %47 {offsets = [0, 0], sizes = [1, 512], strides = [1, 1]} : vector<2x512xf32> to vector<1x512xf32>
    %54 = vector.broadcast %52 : vector<32x1xf32> to vector<32x512xf32>
    %55 = vector.broadcast %53 : vector<1x512xf32> to vector<32x512xf32>
    %56 = arith.mulf %54, %55 : vector<32x512xf32>
    %57 = arith.addf %51, %56 : vector<32x512xf32>
    %58 = vector.extract_strided_slice %48 {offsets = [0, 1], sizes = [32, 1], strides = [1, 1]} : vector<32x2xf32> to vector<32x1xf32>
    %59 = vector.extract_strided_slice %47 {offsets = [1, 0], sizes = [1, 512], strides = [1, 1]} : vector<2x512xf32> to vector<1x512xf32>
    %60 = vector.broadcast %58 : vector<32x1xf32> to vector<32x512xf32>
    %61 = vector.broadcast %59 : vector<1x512xf32> to vector<32x512xf32>
    %62 = arith.mulf %60, %61 : vector<32x512xf32>
    %63 = arith.addf %57, %62 : vector<32x512xf32>
    %64 = math.tanh %63 : vector<32x512xf32>
    %c0_25 = arith.constant 0 : index
    %c0_26 = arith.constant 0 : index
    %65 = vector.load %arg4[%c0_25, %c0_26] : memref<32x32xf32, #tpu.memory_space<vmem>>, vector<32x32xf32>
    %c0_27 = arith.constant 0 : index
    %c0_28 = arith.constant 0 : index
    %66 = vector.load %arg5[%c0_27, %c0_28] : memref<32x1xf32, #tpu.memory_space<vmem>>, vector<32x1xf32>
    %cst_29 = arith.constant dense<0.000000e+00> : vector<32x512xf32>
    %67 = tpu.matmul %65, %64, %cst_29 {dimension_numbers = #tpu.dot_dimension_numbers<[1], [0], [0], [1], [0, 0, 1, 1], [], []>, precision = #tpu.contract_precision<fp32>} : vector<32x32xf32>, vector<32x512xf32>, vector<32x512xf32> -> vector<32x512xf32>
    %68 = vector.broadcast %66 : vector<32x1xf32> to vector<32x512xf32>
    %69 = arith.addf %67, %68 : vector<32x512xf32>
    %70 = math.tanh %69 : vector<32x512xf32>
    %c0_30 = arith.constant 0 : index
    %c0_31 = arith.constant 0 : index
    %71 = vector.load %arg6[%c0_30, %c0_31] : memref<32x32xf32, #tpu.memory_space<vmem>>, vector<32x32xf32>
    %c0_32 = arith.constant 0 : index
    %c0_33 = arith.constant 0 : index
    %72 = vector.load %arg7[%c0_32, %c0_33] : memref<32x1xf32, #tpu.memory_space<vmem>>, vector<32x1xf32>
    %cst_34 = arith.constant dense<0.000000e+00> : vector<32x512xf32>
    %73 = tpu.matmul %71, %70, %cst_34 {dimension_numbers = #tpu.dot_dimension_numbers<[1], [0], [0], [1], [0, 0, 1, 1], [], []>, precision = #tpu.contract_precision<fp32>} : vector<32x32xf32>, vector<32x512xf32>, vector<32x512xf32> -> vector<32x512xf32>
    %74 = vector.broadcast %72 : vector<32x1xf32> to vector<32x512xf32>
    %75 = arith.addf %73, %74 : vector<32x512xf32>
    %76 = math.tanh %75 : vector<32x512xf32>
    %c0_35 = arith.constant 0 : index
    %c0_36 = arith.constant 0 : index
    %77 = vector.load %arg8[%c0_35, %c0_36] : memref<1x32xf32, #tpu.memory_space<vmem>>, vector<1x32xf32>
    %c0_37 = arith.constant 0 : index
    %c0_38 = arith.constant 0 : index
    %78 = vector.load %arg9[%c0_37, %c0_38] : memref<1x1xf32, #tpu.memory_space<vmem>>, vector<1x1xf32>
    %79 = tpu.transpose %77, [1, 0] : vector<1x32xf32> -> vector<32x1xf32>
    %80 = vector.broadcast %79 : vector<32x1xf32> to vector<32x512xf32>
    %81 = arith.mulf %80, %76 : vector<32x512xf32>
    %cst_39 = arith.constant dense<0.000000e+00> : vector<512xf32>
    %82 = vector.multi_reduction <add>, %81, %cst_39 [0] : vector<32x512xf32> to vector<512xf32>
    %83 = vector.shape_cast %82 : vector<512xf32> to vector<1x512xf32>
    %84 = vector.broadcast %78 : vector<1x1xf32> to vector<1x512xf32>
    %85 = arith.addf %83, %84 : vector<1x512xf32>
    %c0_40 = arith.constant 0 : index
    %86 = arith.index_cast %45 : i32 to index
    %87 = vector.load %arg10[%c0_40, %86] : memref<1x1024xf32, #tpu.memory_space<vmem>>, vector<1x512xf32>
    tpu.vector_store %arg10[%c0_40, %86], %85 {strides = array<i32>} : memref<1x1024xf32, #tpu.memory_space<vmem>>, vector<1x512xf32>,
    %c2_i32 = arith.constant 2 : i32
    return
  }
  func.func @transform_0(%arg0: i32) -> (i32, i32) {
    %c0_i32 = arith.constant 0 : i32
    %c0_i32_0 = arith.constant 0 : i32
    return %c0_i32, %arg0 : i32, i32
  }
  func.func @transform_1(%arg0: i32) -> (i32, i32) {
    %c0_i32 = arith.constant 0 : i32
    %c0_i32_0 = arith.constant 0 : i32
    %c0_i32_1 = arith.constant 0 : i32
    return %c0_i32, %c0_i32_0 : i32, i32
  }
  func.func @transform_2(%arg0: i32) -> (i32, i32) {
    %c0_i32 = arith.constant 0 : i32
    %c0_i32_0 = arith.constant 0 : i32
    %c0_i32_1 = arith.constant 0 : i32
    return %c0_i32, %c0_i32_0 : i32, i32
  }
  func.func @transform_3(%arg0: i32) -> (i32, i32) {
    %c0_i32 = arith.constant 0 : i32
    %c0_i32_0 = arith.constant 0 : i32
    %c0_i32_1 = arith.constant 0 : i32
    return %c0_i32, %c0_i32_0 : i32, i32
  }
  func.func @transform_4(%arg0: i32) -> (i32, i32) {
    %c0_i32 = arith.constant 0 : i32
    %c0_i32_0 = arith.constant 0 : i32
    %c0_i32_1 = arith.constant 0 : i32
    return %c0_i32, %c0_i32_0 : i32, i32
  }
  func.func @transform_5(%arg0: i32) -> (i32, i32) {
    %c0_i32 = arith.constant 0 : i32
    %c0_i32_0 = arith.constant 0 : i32
    %c0_i32_1 = arith.constant 0 : i32
    return %c0_i32, %c0_i32_0 : i32, i32
  }
  func.func @transform_6(%arg0: i32) -> (i32, i32) {
    %c0_i32 = arith.constant 0 : i32
    %c0_i32_0 = arith.constant 0 : i32
    %c0_i32_1 = arith.constant 0 : i32
    return %c0_i32, %c0_i32_0 : i32, i32
  }
  func.func @transform_7(%arg0: i32) -> (i32, i32) {
    %c0_i32 = arith.constant 0 : i32
    %c0_i32_0 = arith.constant 0 : i32
    %c0_i32_1 = arith.constant 0 : i32
    return %c0_i32, %c0_i32_0 : i32, i32
  }
  func.func @transform_8(%arg0: i32) -> (i32, i32) {
    %c0_i32 = arith.constant 0 : i32
    %c0_i32_0 = arith.constant 0 : i32
    %c0_i32_1 = arith.constant 0 : i32
    return %c0_i32, %c0_i32_0 : i32, i32
  }
  func.func @transform_9(%arg0: i32) -> (i32, i32) {
    %c0_i32 = arith.constant 0 : i32
    %c0_i32_0 = arith.constant 0 : i32
    return %c0_i32, %arg0 : i32, i32
  }
}

</mosaic_0001>

<llo_original>
// kernel: tpu_custom_call.1
$region0: #{tpu_custom_call.1}
  #allocation0 [shape = 'u32[]', space=smem, size = 0x4, offset = 0x4, fixed_abs, tag = 'smem constant byte address 0x4 - core index']
  #allocation1 [shape = 'u32[144,128]{1,0:T(1,128)}', space=vmem, size = 0x12000, scoped, tag = 'internal scratch']
  #allocation2 [shape = 'f32[1,1]{1,0:T(1,128)S(1)}', space=vmem, size = 0x200, scoped, tag = 'scoped memory for tpu_custom_call.1']
  %s0 = inlined_call_operand.vmem [shape: f32[2,2048], index: 0, kind: input, shape index: {}]
  %s1 = inlined_call_operand.vmem [shape: f32[32,2], index: 1, kind: input, shape index: {}]
  %s2 = inlined_call_operand.vmem [shape: f32[32,1], index: 2, kind: input, shape index: {}]
  %s3 = inlined_call_operand.vmem [shape: f32[32,32], index: 3, kind: input, shape index: {}]
  %s4 = inlined_call_operand.vmem [shape: f32[32,1], index: 4, kind: input, shape index: {}]
  %s5 = inlined_call_operand.vmem [shape: f32[32,32], index: 5, kind: input, shape index: {}]
  %s6 = inlined_call_operand.vmem [shape: f32[32,1], index: 6, kind: input, shape index: {}]
  %s7 = inlined_call_operand.vmem [shape: f32[1,32], index: 7, kind: input, shape index: {}]
  %s8 = inlined_call_operand.<no memory space> [shape: f32[1,1], index: 8, kind: input, shape index: {}]
  %s9 = inlined_call_operand.hbm [shape: f32[1,2048], index: 9, kind: output, shape index: {}]
  %s10 = sld [smem:[#allocation0]]
  $region69: #{tpu_custom_call.1} parent=0
    _
  %s12 = ssub.s32 1, %s10
  %s13 = scalar_select 0, %s12, %s10
  %v14 = vstv %s8
  %15 = vst [vmem:[#allocation2] sm:$0x1] %v14
  $region1: #{tpu_custom_call.1} parent=0
    #allocation3 [shape = 'u8[8192]{0}', space=vmem, size = 0x2000, scoped, tag = 'output window, operand 0']
    #allocation4 [shape = 's32[2]{0}', space=sflag, size = 0x8, scoped, tag = 'scoped memory for tpu_custom_call.1']
    %16 = vsyncpa [#allocation4], 0
    %s17 = scalar_lea.sflag [#allocation4], 1
    %18 = vsyncpa %s17, 0
    loop: start=0, step=1, limit=4
    $region2: #{tpu_custom_call.1} parent=1 // loop_pre_header
      _
    $region3: #{tpu_custom_call.1} parent=1 // loop_header
      %s20 = sphi 0, %s24
      %p21 = scmp.ge.s32.totalorder %s20, 4
      %s30 = sphi 0, %s32
      %s33 = sphi 0, %s30
      %s34 = sphi 0, %s33
      %s50 = sphi 0, %s34
      %s54 = sphi 0, %s54
      %s56 = sphi 0, %s54
      %s57 = sphi 0, %s56
      %s71 = sphi 0, %s57
      %s75 = sphi 0, %s75
      %s77 = sphi 0, %s75
      %s78 = sphi 0, %s77
      %s92 = sphi 0, %s78
      %s96 = sphi 0, %s96
      %s98 = sphi 0, %s96
      %s99 = sphi 0, %s98
      %s113 = sphi 0, %s99
      %s117 = sphi 0, %s117
      %s119 = sphi 0, %s117
      %s120 = sphi 0, %s119
      %s134 = sphi 0, %s120
      %s138 = sphi 0, %s138
      %s140 = sphi 0, %s138
      %s141 = sphi 0, %s140
      %s155 = sphi 0, %s141
      %s159 = sphi 0, %s159
      %s161 = sphi 0, %s159
      %s162 = sphi 0, %s161
      %s176 = sphi 0, %s162
      %s180 = sphi 0, %s180
      %s182 = sphi 0, %s180
      %s183 = sphi 0, %s182
      %s197 = sphi 0, %s183
      %s201 = sphi 0, %s201
      %s203 = sphi 0, %s201
      %s204 = sphi 0, %s203
      %s218 = sphi 0, %s204
      %s224 = sphi 0, %s226
      %s227 = sphi 0, %s224
      %s228 = sphi 0, %s227
      %s244 = sphi 0, %s228
    $region4: #{tpu_custom_call.1} parent=1 // loop_header_branch
      %23 = sbr.rel (%p21) target = $region8
    $region5: #{tpu_custom_call.1} parent=1 // loop_body
      %s25 = ssub.s32 %s20, 1
      %s26 = ssub.s32 %s20, 2
      %s27 = sadd.s32 %s20, 1
      %s28 = ssub.s32 %s20, %s27
      %p29 = scmp.eq.s32.totalorder %s28, 0
      %s31 = sadd.s32 %s30, 1
      %s32 = scalar_select %p29, %s30, %s31
      %p35 = pneg %p29
      %p36 = scmp.eq.s32.totalorder %s20, 1
      %p37 = por %p35, %p36
      %p38 = scmp.ne.s32.totalorder %s30, %s33
      %p39 = scmp.eq.s32.totalorder %s20, 0
      %p40 = por %p38, %p39
      %p41 = scmp.ne.s32.totalorder %s30, %s33
      %p42 = scmp.eq.s32.totalorder %s25, 1
      %p43 = por %p41, %p42
      %p44 = scmp.ne.s32.totalorder %s33, %s34
      %p45 = scmp.eq.s32.totalorder %s25, 0
      %p46 = por %p44, %p45
      %p47 = scmp.ne.s32.totalorder %s33, %s34
      %p48 = scmp.eq.s32.totalorder %s26, 1
      %p49 = por %p47, %p48
      %p51 = scmp.ne.s32.totalorder %s34, %s50
      %p52 = scmp.eq.s32.totalorder %s26, 0
      %p53 = por %p51, %p52
      %s55 = sadd.s32 %s54, 1
      %p58 = scmp.eq.s32.totalorder %s20, 1
      %p59 = scmp.ne.s32.totalorder %s54, %s56
      %p60 = scmp.eq.s32.totalorder %s20, 0
      %p61 = por %p59, %p60
      %p62 = scmp.ne.s32.totalorder %s54, %s56
      %p63 = scmp.eq.s32.totalorder %s25, 1
      %p64 = por %p62, %p63
      %p65 = scmp.ne.s32.totalorder %s56, %s57
      %p66 = scmp.eq.s32.totalorder %s25, 0
      %p67 = por %p65, %p66
      %p68 = scmp.ne.s32.totalorder %s56, %s57
      %p69 = scmp.eq.s32.totalorder %s26, 1
      %p70 = por %p68, %p69
      %p72 = scmp.ne.s32.totalorder %s57, %s71
      %p73 = scmp.eq.s32.totalorder %s26, 0
      %p74 = por %p72, %p73
      %s76 = sadd.s32 %s75, 1
      %p79 = scmp.eq.s32.totalorder %s20, 1
      %p80 = scmp.ne.s32.totalorder %s75, %s77
      %p81 = scmp.eq.s32.totalorder %s20, 0
      %p82 = por %p80, %p81
      %p83 = scmp.ne.s32.totalorder %s75, %s77
      %p84 = scmp.eq.s32.totalorder %s25, 1
      %p85 = por %p83, %p84
      %p86 = scmp.ne.s32.totalorder %s77, %s78
      %p87 = scmp.eq.s32.totalorder %s25, 0
      %p88 = por %p86, %p87
      %p89 = scmp.ne.s32.totalorder %s77, %s78
      %p90 = scmp.eq.s32.totalorder %s26, 1
      %p91 = por %p89, %p90
      %p93 = scmp.ne.s32.totalorder %s78, %s92
      %p94 = scmp.eq.s32.totalorder %s26, 0
      %p95 = por %p93, %p94
      %s97 = sadd.s32 %s96, 1
      %p100 = scmp.eq.s32.totalorder %s20, 1
      %p101 = scmp.ne.s32.totalorder %s96, %s98
      %p102 = scmp.eq.s32.totalorder %s20, 0
      %p103 = por %p101, %p102
      %p104 = scmp.ne.s32.totalorder %s96, %s98
      %p105 = scmp.eq.s32.totalorder %s25, 1
      %p106 = por %p104, %p105
      %p107 = scmp.ne.s32.totalorder %s98, %s99
      %p108 = scmp.eq.s32.totalorder %s25, 0
      %p109 = por %p107, %p108
      %p110 = scmp.ne.s32.totalorder %s98, %s99
      %p111 = scmp.eq.s32.totalorder %s26, 1
      %p112 = por %p110, %p111
      %p114 = scmp.ne.s32.totalorder %s99, %s113
      %p115 = scmp.eq.s32.totalorder %s26, 0
      %p116 = por %p114, %p115
      %s118 = sadd.s32 %s117, 1
      %p121 = scmp.eq.s32.totalorder %s20, 1
      %p122 = scmp.ne.s32.totalorder %s117, %s119
      %p123 = scmp.eq.s32.totalorder %s20, 0
      %p124 = por %p122, %p123
      %p125 = scmp.ne.s32.totalorder %s117, %s119
      %p126 = scmp.eq.s32.totalorder %s25, 1
      %p127 = por %p125, %p126
      %p128 = scmp.ne.s32.totalorder %s119, %s120
      %p129 = scmp.eq.s32.totalorder %s25, 0
      %p130 = por %p128, %p129
      %p131 = scmp.ne.s32.totalorder %s119, %s120
      %p132 = scmp.eq.s32.totalorder %s26, 1
      %p133 = por %p131, %p132
      %p135 = scmp.ne.s32.totalorder %s120, %s134
      %p136 = scmp.eq.s32.totalorder %s26, 0
      %p137 = por %p135, %p136
      %s139 = sadd.s32 %s138, 1
      %p142 = scmp.eq.s32.totalorder %s20, 1
      %p143 = scmp.ne.s32.totalorder %s138, %s140
      %p144 = scmp.eq.s32.totalorder %s20, 0
      %p145 = por %p143, %p144
      %p146 = scmp.ne.s32.totalorder %s138, %s140
      %p147 = scmp.eq.s32.totalorder %s25, 1
      %p148 = por %p146, %p147
      %p149 = scmp.ne.s32.totalorder %s140, %s141
      %p150 = scmp.eq.s32.totalorder %s25, 0
      %p151 = por %p149, %p150
      %p152 = scmp.ne.s32.totalorder %s140, %s141
      %p153 = scmp.eq.s32.totalorder %s26, 1
      %p154 = por %p152, %p153
      %p156 = scmp.ne.s32.totalorder %s141, %s155
      %p157 = scmp.eq.s32.totalorder %s26, 0
      %p158 = por %p156, %p157
      %s160 = sadd.s32 %s159, 1
      %p163 = scmp.eq.s32.totalorder %s20, 1
      %p164 = scmp.ne.s32.totalorder %s159, %s161
      %p165 = scmp.eq.s32.totalorder %s20, 0
      %p166 = por %p164, %p165
      %p167 = scmp.ne.s32.totalorder %s159, %s161
      %p168 = scmp.eq.s32.totalorder %s25, 1
      %p169 = por %p167, %p168
      %p170 = scmp.ne.s32.totalorder %s161, %s162
      %p171 = scmp.eq.s32.totalorder %s25, 0
      %p172 = por %p170, %p171
      %p173 = scmp.ne.s32.totalorder %s161, %s162
      %p174 = scmp.eq.s32.totalorder %s26, 1
      %p175 = por %p173, %p174
      %p177 = scmp.ne.s32.totalorder %s162, %s176
      %p178 = scmp.eq.s32.totalorder %s26, 0
      %p179 = por %p177, %p178
      %s181 = sadd.s32 %s180, 1
      %p184 = scmp.eq.s32.totalorder %s20, 1
      %p185 = scmp.ne.s32.totalorder %s180, %s182
      %p186 = scmp.eq.s32.totalorder %s20, 0
      %p187 = por %p185, %p186
      %p188 = scmp.ne.s32.totalorder %s180, %s182
      %p189 = scmp.eq.s32.totalorder %s25, 1
      %p190 = por %p188, %p189
      %p191 = scmp.ne.s32.totalorder %s182, %s183
      %p192 = scmp.eq.s32.totalorder %s25, 0
      %p193 = por %p191, %p192
      %p194 = scmp.ne.s32.totalorder %s182, %s183
      %p195 = scmp.eq.s32.totalorder %s26, 1
      %p196 = por %p194, %p195
      %p198 = scmp.ne.s32.totalorder %s183, %s197
      %p199 = scmp.eq.s32.totalorder %s26, 0
      %p200 = por %p198, %p199
      %s202 = sadd.s32 %s201, 1
      %p205 = scmp.eq.s32.totalorder %s20, 1
      %p206 = scmp.ne.s32.totalorder %s201, %s203
      %p207 = scmp.eq.s32.totalorder %s20, 0
      %p208 = por %p206, %p207
      %p209 = scmp.ne.s32.totalorder %s201, %s203
      %p210 = scmp.eq.s32.totalorder %s25, 1
      %p211 = por %p209, %p210
      %p212 = scmp.ne.s32.totalorder %s203, %s204
      %p213 = scmp.eq.s32.totalorder %s25, 0
      %p214 = por %p212, %p213
      %p215 = scmp.ne.s32.totalorder %s203, %s204
      %p216 = scmp.eq.s32.totalorder %s26, 1
      %p217 = por %p215, %p216
      %p219 = scmp.ne.s32.totalorder %s204, %s218
      %p220 = scmp.eq.s32.totalorder %s26, 0
      %p221 = por %p219, %p220
      %s222 = ssub.s32 %s20, %s27
      %p223 = scmp.eq.s32.totalorder %s222, 0
      %s225 = sadd.s32 %s224, 1
      %s226 = scalar_select %p223, %s224, %s225
      %p229 = pneg %p223
      %p230 = scmp.eq.s32.totalorder %s20, 1
      %p231 = por %p229, %p230
      %p232 = scmp.ne.s32.totalorder %s224, %s227
      %p233 = scmp.eq.s32.totalorder %s20, 0
      %p234 = por %p232, %p233
      %p235 = scmp.ne.s32.totalorder %s224, %s227
      %p236 = scmp.eq.s32.totalorder %s25, 1
      %p237 = por %p235, %p236
      %p238 = scmp.ne.s32.totalorder %s227, %s228
      %p239 = scmp.eq.s32.totalorder %s25, 0
      %p240 = por %p238, %p239
      %p241 = scmp.ne.s32.totalorder %s227, %s228
      %p242 = scmp.eq.s32.totalorder %s26, 1
      %p243 = por %p241, %p242
      %p245 = scmp.ne.s32.totalorder %s228, %s244
      %p246 = scmp.eq.s32.totalorder %s26, 0
      %p247 = por %p245, %p246
      %p248 = scmp.le.s32.totalorder 1, %s20
      %p249 = scmp.lt.s32.totalorder %s20, 3
      %p250 = pnand %p248, %p249
      %p251 = pneg %p250
      // Predicated region
      $region9: #{tpu_custom_call.1} parent=5 // pred_check
        _
      $region10: #{tpu_custom_call.1} parent=5 // pred_check_branch
        %253 = sbr.rel (%p250) target = $region12
      $region11: #{tpu_custom_call.1} parent=5 // pred_region
        %s254 = ssub.s32 %s20, 1
        // Predicated region
        $region13: #{tpu_custom_call.1} parent=11 // pred_check
          %p255 = pneg %p67
        $region14: #{tpu_custom_call.1} parent=11 // pred_check_branch
          %257 = sbr.rel (%p255) target = $region16
        $region15: #{tpu_custom_call.1} parent=11 // pred_region
          _
        $region16: #{tpu_custom_call.1} parent=11 // pred_fallthru
          _
        // Predicated region
        $region17: #{tpu_custom_call.1} parent=11 // pred_check
          %p258 = pneg %p88
        $region18: #{tpu_custom_call.1} parent=11 // pred_check_branch
          %260 = sbr.rel (%p258) target = $region20
        $region19: #{tpu_custom_call.1} parent=11 // pred_region
          _
        $region20: #{tpu_custom_call.1} parent=11 // pred_fallthru
          _
        // Predicated region
        $region21: #{tpu_custom_call.1} parent=11 // pred_check
          %p261 = pneg %p109
        $region22: #{tpu_custom_call.1} parent=11 // pred_check_branch
          %263 = sbr.rel (%p261) target = $region24
        $region23: #{tpu_custom_call.1} parent=11 // pred_region
          _
        $region24: #{tpu_custom_call.1} parent=11 // pred_fallthru
          _
        // Predicated region
        $region25: #{tpu_custom_call.1} parent=11 // pred_check
          %p264 = pneg %p130
        $region26: #{tpu_custom_call.1} parent=11 // pred_check_branch
          %266 = sbr.rel (%p264) target = $region28
        $region27: #{tpu_custom_call.1} parent=11 // pred_region
          _
        $region28: #{tpu_custom_call.1} parent=11 // pred_fallthru
          _
        // Predicated region
        $region29: #{tpu_custom_call.1} parent=11 // pred_check
          %p267 = pneg %p151
        $region30: #{tpu_custom_call.1} parent=11 // pred_check_branch
          %269 = sbr.rel (%p267) target = $region32
        $region31: #{tpu_custom_call.1} parent=11 // pred_region
          _
        $region32: #{tpu_custom_call.1} parent=11 // pred_fallthru
          _
        // Predicated region
        $region33: #{tpu_custom_call.1} parent=11 // pred_check
          %p270 = pneg %p172
        $region34: #{tpu_custom_call.1} parent=11 // pred_check_branch
          %272 = sbr.rel (%p270) target = $region36
        $region35: #{tpu_custom_call.1} parent=11 // pred_region
          _
        $region36: #{tpu_custom_call.1} parent=11 // pred_fallthru
          _
        // Predicated region
        $region37: #{tpu_custom_call.1} parent=11 // pred_check
          %p273 = pneg %p193
        $region38: #{tpu_custom_call.1} parent=11 // pred_check_branch
          %275 = sbr.rel (%p273) target = $region40
        $region39: #{tpu_custom_call.1} parent=11 // pred_region
          _
        $region40: #{tpu_custom_call.1} parent=11 // pred_fallthru
          _
        // Predicated region
        $region41: #{tpu_custom_call.1} parent=11 // pred_check
          %p276 = pneg %p214
        $region42: #{tpu_custom_call.1} parent=11 // pred_check_branch
          %278 = sbr.rel (%p276) target = $region44
        $region43: #{tpu_custom_call.1} parent=11 // pred_region
          _
        $region44: #{tpu_custom_call.1} parent=11 // pred_fallthru
          _
      $region12: #{tpu_custom_call.1} parent=5 // pred_fallthru
        _
      %p279 = scmp.lt.s32.totalorder %s20, 2
      // Predicated region
      $region45: #{tpu_custom_call.1} parent=5 // pred_check
        %p280 = pneg %p279
      $region46: #{tpu_custom_call.1} parent=5 // pred_check_branch
        %282 = sbr.rel (%p280) target = $region48
      $region47: #{tpu_custom_call.1} parent=5 // pred_region
        // Predicated region
        $region49: #{tpu_custom_call.1} parent=47 // pred_check
          %p283 = pneg %p40
        $region50: #{tpu_custom_call.1} parent=47 // pred_check_branch
          %285 = sbr.rel (%p283) target = $region52
        $region51: #{tpu_custom_call.1} parent=47 // pred_region
          %s286 = smul.u32 8, %s20
          %p287 = scmp.lt.s32.totalorder %s286, 15
          %s288 = scalar_select %p287, %s286, 15
          %s289 = smul.addr %s288, 2
          %s290 = scalar_lea.vmem %s0, %s289
          %s291 = smul.u32 8, %s20
        $region52: #{tpu_custom_call.1} parent=47 // pred_fallthru
          _
      $region48: #{tpu_custom_call.1} parent=5 // pred_fallthru
        _
      %p292 = scmp.le.s32.totalorder 1, %s20
      %p293 = scmp.lt.s32.totalorder %s20, 3
      %p294 = pnand %p292, %p293
      %p295 = pneg %p294
      // Predicated region
      $region53: #{tpu_custom_call.1} parent=5 // pred_check
        _
      $region54: #{tpu_custom_call.1} parent=5 // pred_check_branch
        %297 = sbr.rel (%p294) target = $region56
      $region55: #{tpu_custom_call.1} parent=5 // pred_region
        %s298 = ssub.s32 %s20, 1
        %s299 = smul.u32 8, %s25
        %p300 = scmp.lt.s32.totalorder %s299, 15
        %s301 = scalar_select %p300, %s299, 15
        %s302 = smul.addr %s301, 2
        %s303 = scalar_lea.vmem %s0, %s302
        %p304 = pneg %p46
        %p305 = pneg %p43
        %p306 = pneg %p67
        %p307 = pneg %p64
        %p308 = pneg %p88
        %p309 = pneg %p85
        %p310 = pneg %p109
        %p311 = pneg %p106
        %p312 = pneg %p130
        %p313 = pneg %p127
        %p314 = pneg %p151
        %p315 = pneg %p148
        %p316 = pneg %p172
        %p317 = pneg %p169
        %p318 = pneg %p193
        %p319 = pneg %p190
        %p320 = pneg %p214
        %p321 = pneg %p211
        %p322 = pneg %p240
        %p323 = pneg %p237
        %s324 = sand.u32 %s227, 1
        %s325 = scalar_lea.sflag [#allocation4], %s324
        %s326 = sand.u32 %s227, 1
        %s327 = smul.addr %s326, 8
        %s328 = scalar_lea.vmem [#allocation3], %s327
        %s329 = smul.u32 8, %s25
        %p330 = scmp.lt.s32.totalorder %s329, 15
        %s331 = scalar_select %p330, %s329, 15
        %s332 = smul.addr %s331, 2
        %s333 = scalar_lea.vmem %s0, %s332
        %s334 = smul.u32 8, %s25
        %s335 = smul.u32 8, %s25
        %v336 = vld [vmem:[%s333] sm:$0xff]
        %v337 = vld [vmem:[%s1] sm:$0xff]
        %v338 = vld [vmem:[%s1 + $0x8] sm:$0xff]
        %v339 = vld [vmem:[%s1 + $0x10] sm:$0xff]
        %v340 = vld [vmem:[%s1 + $0x18] sm:$0xff]
        %v341 = vld [vmem:[%s2] sm:$0xff]
        %v342 = vld [vmem:[%s2 + $0x8] sm:$0xff]
        %v343 = vld [vmem:[%s2 + $0x10] sm:$0xff]
        %v344 = vld [vmem:[%s2 + $0x18] sm:$0xff]
        %346 = vset.pattern.permute.xlu0 0
        %347 = vperm.xlu0 %346, %v341
        %v348 = vpop.permute.xlu0 %347
        %351 = vset.pattern.permute.xlu0 0
        %352 = vperm.xlu0 %351, %v342
        %v353 = vpop.permute.xlu0 %352
        %356 = vset.pattern.permute.xlu0 0
        %357 = vperm.xlu0 %356, %v343
        %v358 = vpop.permute.xlu0 %357
        %361 = vset.pattern.permute.xlu0 0
        %362 = vperm.xlu0 %361, %v344
        %v363 = vpop.permute.xlu0 %362
        %366 = vset.pattern.permute.xlu0 0
        %367 = vperm.xlu0 %366, %v337
        %v368 = vpop.permute.xlu0 %367
        %371 = vset.pattern.permute.xlu0 0
        %372 = vperm.xlu0 %371, %v338
        %v373 = vpop.permute.xlu0 %372
        %376 = vset.pattern.permute.xlu0 0
        %377 = vperm.xlu0 %376, %v339
        %v378 = vpop.permute.xlu0 %377
        %381 = vset.pattern.permute.xlu0 0
        %382 = vperm.xlu0 %381, %v340
        %v383 = vpop.permute.xlu0 %382
        %v386 = vlaneseq
        %v387 = vshrl.u32 %v386, 7
        %v388 = vsub.s32 0, %v387
        %v389 = vrot.slane %v336, %v388
        %v390 = vlaneseq
        %v391 = vshrl.u32 %v390, 7
        %v392 = vsub.s32 2, %v391
        %v393 = vrot.slane %v336, %v392
        %v394 = vlaneseq
        %v395 = vshrl.u32 %v394, 7
        %v396 = vsub.s32 4, %v395
        %v397 = vrot.slane %v336, %v396
        %v398 = vlaneseq
        %v399 = vshrl.u32 %v398, 7
        %v400 = vsub.s32 6, %v399
        %v401 = vrot.slane %v336, %v400
        %v406 = vlaneseq
        %v407 = vshrl.u32 %v406, 7
        %v408 = vsub.s32 0, %v407
        %v409 = vrot.slane %v389, %v408
        %v410 = vlaneseq
        %v411 = vshrl.u32 %v410, 7
        %v412 = vsub.s32 0, %v411
        %v413 = vrot.slane %v393, %v412
        %v414 = vlaneseq
        %v415 = vshrl.u32 %v414, 7
        %v416 = vsub.s32 0, %v415
        %v417 = vrot.slane %v397, %v416
        %v418 = vlaneseq
        %v419 = vshrl.u32 %v418, 7
        %v420 = vsub.s32 0, %v419
        %v421 = vrot.slane %v401, %v420
        %v422 = vmul.f32 %v368, %v409
        %v423 = vmul.f32 %v368, %v413
        %v424 = vmul.f32 %v368, %v417
        %v425 = vmul.f32 %v368, %v421
        %v426 = vmul.f32 %v373, %v409
        %v427 = vmul.f32 %v373, %v413
        %v428 = vmul.f32 %v373, %v417
        %v429 = vmul.f32 %v373, %v421
        %v430 = vmul.f32 %v378, %v409
        %v431 = vmul.f32 %v378, %v413
        %v432 = vmul.f32 %v378, %v417
        %v433 = vmul.f32 %v378, %v421
        %v434 = vmul.f32 %v383, %v409
        %v435 = vmul.f32 %v383, %v413
        %v436 = vmul.f32 %v383, %v417
        %v437 = vmul.f32 %v383, %v421
        %v438 = vadd.f32 %v348, %v422
        %v439 = vadd.f32 %v348, %v423
        %v440 = vadd.f32 %v348, %v424
        %v441 = vadd.f32 %v348, %v425
        %v442 = vadd.f32 %v353, %v426
        %v443 = vadd.f32 %v353, %v427
        %v444 = vadd.f32 %v353, %v428
        %v445 = vadd.f32 %v353, %v429
        %v446 = vadd.f32 %v358, %v430
        %v447 = vadd.f32 %v358, %v431
        %v448 = vadd.f32 %v358, %v432
        %v449 = vadd.f32 %v358, %v433
        %v450 = vadd.f32 %v363, %v434
        %v451 = vadd.f32 %v363, %v435
        %v452 = vadd.f32 %v363, %v436
        %v453 = vadd.f32 %v363, %v437
        %454 = vset.pattern.permute.xlu0 1
        %455 = vperm.xlu0 %454, %v337
        %v456 = vpop.permute.xlu0 %455
        %458 = vset.pattern.permute.xlu0 1
        %459 = vperm.xlu0 %458, %v338
        %v460 = vpop.permute.xlu0 %459
        %462 = vset.pattern.permute.xlu0 1
        %463 = vperm.xlu0 %462, %v339
        %v464 = vpop.permute.xlu0 %463
        %466 = vset.pattern.permute.xlu0 1
        %467 = vperm.xlu0 %466, %v340
        %v468 = vpop.permute.xlu0 %467
        %v470 = vlaneseq
        %v471 = vshrl.u32 %v470, 7
        %v472 = vsub.s32 1, %v471
        %v473 = vrot.slane %v336, %v472
        %v474 = vlaneseq
        %v475 = vshrl.u32 %v474, 7
        %v476 = vsub.s32 3, %v475
        %v477 = vrot.slane %v336, %v476
        %v478 = vlaneseq
        %v479 = vshrl.u32 %v478, 7
        %v480 = vsub.s32 5, %v479
        %v481 = vrot.slane %v336, %v480
        %v482 = vlaneseq
        %v483 = vshrl.u32 %v482, 7
        %v484 = vsub.s32 7, %v483
        %v485 = vrot.slane %v336, %v484
        %v490 = vlaneseq
        %v491 = vshrl.u32 %v490, 7
        %v492 = vsub.s32 1, %v491
        %v493 = vrot.slane %v473, %v492
        %v494 = vlaneseq
        %v495 = vshrl.u32 %v494, 7
        %v496 = vsub.s32 1, %v495
        %v497 = vrot.slane %v477, %v496
        %v498 = vlaneseq
        %v499 = vshrl.u32 %v498, 7
        %v500 = vsub.s32 1, %v499
        %v501 = vrot.slane %v481, %v500
        %v502 = vlaneseq
        %v503 = vshrl.u32 %v502, 7
        %v504 = vsub.s32 1, %v503
        %v505 = vrot.slane %v485, %v504
        %v506 = vmul.f32 %v456, %v493
        %v507 = vmul.f32 %v456, %v497
        %v508 = vmul.f32 %v456, %v501
        %v509 = vmul.f32 %v456, %v505
        %v510 = vmul.f32 %v460, %v493
        %v511 = vmul.f32 %v460, %v497
        %v512 = vmul.f32 %v460, %v501
        %v513 = vmul.f32 %v460, %v505
        %v514 = vmul.f32 %v464, %v493
        %v515 = vmul.f32 %v464, %v497
        %v516 = vmul.f32 %v464, %v501
        %v517 = vmul.f32 %v464, %v505
        %v518 = vmul.f32 %v468, %v493
        %v519 = vmul.f32 %v468, %v497
        %v520 = vmul.f32 %v468, %v501
        %v521 = vmul.f32 %v468, %v505
        %v522 = vadd.f32 %v438, %v506
        %v523 = vadd.f32 %v439, %v507
        %v524 = vadd.f32 %v440, %v508
        %v525 = vadd.f32 %v441, %v509
        %v526 = vadd.f32 %v442, %v510
        %v527 = vadd.f32 %v443, %v511
        %v528 = vadd.f32 %v444, %v512
        %v529 = vadd.f32 %v445, %v513
        %v530 = vadd.f32 %v446, %v514
        %v531 = vadd.f32 %v447, %v515
        %v532 = vadd.f32 %v448, %v516
        %v533 = vadd.f32 %v449, %v517
        %v534 = vadd.f32 %v450, %v518
        %v535 = vadd.f32 %v451, %v519
        %v536 = vadd.f32 %v452, %v520
        %v537 = vadd.f32 %v453, %v521
        %v538 = vtanh.pop %v522
        %v539 = vtanh.pop %v523
        %v540 = vtanh.pop %v524
        %v541 = vtanh.pop %v525
        %v542 = vtanh.pop %v526
        %v543 = vtanh.pop %v527
        %v544 = vtanh.pop %v528
        %v545 = vtanh.pop %v529
        %v546 = vtanh.pop %v530
        %v547 = vtanh.pop %v531
        %v548 = vtanh.pop %v532
        %v549 = vtanh.pop %v533
        %v550 = vtanh.pop %v534
        %v551 = vtanh.pop %v535
        %v552 = vtanh.pop %v536
        %v553 = vtanh.pop %v537
        %v554 = vld [vmem:[%s3] sm:$0xff]
        %v555 = vld [vmem:[%s3 + $0x8] sm:$0xff]
        %v556 = vld [vmem:[%s3 + $0x10] sm:$0xff]
        %v557 = vld [vmem:[%s3 + $0x18] sm:$0xff]
        %v558 = vld [vmem:[%s4] sm:$0xff]
        %v559 = vld [vmem:[%s4 + $0x8] sm:$0xff]
        %v560 = vld [vmem:[%s4 + $0x10] sm:$0xff]
        %v561 = vld [vmem:[%s4 + $0x18] sm:$0xff]
        %563 = vset.pattern.permute.xlu0 0
        %564 = vperm.xlu0 %563, %v558
        %v565 = vpop.permute.xlu0 %564
        %568 = vset.pattern.permute.xlu0 0
        %569 = vperm.xlu0 %568, %v559
        %v570 = vpop.permute.xlu0 %569
        %573 = vset.pattern.permute.xlu0 0
        %574 = vperm.xlu0 %573, %v560
        %v575 = vpop.permute.xlu0 %574
        %578 = vset.pattern.permute.xlu0 0
        %579 = vperm.xlu0 %578, %v561
        %v580 = vpop.permute.xlu0 %579
        %vm582 = vcmask 261120
        %v584 = vsel %vm582, %v554, 0
        %v587 = vsel %vm582, %v555, 0
        %v590 = vsel %vm582, %v556, 0
        %v593 = vsel %vm582, %v557, 0
        %v595 = vand.u32 %v539, 4294901760
        %596 = vmatprep.subr.mxu0 %v595
        %v597 = vand.u32 %v538, 4294901760
        %598 = vmatpush1.msra.mxu0 %v597
        %v599 = vand.u32 %v543, 4294901760
        %600 = vmatprep.subr.mxu0 %v599
        %v601 = vand.u32 %v542, 4294901760
        %602 = vmatpush1.msra.mxu0 %v601
        %v603 = vand.u32 %v547, 4294901760
        %604 = vmatprep.subr.mxu0 %v603
        %v605 = vand.u32 %v546, 4294901760
        %606 = vmatpush1.msra.mxu0 %v605
        %v607 = vand.u32 %v551, 4294901760
        %608 = vmatprep.subr.mxu0 %v607
        %v609 = vand.u32 %v550, 4294901760
        %610 = vmatpush1.msra.mxu0 %v609
        %611 = vmatprep.subr.mxu0 0.0
        %612 = vmatpush1.msra.mxu0 0.0
        %613 = vmatprep.subr.mxu0 0.0
        %614 = vmatpush1.msra.mxu0 0.0
        %615 = vmatprep.subr.mxu0 0.0
        %616 = vmatpush1.msra.mxu0 0.0
        %617 = vmatprep.subr.mxu0 0.0
        %618 = vmatpush1.msra.mxu0 0.0
        %619 = vmatprep.subr.mxu0 0.0
        %620 = vmatpush1.msra.mxu0 0.0
        %621 = vmatprep.subr.mxu0 0.0
        %622 = vmatpush1.msra.mxu0 0.0
        %623 = vmatprep.subr.mxu0 0.0
        %624 = vmatpush1.msra.mxu0 0.0
        %625 = vmatprep.subr.mxu0 0.0
        %626 = vmatpush1.msra.mxu0 0.0
        %627 = vmatprep.subr.mxu0 0.0
        %628 = vmatpush1.msra.mxu0 0.0
        %629 = vmatprep.subr.mxu0 0.0
        %630 = vmatpush1.msra.mxu0 0.0
        %631 = vmatprep.subr.mxu0 0.0
        %632 = vmatpush1.msra.mxu0 0.0
        %633 = vmatprep.subr.mxu0 0.0
        %634 = vmatpush1.msra.mxu0 0.0
        %635 = vmatprep.subr.mxu0 0.0
        %636 = vmatpush1.msra.mxu0 0.0
        %637 = vmatprep.subr.mxu0 0.0
        %638 = vmatpush1.msra.mxu0 0.0
        %639 = vmatprep.subr.mxu0 0.0
        %640 = vmatpush1.msra.mxu0 0.0
        %641 = vmatprep.subr.mxu0 0.0
        %642 = vmatpush1.msra.mxu0 0.0
        %643 = vmatprep.subr.mxu0 0.0
        %644 = vmatpush1.msra.mxu0 0.0
        %645 = vmatprep.subr.mxu0 0.0
        %646 = vmatpush1.msra.mxu0 0.0
        %647 = vmatprep.subr.mxu0 0.0
        %648 = vmatpush1.msra.mxu0 0.0
        %649 = vmatprep.subr.mxu0 0.0
        %650 = vmatpush1.msra.mxu0 0.0
        %651 = vmatprep.subr.mxu0 0.0
        %652 = vmatpush1.msra.mxu0 0.0
        %653 = vmatprep.subr.mxu0 0.0
        %654 = vmatpush1.msra.mxu0 0.0
        %655 = vmatprep.subr.mxu0 0.0
        %656 = vmatpush1.msra.mxu0 0.0
        %657 = vmatprep.subr.mxu0 0.0
        %658 = vmatpush1.msra.mxu0 0.0
        %659 = vmatprep.subr.mxu0 0.0
        %660 = vmatpush1.msra.mxu0 0.0
        %661 = vmatprep.subr.mxu0 0.0
        %662 = vmatpush1.msra.mxu0 0.0
        %663 = vmatprep.subr.mxu0 0.0
        %664 = vmatpush1.msra.mxu0 0.0
        %665 = vmatprep.subr.mxu0 0.0
        %666 = vmatpush1.msra.mxu0 0.0
        %667 = vmatprep.mubr.f32.mxu0 0.0
        %v668 = vand.u32 %v584, 4294901760
        %v669 = vsub.f32 %v584, %v668
        %v670 = vand.u32 %v669, 4294901760
        %v671 = vsub.f32 %v669, %v670
        %v672 = vand.u32 %v671, 4294901760
        %673 = vmatmul.mubr.f32.gmra.mrb[0].mxu0 %v672
        %v674 = vpop.f32.mrb[0].mxu0
        %v675 = vadd.f32 %v565, %v674
        %v676 = vpop.f32.mrb[0].mxu0
        %v677 = vadd.f32 %v565, %v676
        %678 = vmatprep.mubr.f32.mxu0 0.0
        %v679 = vand.u32 %v587, 4294901760
        %v680 = vsub.f32 %v587, %v679
        %v681 = vand.u32 %v680, 4294901760
        %v682 = vsub.f32 %v680, %v681
        %v683 = vand.u32 %v682, 4294901760
        %684 = vmatmul.mubr.f32.gmra.mrb[0].mxu0 %v683
        %v685 = vpop.f32.mrb[0].mxu0
        %v686 = vadd.f32 %v570, %v685
        %v687 = vpop.f32.mrb[0].mxu0
        %v688 = vadd.f32 %v570, %v687
        %689 = vmatprep.mubr.f32.mxu0 0.0
        %v690 = vand.u32 %v590, 4294901760
        %v691 = vsub.f32 %v590, %v690
        %v692 = vand.u32 %v691, 4294901760
        %v693 = vsub.f32 %v691, %v692
        %v694 = vand.u32 %v693, 4294901760
        %695 = vmatmul.mubr.f32.gmra.mrb[0].mxu0 %v694
        %v696 = vpop.f32.mrb[0].mxu0
        %v697 = vadd.f32 %v575, %v696
        %v698 = vpop.f32.mrb[0].mxu0
        %v699 = vadd.f32 %v575, %v698
        %700 = vmatprep.mubr.f32.mxu0 0.0
        %v701 = vand.u32 %v593, 4294901760
        %v702 = vsub.f32 %v593, %v701
        %v703 = vand.u32 %v702, 4294901760
        %v704 = vsub.f32 %v702, %v703
        %v705 = vand.u32 %v704, 4294901760
        %706 = vmatmul.mubr.f32.gmra.mrb[0].mxu0 %v705
        %v707 = vpop.f32.mrb[0].mxu0
        %v708 = vadd.f32 %v580, %v707
        %v709 = vpop.f32.mrb[0].mxu0
        %v710 = vadd.f32 %v580, %v709
        %711 = vdwg.mxu0
        %v712 = vand.u32 %v539, 4294901760
        %v713 = vsub.f32 %v539, %v712
        %v714 = vand.u32 %v713, 4294901760
        %v715 = vsub.f32 %v713, %v714
        %v716 = vand.u32 %v715, 4294901760
        %717 = vmatprep.subr.mxu0 %v716
        %v718 = vand.u32 %v538, 4294901760
        %v719 = vsub.f32 %v538, %v718
        %v720 = vand.u32 %v719, 4294901760
        %v721 = vsub.f32 %v719, %v720
        %v722 = vand.u32 %v721, 4294901760
        %723 = vmatpush1.msra.mxu0 %v722
        %v724 = vand.u32 %v543, 4294901760
        %v725 = vsub.f32 %v543, %v724
        %v726 = vand.u32 %v725, 4294901760
        %v727 = vsub.f32 %v725, %v726
        %v728 = vand.u32 %v727, 4294901760
        %729 = vmatprep.subr.mxu0 %v728
        %v730 = vand.u32 %v542, 4294901760
        %v731 = vsub.f32 %v542, %v730
        %v732 = vand.u32 %v731, 4294901760
        %v733 = vsub.f32 %v731, %v732
        %v734 = vand.u32 %v733, 4294901760
        %735 = vmatpush1.msra.mxu0 %v734
        %v736 = vand.u32 %v547, 4294901760
        %v737 = vsub.f32 %v547, %v736
        %v738 = vand.u32 %v737, 4294901760
        %v739 = vsub.f32 %v737, %v738
        %v740 = vand.u32 %v739, 4294901760
        %741 = vmatprep.subr.mxu0 %v740
        %v742 = vand.u32 %v546, 4294901760
        %v743 = vsub.f32 %v546, %v742
        %v744 = vand.u32 %v743, 4294901760
        %v745 = vsub.f32 %v743, %v744
        %v746 = vand.u32 %v745, 4294901760
        %747 = vmatpush1.msra.mxu0 %v746
        %v748 = vand.u32 %v551, 4294901760
        %v749 = vsub.f32 %v551, %v748
        %v750 = vand.u32 %v749, 4294901760
        %v751 = vsub.f32 %v749, %v750
        %v752 = vand.u32 %v751, 4294901760
        %753 = vmatprep.subr.mxu0 %v752
        %v754 = vand.u32 %v550, 4294901760
        %v755 = vsub.f32 %v550, %v754
        %v756 = vand.u32 %v755, 4294901760
        %v757 = vsub.f32 %v755, %v756
        %v758 = vand.u32 %v757, 4294901760
        %759 = vmatpush1.msra.mxu0 %v758
        %760 = vmatprep.subr.mxu0 0.0
        %761 = vmatpush1.msra.mxu0 0.0
        %762 = vmatprep.subr.mxu0 0.0
        %763 = vmatpush1.msra.mxu0 0.0
        %764 = vmatprep.subr.mxu0 0.0
        %765 = vmatpush1.msra.mxu0 0.0
        %766 = vmatprep.subr.mxu0 0.0
        %767 = vmatpush1.msra.mxu0 0.0
        %768 = vmatprep.subr.mxu0 0.0
        %769 = vmatpush1.msra.mxu0 0.0
        %770 = vmatprep.subr.mxu0 0.0
        %771 = vmatpush1.msra.mxu0 0.0
        %772 = vmatprep.subr.mxu0 0.0
        %773 = vmatpush1.msra.mxu0 0.0
        %774 = vmatprep.subr.mxu0 0.0
        %775 = vmatpush1.msra.mxu0 0.0
        %776 = vmatprep.subr.mxu0 0.0
        %777 = vmatpush1.msra.mxu0 0.0
        %778 = vmatprep.subr.mxu0 0.0
        %779 = vmatpush1.msra.mxu0 0.0
        %780 = vmatprep.subr.mxu0 0.0
        %781 = vmatpush1.msra.mxu0 0.0
        %782 = vmatprep.subr.mxu0 0.0
        %783 = vmatpush1.msra.mxu0 0.0
        %784 = vmatprep.subr.mxu0 0.0
        %785 = vmatpush1.msra.mxu0 0.0
        %786 = vmatprep.subr.mxu0 0.0
        %787 = vmatpush1.msra.mxu0 0.0
        %788 = vmatprep.subr.mxu0 0.0
        %789 = vmatpush1.msra.mxu0 0.0
        %790 = vmatprep.subr.mxu0 0.0
        %791 = vmatpush1.msra.mxu0 0.0
        %792 = vmatprep.subr.mxu0 0.0
        %793 = vmatpush1.msra.mxu0 0.0
        %794 = vmatprep.subr.mxu0 0.0
        %795 = vmatpush1.msra.mxu0 0.0
        %796 = vmatprep.subr.mxu0 0.0
        %797 = vmatpush1.msra.mxu0 0.0
        %798 = vmatprep.subr.mxu0 0.0
        %799 = vmatpush1.msra.mxu0 0.0
        %800 = vmatprep.subr.mxu0 0.0
        %801 = vmatpush1.msra.mxu0 0.0
        %802 = vmatprep.subr.mxu0 0.0
        %803 = vmatpush1.msra.mxu0 0.0
        %804 = vmatprep.subr.mxu0 0.0
        %805 = vmatpush1.msra.mxu0 0.0
        %806 = vmatprep.subr.mxu0 0.0
        %807 = vmatpush1.msra.mxu0 0.0
        %808 = vmatprep.subr.mxu0 0.0
        %809 = vmatpush1.msra.mxu0 0.0
        %810 = vmatprep.subr.mxu0 0.0
        %811 = vmatpush1.msra.mxu0 0.0
        %812 = vmatprep.subr.mxu0 0.0
        %813 = vmatpush1.msra.mxu0 0.0
        %814 = vmatprep.subr.mxu0 0.0
        %815 = vmatpush1.msra.mxu0 0.0
        %816 = vmatprep.mubr.f32.mxu0 0.0
        %v817 = vand.u32 %v584, 4294901760
        %818 = vmatmul.mubr.f32.gmra.mrb[0].mxu0 %v817
        %v819 = vpop.f32.mrb[0].mxu0
        %v820 = vadd.f32 %v675, %v819
        %v821 = vpop.f32.mrb[0].mxu0
        %v822 = vadd.f32 %v677, %v821
        %823 = vmatprep.mubr.f32.mxu0 0.0
        %v824 = vand.u32 %v587, 4294901760
        %825 = vmatmul.mubr.f32.gmra.mrb[0].mxu0 %v824
        %v826 = vpop.f32.mrb[0].mxu0
        %v827 = vadd.f32 %v686, %v826
        %v828 = vpop.f32.mrb[0].mxu0
        %v829 = vadd.f32 %v688, %v828
        %830 = vmatprep.mubr.f32.mxu0 0.0
        %v831 = vand.u32 %v590, 4294901760
        %832 = vmatmul.mubr.f32.gmra.mrb[0].mxu0 %v831
        %v833 = vpop.f32.mrb[0].mxu0
        %v834 = vadd.f32 %v697, %v833
        %v835 = vpop.f32.mrb[0].mxu0
        %v836 = vadd.f32 %v699, %v835
        %837 = vmatprep.mubr.f32.mxu0 0.0
        %v838 = vand.u32 %v593, 4294901760
        %839 = vmatmul.mubr.f32.gmra.mrb[0].mxu0 %v838
        %v840 = vpop.f32.mrb[0].mxu0
        %v841 = vadd.f32 %v708, %v840
        %v842 = vpop.f32.mrb[0].mxu0
        %v843 = vadd.f32 %v710, %v842
        %844 = vdwg.mxu0
        %v845 = vand.u32 %v539, 4294901760
        %v846 = vsub.f32 %v539, %v845
        %847 = vmatprep.subr.mxu0 %v846
        %v848 = vand.u32 %v538, 4294901760
        %v849 = vsub.f32 %v538, %v848
        %850 = vmatpush1.msra.mxu0 %v849
        %v851 = vand.u32 %v543, 4294901760
        %v852 = vsub.f32 %v543, %v851
        %853 = vmatprep.subr.mxu0 %v852
        %v854 = vand.u32 %v542, 4294901760
        %v855 = vsub.f32 %v542, %v854
        %856 = vmatpush1.msra.mxu0 %v855
        %v857 = vand.u32 %v547, 4294901760
        %v858 = vsub.f32 %v547, %v857
        %859 = vmatprep.subr.mxu0 %v858
        %v860 = vand.u32 %v546, 4294901760
        %v861 = vsub.f32 %v546, %v860
        %862 = vmatpush1.msra.mxu0 %v861
        %v863 = vand.u32 %v551, 4294901760
        %v864 = vsub.f32 %v551, %v863
        %865 = vmatprep.subr.mxu0 %v864
        %v866 = vand.u32 %v550, 4294901760
        %v867 = vsub.f32 %v550, %v866
        %868 = vmatpush1.msra.mxu0 %v867
        %869 = vmatprep.subr.mxu0 0.0
        %870 = vmatpush1.msra.mxu0 0.0
        %871 = vmatprep.subr.mxu0 0.0
        %872 = vmatpush1.msra.mxu0 0.0
        %873 = vmatprep.subr.mxu0 0.0
        %874 = vmatpush1.msra.mxu0 0.0
        %875 = vmatprep.subr.mxu0 0.0
        %876 = vmatpush1.msra.mxu0 0.0
        %877 = vmatprep.subr.mxu0 0.0
        %878 = vmatpush1.msra.mxu0 0.0
        %879 = vmatprep.subr.mxu0 0.0
        %880 = vmatpush1.msra.mxu0 0.0
        %881 = vmatprep.subr.mxu0 0.0
        %882 = vmatpush1.msra.mxu0 0.0
        %883 = vmatprep.subr.mxu0 0.0
        %884 = vmatpush1.msra.mxu0 0.0
        %885 = vmatprep.subr.mxu0 0.0
        %886 = vmatpush1.msra.mxu0 0.0
        %887 = vmatprep.subr.mxu0 0.0
        %888 = vmatpush1.msra.mxu0 0.0
        %889 = vmatprep.subr.mxu0 0.0
        %890 = vmatpush1.msra.mxu0 0.0
        %891 = vmatprep.subr.mxu0 0.0
        %892 = vmatpush1.msra.mxu0 0.0
        %893 = vmatprep.subr.mxu0 0.0
        %894 = vmatpush1.msra.mxu0 0.0
        %895 = vmatprep.subr.mxu0 0.0
        %896 = vmatpush1.msra.mxu0 0.0
        %897 = vmatprep.subr.mxu0 0.0
        %898 = vmatpush1.msra.mxu0 0.0
        %899 = vmatprep.subr.mxu0 0.0
        %900 = vmatpush1.msra.mxu0 0.0
        %901 = vmatprep.subr.mxu0 0.0
        %902 = vmatpush1.msra.mxu0 0.0
        %903 = vmatprep.subr.mxu0 0.0
        %904 = vmatpush1.msra.mxu0 0.0
        %905 = vmatprep.subr.mxu0 0.0
        %906 = vmatpush1.msra.mxu0 0.0
        %907 = vmatprep.subr.mxu0 0.0
        %908 = vmatpush1.msra.mxu0 0.0
        %909 = vmatprep.subr.mxu0 0.0
        %910 = vmatpush1.msra.mxu0 0.0
        %911 = vmatprep.subr.mxu0 0.0
        %912 = vmatpush1.msra.mxu0 0.0
        %913 = vmatprep.subr.mxu0 0.0
        %914 = vmatpush1.msra.mxu0 0.0
        %915 = vmatprep.subr.mxu0 0.0
        %916 = vmatpush1.msra.mxu0 0.0
        %917 = vmatprep.subr.mxu0 0.0
        %918 = vmatpush1.msra.mxu0 0.0
        %919 = vmatprep.subr.mxu0 0.0
        %920 = vmatpush1.msra.mxu0 0.0
        %921 = vmatprep.subr.mxu0 0.0
        %922 = vmatpush1.msra.mxu0 0.0
        %923 = vmatprep.subr.mxu0 0.0
        %924 = vmatpush1.msra.mxu0 0.0
        %925 = vmatprep.mubr.f32.mxu0 0.0
        %v926 = vand.u32 %v584, 4294901760
        %v927 = vsub.f32 %v584, %v926
        %928 = vmatmul.mubr.f32.gmra.mrb[0].mxu0 %v927
        %v929 = vpop.f32.mrb[0].mxu0
        %v930 = vadd.f32 %v820, %v929
        %v931 = vpop.f32.mrb[0].mxu0
        %v932 = vadd.f32 %v822, %v931
        %933 = vmatprep.mubr.f32.mxu0 0.0
        %v934 = vand.u32 %v587, 4294901760
        %v935 = vsub.f32 %v587, %v934
        %936 = vmatmul.mubr.f32.gmra.mrb[0].mxu0 %v935
        %v937 = vpop.f32.mrb[0].mxu0
        %v938 = vadd.f32 %v827, %v937
        %v939 = vpop.f32.mrb[0].mxu0
        %v940 = vadd.f32 %v829, %v939
        %941 = vmatprep.mubr.f32.mxu0 0.0
        %v942 = vand.u32 %v590, 4294901760
        %v943 = vsub.f32 %v590, %v942
        %944 = vmatmul.mubr.f32.gmra.mrb[0].mxu0 %v943
        %v945 = vpop.f32.mrb[0].mxu0
        %v946 = vadd.f32 %v834, %v945
        %v947 = vpop.f32.mrb[0].mxu0
        %v948 = vadd.f32 %v836, %v947
        %949 = vmatprep.mubr.f32.mxu0 0.0
        %v950 = vand.u32 %v593, 4294901760
        %v951 = vsub.f32 %v593, %v950
        %952 = vmatmul.mubr.f32.gmra.mrb[0].mxu0 %v951
        %v953 = vpop.f32.mrb[0].mxu0
        %v954 = vadd.f32 %v841, %v953
        %v955 = vpop.f32.mrb[0].mxu0
        %v956 = vadd.f32 %v843, %v955
        %957 = vdwg.mxu0
        %v958 = vand.u32 %v539, 4294901760
        %959 = vmatprep.subr.mxu0 %v958
        %v960 = vand.u32 %v538, 4294901760
        %961 = vmatpush1.msra.mxu0 %v960
        %v962 = vand.u32 %v543, 4294901760
        %963 = vmatprep.subr.mxu0 %v962
        %v964 = vand.u32 %v542, 4294901760
        %965 = vmatpush1.msra.mxu0 %v964
        %v966 = vand.u32 %v547, 4294901760
        %967 = vmatprep.subr.mxu0 %v966
        %v968 = vand.u32 %v546, 4294901760
        %969 = vmatpush1.msra.mxu0 %v968
        %v970 = vand.u32 %v551, 4294901760
        %971 = vmatprep.subr.mxu0 %v970
        %v972 = vand.u32 %v550, 4294901760
        %973 = vmatpush1.msra.mxu0 %v972
        %974 = vmatprep.subr.mxu0 0.0
        %975 = vmatpush1.msra.mxu0 0.0
        %976 = vmatprep.subr.mxu0 0.0
        %977 = vmatpush1.msra.mxu0 0.0
        %978 = vmatprep.subr.mxu0 0.0
        %979 = vmatpush1.msra.mxu0 0.0
        %980 = vmatprep.subr.mxu0 0.0
        %981 = vmatpush1.msra.mxu0 0.0
        %982 = vmatprep.subr.mxu0 0.0
        %983 = vmatpush1.msra.mxu0 0.0
        %984 = vmatprep.subr.mxu0 0.0
        %985 = vmatpush1.msra.mxu0 0.0
        %986 = vmatprep.subr.mxu0 0.0
        %987 = vmatpush1.msra.mxu0 0.0
        %988 = vmatprep.subr.mxu0 0.0
        %989 = vmatpush1.msra.mxu0 0.0
        %990 = vmatprep.subr.mxu0 0.0
        %991 = vmatpush1.msra.mxu0 0.0
        %992 = vmatprep.subr.mxu0 0.0
        %993 = vmatpush1.msra.mxu0 0.0
        %994 = vmatprep.subr.mxu0 0.0
        %995 = vmatpush1.msra.mxu0 0.0
        %996 = vmatprep.subr.mxu0 0.0
        %997 = vmatpush1.msra.mxu0 0.0
        %998 = vmatprep.subr.mxu0 0.0
        %999 = vmatpush1.msra.mxu0 0.0
        %1000 = vmatprep.subr.mxu0 0.0
        %1001 = vmatpush1.msra.mxu0 0.0
        %1002 = vmatprep.subr.mxu0 0.0
        %1003 = vmatpush1.msra.mxu0 0.0
        %1004 = vmatprep.subr.mxu0 0.0
        %1005 = vmatpush1.msra.mxu0 0.0
        %1006 = vmatprep.subr.mxu0 0.0
        %1007 = vmatpush1.msra.mxu0 0.0
        %1008 = vmatprep.subr.mxu0 0.0
        %1009 = vmatpush1.msra.mxu0 0.0
        %1010 = vmatprep.subr.mxu0 0.0
        %1011 = vmatpush1.msra.mxu0 0.0
        %1012 = vmatprep.subr.mxu0 0.0
        %1013 = vmatpush1.msra.mxu0 0.0
        %1014 = vmatprep.subr.mxu0 0.0
        %1015 = vmatpush1.msra.mxu0 0.0
        %1016 = vmatprep.subr.mxu0 0.0
        %1017 = vmatpush1.msra.mxu0 0.0
        %1018 = vmatprep.subr.mxu0 0.0
        %1019 = vmatpush1.msra.mxu0 0.0
        %1020 = vmatprep.subr.mxu0 0.0
        %1021 = vmatpush1.msra.mxu0 0.0
        %1022 = vmatprep.subr.mxu0 0.0
        %1023 = vmatpush1.msra.mxu0 0.0
        %1024 = vmatprep.subr.mxu0 0.0
        %1025 = vmatpush1.msra.mxu0 0.0
        %1026 = vmatprep.subr.mxu0 0.0
        %1027 = vmatpush1.msra.mxu0 0.0
        %1028 = vmatprep.subr.mxu0 0.0
        %1029 = vmatpush1.msra.mxu0 0.0
        %1030 = vmatprep.mubr.f32.mxu0 0.0
        %v1031 = vand.u32 %v584, 4294901760
        %v1032 = vsub.f32 %v584, %v1031
        %v1033 = vand.u32 %v1032, 4294901760
        %1034 = vmatmul.mubr.f32.gmra.mrb[0].mxu0 %v1033
        %v1035 = vpop.f32.mrb[0].mxu0
        %v1036 = vadd.f32 %v930, %v1035
        %v1037 = vpop.f32.mrb[0].mxu0
        %v1038 = vadd.f32 %v932, %v1037
        %1039 = vmatprep.mubr.f32.mxu0 0.0
        %v1040 = vand.u32 %v587, 4294901760
        %v1041 = vsub.f32 %v587, %v1040
        %v1042 = vand.u32 %v1041, 4294901760
        %1043 = vmatmul.mubr.f32.gmra.mrb[0].mxu0 %v1042
        %v1044 = vpop.f32.mrb[0].mxu0
        %v1045 = vadd.f32 %v938, %v1044
        %v1046 = vpop.f32.mrb[0].mxu0
        %v1047 = vadd.f32 %v940, %v1046
        %1048 = vmatprep.mubr.f32.mxu0 0.0
        %v1049 = vand.u32 %v590, 4294901760
        %v1050 = vsub.f32 %v590, %v1049
        %v1051 = vand.u32 %v1050, 4294901760
        %1052 = vmatmul.mubr.f32.gmra.mrb[0].mxu0 %v1051
        %v1053 = vpop.f32.mrb[0].mxu0
        %v1054 = vadd.f32 %v946, %v1053
        %v1055 = vpop.f32.mrb[0].mxu0
        %v1056 = vadd.f32 %v948, %v1055
        %1057 = vmatprep.mubr.f32.mxu0 0.0
        %v1058 = vand.u32 %v593, 4294901760
        %v1059 = vsub.f32 %v593, %v1058
        %v1060 = vand.u32 %v1059, 4294901760
        %1061 = vmatmul.mubr.f32.gmra.mrb[0].mxu0 %v1060
        %v1062 = vpop.f32.mrb[0].mxu0
        %v1063 = vadd.f32 %v954, %v1062
        %v1064 = vpop.f32.mrb[0].mxu0
        %v1065 = vadd.f32 %v956, %v1064
        %1066 = vdwg.mxu0
        %v1067 = vand.u32 %v539, 4294901760
        %v1068 = vsub.f32 %v539, %v1067
        %v1069 = vand.u32 %v1068, 4294901760
        %1070 = vmatprep.subr.mxu0 %v1069
        %v1071 = vand.u32 %v538, 4294901760
        %v1072 = vsub.f32 %v538, %v1071
        %v1073 = vand.u32 %v1072, 4294901760
        %1074 = vmatpush1.msra.mxu0 %v1073
        %v1075 = vand.u32 %v543, 4294901760
        %v1076 = vsub.f32 %v543, %v1075
        %v1077 = vand.u32 %v1076, 4294901760
        %1078 = vmatprep.subr.mxu0 %v1077
        %v1079 = vand.u32 %v542, 4294901760
        %v1080 = vsub.f32 %v542, %v1079
        %v1081 = vand.u32 %v1080, 4294901760
        %1082 = vmatpush1.msra.mxu0 %v1081
        %v1083 = vand.u32 %v547, 4294901760
        %v1084 = vsub.f32 %v547, %v1083
        %v1085 = vand.u32 %v1084, 4294901760
        %1086 = vmatprep.subr.mxu0 %v1085
        %v1087 = vand.u32 %v546, 4294901760
        %v1088 = vsub.f32 %v546, %v1087
        %v1089 = vand.u32 %v1088, 4294901760
        %1090 = vmatpush1.msra.mxu0 %v1089
        %v1091 = vand.u32 %v551, 4294901760
        %v1092 = vsub.f32 %v551, %v1091
        %v1093 = vand.u32 %v1092, 4294901760
        %1094 = vmatprep.subr.mxu0 %v1093
        %v1095 = vand.u32 %v550, 4294901760
        %v1096 = vsub.f32 %v550, %v1095
        %v1097 = vand.u32 %v1096, 4294901760
        %1098 = vmatpush1.msra.mxu0 %v1097
        %1099 = vmatprep.subr.mxu0 0.0
        %1100 = vmatpush1.msra.mxu0 0.0
        %1101 = vmatprep.subr.mxu0 0.0
        %1102 = vmatpush1.msra.mxu0 0.0
        %1103 = vmatprep.subr.mxu0 0.0
        %1104 = vmatpush1.msra.mxu0 0.0
        %1105 = vmatprep.subr.mxu0 0.0
        %1106 = vmatpush1.msra.mxu0 0.0
        %1107 = vmatprep.subr.mxu0 0.0
        %1108 = vmatpush1.msra.mxu0 0.0
        %1109 = vmatprep.subr.mxu0 0.0
        %1110 = vmatpush1.msra.mxu0 0.0
        %1111 = vmatprep.subr.mxu0 0.0
        %1112 = vmatpush1.msra.mxu0 0.0
        %1113 = vmatprep.subr.mxu0 0.0
        %1114 = vmatpush1.msra.mxu0 0.0
        %1115 = vmatprep.subr.mxu0 0.0
        %1116 = vmatpush1.msra.mxu0 0.0
        %1117 = vmatprep.subr.mxu0 0.0
        %1118 = vmatpush1.msra.mxu0 0.0
        %1119 = vmatprep.subr.mxu0 0.0
        %1120 = vmatpush1.msra.mxu0 0.0
        %1121 = vmatprep.subr.mxu0 0.0
        %1122 = vmatpush1.msra.mxu0 0.0
        %1123 = vmatprep.subr.mxu0 0.0
        %1124 = vmatpush1.msra.mxu0 0.0
        %1125 = vmatprep.subr.mxu0 0.0
        %1126 = vmatpush1.msra.mxu0 0.0
        %1127 = vmatprep.subr.mxu0 0.0
        %1128 = vmatpush1.msra.mxu0 0.0
        %1129 = vmatprep.subr.mxu0 0.0
        %1130 = vmatpush1.msra.mxu0 0.0
        %1131 = vmatprep.subr.mxu0 0.0
        %1132 = vmatpush1.msra.mxu0 0.0
        %1133 = vmatprep.subr.mxu0 0.0
        %1134 = vmatpush1.msra.mxu0 0.0
        %1135 = vmatprep.subr.mxu0 0.0
        %1136 = vmatpush1.msra.mxu0 0.0
        %1137 = vmatprep.subr.mxu0 0.0
        %1138 = vmatpush1.msra.mxu0 0.0
        %1139 = vmatprep.subr.mxu0 0.0
        %1140 = vmatpush1.msra.mxu0 0.0
        %1141 = vmatprep.subr.mxu0 0.0
        %1142 = vmatpush1.msra.mxu0 0.0
        %1143 = vmatprep.subr.mxu0 0.0
        %1144 = vmatpush1.msra.mxu0 0.0
        %1145 = vmatprep.subr.mxu0 0.0
        %1146 = vmatpush1.msra.mxu0 0.0
        %1147 = vmatprep.subr.mxu0 0.0
        %1148 = vmatpush1.msra.mxu0 0.0
        %1149 = vmatprep.subr.mxu0 0.0
        %1150 = vmatpush1.msra.mxu0 0.0
        %1151 = vmatprep.subr.mxu0 0.0
        %1152 = vmatpush1.msra.mxu0 0.0
        %1153 = vmatprep.subr.mxu0 0.0
        %1154 = vmatpush1.msra.mxu0 0.0
        %1155 = vmatprep.mubr.f32.mxu0 0.0
        %v1156 = vand.u32 %v584, 4294901760
        %1157 = vmatmul.mubr.f32.gmra.mrb[0].mxu0 %v1156
        %v1158 = vpop.f32.mrb[0].mxu0
        %v1159 = vadd.f32 %v1036, %v1158
        %v1160 = vpop.f32.mrb[0].mxu0
        %v1161 = vadd.f32 %v1038, %v1160
        %1162 = vmatprep.mubr.f32.mxu0 0.0
        %v1163 = vand.u32 %v587, 4294901760
        %1164 = vmatmul.mubr.f32.gmra.mrb[0].mxu0 %v1163
        %v1165 = vpop.f32.mrb[0].mxu0
        %v1166 = vadd.f32 %v1045, %v1165
        %v1167 = vpop.f32.mrb[0].mxu0
        %v1168 = vadd.f32 %v1047, %v1167
        %1169 = vmatprep.mubr.f32.mxu0 0.0
        %v1170 = vand.u32 %v590, 4294901760
        %1171 = vmatmul.mubr.f32.gmra.mrb[0].mxu0 %v1170
        %v1172 = vpop.f32.mrb[0].mxu0
        %v1173 = vadd.f32 %v1054, %v1172
        %v1174 = vpop.f32.mrb[0].mxu0
        %v1175 = vadd.f32 %v1056, %v1174
        %1176 = vmatprep.mubr.f32.mxu0 0.0
        %v1177 = vand.u32 %v593, 4294901760
        %1178 = vmatmul.mubr.f32.gmra.mrb[0].mxu0 %v1177
        %v1179 = vpop.f32.mrb[0].mxu0
        %v1180 = vadd.f32 %v1063, %v1179
        %v1181 = vpop.f32.mrb[0].mxu0
        %v1182 = vadd.f32 %v1065, %v1181
        %1183 = vdwg.mxu0
        %v1184 = vand.u32 %v539, 4294901760
        %1185 = vmatprep.subr.mxu0 %v1184
        %v1186 = vand.u32 %v538, 4294901760
        %1187 = vmatpush1.msra.mxu0 %v1186
        %v1188 = vand.u32 %v543, 4294901760
        %1189 = vmatprep.subr.mxu0 %v1188
        %v1190 = vand.u32 %v542, 4294901760
        %1191 = vmatpush1.msra.mxu0 %v1190
        %v1192 = vand.u32 %v547, 4294901760
        %1193 = vmatprep.subr.mxu0 %v1192
        %v1194 = vand.u32 %v546, 4294901760
        %1195 = vmatpush1.msra.mxu0 %v1194
        %v1196 = vand.u32 %v551, 4294901760
        %1197 = vmatprep.subr.mxu0 %v1196
        %v1198 = vand.u32 %v550, 4294901760
        %1199 = vmatpush1.msra.mxu0 %v1198
        %1200 = vmatprep.subr.mxu0 0.0
        %1201 = vmatpush1.msra.mxu0 0.0
        %1202 = vmatprep.subr.mxu0 0.0
        %1203 = vmatpush1.msra.mxu0 0.0
        %1204 = vmatprep.subr.mxu0 0.0
        %1205 = vmatpush1.msra.mxu0 0.0
        %1206 = vmatprep.subr.mxu0 0.0
        %1207 = vmatpush1.msra.mxu0 0.0
        %1208 = vmatprep.subr.mxu0 0.0
        %1209 = vmatpush1.msra.mxu0 0.0
        %1210 = vmatprep.subr.mxu0 0.0
        %1211 = vmatpush1.msra.mxu0 0.0
        %1212 = vmatprep.subr.mxu0 0.0
        %1213 = vmatpush1.msra.mxu0 0.0
        %1214 = vmatprep.subr.mxu0 0.0
        %1215 = vmatpush1.msra.mxu0 0.0
        %1216 = vmatprep.subr.mxu0 0.0
        %1217 = vmatpush1.msra.mxu0 0.0
        %1218 = vmatprep.subr.mxu0 0.0
        %1219 = vmatpush1.msra.mxu0 0.0
        %1220 = vmatprep.subr.mxu0 0.0
        %1221 = vmatpush1.msra.mxu0 0.0
        %1222 = vmatprep.subr.mxu0 0.0
        %1223 = vmatpush1.msra.mxu0 0.0
        %1224 = vmatprep.subr.mxu0 0.0
        %1225 = vmatpush1.msra.mxu0 0.0
        %1226 = vmatprep.subr.mxu0 0.0
        %1227 = vmatpush1.msra.mxu0 0.0
        %1228 = vmatprep.subr.mxu0 0.0
        %1229 = vmatpush1.msra.mxu0 0.0
        %1230 = vmatprep.subr.mxu0 0.0
        %1231 = vmatpush1.msra.mxu0 0.0
        %1232 = vmatprep.subr.mxu0 0.0
        %1233 = vmatpush1.msra.mxu0 0.0
        %1234 = vmatprep.subr.mxu0 0.0
        %1235 = vmatpush1.msra.mxu0 0.0
        %1236 = vmatprep.subr.mxu0 0.0
        %1237 = vmatpush1.msra.mxu0 0.0
        %1238 = vmatprep.subr.mxu0 0.0
        %1239 = vmatpush1.msra.mxu0 0.0
        %1240 = vmatprep.subr.mxu0 0.0
        %1241 = vmatpush1.msra.mxu0 0.0
        %1242 = vmatprep.subr.mxu0 0.0
        %1243 = vmatpush1.msra.mxu0 0.0
        %1244 = vmatprep.subr.mxu0 0.0
        %1245 = vmatpush1.msra.mxu0 0.0
        %1246 = vmatprep.subr.mxu0 0.0
        %1247 = vmatpush1.msra.mxu0 0.0
        %1248 = vmatprep.subr.mxu0 0.0
        %1249 = vmatpush1.msra.mxu0 0.0
        %1250 = vmatprep.subr.mxu0 0.0
        %1251 = vmatpush1.msra.mxu0 0.0
        %1252 = vmatprep.subr.mxu0 0.0
        %1253 = vmatpush1.msra.mxu0 0.0
        %1254 = vmatprep.subr.mxu0 0.0
        %1255 = vmatpush1.msra.mxu0 0.0
        %1256 = vmatprep.mubr.f32.mxu0 0.0
        %v1257 = vand.u32 %v584, 4294901760
        %1258 = vmatmul.mubr.f32.gmra.mrb[0].mxu0 %v1257
        %v1259 = vpop.f32.mrb[0].mxu0
        %v1260 = vadd.f32 %v1159, %v1259
        %v1261 = vpop.f32.mrb[0].mxu0
        %v1262 = vadd.f32 %v1161, %v1261
        %1263 = vmatprep.mubr.f32.mxu0 0.0
        %v1264 = vand.u32 %v587, 4294901760
        %1265 = vmatmul.mubr.f32.gmra.mrb[0].mxu0 %v1264
        %v1266 = vpop.f32.mrb[0].mxu0
        %v1267 = vadd.f32 %v1166, %v1266
        %v1268 = vpop.f32.mrb[0].mxu0
        %v1269 = vadd.f32 %v1168, %v1268
        %1270 = vmatprep.mubr.f32.mxu0 0.0
        %v1271 = vand.u32 %v590, 4294901760
        %1272 = vmatmul.mubr.f32.gmra.mrb[0].mxu0 %v1271
        %v1273 = vpop.f32.mrb[0].mxu0
        %v1274 = vadd.f32 %v1173, %v1273
        %v1275 = vpop.f32.mrb[0].mxu0
        %v1276 = vadd.f32 %v1175, %v1275
        %1277 = vmatprep.mubr.f32.mxu0 0.0
        %v1278 = vand.u32 %v593, 4294901760
        %1279 = vmatmul.mubr.f32.gmra.mrb[0].mxu0 %v1278
        %v1280 = vpop.f32.mrb[0].mxu0
        %v1281 = vadd.f32 %v1180, %v1280
        %v1282 = vpop.f32.mrb[0].mxu0
        %v1283 = vadd.f32 %v1182, %v1282
        %1284 = vdwg.mxu0
        %v1285 = vand.u32 %v541, 4294901760
        %1286 = vmatprep.subr.mxu0 %v1285
        %v1287 = vand.u32 %v540, 4294901760
        %1288 = vmatpush1.msra.mxu0 %v1287
        %v1289 = vand.u32 %v545, 4294901760
        %1290 = vmatprep.subr.mxu0 %v1289
        %v1291 = vand.u32 %v544, 4294901760
        %1292 = vmatpush1.msra.mxu0 %v1291
        %v1293 = vand.u32 %v549, 4294901760
        %1294 = vmatprep.subr.mxu0 %v1293
        %v1295 = vand.u32 %v548, 4294901760
        %1296 = vmatpush1.msra.mxu0 %v1295
        %v1297 = vand.u32 %v553, 4294901760
        %1298 = vmatprep.subr.mxu0 %v1297
        %v1299 = vand.u32 %v552, 4294901760
        %1300 = vmatpush1.msra.mxu0 %v1299
        %1301 = vmatprep.subr.mxu0 0.0
        %1302 = vmatpush1.msra.mxu0 0.0
        %1303 = vmatprep.subr.mxu0 0.0
        %1304 = vmatpush1.msra.mxu0 0.0
        %1305 = vmatprep.subr.mxu0 0.0
        %1306 = vmatpush1.msra.mxu0 0.0
        %1307 = vmatprep.subr.mxu0 0.0
        %1308 = vmatpush1.msra.mxu0 0.0
        %1309 = vmatprep.subr.mxu0 0.0
        %1310 = vmatpush1.msra.mxu0 0.0
        %1311 = vmatprep.subr.mxu0 0.0
        %1312 = vmatpush1.msra.mxu0 0.0
        %1313 = vmatprep.subr.mxu0 0.0
        %1314 = vmatpush1.msra.mxu0 0.0
        %1315 = vmatprep.subr.mxu0 0.0
        %1316 = vmatpush1.msra.mxu0 0.0
        %1317 = vmatprep.subr.mxu0 0.0
        %1318 = vmatpush1.msra.mxu0 0.0
        %1319 = vmatprep.subr.mxu0 0.0
        %1320 = vmatpush1.msra.mxu0 0.0
        %1321 = vmatprep.subr.mxu0 0.0
        %1322 = vmatpush1.msra.mxu0 0.0
        %1323 = vmatprep.subr.mxu0 0.0
        %1324 = vmatpush1.msra.mxu0 0.0
        %1325 = vmatprep.subr.mxu0 0.0
        %1326 = vmatpush1.msra.mxu0 0.0
        %1327 = vmatprep.subr.mxu0 0.0
        %1328 = vmatpush1.msra.mxu0 0.0
        %1329 = vmatprep.subr.mxu0 0.0
        %1330 = vmatpush1.msra.mxu0 0.0
        %1331 = vmatprep.subr.mxu0 0.0
        %1332 = vmatpush1.msra.mxu0 0.0
        %1333 = vmatprep.subr.mxu0 0.0
        %1334 = vmatpush1.msra.mxu0 0.0
        %1335 = vmatprep.subr.mxu0 0.0
        %1336 = vmatpush1.msra.mxu0 0.0
        %1337 = vmatprep.subr.mxu0 0.0
        %1338 = vmatpush1.msra.mxu0 0.0
        %1339 = vmatprep.subr.mxu0 0.0
        %1340 = vmatpush1.msra.mxu0 0.0
        %1341 = vmatprep.subr.mxu0 0.0
        %1342 = vmatpush1.msra.mxu0 0.0
        %1343 = vmatprep.subr.mxu0 0.0
        %1344 = vmatpush1.msra.mxu0 0.0
        %1345 = vmatprep.subr.mxu0 0.0
        %1346 = vmatpush1.msra.mxu0 0.0
        %1347 = vmatprep.subr.mxu0 0.0
        %1348 = vmatpush1.msra.mxu0 0.0
        %1349 = vmatprep.subr.mxu0 0.0
        %1350 = vmatpush1.msra.mxu0 0.0
        %1351 = vmatprep.subr.mxu0 0.0
        %1352 = vmatpush1.msra.mxu0 0.0
        %1353 = vmatprep.subr.mxu0 0.0
        %1354 = vmatpush1.msra.mxu0 0.0
        %1355 = vmatprep.subr.mxu0 0.0
        %1356 = vmatpush1.msra.mxu0 0.0
        %1357 = vmatprep.mubr.f32.mxu0 0.0
        %v1358 = vand.u32 %v584, 4294901760
        %v1359 = vsub.f32 %v584, %v1358
        %v1360 = vand.u32 %v1359, 4294901760
        %v1361 = vsub.f32 %v1359, %v1360
        %v1362 = vand.u32 %v1361, 4294901760
        %1363 = vmatmul.mubr.f32.gmra.mrb[0].mxu0 %v1362
        %v1364 = vpop.f32.mrb[0].mxu0
        %v1365 = vadd.f32 %v565, %v1364
        %v1366 = vpop.f32.mrb[0].mxu0
        %v1367 = vadd.f32 %v565, %v1366
        %1368 = vmatprep.mubr.f32.mxu0 0.0
        %v1369 = vand.u32 %v587, 4294901760
        %v1370 = vsub.f32 %v587, %v1369
        %v1371 = vand.u32 %v1370, 4294901760
        %v1372 = vsub.f32 %v1370, %v1371
        %v1373 = vand.u32 %v1372, 4294901760
        %1374 = vmatmul.mubr.f32.gmra.mrb[0].mxu0 %v1373
        %v1375 = vpop.f32.mrb[0].mxu0
        %v1376 = vadd.f32 %v570, %v1375
        %v1377 = vpop.f32.mrb[0].mxu0
        %v1378 = vadd.f32 %v570, %v1377
        %1379 = vmatprep.mubr.f32.mxu0 0.0
        %v1380 = vand.u32 %v590, 4294901760
        %v1381 = vsub.f32 %v590, %v1380
        %v1382 = vand.u32 %v1381, 4294901760
        %v1383 = vsub.f32 %v1381, %v1382
        %v1384 = vand.u32 %v1383, 4294901760
        %1385 = vmatmul.mubr.f32.gmra.mrb[0].mxu0 %v1384
        %v1386 = vpop.f32.mrb[0].mxu0
        %v1387 = vadd.f32 %v575, %v1386
        %v1388 = vpop.f32.mrb[0].mxu0
        %v1389 = vadd.f32 %v575, %v1388
        %1390 = vmatprep.mubr.f32.mxu0 0.0
        %v1391 = vand.u32 %v593, 4294901760
        %v1392 = vsub.f32 %v593, %v1391
        %v1393 = vand.u32 %v1392, 4294901760
        %v1394 = vsub.f32 %v1392, %v1393
        %v1395 = vand.u32 %v1394, 4294901760
        %1396 = vmatmul.mubr.f32.gmra.mrb[0].mxu0 %v1395
        %v1397 = vpop.f32.mrb[0].mxu0
        %v1398 = vadd.f32 %v580, %v1397
        %v1399 = vpop.f32.mrb[0].mxu0
        %v1400 = vadd.f32 %v580, %v1399
        %1401 = vdwg.mxu0
        %v1402 = vand.u32 %v541, 4294901760
        %v1403 = vsub.f32 %v541, %v1402
        %v1404 = vand.u32 %v1403, 4294901760
        %v1405 = vsub.f32 %v1403, %v1404
        %v1406 = vand.u32 %v1405, 4294901760
        %1407 = vmatprep.subr.mxu0 %v1406
        %v1408 = vand.u32 %v540, 4294901760
        %v1409 = vsub.f32 %v540, %v1408
        %v1410 = vand.u32 %v1409, 4294901760
        %v1411 = vsub.f32 %v1409, %v1410
        %v1412 = vand.u32 %v1411, 4294901760
        %1413 = vmatpush1.msra.mxu0 %v1412
        %v1414 = vand.u32 %v545, 4294901760
        %v1415 = vsub.f32 %v545, %v1414
        %v1416 = vand.u32 %v1415, 4294901760
        %v1417 = vsub.f32 %v1415, %v1416
        %v1418 = vand.u32 %v1417, 4294901760
        %1419 = vmatprep.subr.mxu0 %v1418
        %v1420 = vand.u32 %v544, 4294901760
        %v1421 = vsub.f32 %v544, %v1420
        %v1422 = vand.u32 %v1421, 4294901760
        %v1423 = vsub.f32 %v1421, %v1422
        %v1424 = vand.u32 %v1423, 4294901760
        %1425 = vmatpush1.msra.mxu0 %v1424
        %v1426 = vand.u32 %v549, 4294901760
        %v1427 = vsub.f32 %v549, %v1426
        %v1428 = vand.u32 %v1427, 4294901760
        %v1429 = vsub.f32 %v1427, %v1428
        %v1430 = vand.u32 %v1429, 4294901760
        %1431 = vmatprep.subr.mxu0 %v1430
        %v1432 = vand.u32 %v548, 4294901760
        %v1433 = vsub.f32 %v548, %v1432
        %v1434 = vand.u32 %v1433, 4294901760
        %v1435 = vsub.f32 %v1433, %v1434
        %v1436 = vand.u32 %v1435, 4294901760
        %1437 = vmatpush1.msra.mxu0 %v1436
        %v1438 = vand.u32 %v553, 4294901760
        %v1439 = vsub.f32 %v553, %v1438
        %v1440 = vand.u32 %v1439, 4294901760
        %v1441 = vsub.f32 %v1439, %v1440
        %v1442 = vand.u32 %v1441, 4294901760
        %1443 = vmatprep.subr.mxu0 %v1442
        %v1444 = vand.u32 %v552, 4294901760
        %v1445 = vsub.f32 %v552, %v1444
        %v1446 = vand.u32 %v1445, 4294901760
        %v1447 = vsub.f32 %v1445, %v1446
        %v1448 = vand.u32 %v1447, 4294901760
        %1449 = vmatpush1.msra.mxu0 %v1448
        %1450 = vmatprep.subr.mxu0 0.0
        %1451 = vmatpush1.msra.mxu0 0.0
        %1452 = vmatprep.subr.mxu0 0.0
        %1453 = vmatpush1.msra.mxu0 0.0
        %1454 = vmatprep.subr.mxu0 0.0
        %1455 = vmatpush1.msra.mxu0 0.0
        %1456 = vmatprep.subr.mxu0 0.0
        %1457 = vmatpush1.msra.mxu0 0.0
        %1458 = vmatprep.subr.mxu0 0.0
        %1459 = vmatpush1.msra.mxu0 0.0
        %1460 = vmatprep.subr.mxu0 0.0
        %1461 = vmatpush1.msra.mxu0 0.0
        %1462 = vmatprep.subr.mxu0 0.0
        %1463 = vmatpush1.msra.mxu0 0.0
        %1464 = vmatprep.subr.mxu0 0.0
        %1465 = vmatpush1.msra.mxu0 0.0
        %1466 = vmatprep.subr.mxu0 0.0
        %1467 = vmatpush1.msra.mxu0 0.0
        %1468 = vmatprep.subr.mxu0 0.0
        %1469 = vmatpush1.msra.mxu0 0.0
        %1470 = vmatprep.subr.mxu0 0.0
        %1471 = vmatpush1.msra.mxu0 0.0
        %1472 = vmatprep.subr.mxu0 0.0
        %1473 = vmatpush1.msra.mxu0 0.0
        %1474 = vmatprep.subr.mxu0 0.0
        %1475 = vmatpush1.msra.mxu0 0.0
        %1476 = vmatprep.subr.mxu0 0.0
        %1477 = vmatpush1.msra.mxu0 0.0
        %1478 = vmatprep.subr.mxu0 0.0
        %1479 = vmatpush1.msra.mxu0 0.0
        %1480 = vmatprep.subr.mxu0 0.0
        %1481 = vmatpush1.msra.mxu0 0.0
        %1482 = vmatprep.subr.mxu0 0.0
        %1483 = vmatpush1.msra.mxu0 0.0
        %1484 = vmatprep.subr.mxu0 0.0
        %1485 = vmatpush1.msra.mxu0 0.0
        %1486 = vmatprep.subr.mxu0 0.0
        %1487 = vmatpush1.msra.mxu0 0.0
        %1488 = vmatprep.subr.mxu0 0.0
        %1489 = vmatpush1.msra.mxu0 0.0
        %1490 = vmatprep.subr.mxu0 0.0
        %1491 = vmatpush1.msra.mxu0 0.0
        %1492 = vmatprep.subr.mxu0 0.0
        %1493 = vmatpush1.msra.mxu0 0.0
        %1494 = vmatprep.subr.mxu0 0.0
        %1495 = vmatpush1.msra.mxu0 0.0
        %1496 = vmatprep.subr.mxu0 0.0
        %1497 = vmatpush1.msra.mxu0 0.0
        %1498 = vmatprep.subr.mxu0 0.0
        %1499 = vmatpush1.msra.mxu0 0.0
        %1500 = vmatprep.subr.mxu0 0.0
        %1501 = vmatpush1.msra.mxu0 0.0
        %1502 = vmatprep.subr.mxu0 0.0
        %1503 = vmatpush1.msra.mxu0 0.0
        %1504 = vmatprep.subr.mxu0 0.0
        %1505 = vmatpush1.msra.mxu0 0.0
        %1506 = vmatprep.mubr.f32.mxu0 0.0
        %v1507 = vand.u32 %v584, 4294901760
        %1508 = vmatmul.mubr.f32.gmra.mrb[0].mxu0 %v1507
        %v1509 = vpop.f32.mrb[0].mxu0
        %v1510 = vadd.f32 %v1365, %v1509
        %v1511 = vpop.f32.mrb[0].mxu0
        %v1512 = vadd.f32 %v1367, %v1511
        %1513 = vmatprep.mubr.f32.mxu0 0.0
        %v1514 = vand.u32 %v587, 4294901760
        %1515 = vmatmul.mubr.f32.gmra.mrb[0].mxu0 %v1514
        %v1516 = vpop.f32.mrb[0].mxu0
        %v1517 = vadd.f32 %v1376, %v1516
        %v1518 = vpop.f32.mrb[0].mxu0
        %v1519 = vadd.f32 %v1378, %v1518
        %1520 = vmatprep.mubr.f32.mxu0 0.0
        %v1521 = vand.u32 %v590, 4294901760
        %1522 = vmatmul.mubr.f32.gmra.mrb[0].mxu0 %v1521
        %v1523 = vpop.f32.mrb[0].mxu0
        %v1524 = vadd.f32 %v1387, %v1523
        %v1525 = vpop.f32.mrb[0].mxu0
        %v1526 = vadd.f32 %v1389, %v1525
        %1527 = vmatprep.mubr.f32.mxu0 0.0
        %v1528 = vand.u32 %v593, 4294901760
        %1529 = vmatmul.mubr.f32.gmra.mrb[0].mxu0 %v1528
        %v1530 = vpop.f32.mrb[0].mxu0
        %v1531 = vadd.f32 %v1398, %v1530
        %v1532 = vpop.f32.mrb[0].mxu0
        %v1533 = vadd.f32 %v1400, %v1532
        %1534 = vdwg.mxu0
        %v1535 = vand.u32 %v541, 4294901760
        %v1536 = vsub.f32 %v541, %v1535
        %1537 = vmatprep.subr.mxu0 %v1536
        %v1538 = vand.u32 %v540, 4294901760
        %v1539 = vsub.f32 %v540, %v1538
        %1540 = vmatpush1.msra.mxu0 %v1539
        %v1541 = vand.u32 %v545, 4294901760
        %v1542 = vsub.f32 %v545, %v1541
        %1543 = vmatprep.subr.mxu0 %v1542
        %v1544 = vand.u32 %v544, 4294901760
        %v1545 = vsub.f32 %v544, %v1544
        %1546 = vmatpush1.msra.mxu0 %v1545
        %v1547 = vand.u32 %v549, 4294901760
        %v1548 = vsub.f32 %v549, %v1547
        %1549 = vmatprep.subr.mxu0 %v1548
        %v1550 = vand.u32 %v548, 4294901760
        %v1551 = vsub.f32 %v548, %v1550
        %1552 = vmatpush1.msra.mxu0 %v1551
        %v1553 = vand.u32 %v553, 4294901760
        %v1554 = vsub.f32 %v553, %v1553
        %1555 = vmatprep.subr.mxu0 %v1554
        %v1556 = vand.u32 %v552, 4294901760
        %v1557 = vsub.f32 %v552, %v1556
        %1558 = vmatpush1.msra.mxu0 %v1557
        %1559 = vmatprep.subr.mxu0 0.0
        %1560 = vmatpush1.msra.mxu0 0.0
        %1561 = vmatprep.subr.mxu0 0.0
        %1562 = vmatpush1.msra.mxu0 0.0
        %1563 = vmatprep.subr.mxu0 0.0
        %1564 = vmatpush1.msra.mxu0 0.0
        %1565 = vmatprep.subr.mxu0 0.0
        %1566 = vmatpush1.msra.mxu0 0.0
        %1567 = vmatprep.subr.mxu0 0.0
        %1568 = vmatpush1.msra.mxu0 0.0
        %1569 = vmatprep.subr.mxu0 0.0
        %1570 = vmatpush1.msra.mxu0 0.0
        %1571 = vmatprep.subr.mxu0 0.0
        %1572 = vmatpush1.msra.mxu0 0.0
        %1573 = vmatprep.subr.mxu0 0.0
        %1574 = vmatpush1.msra.mxu0 0.0
        %1575 = vmatprep.subr.mxu0 0.0
        %1576 = vmatpush1.msra.mxu0 0.0
        %1577 = vmatprep.subr.mxu0 0.0
        %1578 = vmatpush1.msra.mxu0 0.0
        %1579 = vmatprep.subr.mxu0 0.0
        %1580 = vmatpush1.msra.mxu0 0.0
        %1581 = vmatprep.subr.mxu0 0.0
        %1582 = vmatpush1.msra.mxu0 0.0
        %1583 = vmatprep.subr.mxu0 0.0
        %1584 = vmatpush1.msra.mxu0 0.0
        %1585 = vmatprep.subr.mxu0 0.0
        %1586 = vmatpush1.msra.mxu0 0.0
        %1587 = vmatprep.subr.mxu0 0.0
        %1588 = vmatpush1.msra.mxu0 0.0
        %1589 = vmatprep.subr.mxu0 0.0
        %1590 = vmatpush1.msra.mxu0 0.0
        %1591 = vmatprep.subr.mxu0 0.0
        %1592 = vmatpush1.msra.mxu0 0.0
        %1593 = vmatprep.subr.mxu0 0.0
        %1594 = vmatpush1.msra.mxu0 0.0
        %1595 = vmatprep.subr.mxu0 0.0
        %1596 = vmatpush1.msra.mxu0 0.0
        %1597 = vmatprep.subr.mxu0 0.0
        %1598 = vmatpush1.msra.mxu0 0.0
        %1599 = vmatprep.subr.mxu0 0.0
        %1600 = vmatpush1.msra.mxu0 0.0
        %1601 = vmatprep.subr.mxu0 0.0
        %1602 = vmatpush1.msra.mxu0 0.0
        %1603 = vmatprep.subr.mxu0 0.0
        %1604 = vmatpush1.msra.mxu0 0.0
        %1605 = vmatprep.subr.mxu0 0.0
        %1606 = vmatpush1.msra.mxu0 0.0
        %1607 = vmatprep.subr.mxu0 0.0
        %1608 = vmatpush1.msra.mxu0 0.0
        %1609 = vmatprep.subr.mxu0 0.0
        %1610 = vmatpush1.msra.mxu0 0.0
        %1611 = vmatprep.subr.mxu0 0.0
        %1612 = vmatpush1.msra.mxu0 0.0
        %1613 = vmatprep.subr.mxu0 0.0
        %1614 = vmatpush1.msra.mxu0 0.0
        %1615 = vmatprep.mubr.f32.mxu0 0.0
        %v1616 = vand.u32 %v584, 4294901760
        %v1617 = vsub.f32 %v584, %v1616
        %1618 = vmatmul.mubr.f32.gmra.mrb[0].mxu0 %v1617
        %v1619 = vpop.f32.mrb[0].mxu0
        %v1620 = vadd.f32 %v1510, %v1619
        %v1621 = vpop.f32.mrb[0].mxu0
        %v1622 = vadd.f32 %v1512, %v1621
        %1623 = vmatprep.mubr.f32.mxu0 0.0
        %v1624 = vand.u32 %v587, 4294901760
        %v1625 = vsub.f32 %v587, %v1624
        %1626 = vmatmul.mubr.f32.gmra.mrb[0].mxu0 %v1625
        %v1627 = vpop.f32.mrb[0].mxu0
        %v1628 = vadd.f32 %v1517, %v1627
        %v1629 = vpop.f32.mrb[0].mxu0
        %v1630 = vadd.f32 %v1519, %v1629
        %1631 = vmatprep.mubr.f32.mxu0 0.0
        %v1632 = vand.u32 %v590, 4294901760
        %v1633 = vsub.f32 %v590, %v1632
        %1634 = vmatmul.mubr.f32.gmra.mrb[0].mxu0 %v1633
        %v1635 = vpop.f32.mrb[0].mxu0
        %v1636 = vadd.f32 %v1524, %v1635
        %v1637 = vpop.f32.mrb[0].mxu0
        %v1638 = vadd.f32 %v1526, %v1637
        %1639 = vmatprep.mubr.f32.mxu0 0.0
        %v1640 = vand.u32 %v593, 4294901760
        %v1641 = vsub.f32 %v593, %v1640
        %1642 = vmatmul.mubr.f32.gmra.mrb[0].mxu0 %v1641
        %v1643 = vpop.f32.mrb[0].mxu0
        %v1644 = vadd.f32 %v1531, %v1643
        %v1645 = vpop.f32.mrb[0].mxu0
        %v1646 = vadd.f32 %v1533, %v1645
        %1647 = vdwg.mxu0
        %v1648 = vand.u32 %v541, 4294901760
        %1649 = vmatprep.subr.mxu0 %v1648
        %v1650 = vand.u32 %v540, 4294901760
        %1651 = vmatpush1.msra.mxu0 %v1650
        %v1652 = vand.u32 %v545, 4294901760
        %1653 = vmatprep.subr.mxu0 %v1652
        %v1654 = vand.u32 %v544, 4294901760
        %1655 = vmatpush1.msra.mxu0 %v1654
        %v1656 = vand.u32 %v549, 4294901760
        %1657 = vmatprep.subr.mxu0 %v1656
        %v1658 = vand.u32 %v548, 4294901760
        %1659 = vmatpush1.msra.mxu0 %v1658
        %v1660 = vand.u32 %v553, 4294901760
        %1661 = vmatprep.subr.mxu0 %v1660
        %v1662 = vand.u32 %v552, 4294901760
        %1663 = vmatpush1.msra.mxu0 %v1662
        %1664 = vmatprep.subr.mxu0 0.0
        %1665 = vmatpush1.msra.mxu0 0.0
        %1666 = vmatprep.subr.mxu0 0.0
        %1667 = vmatpush1.msra.mxu0 0.0
        %1668 = vmatprep.subr.mxu0 0.0
        %1669 = vmatpush1.msra.mxu0 0.0
        %1670 = vmatprep.subr.mxu0 0.0
        %1671 = vmatpush1.msra.mxu0 0.0
        %1672 = vmatprep.subr.mxu0 0.0
        %1673 = vmatpush1.msra.mxu0 0.0
        %1674 = vmatprep.subr.mxu0 0.0
        %1675 = vmatpush1.msra.mxu0 0.0
        %1676 = vmatprep.subr.mxu0 0.0
        %1677 = vmatpush1.msra.mxu0 0.0
        %1678 = vmatprep.subr.mxu0 0.0
        %1679 = vmatpush1.msra.mxu0 0.0
        %1680 = vmatprep.subr.mxu0 0.0
        %1681 = vmatpush1.msra.mxu0 0.0
        %1682 = vmatprep.subr.mxu0 0.0
        %1683 = vmatpush1.msra.mxu0 0.0
        %1684 = vmatprep.subr.mxu0 0.0
        %1685 = vmatpush1.msra.mxu0 0.0
        %1686 = vmatprep.subr.mxu0 0.0
        %1687 = vmatpush1.msra.mxu0 0.0
        %1688 = vmatprep.subr.mxu0 0.0
        %1689 = vmatpush1.msra.mxu0 0.0
        %1690 = vmatprep.subr.mxu0 0.0
        %1691 = vmatpush1.msra.mxu0 0.0
        %1692 = vmatprep.subr.mxu0 0.0
        %1693 = vmatpush1.msra.mxu0 0.0
        %1694 = vmatprep.subr.mxu0 0.0
        %1695 = vmatpush1.msra.mxu0 0.0
        %1696 = vmatprep.subr.mxu0 0.0
        %1697 = vmatpush1.msra.mxu0 0.0
        %1698 = vmatprep.subr.mxu0 0.0
        %1699 = vmatpush1.msra.mxu0 0.0
        %1700 = vmatprep.subr.mxu0 0.0
        %1701 = vmatpush1.msra.mxu0 0.0
        %1702 = vmatprep.subr.mxu0 0.0
        %1703 = vmatpush1.msra.mxu0 0.0
        %1704 = vmatprep.subr.mxu0 0.0
        %1705 = vmatpush1.msra.mxu0 0.0
        %1706 = vmatprep.subr.mxu0 0.0
        %1707 = vmatpush1.msra.mxu0 0.0
        %1708 = vmatprep.subr.mxu0 0.0
        %1709 = vmatpush1.msra.mxu0 0.0
        %1710 = vmatprep.subr.mxu0 0.0
        %1711 = vmatpush1.msra.mxu0 0.0
        %1712 = vmatprep.subr.mxu0 0.0
        %1713 = vmatpush1.msra.mxu0 0.0
        %1714 = vmatprep.subr.mxu0 0.0
        %1715 = vmatpush1.msra.mxu0 0.0
        %1716 = vmatprep.subr.mxu0 0.0
        %1717 = vmatpush1.msra.mxu0 0.0
        %1718 = vmatprep.subr.mxu0 0.0
        %1719 = vmatpush1.msra.mxu0 0.0
        %1720 = vmatprep.mubr.f32.mxu0 0.0
        %v1721 = vand.u32 %v584, 4294901760
        %v1722 = vsub.f32 %v584, %v1721
        %v1723 = vand.u32 %v1722, 4294901760
        %1724 = vmatmul.mubr.f32.gmra.mrb[0].mxu0 %v1723
        %v1725 = vpop.f32.mrb[0].mxu0
        %v1726 = vadd.f32 %v1620, %v1725
        %v1727 = vpop.f32.mrb[0].mxu0
        %v1728 = vadd.f32 %v1622, %v1727
        %1729 = vmatprep.mubr.f32.mxu0 0.0
        %v1730 = vand.u32 %v587, 4294901760
        %v1731 = vsub.f32 %v587, %v1730
        %v1732 = vand.u32 %v1731, 4294901760
        %1733 = vmatmul.mubr.f32.gmra.mrb[0].mxu0 %v1732
        %v1734 = vpop.f32.mrb[0].mxu0
        %v1735 = vadd.f32 %v1628, %v1734
        %v1736 = vpop.f32.mrb[0].mxu0
        %v1737 = vadd.f32 %v1630, %v1736
        %1738 = vmatprep.mubr.f32.mxu0 0.0
        %v1739 = vand.u32 %v590, 4294901760
        %v1740 = vsub.f32 %v590, %v1739
        %v1741 = vand.u32 %v1740, 4294901760
        %1742 = vmatmul.mubr.f32.gmra.mrb[0].mxu0 %v1741
        %v1743 = vpop.f32.mrb[0].mxu0
        %v1744 = vadd.f32 %v1636, %v1743
        %v1745 = vpop.f32.mrb[0].mxu0
        %v1746 = vadd.f32 %v1638, %v1745
        %1747 = vmatprep.mubr.f32.mxu0 0.0
        %v1748 = vand.u32 %v593, 4294901760
        %v1749 = vsub.f32 %v593, %v1748
        %v1750 = vand.u32 %v1749, 4294901760
        %1751 = vmatmul.mubr.f32.gmra.mrb[0].mxu0 %v1750
        %v1752 = vpop.f32.mrb[0].mxu0
        %v1753 = vadd.f32 %v1644, %v1752
        %v1754 = vpop.f32.mrb[0].mxu0
        %v1755 = vadd.f32 %v1646, %v1754
        %1756 = vdwg.mxu0
        %v1757 = vand.u32 %v541, 4294901760
        %v1758 = vsub.f32 %v541, %v1757
        %v1759 = vand.u32 %v1758, 4294901760
        %1760 = vmatprep.subr.mxu0 %v1759
        %v1761 = vand.u32 %v540, 4294901760
        %v1762 = vsub.f32 %v540, %v1761
        %v1763 = vand.u32 %v1762, 4294901760
        %1764 = vmatpush1.msra.mxu0 %v1763
        %v1765 = vand.u32 %v545, 4294901760
        %v1766 = vsub.f32 %v545, %v1765
        %v1767 = vand.u32 %v1766, 4294901760
        %1768 = vmatprep.subr.mxu0 %v1767
        %v1769 = vand.u32 %v544, 4294901760
        %v1770 = vsub.f32 %v544, %v1769
        %v1771 = vand.u32 %v1770, 4294901760
        %1772 = vmatpush1.msra.mxu0 %v1771
        %v1773 = vand.u32 %v549, 4294901760
        %v1774 = vsub.f32 %v549, %v1773
        %v1775 = vand.u32 %v1774, 4294901760
        %1776 = vmatprep.subr.mxu0 %v1775
        %v1777 = vand.u32 %v548, 4294901760
        %v1778 = vsub.f32 %v548, %v1777
        %v1779 = vand.u32 %v1778, 4294901760
        %1780 = vmatpush1.msra.mxu0 %v1779
        %v1781 = vand.u32 %v553, 4294901760
        %v1782 = vsub.f32 %v553, %v1781
        %v1783 = vand.u32 %v1782, 4294901760
        %1784 = vmatprep.subr.mxu0 %v1783
        %v1785 = vand.u32 %v552, 4294901760
        %v1786 = vsub.f32 %v552, %v1785
        %v1787 = vand.u32 %v1786, 4294901760
        %1788 = vmatpush1.msra.mxu0 %v1787
        %1789 = vmatprep.subr.mxu0 0.0
        %1790 = vmatpush1.msra.mxu0 0.0
        %1791 = vmatprep.subr.mxu0 0.0
        %1792 = vmatpush1.msra.mxu0 0.0
        %1793 = vmatprep.subr.mxu0 0.0
        %1794 = vmatpush1.msra.mxu0 0.0
        %1795 = vmatprep.subr.mxu0 0.0
        %1796 = vmatpush1.msra.mxu0 0.0
        %1797 = vmatprep.subr.mxu0 0.0
        %1798 = vmatpush1.msra.mxu0 0.0
        %1799 = vmatprep.subr.mxu0 0.0
        %1800 = vmatpush1.msra.mxu0 0.0
        %1801 = vmatprep.subr.mxu0 0.0
        %1802 = vmatpush1.msra.mxu0 0.0
        %1803 = vmatprep.subr.mxu0 0.0
        %1804 = vmatpush1.msra.mxu0 0.0
        %1805 = vmatprep.subr.mxu0 0.0
        %1806 = vmatpush1.msra.mxu0 0.0
        %1807 = vmatprep.subr.mxu0 0.0
        %1808 = vmatpush1.msra.mxu0 0.0
        %1809 = vmatprep.subr.mxu0 0.0
        %1810 = vmatpush1.msra.mxu0 0.0
        %1811 = vmatprep.subr.mxu0 0.0
        %1812 = vmatpush1.msra.mxu0 0.0
        %1813 = vmatprep.subr.mxu0 0.0
        %1814 = vmatpush1.msra.mxu0 0.0
        %1815 = vmatprep.subr.mxu0 0.0
        %1816 = vmatpush1.msra.mxu0 0.0
        %1817 = vmatprep.subr.mxu0 0.0
        %1818 = vmatpush1.msra.mxu0 0.0
        %1819 = vmatprep.subr.mxu0 0.0
        %1820 = vmatpush1.msra.mxu0 0.0
        %1821 = vmatprep.subr.mxu0 0.0
        %1822 = vmatpush1.msra.mxu0 0.0
        %1823 = vmatprep.subr.mxu0 0.0
        %1824 = vmatpush1.msra.mxu0 0.0
        %1825 = vmatprep.subr.mxu0 0.0
        %1826 = vmatpush1.msra.mxu0 0.0
        %1827 = vmatprep.subr.mxu0 0.0
        %1828 = vmatpush1.msra.mxu0 0.0
        %1829 = vmatprep.subr.mxu0 0.0
        %1830 = vmatpush1.msra.mxu0 0.0
        %1831 = vmatprep.subr.mxu0 0.0
        %1832 = vmatpush1.msra.mxu0 0.0
        %1833 = vmatprep.subr.mxu0 0.0
        %1834 = vmatpush1.msra.mxu0 0.0
        %1835 = vmatprep.subr.mxu0 0.0
        %1836 = vmatpush1.msra.mxu0 0.0
        %1837 = vmatprep.subr.mxu0 0.0
        %1838 = vmatpush1.msra.mxu0 0.0
        %1839 = vmatprep.subr.mxu0 0.0
        %1840 = vmatpush1.msra.mxu0 0.0
        %1841 = vmatprep.subr.mxu0 0.0
        %1842 = vmatpush1.msra.mxu0 0.0
        %1843 = vmatprep.subr.mxu0 0.0
        %1844 = vmatpush1.msra.mxu0 0.0
        %1845 = vmatprep.mubr.f32.mxu0 0.0
        %v1846 = vand.u32 %v584, 4294901760
        %1847 = vmatmul.mubr.f32.gmra.mrb[0].mxu0 %v1846
        %v1848 = vpop.f32.mrb[0].mxu0
        %v1849 = vadd.f32 %v1726, %v1848
        %v1850 = vpop.f32.mrb[0].mxu0
        %v1851 = vadd.f32 %v1728, %v1850
        %1852 = vmatprep.mubr.f32.mxu0 0.0
        %v1853 = vand.u32 %v587, 4294901760
        %1854 = vmatmul.mubr.f32.gmra.mrb[0].mxu0 %v1853
        %v1855 = vpop.f32.mrb[0].mxu0
        %v1856 = vadd.f32 %v1735, %v1855
        %v1857 = vpop.f32.mrb[0].mxu0
        %v1858 = vadd.f32 %v1737, %v1857
        %1859 = vmatprep.mubr.f32.mxu0 0.0
        %v1860 = vand.u32 %v590, 4294901760
        %1861 = vmatmul.mubr.f32.gmra.mrb[0].mxu0 %v1860
        %v1862 = vpop.f32.mrb[0].mxu0
        %v1863 = vadd.f32 %v1744, %v1862
        %v1864 = vpop.f32.mrb[0].mxu0
        %v1865 = vadd.f32 %v1746, %v1864
        %1866 = vmatprep.mubr.f32.mxu0 0.0
        %v1867 = vand.u32 %v593, 4294901760
        %1868 = vmatmul.mubr.f32.gmra.mrb[0].mxu0 %v1867
        %v1869 = vpop.f32.mrb[0].mxu0
        %v1870 = vadd.f32 %v1753, %v1869
        %v1871 = vpop.f32.mrb[0].mxu0
        %v1872 = vadd.f32 %v1755, %v1871
        %1873 = vdwg.mxu0
        %v1874 = vand.u32 %v541, 4294901760
        %1875 = vmatprep.subr.mxu0 %v1874
        %v1876 = vand.u32 %v540, 4294901760
        %1877 = vmatpush1.msra.mxu0 %v1876
        %v1878 = vand.u32 %v545, 4294901760
        %1879 = vmatprep.subr.mxu0 %v1878
        %v1880 = vand.u32 %v544, 4294901760
        %1881 = vmatpush1.msra.mxu0 %v1880
        %v1882 = vand.u32 %v549, 4294901760
        %1883 = vmatprep.subr.mxu0 %v1882
        %v1884 = vand.u32 %v548, 4294901760
        %1885 = vmatpush1.msra.mxu0 %v1884
        %v1886 = vand.u32 %v553, 4294901760
        %1887 = vmatprep.subr.mxu0 %v1886
        %v1888 = vand.u32 %v552, 4294901760
        %1889 = vmatpush1.msra.mxu0 %v1888
        %1890 = vmatprep.subr.mxu0 0.0
        %1891 = vmatpush1.msra.mxu0 0.0
        %1892 = vmatprep.subr.mxu0 0.0
        %1893 = vmatpush1.msra.mxu0 0.0
        %1894 = vmatprep.subr.mxu0 0.0
        %1895 = vmatpush1.msra.mxu0 0.0
        %1896 = vmatprep.subr.mxu0 0.0
        %1897 = vmatpush1.msra.mxu0 0.0
        %1898 = vmatprep.subr.mxu0 0.0
        %1899 = vmatpush1.msra.mxu0 0.0
        %1900 = vmatprep.subr.mxu0 0.0
        %1901 = vmatpush1.msra.mxu0 0.0
        %1902 = vmatprep.subr.mxu0 0.0
        %1903 = vmatpush1.msra.mxu0 0.0
        %1904 = vmatprep.subr.mxu0 0.0
        %1905 = vmatpush1.msra.mxu0 0.0
        %1906 = vmatprep.subr.mxu0 0.0
        %1907 = vmatpush1.msra.mxu0 0.0
        %1908 = vmatprep.subr.mxu0 0.0
        %1909 = vmatpush1.msra.mxu0 0.0
        %1910 = vmatprep.subr.mxu0 0.0
        %1911 = vmatpush1.msra.mxu0 0.0
        %1912 = vmatprep.subr.mxu0 0.0
        %1913 = vmatpush1.msra.mxu0 0.0
        %1914 = vmatprep.subr.mxu0 0.0
        %1915 = vmatpush1.msra.mxu0 0.0
        %1916 = vmatprep.subr.mxu0 0.0
        %1917 = vmatpush1.msra.mxu0 0.0
        %1918 = vmatprep.subr.mxu0 0.0
        %1919 = vmatpush1.msra.mxu0 0.0
        %1920 = vmatprep.subr.mxu0 0.0
        %1921 = vmatpush1.msra.mxu0 0.0
        %1922 = vmatprep.subr.mxu0 0.0
        %1923 = vmatpush1.msra.mxu0 0.0
        %1924 = vmatprep.subr.mxu0 0.0
        %1925 = vmatpush1.msra.mxu0 0.0
        %1926 = vmatprep.subr.mxu0 0.0
        %1927 = vmatpush1.msra.mxu0 0.0
        %1928 = vmatprep.subr.mxu0 0.0
        %1929 = vmatpush1.msra.mxu0 0.0
        %1930 = vmatprep.subr.mxu0 0.0
        %1931 = vmatpush1.msra.mxu0 0.0
        %1932 = vmatprep.subr.mxu0 0.0
        %1933 = vmatpush1.msra.mxu0 0.0
        %1934 = vmatprep.subr.mxu0 0.0
        %1935 = vmatpush1.msra.mxu0 0.0
        %1936 = vmatprep.subr.mxu0 0.0
        %1937 = vmatpush1.msra.mxu0 0.0
        %1938 = vmatprep.subr.mxu0 0.0
        %1939 = vmatpush1.msra.mxu0 0.0
        %1940 = vmatprep.subr.mxu0 0.0
        %1941 = vmatpush1.msra.mxu0 0.0
        %1942 = vmatprep.subr.mxu0 0.0
        %1943 = vmatpush1.msra.mxu0 0.0
        %1944 = vmatprep.subr.mxu0 0.0
        %1945 = vmatpush1.msra.mxu0 0.0
        %1946 = vmatprep.mubr.f32.mxu0 0.0
        %v1947 = vand.u32 %v584, 4294901760
        %1948 = vmatmul.mubr.f32.gmra.mrb[0].mxu0 %v1947
        %v1949 = vpop.f32.mrb[0].mxu0
        %v1950 = vadd.f32 %v1849, %v1949
        %v1951 = vpop.f32.mrb[0].mxu0
        %v1952 = vadd.f32 %v1851, %v1951
        %1953 = vmatprep.mubr.f32.mxu0 0.0
        %v1954 = vand.u32 %v587, 4294901760
        %1955 = vmatmul.mubr.f32.gmra.mrb[0].mxu0 %v1954
        %v1956 = vpop.f32.mrb[0].mxu0
        %v1957 = vadd.f32 %v1856, %v1956
        %v1958 = vpop.f32.mrb[0].mxu0
        %v1959 = vadd.f32 %v1858, %v1958
        %1960 = vmatprep.mubr.f32.mxu0 0.0
        %v1961 = vand.u32 %v590, 4294901760
        %1962 = vmatmul.mubr.f32.gmra.mrb[0].mxu0 %v1961
        %v1963 = vpop.f32.mrb[0].mxu0
        %v1964 = vadd.f32 %v1863, %v1963
        %v1965 = vpop.f32.mrb[0].mxu0
        %v1966 = vadd.f32 %v1865, %v1965
        %1967 = vmatprep.mubr.f32.mxu0 0.0
        %v1968 = vand.u32 %v593, 4294901760
        %1969 = vmatmul.mubr.f32.gmra.mrb[0].mxu0 %v1968
        %v1970 = vpop.f32.mrb[0].mxu0
        %v1971 = vadd.f32 %v1870, %v1970
        %v1972 = vpop.f32.mrb[0].mxu0
        %v1973 = vadd.f32 %v1872, %v1972
        %1974 = vdwg.mxu0
        %v1975 = vtanh.pop %v1260
        %v1976 = vtanh.pop %v1262
        %v1977 = vtanh.pop %v1950
        %v1978 = vtanh.pop %v1952
        %v1979 = vtanh.pop %v1267
        %v1980 = vtanh.pop %v1269
        %v1981 = vtanh.pop %v1957
        %v1982 = vtanh.pop %v1959
        %v1983 = vtanh.pop %v1274
        %v1984 = vtanh.pop %v1276
        %v1985 = vtanh.pop %v1964
        %v1986 = vtanh.pop %v1966
        %v1987 = vtanh.pop %v1281
        %v1988 = vtanh.pop %v1283
        %v1989 = vtanh.pop %v1971
        %v1990 = vtanh.pop %v1973
        %v1991 = vld [vmem:[%s5] sm:$0xff]
        %v1992 = vld [vmem:[%s5 + $0x8] sm:$0xff]
        %v1993 = vld [vmem:[%s5 + $0x10] sm:$0xff]
        %v1994 = vld [vmem:[%s5 + $0x18] sm:$0xff]
        %v1995 = vld [vmem:[%s6] sm:$0xff]
        %v1996 = vld [vmem:[%s6 + $0x8] sm:$0xff]
        %v1997 = vld [vmem:[%s6 + $0x10] sm:$0xff]
        %v1998 = vld [vmem:[%s6 + $0x18] sm:$0xff]
        %2000 = vset.pattern.permute.xlu0 0
        %2001 = vperm.xlu0 %2000, %v1995
        %v2002 = vpop.permute.xlu0 %2001
        %2005 = vset.pattern.permute.xlu0 0
        %2006 = vperm.xlu0 %2005, %v1996
        %v2007 = vpop.permute.xlu0 %2006
        %2010 = vset.pattern.permute.xlu0 0
        %2011 = vperm.xlu0 %2010, %v1997
        %v2012 = vpop.permute.xlu0 %2011
        %2015 = vset.pattern.permute.xlu0 0
        %2016 = vperm.xlu0 %2015, %v1998
        %v2017 = vpop.permute.xlu0 %2016
        %v2020 = vsel %vm582, %v1991, 0
        %v2023 = vsel %vm582, %v1992, 0
        %v2026 = vsel %vm582, %v1993, 0
        %v2029 = vsel %vm582, %v1994, 0
        %v2031 = vand.u32 %v1976, 4294901760
        %2032 = vmatprep.subr.mxu0 %v2031
        %v2033 = vand.u32 %v1975, 4294901760
        %2034 = vmatpush1.msra.mxu0 %v2033
        %v2035 = vand.u32 %v1980, 4294901760
        %2036 = vmatprep.subr.mxu0 %v2035
        %v2037 = vand.u32 %v1979, 4294901760
        %2038 = vmatpush1.msra.mxu0 %v2037
        %v2039 = vand.u32 %v1984, 4294901760
        %2040 = vmatprep.subr.mxu0 %v2039
        %v2041 = vand.u32 %v1983, 4294901760
        %2042 = vmatpush1.msra.mxu0 %v2041
        %v2043 = vand.u32 %v1988, 4294901760
        %2044 = vmatprep.subr.mxu0 %v2043
        %v2045 = vand.u32 %v1987, 4294901760
        %2046 = vmatpush1.msra.mxu0 %v2045
        %2047 = vmatprep.subr.mxu0 0.0
        %2048 = vmatpush1.msra.mxu0 0.0
        %2049 = vmatprep.subr.mxu0 0.0
        %2050 = vmatpush1.msra.mxu0 0.0
        %2051 = vmatprep.subr.mxu0 0.0
        %2052 = vmatpush1.msra.mxu0 0.0
        %2053 = vmatprep.subr.mxu0 0.0
        %2054 = vmatpush1.msra.mxu0 0.0
        %2055 = vmatprep.subr.mxu0 0.0
        %2056 = vmatpush1.msra.mxu0 0.0
        %2057 = vmatprep.subr.mxu0 0.0
        %2058 = vmatpush1.msra.mxu0 0.0
        %2059 = vmatprep.subr.mxu0 0.0
        %2060 = vmatpush1.msra.mxu0 0.0
        %2061 = vmatprep.subr.mxu0 0.0
        %2062 = vmatpush1.msra.mxu0 0.0
        %2063 = vmatprep.subr.mxu0 0.0
        %2064 = vmatpush1.msra.mxu0 0.0
        %2065 = vmatprep.subr.mxu0 0.0
        %2066 = vmatpush1.msra.mxu0 0.0
        %2067 = vmatprep.subr.mxu0 0.0
        %2068 = vmatpush1.msra.mxu0 0.0
        %2069 = vmatprep.subr.mxu0 0.0
        %2070 = vmatpush1.msra.mxu0 0.0
        %2071 = vmatprep.subr.mxu0 0.0
        %2072 = vmatpush1.msra.mxu0 0.0
        %2073 = vmatprep.subr.mxu0 0.0
        %2074 = vmatpush1.msra.mxu0 0.0
        %2075 = vmatprep.subr.mxu0 0.0
        %2076 = vmatpush1.msra.mxu0 0.0
        %2077 = vmatprep.subr.mxu0 0.0
        %2078 = vmatpush1.msra.mxu0 0.0
        %2079 = vmatprep.subr.mxu0 0.0
        %2080 = vmatpush1.msra.mxu0 0.0
        %2081 = vmatprep.subr.mxu0 0.0
        %2082 = vmatpush1.msra.mxu0 0.0
        %2083 = vmatprep.subr.mxu0 0.0
        %2084 = vmatpush1.msra.mxu0 0.0
        %2085 = vmatprep.subr.mxu0 0.0
        %2086 = vmatpush1.msra.mxu0 0.0
        %2087 = vmatprep.subr.mxu0 0.0
        %2088 = vmatpush1.msra.mxu0 0.0
        %2089 = vmatprep.subr.mxu0 0.0
        %2090 = vmatpush1.msra.mxu0 0.0
        %2091 = vmatprep.subr.mxu0 0.0
        %2092 = vmatpush1.msra.mxu0 0.0
        %2093 = vmatprep.subr.mxu0 0.0
        %2094 = vmatpush1.msra.mxu0 0.0
        %2095 = vmatprep.subr.mxu0 0.0
        %2096 = vmatpush1.msra.mxu0 0.0
        %2097 = vmatprep.subr.mxu0 0.0
        %2098 = vmatpush1.msra.mxu0 0.0
        %2099 = vmatprep.subr.mxu0 0.0
        %2100 = vmatpush1.msra.mxu0 0.0
        %2101 = vmatprep.subr.mxu0 0.0
        %2102 = vmatpush1.msra.mxu0 0.0
        %2103 = vmatprep.mubr.f32.mxu0 0.0
        %v2104 = vand.u32 %v2020, 4294901760
        %v2105 = vsub.f32 %v2020, %v2104
        %v2106 = vand.u32 %v2105, 4294901760
        %v2107 = vsub.f32 %v2105, %v2106
        %v2108 = vand.u32 %v2107, 4294901760
        %2109 = vmatmul.mubr.f32.gmra.mrb[0].mxu0 %v2108
        %v2110 = vpop.f32.mrb[0].mxu0
        %v2111 = vadd.f32 %v2002, %v2110
        %v2112 = vpop.f32.mrb[0].mxu0
        %v2113 = vadd.f32 %v2002, %v2112
        %2114 = vmatprep.mubr.f32.mxu0 0.0
        %v2115 = vand.u32 %v2023, 4294901760
        %v2116 = vsub.f32 %v2023, %v2115
        %v2117 = vand.u32 %v2116, 4294901760
        %v2118 = vsub.f32 %v2116, %v2117
        %v2119 = vand.u32 %v2118, 4294901760
        %2120 = vmatmul.mubr.f32.gmra.mrb[0].mxu0 %v2119
        %v2121 = vpop.f32.mrb[0].mxu0
        %v2122 = vadd.f32 %v2007, %v2121
        %v2123 = vpop.f32.mrb[0].mxu0
        %v2124 = vadd.f32 %v2007, %v2123
        %2125 = vmatprep.mubr.f32.mxu0 0.0
        %v2126 = vand.u32 %v2026, 4294901760
        %v2127 = vsub.f32 %v2026, %v2126
        %v2128 = vand.u32 %v2127, 4294901760
        %v2129 = vsub.f32 %v2127, %v2128
        %v2130 = vand.u32 %v2129, 4294901760
        %2131 = vmatmul.mubr.f32.gmra.mrb[0].mxu0 %v2130
        %v2132 = vpop.f32.mrb[0].mxu0
        %v2133 = vadd.f32 %v2012, %v2132
        %v2134 = vpop.f32.mrb[0].mxu0
        %v2135 = vadd.f32 %v2012, %v2134
        %2136 = vmatprep.mubr.f32.mxu0 0.0
        %v2137 = vand.u32 %v2029, 4294901760
        %v2138 = vsub.f32 %v2029, %v2137
        %v2139 = vand.u32 %v2138, 4294901760
        %v2140 = vsub.f32 %v2138, %v2139
        %v2141 = vand.u32 %v2140, 4294901760
        %2142 = vmatmul.mubr.f32.gmra.mrb[0].mxu0 %v2141
        %v2143 = vpop.f32.mrb[0].mxu0
        %v2144 = vadd.f32 %v2017, %v2143
        %v2145 = vpop.f32.mrb[0].mxu0
        %v2146 = vadd.f32 %v2017, %v2145
        %2147 = vdwg.mxu0
        %v2148 = vand.u32 %v1976, 4294901760
        %v2149 = vsub.f32 %v1976, %v2148
        %v2150 = vand.u32 %v2149, 4294901760
        %v2151 = vsub.f32 %v2149, %v2150
        %v2152 = vand.u32 %v2151, 4294901760
        %2153 = vmatprep.subr.mxu0 %v2152
        %v2154 = vand.u32 %v1975, 4294901760
        %v2155 = vsub.f32 %v1975, %v2154
        %v2156 = vand.u32 %v2155, 4294901760
        %v2157 = vsub.f32 %v2155, %v2156
        %v2158 = vand.u32 %v2157, 4294901760
        %2159 = vmatpush1.msra.mxu0 %v2158
        %v2160 = vand.u32 %v1980, 4294901760
        %v2161 = vsub.f32 %v1980, %v2160
        %v2162 = vand.u32 %v2161, 4294901760
        %v2163 = vsub.f32 %v2161, %v2162
        %v2164 = vand.u32 %v2163, 4294901760
        %2165 = vmatprep.subr.mxu0 %v2164
        %v2166 = vand.u32 %v1979, 4294901760
        %v2167 = vsub.f32 %v1979, %v2166
        %v2168 = vand.u32 %v2167, 4294901760
        %v2169 = vsub.f32 %v2167, %v2168
        %v2170 = vand.u32 %v2169, 4294901760
        %2171 = vmatpush1.msra.mxu0 %v2170
        %v2172 = vand.u32 %v1984, 4294901760
        %v2173 = vsub.f32 %v1984, %v2172
        %v2174 = vand.u32 %v2173, 4294901760
        %v2175 = vsub.f32 %v2173, %v2174
        %v2176 = vand.u32 %v2175, 4294901760
        %2177 = vmatprep.subr.mxu0 %v2176
        %v2178 = vand.u32 %v1983, 4294901760
        %v2179 = vsub.f32 %v1983, %v2178
        %v2180 = vand.u32 %v2179, 4294901760
        %v2181 = vsub.f32 %v2179, %v2180
        %v2182 = vand.u32 %v2181, 4294901760
        %2183 = vmatpush1.msra.mxu0 %v2182
        %v2184 = vand.u32 %v1988, 4294901760
        %v2185 = vsub.f32 %v1988, %v2184
        %v2186 = vand.u32 %v2185, 4294901760
        %v2187 = vsub.f32 %v2185, %v2186
        %v2188 = vand.u32 %v2187, 4294901760
        %2189 = vmatprep.subr.mxu0 %v2188
        %v2190 = vand.u32 %v1987, 4294901760
        %v2191 = vsub.f32 %v1987, %v2190
        %v2192 = vand.u32 %v2191, 4294901760
        %v2193 = vsub.f32 %v2191, %v2192
        %v2194 = vand.u32 %v2193, 4294901760
        %2195 = vmatpush1.msra.mxu0 %v2194
        %2196 = vmatprep.subr.mxu0 0.0
        %2197 = vmatpush1.msra.mxu0 0.0
        %2198 = vmatprep.subr.mxu0 0.0
        %2199 = vmatpush1.msra.mxu0 0.0
        %2200 = vmatprep.subr.mxu0 0.0
        %2201 = vmatpush1.msra.mxu0 0.0
        %2202 = vmatprep.subr.mxu0 0.0
        %2203 = vmatpush1.msra.mxu0 0.0
        %2204 = vmatprep.subr.mxu0 0.0
        %2205 = vmatpush1.msra.mxu0 0.0
        %2206 = vmatprep.subr.mxu0 0.0
        %2207 = vmatpush1.msra.mxu0 0.0
        %2208 = vmatprep.subr.mxu0 0.0
        %2209 = vmatpush1.msra.mxu0 0.0
        %2210 = vmatprep.subr.mxu0 0.0
        %2211 = vmatpush1.msra.mxu0 0.0
        %2212 = vmatprep.subr.mxu0 0.0
        %2213 = vmatpush1.msra.mxu0 0.0
        %2214 = vmatprep.subr.mxu0 0.0
        %2215 = vmatpush1.msra.mxu0 0.0
        %2216 = vmatprep.subr.mxu0 0.0
        %2217 = vmatpush1.msra.mxu0 0.0
        %2218 = vmatprep.subr.mxu0 0.0
        %2219 = vmatpush1.msra.mxu0 0.0
        %2220 = vmatprep.subr.mxu0 0.0
        %2221 = vmatpush1.msra.mxu0 0.0
        %2222 = vmatprep.subr.mxu0 0.0
        %2223 = vmatpush1.msra.mxu0 0.0
        %2224 = vmatprep.subr.mxu0 0.0
        %2225 = vmatpush1.msra.mxu0 0.0
        %2226 = vmatprep.subr.mxu0 0.0
        %2227 = vmatpush1.msra.mxu0 0.0
        %2228 = vmatprep.subr.mxu0 0.0
        %2229 = vmatpush1.msra.mxu0 0.0
        %2230 = vmatprep.subr.mxu0 0.0
        %2231 = vmatpush1.msra.mxu0 0.0
        %2232 = vmatprep.subr.mxu0 0.0
        %2233 = vmatpush1.msra.mxu0 0.0
        %2234 = vmatprep.subr.mxu0 0.0
        %2235 = vmatpush1.msra.mxu0 0.0
        %2236 = vmatprep.subr.mxu0 0.0
        %2237 = vmatpush1.msra.mxu0 0.0
        %2238 = vmatprep.subr.mxu0 0.0
        %2239 = vmatpush1.msra.mxu0 0.0
        %2240 = vmatprep.subr.mxu0 0.0
        %2241 = vmatpush1.msra.mxu0 0.0
        %2242 = vmatprep.subr.mxu0 0.0
        %2243 = vmatpush1.msra.mxu0 0.0
        %2244 = vmatprep.subr.mxu0 0.0
        %2245 = vmatpush1.msra.mxu0 0.0
        %2246 = vmatprep.subr.mxu0 0.0
        %2247 = vmatpush1.msra.mxu0 0.0
        %2248 = vmatprep.subr.mxu0 0.0
        %2249 = vmatpush1.msra.mxu0 0.0
        %2250 = vmatprep.subr.mxu0 0.0
        %2251 = vmatpush1.msra.mxu0 0.0
        %2252 = vmatprep.mubr.f32.mxu0 0.0
        %v2253 = vand.u32 %v2020, 4294901760
        %2254 = vmatmul.mubr.f32.gmra.mrb[0].mxu0 %v2253
        %v2255 = vpop.f32.mrb[0].mxu0
        %v2256 = vadd.f32 %v2111, %v2255
        %v2257 = vpop.f32.mrb[0].mxu0
        %v2258 = vadd.f32 %v2113, %v2257
        %2259 = vmatprep.mubr.f32.mxu0 0.0
        %v2260 = vand.u32 %v2023, 4294901760
        %2261 = vmatmul.mubr.f32.gmra.mrb[0].mxu0 %v2260
        %v2262 = vpop.f32.mrb[0].mxu0
        %v2263 = vadd.f32 %v2122, %v2262
        %v2264 = vpop.f32.mrb[0].mxu0
        %v2265 = vadd.f32 %v2124, %v2264
        %2266 = vmatprep.mubr.f32.mxu0 0.0
        %v2267 = vand.u32 %v2026, 4294901760
        %2268 = vmatmul.mubr.f32.gmra.mrb[0].mxu0 %v2267
        %v2269 = vpop.f32.mrb[0].mxu0
        %v2270 = vadd.f32 %v2133, %v2269
        %v2271 = vpop.f32.mrb[0].mxu0
        %v2272 = vadd.f32 %v2135, %v2271
        %2273 = vmatprep.mubr.f32.mxu0 0.0
        %v2274 = vand.u32 %v2029, 4294901760
        %2275 = vmatmul.mubr.f32.gmra.mrb[0].mxu0 %v2274
        %v2276 = vpop.f32.mrb[0].mxu0
        %v2277 = vadd.f32 %v2144, %v2276
        %v2278 = vpop.f32.mrb[0].mxu0
        %v2279 = vadd.f32 %v2146, %v2278
        %2280 = vdwg.mxu0
        %v2281 = vand.u32 %v1976, 4294901760
        %v2282 = vsub.f32 %v1976, %v2281
        %2283 = vmatprep.subr.mxu0 %v2282
        %v2284 = vand.u32 %v1975, 4294901760
        %v2285 = vsub.f32 %v1975, %v2284
        %2286 = vmatpush1.msra.mxu0 %v2285
        %v2287 = vand.u32 %v1980, 4294901760
        %v2288 = vsub.f32 %v1980, %v2287
        %2289 = vmatprep.subr.mxu0 %v2288
        %v2290 = vand.u32 %v1979, 4294901760
        %v2291 = vsub.f32 %v1979, %v2290
        %2292 = vmatpush1.msra.mxu0 %v2291
        %v2293 = vand.u32 %v1984, 4294901760
        %v2294 = vsub.f32 %v1984, %v2293
        %2295 = vmatprep.subr.mxu0 %v2294
        %v2296 = vand.u32 %v1983, 4294901760
        %v2297 = vsub.f32 %v1983, %v2296
        %2298 = vmatpush1.msra.mxu0 %v2297
        %v2299 = vand.u32 %v1988, 4294901760
        %v2300 = vsub.f32 %v1988, %v2299
        %2301 = vmatprep.subr.mxu0 %v2300
        %v2302 = vand.u32 %v1987, 4294901760
        %v2303 = vsub.f32 %v1987, %v2302
        %2304 = vmatpush1.msra.mxu0 %v2303
        %2305 = vmatprep.subr.mxu0 0.0
        %2306 = vmatpush1.msra.mxu0 0.0
        %2307 = vmatprep.subr.mxu0 0.0
        %2308 = vmatpush1.msra.mxu0 0.0
        %2309 = vmatprep.subr.mxu0 0.0
        %2310 = vmatpush1.msra.mxu0 0.0
        %2311 = vmatprep.subr.mxu0 0.0
        %2312 = vmatpush1.msra.mxu0 0.0
        %2313 = vmatprep.subr.mxu0 0.0
        %2314 = vmatpush1.msra.mxu0 0.0
        %2315 = vmatprep.subr.mxu0 0.0
        %2316 = vmatpush1.msra.mxu0 0.0
        %2317 = vmatprep.subr.mxu0 0.0
        %2318 = vmatpush1.msra.mxu0 0.0
        %2319 = vmatprep.subr.mxu0 0.0
        %2320 = vmatpush1.msra.mxu0 0.0
        %2321 = vmatprep.subr.mxu0 0.0
        %2322 = vmatpush1.msra.mxu0 0.0
        %2323 = vmatprep.subr.mxu0 0.0
        %2324 = vmatpush1.msra.mxu0 0.0
        %2325 = vmatprep.subr.mxu0 0.0
        %2326 = vmatpush1.msra.mxu0 0.0
        %2327 = vmatprep.subr.mxu0 0.0
        %2328 = vmatpush1.msra.mxu0 0.0
        %2329 = vmatprep.subr.mxu0 0.0
        %2330 = vmatpush1.msra.mxu0 0.0
        %2331 = vmatprep.subr.mxu0 0.0
        %2332 = vmatpush1.msra.mxu0 0.0
        %2333 = vmatprep.subr.mxu0 0.0
        %2334 = vmatpush1.msra.mxu0 0.0
        %2335 = vmatprep.subr.mxu0 0.0
        %2336 = vmatpush1.msra.mxu0 0.0
        %2337 = vmatprep.subr.mxu0 0.0
        %2338 = vmatpush1.msra.mxu0 0.0
        %2339 = vmatprep.subr.mxu0 0.0
        %2340 = vmatpush1.msra.mxu0 0.0
        %2341 = vmatprep.subr.mxu0 0.0
        %2342 = vmatpush1.msra.mxu0 0.0
        %2343 = vmatprep.subr.mxu0 0.0
        %2344 = vmatpush1.msra.mxu0 0.0
        %2345 = vmatprep.subr.mxu0 0.0
        %2346 = vmatpush1.msra.mxu0 0.0
        %2347 = vmatprep.subr.mxu0 0.0
        %2348 = vmatpush1.msra.mxu0 0.0
        %2349 = vmatprep.subr.mxu0 0.0
        %2350 = vmatpush1.msra.mxu0 0.0
        %2351 = vmatprep.subr.mxu0 0.0
        %2352 = vmatpush1.msra.mxu0 0.0
        %2353 = vmatprep.subr.mxu0 0.0
        %2354 = vmatpush1.msra.mxu0 0.0
        %2355 = vmatprep.subr.mxu0 0.0
        %2356 = vmatpush1.msra.mxu0 0.0
        %2357 = vmatprep.subr.mxu0 0.0
        %2358 = vmatpush1.msra.mxu0 0.0
        %2359 = vmatprep.subr.mxu0 0.0
        %2360 = vmatpush1.msra.mxu0 0.0
        %2361 = vmatprep.mubr.f32.mxu0 0.0
        %v2362 = vand.u32 %v2020, 4294901760
        %v2363 = vsub.f32 %v2020, %v2362
        %2364 = vmatmul.mubr.f32.gmra.mrb[0].mxu0 %v2363
        %v2365 = vpop.f32.mrb[0].mxu0
        %v2366 = vadd.f32 %v2256, %v2365
        %v2367 = vpop.f32.mrb[0].mxu0
        %v2368 = vadd.f32 %v2258, %v2367
        %2369 = vmatprep.mubr.f32.mxu0 0.0
        %v2370 = vand.u32 %v2023, 4294901760
        %v2371 = vsub.f32 %v2023, %v2370
        %2372 = vmatmul.mubr.f32.gmra.mrb[0].mxu0 %v2371
        %v2373 = vpop.f32.mrb[0].mxu0
        %v2374 = vadd.f32 %v2263, %v2373
        %v2375 = vpop.f32.mrb[0].mxu0
        %v2376 = vadd.f32 %v2265, %v2375
        %2377 = vmatprep.mubr.f32.mxu0 0.0
        %v2378 = vand.u32 %v2026, 4294901760
        %v2379 = vsub.f32 %v2026, %v2378
        %2380 = vmatmul.mubr.f32.gmra.mrb[0].mxu0 %v2379
        %v2381 = vpop.f32.mrb[0].mxu0
        %v2382 = vadd.f32 %v2270, %v2381
        %v2383 = vpop.f32.mrb[0].mxu0
        %v2384 = vadd.f32 %v2272, %v2383
        %2385 = vmatprep.mubr.f32.mxu0 0.0
        %v2386 = vand.u32 %v2029, 4294901760
        %v2387 = vsub.f32 %v2029, %v2386
        %2388 = vmatmul.mubr.f32.gmra.mrb[0].mxu0 %v2387
        %v2389 = vpop.f32.mrb[0].mxu0
        %v2390 = vadd.f32 %v2277, %v2389
        %v2391 = vpop.f32.mrb[0].mxu0
        %v2392 = vadd.f32 %v2279, %v2391
        %2393 = vdwg.mxu0
        %v2394 = vand.u32 %v1976, 4294901760
        %2395 = vmatprep.subr.mxu0 %v2394
        %v2396 = vand.u32 %v1975, 4294901760
        %2397 = vmatpush1.msra.mxu0 %v2396
        %v2398 = vand.u32 %v1980, 4294901760
        %2399 = vmatprep.subr.mxu0 %v2398
        %v2400 = vand.u32 %v1979, 4294901760
        %2401 = vmatpush1.msra.mxu0 %v2400
        %v2402 = vand.u32 %v1984, 4294901760
        %2403 = vmatprep.subr.mxu0 %v2402
        %v2404 = vand.u32 %v1983, 4294901760
        %2405 = vmatpush1.msra.mxu0 %v2404
        %v2406 = vand.u32 %v1988, 4294901760
        %2407 = vmatprep.subr.mxu0 %v2406
        %v2408 = vand.u32 %v1987, 4294901760
        %2409 = vmatpush1.msra.mxu0 %v2408
        %2410 = vmatprep.subr.mxu0 0.0
        %2411 = vmatpush1.msra.mxu0 0.0
        %2412 = vmatprep.subr.mxu0 0.0
        %2413 = vmatpush1.msra.mxu0 0.0
        %2414 = vmatprep.subr.mxu0 0.0
        %2415 = vmatpush1.msra.mxu0 0.0
        %2416 = vmatprep.subr.mxu0 0.0
        %2417 = vmatpush1.msra.mxu0 0.0
        %2418 = vmatprep.subr.mxu0 0.0
        %2419 = vmatpush1.msra.mxu0 0.0
        %2420 = vmatprep.subr.mxu0 0.0
        %2421 = vmatpush1.msra.mxu0 0.0
        %2422 = vmatprep.subr.mxu0 0.0
        %2423 = vmatpush1.msra.mxu0 0.0
        %2424 = vmatprep.subr.mxu0 0.0
        %2425 = vmatpush1.msra.mxu0 0.0
        %2426 = vmatprep.subr.mxu0 0.0
        %2427 = vmatpush1.msra.mxu0 0.0
        %2428 = vmatprep.subr.mxu0 0.0
        %2429 = vmatpush1.msra.mxu0 0.0
        %2430 = vmatprep.subr.mxu0 0.0
        %2431 = vmatpush1.msra.mxu0 0.0
        %2432 = vmatprep.subr.mxu0 0.0
        %2433 = vmatpush1.msra.mxu0 0.0
        %2434 = vmatprep.subr.mxu0 0.0
        %2435 = vmatpush1.msra.mxu0 0.0
        %2436 = vmatprep.subr.mxu0 0.0
        %2437 = vmatpush1.msra.mxu0 0.0
        %2438 = vmatprep.subr.mxu0 0.0
        %2439 = vmatpush1.msra.mxu0 0.0
        %2440 = vmatprep.subr.mxu0 0.0
        %2441 = vmatpush1.msra.mxu0 0.0
        %2442 = vmatprep.subr.mxu0 0.0
        %2443 = vmatpush1.msra.mxu0 0.0
        %2444 = vmatprep.subr.mxu0 0.0
        %2445 = vmatpush1.msra.mxu0 0.0
        %2446 = vmatprep.subr.mxu0 0.0
        %2447 = vmatpush1.msra.mxu0 0.0
        %2448 = vmatprep.subr.mxu0 0.0
        %2449 = vmatpush1.msra.mxu0 0.0
        %2450 = vmatprep.subr.mxu0 0.0
        %2451 = vmatpush1.msra.mxu0 0.0
        %2452 = vmatprep.subr.mxu0 0.0
        %2453 = vmatpush1.msra.mxu0 0.0
        %2454 = vmatprep.subr.mxu0 0.0
        %2455 = vmatpush1.msra.mxu0 0.0
        %2456 = vmatprep.subr.mxu0 0.0
        %2457 = vmatpush1.msra.mxu0 0.0
        %2458 = vmatprep.subr.mxu0 0.0
        %2459 = vmatpush1.msra.mxu0 0.0
        %2460 = vmatprep.subr.mxu0 0.0
        %2461 = vmatpush1.msra.mxu0 0.0
        %2462 = vmatprep.subr.mxu0 0.0
        %2463 = vmatpush1.msra.mxu0 0.0
        %2464 = vmatprep.subr.mxu0 0.0
        %2465 = vmatpush1.msra.mxu0 0.0
        %2466 = vmatprep.mubr.f32.mxu0 0.0
        %v2467 = vand.u32 %v2020, 4294901760
        %v2468 = vsub.f32 %v2020, %v2467
        %v2469 = vand.u32 %v2468, 4294901760
        %2470 = vmatmul.mubr.f32.gmra.mrb[0].mxu0 %v2469
        %v2471 = vpop.f32.mrb[0].mxu0
        %v2472 = vadd.f32 %v2366, %v2471
        %v2473 = vpop.f32.mrb[0].mxu0
        %v2474 = vadd.f32 %v2368, %v2473
        %2475 = vmatprep.mubr.f32.mxu0 0.0
        %v2476 = vand.u32 %v2023, 4294901760
        %v2477 = vsub.f32 %v2023, %v2476
        %v2478 = vand.u32 %v2477, 4294901760
        %2479 = vmatmul.mubr.f32.gmra.mrb[0].mxu0 %v2478
        %v2480 = vpop.f32.mrb[0].mxu0
        %v2481 = vadd.f32 %v2374, %v2480
        %v2482 = vpop.f32.mrb[0].mxu0
        %v2483 = vadd.f32 %v2376, %v2482
        %2484 = vmatprep.mubr.f32.mxu0 0.0
        %v2485 = vand.u32 %v2026, 4294901760
        %v2486 = vsub.f32 %v2026, %v2485
        %v2487 = vand.u32 %v2486, 4294901760
        %2488 = vmatmul.mubr.f32.gmra.mrb[0].mxu0 %v2487
        %v2489 = vpop.f32.mrb[0].mxu0
        %v2490 = vadd.f32 %v2382, %v2489
        %v2491 = vpop.f32.mrb[0].mxu0
        %v2492 = vadd.f32 %v2384, %v2491
        %2493 = vmatprep.mubr.f32.mxu0 0.0
        %v2494 = vand.u32 %v2029, 4294901760
        %v2495 = vsub.f32 %v2029, %v2494
        %v2496 = vand.u32 %v2495, 4294901760
        %2497 = vmatmul.mubr.f32.gmra.mrb[0].mxu0 %v2496
        %v2498 = vpop.f32.mrb[0].mxu0
        %v2499 = vadd.f32 %v2390, %v2498
        %v2500 = vpop.f32.mrb[0].mxu0
        %v2501 = vadd.f32 %v2392, %v2500
        %2502 = vdwg.mxu0
        %v2503 = vand.u32 %v1976, 4294901760
        %v2504 = vsub.f32 %v1976, %v2503
        %v2505 = vand.u32 %v2504, 4294901760
        %2506 = vmatprep.subr.mxu0 %v2505
        %v2507 = vand.u32 %v1975, 4294901760
        %v2508 = vsub.f32 %v1975, %v2507
        %v2509 = vand.u32 %v2508, 4294901760
        %2510 = vmatpush1.msra.mxu0 %v2509
        %v2511 = vand.u32 %v1980, 4294901760
        %v2512 = vsub.f32 %v1980, %v2511
        %v2513 = vand.u32 %v2512, 4294901760
        %2514 = vmatprep.subr.mxu0 %v2513
        %v2515 = vand.u32 %v1979, 4294901760
        %v2516 = vsub.f32 %v1979, %v2515
        %v2517 = vand.u32 %v2516, 4294901760
        %2518 = vmatpush1.msra.mxu0 %v2517
        %v2519 = vand.u32 %v1984, 4294901760
        %v2520 = vsub.f32 %v1984, %v2519
        %v2521 = vand.u32 %v2520, 4294901760
        %2522 = vmatprep.subr.mxu0 %v2521
        %v2523 = vand.u32 %v1983, 4294901760
        %v2524 = vsub.f32 %v1983, %v2523
        %v2525 = vand.u32 %v2524, 4294901760
        %2526 = vmatpush1.msra.mxu0 %v2525
        %v2527 = vand.u32 %v1988, 4294901760
        %v2528 = vsub.f32 %v1988, %v2527
        %v2529 = vand.u32 %v2528, 4294901760
        %2530 = vmatprep.subr.mxu0 %v2529
        %v2531 = vand.u32 %v1987, 4294901760
        %v2532 = vsub.f32 %v1987, %v2531
        %v2533 = vand.u32 %v2532, 4294901760
        %2534 = vmatpush1.msra.mxu0 %v2533
        %2535 = vmatprep.subr.mxu0 0.0
        %2536 = vmatpush1.msra.mxu0 0.0
        %2537 = vmatprep.subr.mxu0 0.0
        %2538 = vmatpush1.msra.mxu0 0.0
        %2539 = vmatprep.subr.mxu0 0.0
        %2540 = vmatpush1.msra.mxu0 0.0
        %2541 = vmatprep.subr.mxu0 0.0
        %2542 = vmatpush1.msra.mxu0 0.0
        %2543 = vmatprep.subr.mxu0 0.0
        %2544 = vmatpush1.msra.mxu0 0.0
        %2545 = vmatprep.subr.mxu0 0.0
        %2546 = vmatpush1.msra.mxu0 0.0
        %2547 = vmatprep.subr.mxu0 0.0
        %2548 = vmatpush1.msra.mxu0 0.0
        %2549 = vmatprep.subr.mxu0 0.0
        %2550 = vmatpush1.msra.mxu0 0.0
        %2551 = vmatprep.subr.mxu0 0.0
        %2552 = vmatpush1.msra.mxu0 0.0
        %2553 = vmatprep.subr.mxu0 0.0
        %2554 = vmatpush1.msra.mxu0 0.0
        %2555 = vmatprep.subr.mxu0 0.0
        %2556 = vmatpush1.msra.mxu0 0.0
        %2557 = vmatprep.subr.mxu0 0.0
        %2558 = vmatpush1.msra.mxu0 0.0
        %2559 = vmatprep.subr.mxu0 0.0
        %2560 = vmatpush1.msra.mxu0 0.0
        %2561 = vmatprep.subr.mxu0 0.0
        %2562 = vmatpush1.msra.mxu0 0.0
        %2563 = vmatprep.subr.mxu0 0.0
        %2564 = vmatpush1.msra.mxu0 0.0
        %2565 = vmatprep.subr.mxu0 0.0
        %2566 = vmatpush1.msra.mxu0 0.0
        %2567 = vmatprep.subr.mxu0 0.0
        %2568 = vmatpush1.msra.mxu0 0.0
        %2569 = vmatprep.subr.mxu0 0.0
        %2570 = vmatpush1.msra.mxu0 0.0
        %2571 = vmatprep.subr.mxu0 0.0
        %2572 = vmatpush1.msra.mxu0 0.0
        %2573 = vmatprep.subr.mxu0 0.0
        %2574 = vmatpush1.msra.mxu0 0.0
        %2575 = vmatprep.subr.mxu0 0.0
        %2576 = vmatpush1.msra.mxu0 0.0
        %2577 = vmatprep.subr.mxu0 0.0
        %2578 = vmatpush1.msra.mxu0 0.0
        %2579 = vmatprep.subr.mxu0 0.0
        %2580 = vmatpush1.msra.mxu0 0.0
        %2581 = vmatprep.subr.mxu0 0.0
        %2582 = vmatpush1.msra.mxu0 0.0
        %2583 = vmatprep.subr.mxu0 0.0
        %2584 = vmatpush1.msra.mxu0 0.0
        %2585 = vmatprep.subr.mxu0 0.0
        %2586 = vmatpush1.msra.mxu0 0.0
        %2587 = vmatprep.subr.mxu0 0.0
        %2588 = vmatpush1.msra.mxu0 0.0
        %2589 = vmatprep.subr.mxu0 0.0
        %2590 = vmatpush1.msra.mxu0 0.0
        %2591 = vmatprep.mubr.f32.mxu0 0.0
        %v2592 = vand.u32 %v2020, 4294901760
        %2593 = vmatmul.mubr.f32.gmra.mrb[0].mxu0 %v2592
        %v2594 = vpop.f32.mrb[0].mxu0
        %v2595 = vadd.f32 %v2472, %v2594
        %v2596 = vpop.f32.mrb[0].mxu0
        %v2597 = vadd.f32 %v2474, %v2596
        %2598 = vmatprep.mubr.f32.mxu0 0.0
        %v2599 = vand.u32 %v2023, 4294901760
        %2600 = vmatmul.mubr.f32.gmra.mrb[0].mxu0 %v2599
        %v2601 = vpop.f32.mrb[0].mxu0
        %v2602 = vadd.f32 %v2481, %v2601
        %v2603 = vpop.f32.mrb[0].mxu0
        %v2604 = vadd.f32 %v2483, %v2603
        %2605 = vmatprep.mubr.f32.mxu0 0.0
        %v2606 = vand.u32 %v2026, 4294901760
        %2607 = vmatmul.mubr.f32.gmra.mrb[0].mxu0 %v2606
        %v2608 = vpop.f32.mrb[0].mxu0
        %v2609 = vadd.f32 %v2490, %v2608
        %v2610 = vpop.f32.mrb[0].mxu0
        %v2611 = vadd.f32 %v2492, %v2610
        %2612 = vmatprep.mubr.f32.mxu0 0.0
        %v2613 = vand.u32 %v2029, 4294901760
        %2614 = vmatmul.mubr.f32.gmra.mrb[0].mxu0 %v2613
        %v2615 = vpop.f32.mrb[0].mxu0
        %v2616 = vadd.f32 %v2499, %v2615
        %v2617 = vpop.f32.mrb[0].mxu0
        %v2618 = vadd.f32 %v2501, %v2617
        %2619 = vdwg.mxu0
        %v2620 = vand.u32 %v1976, 4294901760
        %2621 = vmatprep.subr.mxu0 %v2620
        %v2622 = vand.u32 %v1975, 4294901760
        %2623 = vmatpush1.msra.mxu0 %v2622
        %v2624 = vand.u32 %v1980, 4294901760
        %2625 = vmatprep.subr.mxu0 %v2624
        %v2626 = vand.u32 %v1979, 4294901760
        %2627 = vmatpush1.msra.mxu0 %v2626
        %v2628 = vand.u32 %v1984, 4294901760
        %2629 = vmatprep.subr.mxu0 %v2628
        %v2630 = vand.u32 %v1983, 4294901760
        %2631 = vmatpush1.msra.mxu0 %v2630
        %v2632 = vand.u32 %v1988, 4294901760
        %2633 = vmatprep.subr.mxu0 %v2632
        %v2634 = vand.u32 %v1987, 4294901760
        %2635 = vmatpush1.msra.mxu0 %v2634
        %2636 = vmatprep.subr.mxu0 0.0
        %2637 = vmatpush1.msra.mxu0 0.0
        %2638 = vmatprep.subr.mxu0 0.0
        %2639 = vmatpush1.msra.mxu0 0.0
        %2640 = vmatprep.subr.mxu0 0.0
        %2641 = vmatpush1.msra.mxu0 0.0
        %2642 = vmatprep.subr.mxu0 0.0
        %2643 = vmatpush1.msra.mxu0 0.0
        %2644 = vmatprep.subr.mxu0 0.0
        %2645 = vmatpush1.msra.mxu0 0.0
        %2646 = vmatprep.subr.mxu0 0.0
        %2647 = vmatpush1.msra.mxu0 0.0
        %2648 = vmatprep.subr.mxu0 0.0
        %2649 = vmatpush1.msra.mxu0 0.0
        %2650 = vmatprep.subr.mxu0 0.0
        %2651 = vmatpush1.msra.mxu0 0.0
        %2652 = vmatprep.subr.mxu0 0.0
        %2653 = vmatpush1.msra.mxu0 0.0
        %2654 = vmatprep.subr.mxu0 0.0
        %2655 = vmatpush1.msra.mxu0 0.0
        %2656 = vmatprep.subr.mxu0 0.0
        %2657 = vmatpush1.msra.mxu0 0.0
        %2658 = vmatprep.subr.mxu0 0.0
        %2659 = vmatpush1.msra.mxu0 0.0
        %2660 = vmatprep.subr.mxu0 0.0
        %2661 = vmatpush1.msra.mxu0 0.0
        %2662 = vmatprep.subr.mxu0 0.0
        %2663 = vmatpush1.msra.mxu0 0.0
        %2664 = vmatprep.subr.mxu0 0.0
        %2665 = vmatpush1.msra.mxu0 0.0
        %2666 = vmatprep.subr.mxu0 0.0
        %2667 = vmatpush1.msra.mxu0 0.0
        %2668 = vmatprep.subr.mxu0 0.0
        %2669 = vmatpush1.msra.mxu0 0.0
        %2670 = vmatprep.subr.mxu0 0.0
        %2671 = vmatpush1.msra.mxu0 0.0
        %2672 = vmatprep.subr.mxu0 0.0
        %2673 = vmatpush1.msra.mxu0 0.0
        %2674 = vmatprep.subr.mxu0 0.0
        %2675 = vmatpush1.msra.mxu0 0.0
        %2676 = vmatprep.subr.mxu0 0.0
        %2677 = vmatpush1.msra.mxu0 0.0
        %2678 = vmatprep.subr.mxu0 0.0
        %2679 = vmatpush1.msra.mxu0 0.0
        %2680 = vmatprep.subr.mxu0 0.0
        %2681 = vmatpush1.msra.mxu0 0.0
        %2682 = vmatprep.subr.mxu0 0.0
        %2683 = vmatpush1.msra.mxu0 0.0
        %2684 = vmatprep.subr.mxu0 0.0
        %2685 = vmatpush1.msra.mxu0 0.0
        %2686 = vmatprep.subr.mxu0 0.0
        %2687 = vmatpush1.msra.mxu0 0.0
        %2688 = vmatprep.subr.mxu0 0.0
        %2689 = vmatpush1.msra.mxu0 0.0
        %2690 = vmatprep.subr.mxu0 0.0
        %2691 = vmatpush1.msra.mxu0 0.0
        %2692 = vmatprep.mubr.f32.mxu0 0.0
        %v2693 = vand.u32 %v2020, 4294901760
        %2694 = vmatmul.mubr.f32.gmra.mrb[0].mxu0 %v2693
        %v2695 = vpop.f32.mrb[0].mxu0
        %v2696 = vadd.f32 %v2595, %v2695
        %v2697 = vpop.f32.mrb[0].mxu0
        %v2698 = vadd.f32 %v2597, %v2697
        %2699 = vmatprep.mubr.f32.mxu0 0.0
        %v2700 = vand.u32 %v2023, 4294901760
        %2701 = vmatmul.mubr.f32.gmra.mrb[0].mxu0 %v2700
        %v2702 = vpop.f32.mrb[0].mxu0
        %v2703 = vadd.f32 %v2602, %v2702
        %v2704 = vpop.f32.mrb[0].mxu0
        %v2705 = vadd.f32 %v2604, %v2704
        %2706 = vmatprep.mubr.f32.mxu0 0.0
        %v2707 = vand.u32 %v2026, 4294901760
        %2708 = vmatmul.mubr.f32.gmra.mrb[0].mxu0 %v2707
        %v2709 = vpop.f32.mrb[0].mxu0
        %v2710 = vadd.f32 %v2609, %v2709
        %v2711 = vpop.f32.mrb[0].mxu0
        %v2712 = vadd.f32 %v2611, %v2711
        %2713 = vmatprep.mubr.f32.mxu0 0.0
        %v2714 = vand.u32 %v2029, 4294901760
        %2715 = vmatmul.mubr.f32.gmra.mrb[0].mxu0 %v2714
        %v2716 = vpop.f32.mrb[0].mxu0
        %v2717 = vadd.f32 %v2616, %v2716
        %v2718 = vpop.f32.mrb[0].mxu0
        %v2719 = vadd.f32 %v2618, %v2718
        %2720 = vdwg.mxu0
        %v2721 = vand.u32 %v1978, 4294901760
        %2722 = vmatprep.subr.mxu0 %v2721
        %v2723 = vand.u32 %v1977, 4294901760
        %2724 = vmatpush1.msra.mxu0 %v2723
        %v2725 = vand.u32 %v1982, 4294901760
        %2726 = vmatprep.subr.mxu0 %v2725
        %v2727 = vand.u32 %v1981, 4294901760
        %2728 = vmatpush1.msra.mxu0 %v2727
        %v2729 = vand.u32 %v1986, 4294901760
        %2730 = vmatprep.subr.mxu0 %v2729
        %v2731 = vand.u32 %v1985, 4294901760
        %2732 = vmatpush1.msra.mxu0 %v2731
        %v2733 = vand.u32 %v1990, 4294901760
        %2734 = vmatprep.subr.mxu0 %v2733
        %v2735 = vand.u32 %v1989, 4294901760
        %2736 = vmatpush1.msra.mxu0 %v2735
        %2737 = vmatprep.subr.mxu0 0.0
        %2738 = vmatpush1.msra.mxu0 0.0
        %2739 = vmatprep.subr.mxu0 0.0
        %2740 = vmatpush1.msra.mxu0 0.0
        %2741 = vmatprep.subr.mxu0 0.0
        %2742 = vmatpush1.msra.mxu0 0.0
        %2743 = vmatprep.subr.mxu0 0.0
        %2744 = vmatpush1.msra.mxu0 0.0
        %2745 = vmatprep.subr.mxu0 0.0
        %2746 = vmatpush1.msra.mxu0 0.0
        %2747 = vmatprep.subr.mxu0 0.0
        %2748 = vmatpush1.msra.mxu0 0.0
        %2749 = vmatprep.subr.mxu0 0.0
        %2750 = vmatpush1.msra.mxu0 0.0
        %2751 = vmatprep.subr.mxu0 0.0
        %2752 = vmatpush1.msra.mxu0 0.0
        %2753 = vmatprep.subr.mxu0 0.0
        %2754 = vmatpush1.msra.mxu0 0.0
        %2755 = vmatprep.subr.mxu0 0.0
        %2756 = vmatpush1.msra.mxu0 0.0
        %2757 = vmatprep.subr.mxu0 0.0
        %2758 = vmatpush1.msra.mxu0 0.0
        %2759 = vmatprep.subr.mxu0 0.0
        %2760 = vmatpush1.msra.mxu0 0.0
        %2761 = vmatprep.subr.mxu0 0.0
        %2762 = vmatpush1.msra.mxu0 0.0
        %2763 = vmatprep.subr.mxu0 0.0
        %2764 = vmatpush1.msra.mxu0 0.0
        %2765 = vmatprep.subr.mxu0 0.0
        %2766 = vmatpush1.msra.mxu0 0.0
        %2767 = vmatprep.subr.mxu0 0.0
        %2768 = vmatpush1.msra.mxu0 0.0
        %2769 = vmatprep.subr.mxu0 0.0
        %2770 = vmatpush1.msra.mxu0 0.0
        %2771 = vmatprep.subr.mxu0 0.0
        %2772 = vmatpush1.msra.mxu0 0.0
        %2773 = vmatprep.subr.mxu0 0.0
        %2774 = vmatpush1.msra.mxu0 0.0
        %2775 = vmatprep.subr.mxu0 0.0
        %2776 = vmatpush1.msra.mxu0 0.0
        %2777 = vmatprep.subr.mxu0 0.0
        %2778 = vmatpush1.msra.mxu0 0.0
        %2779 = vmatprep.subr.mxu0 0.0
        %2780 = vmatpush1.msra.mxu0 0.0
        %2781 = vmatprep.subr.mxu0 0.0
        %2782 = vmatpush1.msra.mxu0 0.0
        %2783 = vmatprep.subr.mxu0 0.0
        %2784 = vmatpush1.msra.mxu0 0.0
        %2785 = vmatprep.subr.mxu0 0.0
        %2786 = vmatpush1.msra.mxu0 0.0
        %2787 = vmatprep.subr.mxu0 0.0
        %2788 = vmatpush1.msra.mxu0 0.0
        %2789 = vmatprep.subr.mxu0 0.0
        %2790 = vmatpush1.msra.mxu0 0.0
        %2791 = vmatprep.subr.mxu0 0.0
        %2792 = vmatpush1.msra.mxu0 0.0
        %2793 = vmatprep.mubr.f32.mxu0 0.0
        %v2794 = vand.u32 %v2020, 4294901760
        %v2795 = vsub.f32 %v2020, %v2794
        %v2796 = vand.u32 %v2795, 4294901760
        %v2797 = vsub.f32 %v2795, %v2796
        %v2798 = vand.u32 %v2797, 4294901760
        %2799 = vmatmul.mubr.f32.gmra.mrb[0].mxu0 %v2798
        %v2800 = vpop.f32.mrb[0].mxu0
        %v2801 = vadd.f32 %v2002, %v2800
        %v2802 = vpop.f32.mrb[0].mxu0
        %v2803 = vadd.f32 %v2002, %v2802
        %2804 = vmatprep.mubr.f32.mxu0 0.0
        %v2805 = vand.u32 %v2023, 4294901760
        %v2806 = vsub.f32 %v2023, %v2805
        %v2807 = vand.u32 %v2806, 4294901760
        %v2808 = vsub.f32 %v2806, %v2807
        %v2809 = vand.u32 %v2808, 4294901760
        %2810 = vmatmul.mubr.f32.gmra.mrb[0].mxu0 %v2809
        %v2811 = vpop.f32.mrb[0].mxu0
        %v2812 = vadd.f32 %v2007, %v2811
        %v2813 = vpop.f32.mrb[0].mxu0
        %v2814 = vadd.f32 %v2007, %v2813
        %2815 = vmatprep.mubr.f32.mxu0 0.0
        %v2816 = vand.u32 %v2026, 4294901760
        %v2817 = vsub.f32 %v2026, %v2816
        %v2818 = vand.u32 %v2817, 4294901760
        %v2819 = vsub.f32 %v2817, %v2818
        %v2820 = vand.u32 %v2819, 4294901760
        %2821 = vmatmul.mubr.f32.gmra.mrb[0].mxu0 %v2820
        %v2822 = vpop.f32.mrb[0].mxu0
        %v2823 = vadd.f32 %v2012, %v2822
        %v2824 = vpop.f32.mrb[0].mxu0
        %v2825 = vadd.f32 %v2012, %v2824
        %2826 = vmatprep.mubr.f32.mxu0 0.0
        %v2827 = vand.u32 %v2029, 4294901760
        %v2828 = vsub.f32 %v2029, %v2827
        %v2829 = vand.u32 %v2828, 4294901760
        %v2830 = vsub.f32 %v2828, %v2829
        %v2831 = vand.u32 %v2830, 4294901760
        %2832 = vmatmul.mubr.f32.gmra.mrb[0].mxu0 %v2831
        %v2833 = vpop.f32.mrb[0].mxu0
        %v2834 = vadd.f32 %v2017, %v2833
        %v2835 = vpop.f32.mrb[0].mxu0
        %v2836 = vadd.f32 %v2017, %v2835
        %2837 = vdwg.mxu0
        %v2838 = vand.u32 %v1978, 4294901760
        %v2839 = vsub.f32 %v1978, %v2838
        %v2840 = vand.u32 %v2839, 4294901760
        %v2841 = vsub.f32 %v2839, %v2840
        %v2842 = vand.u32 %v2841, 4294901760
        %2843 = vmatprep.subr.mxu0 %v2842
        %v2844 = vand.u32 %v1977, 4294901760
        %v2845 = vsub.f32 %v1977, %v2844
        %v2846 = vand.u32 %v2845, 4294901760
        %v2847 = vsub.f32 %v2845, %v2846
        %v2848 = vand.u32 %v2847, 4294901760
        %2849 = vmatpush1.msra.mxu0 %v2848
        %v2850 = vand.u32 %v1982, 4294901760
        %v2851 = vsub.f32 %v1982, %v2850
        %v2852 = vand.u32 %v2851, 4294901760
        %v2853 = vsub.f32 %v2851, %v2852
        %v2854 = vand.u32 %v2853, 4294901760
        %2855 = vmatprep.subr.mxu0 %v2854
        %v2856 = vand.u32 %v1981, 4294901760
        %v2857 = vsub.f32 %v1981, %v2856
        %v2858 = vand.u32 %v2857, 4294901760
        %v2859 = vsub.f32 %v2857, %v2858
        %v2860 = vand.u32 %v2859, 4294901760
        %2861 = vmatpush1.msra.mxu0 %v2860
        %v2862 = vand.u32 %v1986, 4294901760
        %v2863 = vsub.f32 %v1986, %v2862
        %v2864 = vand.u32 %v2863, 4294901760
        %v2865 = vsub.f32 %v2863, %v2864
        %v2866 = vand.u32 %v2865, 4294901760
        %2867 = vmatprep.subr.mxu0 %v2866
        %v2868 = vand.u32 %v1985, 4294901760
        %v2869 = vsub.f32 %v1985, %v2868
        %v2870 = vand.u32 %v2869, 4294901760
        %v2871 = vsub.f32 %v2869, %v2870
        %v2872 = vand.u32 %v2871, 4294901760
        %2873 = vmatpush1.msra.mxu0 %v2872
        %v2874 = vand.u32 %v1990, 4294901760
        %v2875 = vsub.f32 %v1990, %v2874
        %v2876 = vand.u32 %v2875, 4294901760
        %v2877 = vsub.f32 %v2875, %v2876
        %v2878 = vand.u32 %v2877, 4294901760
        %2879 = vmatprep.subr.mxu0 %v2878
        %v2880 = vand.u32 %v1989, 4294901760
        %v2881 = vsub.f32 %v1989, %v2880
        %v2882 = vand.u32 %v2881, 4294901760
        %v2883 = vsub.f32 %v2881, %v2882
        %v2884 = vand.u32 %v2883, 4294901760
        %2885 = vmatpush1.msra.mxu0 %v2884
        %2886 = vmatprep.subr.mxu0 0.0
        %2887 = vmatpush1.msra.mxu0 0.0
        %2888 = vmatprep.subr.mxu0 0.0
        %2889 = vmatpush1.msra.mxu0 0.0
        %2890 = vmatprep.subr.mxu0 0.0
        %2891 = vmatpush1.msra.mxu0 0.0
        %2892 = vmatprep.subr.mxu0 0.0
        %2893 = vmatpush1.msra.mxu0 0.0
        %2894 = vmatprep.subr.mxu0 0.0
        %2895 = vmatpush1.msra.mxu0 0.0
        %2896 = vmatprep.subr.mxu0 0.0
        %2897 = vmatpush1.msra.mxu0 0.0
        %2898 = vmatprep.subr.mxu0 0.0
        %2899 = vmatpush1.msra.mxu0 0.0
        %2900 = vmatprep.subr.mxu0 0.0
        %2901 = vmatpush1.msra.mxu0 0.0
        %2902 = vmatprep.subr.mxu0 0.0
        %2903 = vmatpush1.msra.mxu0 0.0
        %2904 = vmatprep.subr.mxu0 0.0
        %2905 = vmatpush1.msra.mxu0 0.0
        %2906 = vmatprep.subr.mxu0 0.0
        %2907 = vmatpush1.msra.mxu0 0.0
        %2908 = vmatprep.subr.mxu0 0.0
        %2909 = vmatpush1.msra.mxu0 0.0
        %2910 = vmatprep.subr.mxu0 0.0
        %2911 = vmatpush1.msra.mxu0 0.0
        %2912 = vmatprep.subr.mxu0 0.0
        %2913 = vmatpush1.msra.mxu0 0.0
        %2914 = vmatprep.subr.mxu0 0.0
        %2915 = vmatpush1.msra.mxu0 0.0
        %2916 = vmatprep.subr.mxu0 0.0
        %2917 = vmatpush1.msra.mxu0 0.0
        %2918 = vmatprep.subr.mxu0 0.0
        %2919 = vmatpush1.msra.mxu0 0.0
        %2920 = vmatprep.subr.mxu0 0.0
        %2921 = vmatpush1.msra.mxu0 0.0
        %2922 = vmatprep.subr.mxu0 0.0
        %2923 = vmatpush1.msra.mxu0 0.0
        %2924 = vmatprep.subr.mxu0 0.0
        %2925 = vmatpush1.msra.mxu0 0.0
        %2926 = vmatprep.subr.mxu0 0.0
        %2927 = vmatpush1.msra.mxu0 0.0
        %2928 = vmatprep.subr.mxu0 0.0
        %2929 = vmatpush1.msra.mxu0 0.0
        %2930 = vmatprep.subr.mxu0 0.0
        %2931 = vmatpush1.msra.mxu0 0.0
        %2932 = vmatprep.subr.mxu0 0.0
        %2933 = vmatpush1.msra.mxu0 0.0
        %2934 = vmatprep.subr.mxu0 0.0
        %2935 = vmatpush1.msra.mxu0 0.0
        %2936 = vmatprep.subr.mxu0 0.0
        %2937 = vmatpush1.msra.mxu0 0.0
        %2938 = vmatprep.subr.mxu0 0.0
        %2939 = vmatpush1.msra.mxu0 0.0
        %2940 = vmatprep.subr.mxu0 0.0
        %2941 = vmatpush1.msra.mxu0 0.0
        %2942 = vmatprep.mubr.f32.mxu0 0.0
        %v2943 = vand.u32 %v2020, 4294901760
        %2944 = vmatmul.mubr.f32.gmra.mrb[0].mxu0 %v2943
        %v2945 = vpop.f32.mrb[0].mxu0
        %v2946 = vadd.f32 %v2801, %v2945
        %v2947 = vpop.f32.mrb[0].mxu0
        %v2948 = vadd.f32 %v2803, %v2947
        %2949 = vmatprep.mubr.f32.mxu0 0.0
        %v2950 = vand.u32 %v2023, 4294901760
        %2951 = vmatmul.mubr.f32.gmra.mrb[0].mxu0 %v2950
        %v2952 = vpop.f32.mrb[0].mxu0
        %v2953 = vadd.f32 %v2812, %v2952
        %v2954 = vpop.f32.mrb[0].mxu0
        %v2955 = vadd.f32 %v2814, %v2954
        %2956 = vmatprep.mubr.f32.mxu0 0.0
        %v2957 = vand.u32 %v2026, 4294901760
        %2958 = vmatmul.mubr.f32.gmra.mrb[0].mxu0 %v2957
        %v2959 = vpop.f32.mrb[0].mxu0
        %v2960 = vadd.f32 %v2823, %v2959
        %v2961 = vpop.f32.mrb[0].mxu0
        %v2962 = vadd.f32 %v2825, %v2961
        %2963 = vmatprep.mubr.f32.mxu0 0.0
        %v2964 = vand.u32 %v2029, 4294901760
        %2965 = vmatmul.mubr.f32.gmra.mrb[0].mxu0 %v2964
        %v2966 = vpop.f32.mrb[0].mxu0
        %v2967 = vadd.f32 %v2834, %v2966
        %v2968 = vpop.f32.mrb[0].mxu0
        %v2969 = vadd.f32 %v2836, %v2968
        %2970 = vdwg.mxu0
        %v2971 = vand.u32 %v1978, 4294901760
        %v2972 = vsub.f32 %v1978, %v2971
        %2973 = vmatprep.subr.mxu0 %v2972
        %v2974 = vand.u32 %v1977, 4294901760
        %v2975 = vsub.f32 %v1977, %v2974
        %2976 = vmatpush1.msra.mxu0 %v2975
        %v2977 = vand.u32 %v1982, 4294901760
        %v2978 = vsub.f32 %v1982, %v2977
        %2979 = vmatprep.subr.mxu0 %v2978
        %v2980 = vand.u32 %v1981, 4294901760
        %v2981 = vsub.f32 %v1981, %v2980
        %2982 = vmatpush1.msra.mxu0 %v2981
        %v2983 = vand.u32 %v1986, 4294901760
        %v2984 = vsub.f32 %v1986, %v2983
        %2985 = vmatprep.subr.mxu0 %v2984
        %v2986 = vand.u32 %v1985, 4294901760
        %v2987 = vsub.f32 %v1985, %v2986
        %2988 = vmatpush1.msra.mxu0 %v2987
        %v2989 = vand.u32 %v1990, 4294901760
        %v2990 = vsub.f32 %v1990, %v2989
        %2991 = vmatprep.subr.mxu0 %v2990
        %v2992 = vand.u32 %v1989, 4294901760
        %v2993 = vsub.f32 %v1989, %v2992
        %2994 = vmatpush1.msra.mxu0 %v2993
        %2995 = vmatprep.subr.mxu0 0.0
        %2996 = vmatpush1.msra.mxu0 0.0
        %2997 = vmatprep.subr.mxu0 0.0
        %2998 = vmatpush1.msra.mxu0 0.0
        %2999 = vmatprep.subr.mxu0 0.0
        %3000 = vmatpush1.msra.mxu0 0.0
        %3001 = vmatprep.subr.mxu0 0.0
        %3002 = vmatpush1.msra.mxu0 0.0
        %3003 = vmatprep.subr.mxu0 0.0
        %3004 = vmatpush1.msra.mxu0 0.0
        %3005 = vmatprep.subr.mxu0 0.0
        %3006 = vmatpush1.msra.mxu0 0.0
        %3007 = vmatprep.subr.mxu0 0.0
        %3008 = vmatpush1.msra.mxu0 0.0
        %3009 = vmatprep.subr.mxu0 0.0
        %3010 = vmatpush1.msra.mxu0 0.0
        %3011 = vmatprep.subr.mxu0 0.0
        %3012 = vmatpush1.msra.mxu0 0.0
        %3013 = vmatprep.subr.mxu0 0.0
        %3014 = vmatpush1.msra.mxu0 0.0
        %3015 = vmatprep.subr.mxu0 0.0
        %3016 = vmatpush1.msra.mxu0 0.0
        %3017 = vmatprep.subr.mxu0 0.0
        %3018 = vmatpush1.msra.mxu0 0.0
        %3019 = vmatprep.subr.mxu0 0.0
        %3020 = vmatpush1.msra.mxu0 0.0
        %3021 = vmatprep.subr.mxu0 0.0
        %3022 = vmatpush1.msra.mxu0 0.0
        %3023 = vmatprep.subr.mxu0 0.0
        %3024 = vmatpush1.msra.mxu0 0.0
        %3025 = vmatprep.subr.mxu0 0.0
        %3026 = vmatpush1.msra.mxu0 0.0
        %3027 = vmatprep.subr.mxu0 0.0
        %3028 = vmatpush1.msra.mxu0 0.0
        %3029 = vmatprep.subr.mxu0 0.0
        %3030 = vmatpush1.msra.mxu0 0.0
        %3031 = vmatprep.subr.mxu0 0.0
        %3032 = vmatpush1.msra.mxu0 0.0
        %3033 = vmatprep.subr.mxu0 0.0
        %3034 = vmatpush1.msra.mxu0 0.0
        %3035 = vmatprep.subr.mxu0 0.0
        %3036 = vmatpush1.msra.mxu0 0.0
        %3037 = vmatprep.subr.mxu0 0.0
        %3038 = vmatpush1.msra.mxu0 0.0
        %3039 = vmatprep.subr.mxu0 0.0
        %3040 = vmatpush1.msra.mxu0 0.0
        %3041 = vmatprep.subr.mxu0 0.0
        %3042 = vmatpush1.msra.mxu0 0.0
        %3043 = vmatprep.subr.mxu0 0.0
        %3044 = vmatpush1.msra.mxu0 0.0
        %3045 = vmatprep.subr.mxu0 0.0
        %3046 = vmatpush1.msra.mxu0 0.0
        %3047 = vmatprep.subr.mxu0 0.0
        %3048 = vmatpush1.msra.mxu0 0.0
        %3049 = vmatprep.subr.mxu0 0.0
        %3050 = vmatpush1.msra.mxu0 0.0
        %3051 = vmatprep.mubr.f32.mxu0 0.0
        %v3052 = vand.u32 %v2020, 4294901760
        %v3053 = vsub.f32 %v2020, %v3052
        %3054 = vmatmul.mubr.f32.gmra.mrb[0].mxu0 %v3053
        %v3055 = vpop.f32.mrb[0].mxu0
        %v3056 = vadd.f32 %v2946, %v3055
        %v3057 = vpop.f32.mrb[0].mxu0
        %v3058 = vadd.f32 %v2948, %v3057
        %3059 = vmatprep.mubr.f32.mxu0 0.0
        %v3060 = vand.u32 %v2023, 4294901760
        %v3061 = vsub.f32 %v2023, %v3060
        %3062 = vmatmul.mubr.f32.gmra.mrb[0].mxu0 %v3061
        %v3063 = vpop.f32.mrb[0].mxu0
        %v3064 = vadd.f32 %v2953, %v3063
        %v3065 = vpop.f32.mrb[0].mxu0
        %v3066 = vadd.f32 %v2955, %v3065
        %3067 = vmatprep.mubr.f32.mxu0 0.0
        %v3068 = vand.u32 %v2026, 4294901760
        %v3069 = vsub.f32 %v2026, %v3068
        %3070 = vmatmul.mubr.f32.gmra.mrb[0].mxu0 %v3069
        %v3071 = vpop.f32.mrb[0].mxu0
        %v3072 = vadd.f32 %v2960, %v3071
        %v3073 = vpop.f32.mrb[0].mxu0
        %v3074 = vadd.f32 %v2962, %v3073
        %3075 = vmatprep.mubr.f32.mxu0 0.0
        %v3076 = vand.u32 %v2029, 4294901760
        %v3077 = vsub.f32 %v2029, %v3076
        %3078 = vmatmul.mubr.f32.gmra.mrb[0].mxu0 %v3077
        %v3079 = vpop.f32.mrb[0].mxu0
        %v3080 = vadd.f32 %v2967, %v3079
        %v3081 = vpop.f32.mrb[0].mxu0
        %v3082 = vadd.f32 %v2969, %v3081
        %3083 = vdwg.mxu0
        %v3084 = vand.u32 %v1978, 4294901760
        %3085 = vmatprep.subr.mxu0 %v3084
        %v3086 = vand.u32 %v1977, 4294901760
        %3087 = vmatpush1.msra.mxu0 %v3086
        %v3088 = vand.u32 %v1982, 4294901760
        %3089 = vmatprep.subr.mxu0 %v3088
        %v3090 = vand.u32 %v1981, 4294901760
        %3091 = vmatpush1.msra.mxu0 %v3090
        %v3092 = vand.u32 %v1986, 4294901760
        %3093 = vmatprep.subr.mxu0 %v3092
        %v3094 = vand.u32 %v1985, 4294901760
        %3095 = vmatpush1.msra.mxu0 %v3094
        %v3096 = vand.u32 %v1990, 4294901760
        %3097 = vmatprep.subr.mxu0 %v3096
        %v3098 = vand.u32 %v1989, 4294901760
        %3099 = vmatpush1.msra.mxu0 %v3098
        %3100 = vmatprep.subr.mxu0 0.0
        %3101 = vmatpush1.msra.mxu0 0.0
        %3102 = vmatprep.subr.mxu0 0.0
        %3103 = vmatpush1.msra.mxu0 0.0
        %3104 = vmatprep.subr.mxu0 0.0
        %3105 = vmatpush1.msra.mxu0 0.0
        %3106 = vmatprep.subr.mxu0 0.0
        %3107 = vmatpush1.msra.mxu0 0.0
        %3108 = vmatprep.subr.mxu0 0.0
        %3109 = vmatpush1.msra.mxu0 0.0
        %3110 = vmatprep.subr.mxu0 0.0
        %3111 = vmatpush1.msra.mxu0 0.0
        %3112 = vmatprep.subr.mxu0 0.0
        %3113 = vmatpush1.msra.mxu0 0.0
        %3114 = vmatprep.subr.mxu0 0.0
        %3115 = vmatpush1.msra.mxu0 0.0
        %3116 = vmatprep.subr.mxu0 0.0
        %3117 = vmatpush1.msra.mxu0 0.0
        %3118 = vmatprep.subr.mxu0 0.0
        %3119 = vmatpush1.msra.mxu0 0.0
        %3120 = vmatprep.subr.mxu0 0.0
        %3121 = vmatpush1.msra.mxu0 0.0
        %3122 = vmatprep.subr.mxu0 0.0
        %3123 = vmatpush1.msra.mxu0 0.0
        %3124 = vmatprep.subr.mxu0 0.0
        %3125 = vmatpush1.msra.mxu0 0.0
        %3126 = vmatprep.subr.mxu0 0.0
        %3127 = vmatpush1.msra.mxu0 0.0
        %3128 = vmatprep.subr.mxu0 0.0
        %3129 = vmatpush1.msra.mxu0 0.0
        %3130 = vmatprep.subr.mxu0 0.0
        %3131 = vmatpush1.msra.mxu0 0.0
        %3132 = vmatprep.subr.mxu0 0.0
        %3133 = vmatpush1.msra.mxu0 0.0
        %3134 = vmatprep.subr.mxu0 0.0
        %3135 = vmatpush1.msra.mxu0 0.0
        %3136 = vmatprep.subr.mxu0 0.0
        %3137 = vmatpush1.msra.mxu0 0.0
        %3138 = vmatprep.subr.mxu0 0.0
        %3139 = vmatpush1.msra.mxu0 0.0
        %3140 = vmatprep.subr.mxu0 0.0
        %3141 = vmatpush1.msra.mxu0 0.0
        %3142 = vmatprep.subr.mxu0 0.0
        %3143 = vmatpush1.msra.mxu0 0.0
        %3144 = vmatprep.subr.mxu0 0.0
        %3145 = vmatpush1.msra.mxu0 0.0
        %3146 = vmatprep.subr.mxu0 0.0
        %3147 = vmatpush1.msra.mxu0 0.0
        %3148 = vmatprep.subr.mxu0 0.0
        %3149 = vmatpush1.msra.mxu0 0.0
        %3150 = vmatprep.subr.mxu0 0.0
        %3151 = vmatpush1.msra.mxu0 0.0
        %3152 = vmatprep.subr.mxu0 0.0
        %3153 = vmatpush1.msra.mxu0 0.0
        %3154 = vmatprep.subr.mxu0 0.0
        %3155 = vmatpush1.msra.mxu0 0.0
        %3156 = vmatprep.mubr.f32.mxu0 0.0
        %v3157 = vand.u32 %v2020, 4294901760
        %v3158 = vsub.f32 %v2020, %v3157
        %v3159 = vand.u32 %v3158, 4294901760
        %3160 = vmatmul.mubr.f32.gmra.mrb[0].mxu0 %v3159
        %v3161 = vpop.f32.mrb[0].mxu0
        %v3162 = vadd.f32 %v3056, %v3161
        %v3163 = vpop.f32.mrb[0].mxu0
        %v3164 = vadd.f32 %v3058, %v3163
        %3165 = vmatprep.mubr.f32.mxu0 0.0
        %v3166 = vand.u32 %v2023, 4294901760
        %v3167 = vsub.f32 %v2023, %v3166
        %v3168 = vand.u32 %v3167, 4294901760
        %3169 = vmatmul.mubr.f32.gmra.mrb[0].mxu0 %v3168
        %v3170 = vpop.f32.mrb[0].mxu0
        %v3171 = vadd.f32 %v3064, %v3170
        %v3172 = vpop.f32.mrb[0].mxu0
        %v3173 = vadd.f32 %v3066, %v3172
        %3174 = vmatprep.mubr.f32.mxu0 0.0
        %v3175 = vand.u32 %v2026, 4294901760
        %v3176 = vsub.f32 %v2026, %v3175
        %v3177 = vand.u32 %v3176, 4294901760
        %3178 = vmatmul.mubr.f32.gmra.mrb[0].mxu0 %v3177
        %v3179 = vpop.f32.mrb[0].mxu0
        %v3180 = vadd.f32 %v3072, %v3179
        %v3181 = vpop.f32.mrb[0].mxu0
        %v3182 = vadd.f32 %v3074, %v3181
        %3183 = vmatprep.mubr.f32.mxu0 0.0
        %v3184 = vand.u32 %v2029, 4294901760
        %v3185 = vsub.f32 %v2029, %v3184
        %v3186 = vand.u32 %v3185, 4294901760
        %3187 = vmatmul.mubr.f32.gmra.mrb[0].mxu0 %v3186
        %v3188 = vpop.f32.mrb[0].mxu0
        %v3189 = vadd.f32 %v3080, %v3188
        %v3190 = vpop.f32.mrb[0].mxu0
        %v3191 = vadd.f32 %v3082, %v3190
        %3192 = vdwg.mxu0
        %v3193 = vand.u32 %v1978, 4294901760
        %v3194 = vsub.f32 %v1978, %v3193
        %v3195 = vand.u32 %v3194, 4294901760
        %3196 = vmatprep.subr.mxu0 %v3195
        %v3197 = vand.u32 %v1977, 4294901760
        %v3198 = vsub.f32 %v1977, %v3197
        %v3199 = vand.u32 %v3198, 4294901760
        %3200 = vmatpush1.msra.mxu0 %v3199
        %v3201 = vand.u32 %v1982, 4294901760
        %v3202 = vsub.f32 %v1982, %v3201
        %v3203 = vand.u32 %v3202, 4294901760
        %3204 = vmatprep.subr.mxu0 %v3203
        %v3205 = vand.u32 %v1981, 4294901760
        %v3206 = vsub.f32 %v1981, %v3205
        %v3207 = vand.u32 %v3206, 4294901760
        %3208 = vmatpush1.msra.mxu0 %v3207
        %v3209 = vand.u32 %v1986, 4294901760
        %v3210 = vsub.f32 %v1986, %v3209
        %v3211 = vand.u32 %v3210, 4294901760
        %3212 = vmatprep.subr.mxu0 %v3211
        %v3213 = vand.u32 %v1985, 4294901760
        %v3214 = vsub.f32 %v1985, %v3213
        %v3215 = vand.u32 %v3214, 4294901760
        %3216 = vmatpush1.msra.mxu0 %v3215
        %v3217 = vand.u32 %v1990, 4294901760
        %v3218 = vsub.f32 %v1990, %v3217
        %v3219 = vand.u32 %v3218, 4294901760
        %3220 = vmatprep.subr.mxu0 %v3219
        %v3221 = vand.u32 %v1989, 4294901760
        %v3222 = vsub.f32 %v1989, %v3221
        %v3223 = vand.u32 %v3222, 4294901760
        %3224 = vmatpush1.msra.mxu0 %v3223
        %3225 = vmatprep.subr.mxu0 0.0
        %3226 = vmatpush1.msra.mxu0 0.0
        %3227 = vmatprep.subr.mxu0 0.0
        %3228 = vmatpush1.msra.mxu0 0.0
        %3229 = vmatprep.subr.mxu0 0.0
        %3230 = vmatpush1.msra.mxu0 0.0
        %3231 = vmatprep.subr.mxu0 0.0
        %3232 = vmatpush1.msra.mxu0 0.0
        %3233 = vmatprep.subr.mxu0 0.0
        %3234 = vmatpush1.msra.mxu0 0.0
        %3235 = vmatprep.subr.mxu0 0.0
        %3236 = vmatpush1.msra.mxu0 0.0
        %3237 = vmatprep.subr.mxu0 0.0
        %3238 = vmatpush1.msra.mxu0 0.0
        %3239 = vmatprep.subr.mxu0 0.0
        %3240 = vmatpush1.msra.mxu0 0.0
        %3241 = vmatprep.subr.mxu0 0.0
        %3242 = vmatpush1.msra.mxu0 0.0
        %3243 = vmatprep.subr.mxu0 0.0
        %3244 = vmatpush1.msra.mxu0 0.0
        %3245 = vmatprep.subr.mxu0 0.0
        %3246 = vmatpush1.msra.mxu0 0.0
        %3247 = vmatprep.subr.mxu0 0.0
        %3248 = vmatpush1.msra.mxu0 0.0
        %3249 = vmatprep.subr.mxu0 0.0
        %3250 = vmatpush1.msra.mxu0 0.0
        %3251 = vmatprep.subr.mxu0 0.0
        %3252 = vmatpush1.msra.mxu0 0.0
        %3253 = vmatprep.subr.mxu0 0.0
        %3254 = vmatpush1.msra.mxu0 0.0
        %3255 = vmatprep.subr.mxu0 0.0
        %3256 = vmatpush1.msra.mxu0 0.0
        %3257 = vmatprep.subr.mxu0 0.0
        %3258 = vmatpush1.msra.mxu0 0.0
        %3259 = vmatprep.subr.mxu0 0.0
        %3260 = vmatpush1.msra.mxu0 0.0
        %3261 = vmatprep.subr.mxu0 0.0
        %3262 = vmatpush1.msra.mxu0 0.0
        %3263 = vmatprep.subr.mxu0 0.0
        %3264 = vmatpush1.msra.mxu0 0.0
        %3265 = vmatprep.subr.mxu0 0.0
        %3266 = vmatpush1.msra.mxu0 0.0
        %3267 = vmatprep.subr.mxu0 0.0
        %3268 = vmatpush1.msra.mxu0 0.0
        %3269 = vmatprep.subr.mxu0 0.0
        %3270 = vmatpush1.msra.mxu0 0.0
        %3271 = vmatprep.subr.mxu0 0.0
        %3272 = vmatpush1.msra.mxu0 0.0
        %3273 = vmatprep.subr.mxu0 0.0
        %3274 = vmatpush1.msra.mxu0 0.0
        %3275 = vmatprep.subr.mxu0 0.0
        %3276 = vmatpush1.msra.mxu0 0.0
        %3277 = vmatprep.subr.mxu0 0.0
        %3278 = vmatpush1.msra.mxu0 0.0
        %3279 = vmatprep.subr.mxu0 0.0
        %3280 = vmatpush1.msra.mxu0 0.0
        %3281 = vmatprep.mubr.f32.mxu0 0.0
        %v3282 = vand.u32 %v2020, 4294901760
        %3283 = vmatmul.mubr.f32.gmra.mrb[0].mxu0 %v3282
        %v3284 = vpop.f32.mrb[0].mxu0
        %v3285 = vadd.f32 %v3162, %v3284
        %v3286 = vpop.f32.mrb[0].mxu0
        %v3287 = vadd.f32 %v3164, %v3286
        %3288 = vmatprep.mubr.f32.mxu0 0.0
        %v3289 = vand.u32 %v2023, 4294901760
        %3290 = vmatmul.mubr.f32.gmra.mrb[0].mxu0 %v3289
        %v3291 = vpop.f32.mrb[0].mxu0
        %v3292 = vadd.f32 %v3171, %v3291
        %v3293 = vpop.f32.mrb[0].mxu0
        %v3294 = vadd.f32 %v3173, %v3293
        %3295 = vmatprep.mubr.f32.mxu0 0.0
        %v3296 = vand.u32 %v2026, 4294901760
        %3297 = vmatmul.mubr.f32.gmra.mrb[0].mxu0 %v3296
        %v3298 = vpop.f32.mrb[0].mxu0
        %v3299 = vadd.f32 %v3180, %v3298
        %v3300 = vpop.f32.mrb[0].mxu0
        %v3301 = vadd.f32 %v3182, %v3300
        %3302 = vmatprep.mubr.f32.mxu0 0.0
        %v3303 = vand.u32 %v2029, 4294901760
        %3304 = vmatmul.mubr.f32.gmra.mrb[0].mxu0 %v3303
        %v3305 = vpop.f32.mrb[0].mxu0
        %v3306 = vadd.f32 %v3189, %v3305
        %v3307 = vpop.f32.mrb[0].mxu0
        %v3308 = vadd.f32 %v3191, %v3307
        %3309 = vdwg.mxu0
        %v3310 = vand.u32 %v1978, 4294901760
        %3311 = vmatprep.subr.mxu0 %v3310
        %v3312 = vand.u32 %v1977, 4294901760
        %3313 = vmatpush1.msra.mxu0 %v3312
        %v3314 = vand.u32 %v1982, 4294901760
        %3315 = vmatprep.subr.mxu0 %v3314
        %v3316 = vand.u32 %v1981, 4294901760
        %3317 = vmatpush1.msra.mxu0 %v3316
        %v3318 = vand.u32 %v1986, 4294901760
        %3319 = vmatprep.subr.mxu0 %v3318
        %v3320 = vand.u32 %v1985, 4294901760
        %3321 = vmatpush1.msra.mxu0 %v3320
        %v3322 = vand.u32 %v1990, 4294901760
        %3323 = vmatprep.subr.mxu0 %v3322
        %v3324 = vand.u32 %v1989, 4294901760
        %3325 = vmatpush1.msra.mxu0 %v3324
        %3326 = vmatprep.subr.mxu0 0.0
        %3327 = vmatpush1.msra.mxu0 0.0
        %3328 = vmatprep.subr.mxu0 0.0
        %3329 = vmatpush1.msra.mxu0 0.0
        %3330 = vmatprep.subr.mxu0 0.0
        %3331 = vmatpush1.msra.mxu0 0.0
        %3332 = vmatprep.subr.mxu0 0.0
        %3333 = vmatpush1.msra.mxu0 0.0
        %3334 = vmatprep.subr.mxu0 0.0
        %3335 = vmatpush1.msra.mxu0 0.0
        %3336 = vmatprep.subr.mxu0 0.0
        %3337 = vmatpush1.msra.mxu0 0.0
        %3338 = vmatprep.subr.mxu0 0.0
        %3339 = vmatpush1.msra.mxu0 0.0
        %3340 = vmatprep.subr.mxu0 0.0
        %3341 = vmatpush1.msra.mxu0 0.0
        %3342 = vmatprep.subr.mxu0 0.0
        %3343 = vmatpush1.msra.mxu0 0.0
        %3344 = vmatprep.subr.mxu0 0.0
        %3345 = vmatpush1.msra.mxu0 0.0
        %3346 = vmatprep.subr.mxu0 0.0
        %3347 = vmatpush1.msra.mxu0 0.0
        %3348 = vmatprep.subr.mxu0 0.0
        %3349 = vmatpush1.msra.mxu0 0.0
        %3350 = vmatprep.subr.mxu0 0.0
        %3351 = vmatpush1.msra.mxu0 0.0
        %3352 = vmatprep.subr.mxu0 0.0
        %3353 = vmatpush1.msra.mxu0 0.0
        %3354 = vmatprep.subr.mxu0 0.0
        %3355 = vmatpush1.msra.mxu0 0.0
        %3356 = vmatprep.subr.mxu0 0.0
        %3357 = vmatpush1.msra.mxu0 0.0
        %3358 = vmatprep.subr.mxu0 0.0
        %3359 = vmatpush1.msra.mxu0 0.0
        %3360 = vmatprep.subr.mxu0 0.0
        %3361 = vmatpush1.msra.mxu0 0.0
        %3362 = vmatprep.subr.mxu0 0.0
        %3363 = vmatpush1.msra.mxu0 0.0
        %3364 = vmatprep.subr.mxu0 0.0
        %3365 = vmatpush1.msra.mxu0 0.0
        %3366 = vmatprep.subr.mxu0 0.0
        %3367 = vmatpush1.msra.mxu0 0.0
        %3368 = vmatprep.subr.mxu0 0.0
        %3369 = vmatpush1.msra.mxu0 0.0
        %3370 = vmatprep.subr.mxu0 0.0
        %3371 = vmatpush1.msra.mxu0 0.0
        %3372 = vmatprep.subr.mxu0 0.0
        %3373 = vmatpush1.msra.mxu0 0.0
        %3374 = vmatprep.subr.mxu0 0.0
        %3375 = vmatpush1.msra.mxu0 0.0
        %3376 = vmatprep.subr.mxu0 0.0
        %3377 = vmatpush1.msra.mxu0 0.0
        %3378 = vmatprep.subr.mxu0 0.0
        %3379 = vmatpush1.msra.mxu0 0.0
        %3380 = vmatprep.subr.mxu0 0.0
        %3381 = vmatpush1.msra.mxu0 0.0
        %3382 = vmatprep.mubr.f32.mxu0 0.0
        %v3383 = vand.u32 %v2020, 4294901760
        %3384 = vmatmul.mubr.f32.gmra.mrb[0].mxu0 %v3383
        %v3385 = vpop.f32.mrb[0].mxu0
        %v3386 = vadd.f32 %v3285, %v3385
        %v3387 = vpop.f32.mrb[0].mxu0
        %v3388 = vadd.f32 %v3287, %v3387
        %3389 = vmatprep.mubr.f32.mxu0 0.0
        %v3390 = vand.u32 %v2023, 4294901760
        %3391 = vmatmul.mubr.f32.gmra.mrb[0].mxu0 %v3390
        %v3392 = vpop.f32.mrb[0].mxu0
        %v3393 = vadd.f32 %v3292, %v3392
        %v3394 = vpop.f32.mrb[0].mxu0
        %v3395 = vadd.f32 %v3294, %v3394
        %3396 = vmatprep.mubr.f32.mxu0 0.0
        %v3397 = vand.u32 %v2026, 4294901760
        %3398 = vmatmul.mubr.f32.gmra.mrb[0].mxu0 %v3397
        %v3399 = vpop.f32.mrb[0].mxu0
        %v3400 = vadd.f32 %v3299, %v3399
        %v3401 = vpop.f32.mrb[0].mxu0
        %v3402 = vadd.f32 %v3301, %v3401
        %3403 = vmatprep.mubr.f32.mxu0 0.0
        %v3404 = vand.u32 %v2029, 4294901760
        %3405 = vmatmul.mubr.f32.gmra.mrb[0].mxu0 %v3404
        %v3406 = vpop.f32.mrb[0].mxu0
        %v3407 = vadd.f32 %v3306, %v3406
        %v3408 = vpop.f32.mrb[0].mxu0
        %v3409 = vadd.f32 %v3308, %v3408
        %3410 = vdwg.mxu0
        %v3411 = vtanh.pop %v2696
        %v3412 = vtanh.pop %v2698
        %v3413 = vtanh.pop %v3386
        %v3414 = vtanh.pop %v3388
        %v3415 = vtanh.pop %v2703
        %v3416 = vtanh.pop %v2705
        %v3417 = vtanh.pop %v3393
        %v3418 = vtanh.pop %v3395
        %v3419 = vtanh.pop %v2710
        %v3420 = vtanh.pop %v2712
        %v3421 = vtanh.pop %v3400
        %v3422 = vtanh.pop %v3402
        %v3423 = vtanh.pop %v2717
        %v3424 = vtanh.pop %v2719
        %v3425 = vtanh.pop %v3407
        %v3426 = vtanh.pop %v3409
        %v3427 = vld [vmem:[%s7] sm:$0x1]
        %v3428 = vld [vmem:[#allocation2] sm:$0x1]
        %3429 = vxpose.xlu0.b32.start [1/16] %v3427, 128
        %3430 = vxpose.xlu0.b32.cont [2/16] 0.0, 128
        %3431 = vxpose.xlu0.b32.cont [3/16] 0.0, 128
        %3432 = vxpose.xlu0.b32.cont [4/16] 0.0, 128
        %3433 = vxpose.xlu0.b32.cont [5/16] 0.0, 128
        %3434 = vxpose.xlu0.b32.cont [6/16] 0.0, 128
        %3435 = vxpose.xlu0.b32.cont [7/16] 0.0, 128
        %3436 = vxpose.xlu0.b32.cont [8/16] 0.0, 128
        %3437 = vxpose.xlu0.b32.cont [9/16] 0.0, 128
        %3438 = vxpose.xlu0.b32.cont [10/16] 0.0, 128
        %3439 = vxpose.xlu0.b32.cont [11/16] 0.0, 128
        %3440 = vxpose.xlu0.b32.cont [12/16] 0.0, 128
        %3441 = vxpose.xlu0.b32.cont [13/16] 0.0, 128
        %3442 = vxpose.xlu0.b32.cont [14/16] 0.0, 128
        %3443 = vxpose.xlu0.b32.cont [15/16] 0.0, 128
        %3444 = vxpose.xlu0.b32.end [16/16] 0.0, 128
        %v3445 = vpop.trf.xlu0
        %v3446 = vpop.trf.xlu0
        %v3447 = vpop.trf.xlu0
        %v3448 = vpop.trf.xlu0
        %v3449 = vpop.trf.xlu0
        %v3450 = vpop.trf.xlu0
        %v3451 = vpop.trf.xlu0
        %v3452 = vpop.trf.xlu0
        %v3453 = vpop.trf.xlu0
        %v3454 = vpop.trf.xlu0
        %v3455 = vpop.trf.xlu0
        %v3456 = vpop.trf.xlu0
        %v3457 = vpop.trf.xlu0
        %v3458 = vpop.trf.xlu0
        %v3459 = vpop.trf.xlu0
        %v3460 = vpop.trf.xlu0
        %3462 = vset.pattern.permute.xlu0 0
        %3463 = vperm.xlu0 %3462, %v3445
        %v3464 = vpop.permute.xlu0 %3463
        %3467 = vset.pattern.permute.xlu0 0
        %3468 = vperm.xlu0 %3467, %v3446
        %v3469 = vpop.permute.xlu0 %3468
        %3472 = vset.pattern.permute.xlu0 0
        %3473 = vperm.xlu0 %3472, %v3447
        %v3474 = vpop.permute.xlu0 %3473
        %3477 = vset.pattern.permute.xlu0 0
        %3478 = vperm.xlu0 %3477, %v3448
        %v3479 = vpop.permute.xlu0 %3478
        %v3481 = vmul.f32 %v3464, %v3411
        %v3482 = vmul.f32 %v3464, %v3412
        %v3483 = vmul.f32 %v3464, %v3413
        %v3484 = vmul.f32 %v3464, %v3414
        %v3485 = vmul.f32 %v3469, %v3415
        %v3486 = vmul.f32 %v3469, %v3416
        %v3487 = vmul.f32 %v3469, %v3417
        %v3488 = vmul.f32 %v3469, %v3418
        %v3489 = vmul.f32 %v3474, %v3419
        %v3490 = vmul.f32 %v3474, %v3420
        %v3491 = vmul.f32 %v3474, %v3421
        %v3492 = vmul.f32 %v3474, %v3422
        %v3493 = vmul.f32 %v3479, %v3423
        %v3494 = vmul.f32 %v3479, %v3424
        %v3495 = vmul.f32 %v3479, %v3425
        %v3496 = vmul.f32 %v3479, %v3426
        %v3497 = vadd.f32 %v3481, %v3485
        %v3498 = vadd.f32 %v3497, %v3489
        %v3499 = vadd.f32 %v3498, %v3493
        %v3500 = vrot.slane %v3499, 4
        %v3501 = vadd.f32 %v3499, %v3500
        %v3502 = vrot.slane %v3501, 2
        %v3503 = vadd.f32 %v3501, %v3502
        %v3504 = vrot.slane %v3503, 1
        %v3505 = vadd.f32 %v3503, %v3504
        %v3506 = vadd.f32 %v3482, %v3486
        %v3507 = vadd.f32 %v3506, %v3490
        %v3508 = vadd.f32 %v3507, %v3494
        %v3509 = vrot.slane %v3508, 4
        %v3510 = vadd.f32 %v3508, %v3509
        %v3511 = vrot.slane %v3510, 2
        %v3512 = vadd.f32 %v3510, %v3511
        %v3513 = vrot.slane %v3512, 1
        %v3514 = vadd.f32 %v3512, %v3513
        %v3515 = vadd.f32 %v3483, %v3487
        %v3516 = vadd.f32 %v3515, %v3491
        %v3517 = vadd.f32 %v3516, %v3495
        %v3518 = vrot.slane %v3517, 4
        %v3519 = vadd.f32 %v3517, %v3518
        %v3520 = vrot.slane %v3519, 2
        %v3521 = vadd.f32 %v3519, %v3520
        %v3522 = vrot.slane %v3521, 1
        %v3523 = vadd.f32 %v3521, %v3522
        %v3524 = vadd.f32 %v3484, %v3488
        %v3525 = vadd.f32 %v3524, %v3492
        %v3526 = vadd.f32 %v3525, %v3496
        %v3527 = vrot.slane %v3526, 4
        %v3528 = vadd.f32 %v3526, %v3527
        %v3529 = vrot.slane %v3528, 2
        %v3530 = vadd.f32 %v3528, %v3529
        %v3531 = vrot.slane %v3530, 1
        %v3532 = vadd.f32 %v3530, %v3531
        %3534 = vset.pattern.permute.xlu0 0
        %3535 = vperm.xlu0 %3534, %v3428
        %v3536 = vpop.permute.xlu0 %3535
        %v3538 = vlaneseq
        %v3539 = vshrl.u32 %v3538, 7
        %v3540 = vsub.s32 0, %v3539
        %v3541 = vrot.slane %v3536, %v3540
        %v3542 = vadd.f32 %v3505, %v3541
        %v3543 = vadd.f32 %v3514, %v3541
        %v3544 = vadd.f32 %v3523, %v3541
        %v3545 = vadd.f32 %v3532, %v3541
        %v3550 = vcombine.low %v3542, %v3543
        %v3551 = vcombine.low %v3544, %v3545
        %v3553 = vunpack.c.l.s4 1966171168
        %v3554 = vunpack.c.0.s8 %v3553
        %v3555 = vlaneseq
        %v3556 = vshrl.u32 %v3555, 7
        %v3557 = vsub.s32 %v3554, %v3556
        %v3558 = vrot.slane %v3550, %v3557
        %v3560 = vunpack.c.l.s4 1966171168
        %v3561 = vunpack.c.0.s8 %v3560
        %v3562 = vlaneseq
        %v3563 = vshrl.u32 %v3562, 7
        %v3564 = vsub.s32 %v3561, %v3563
        %v3565 = vrot.slane %v3551, %v3564
        %v3566 = vcombine.low %v3558, %v3565
        %v3568 = vunpack.c.l.s4 1966171168
        %v3569 = vunpack.c.0.s8 %v3568
        %v3570 = vlaneseq
        %v3571 = vshrl.u32 %v3570, 7
        %v3572 = vsub.s32 %v3569, %v3571
        %v3573 = vrot.slane %v3566, %v3572
        %v3575 = vlaneseq
        %vm3576 = vcmp.ge.s32.totalorder %v3575, 0
        %vm3577 = vcmp.lt.s32.totalorder %v3575, 512
        %vm3578 = vmand %vm3576, %vm3577
        %3579 = vst.msk [vmem:[%s328] sm:$0xf] %vm3578, %v3573
        %s3580 = scalar_lea.vmem %s333, 8
        %v3581 = vld [vmem:[%s3580] sm:$0xff]
        %v3582 = vld [vmem:[%s1] sm:$0xff]
        %v3583 = vld [vmem:[%s1 + $0x8] sm:$0xff]
        %v3584 = vld [vmem:[%s1 + $0x10] sm:$0xff]
        %v3585 = vld [vmem:[%s1 + $0x18] sm:$0xff]
        %v3586 = vld [vmem:[%s2] sm:$0xff]
        %v3587 = vld [vmem:[%s2 + $0x8] sm:$0xff]
        %v3588 = vld [vmem:[%s2 + $0x10] sm:$0xff]
        %v3589 = vld [vmem:[%s2 + $0x18] sm:$0xff]
        %3591 = vset.pattern.permute.xlu0 0
        %3592 = vperm.xlu0 %3591, %v3586
        %v3593 = vpop.permute.xlu0 %3592
        %3596 = vset.pattern.permute.xlu0 0
        %3597 = vperm.xlu0 %3596, %v3587
        %v3598 = vpop.permute.xlu0 %3597
        %3601 = vset.pattern.permute.xlu0 0
        %3602 = vperm.xlu0 %3601, %v3588
        %v3603 = vpop.permute.xlu0 %3602
        %3606 = vset.pattern.permute.xlu0 0
        %3607 = vperm.xlu0 %3606, %v3589
        %v3608 = vpop.permute.xlu0 %3607
        %3611 = vset.pattern.permute.xlu0 0
        %3612 = vperm.xlu0 %3611, %v3582
        %v3613 = vpop.permute.xlu0 %3612
        %3616 = vset.pattern.permute.xlu0 0
        %3617 = vperm.xlu0 %3616, %v3583
        %v3618 = vpop.permute.xlu0 %3617
        %3621 = vset.pattern.permute.xlu0 0
        %3622 = vperm.xlu0 %3621, %v3584
        %v3623 = vpop.permute.xlu0 %3622
        %3626 = vset.pattern.permute.xlu0 0
        %3627 = vperm.xlu0 %3626, %v3585
        %v3628 = vpop.permute.xlu0 %3627
        %v3631 = vlaneseq
        %v3632 = vshrl.u32 %v3631, 7
        %v3633 = vsub.s32 0, %v3632
        %v3634 = vrot.slane %v3581, %v3633
        %v3635 = vlaneseq
        %v3636 = vshrl.u32 %v3635, 7
        %v3637 = vsub.s32 2, %v3636
        %v3638 = vrot.slane %v3581, %v3637
        %v3639 = vlaneseq
        %v3640 = vshrl.u32 %v3639, 7
        %v3641 = vsub.s32 4, %v3640
        %v3642 = vrot.slane %v3581, %v3641
        %v3643 = vlaneseq
        %v3644 = vshrl.u32 %v3643, 7
        %v3645 = vsub.s32 6, %v3644
        %v3646 = vrot.slane %v3581, %v3645
        %v3651 = vlaneseq
        %v3652 = vshrl.u32 %v3651, 7
        %v3653 = vsub.s32 0, %v3652
        %v3654 = vrot.slane %v3634, %v3653
        %v3655 = vlaneseq
        %v3656 = vshrl.u32 %v3655, 7
        %v3657 = vsub.s32 0, %v3656
        %v3658 = vrot.slane %v3638, %v3657
        %v3659 = vlaneseq
        %v3660 = vshrl.u32 %v3659, 7
        %v3661 = vsub.s32 0, %v3660
        %v3662 = vrot.slane %v3642, %v3661
        %v3663 = vlaneseq
        %v3664 = vshrl.u32 %v3663, 7
        %v3665 = vsub.s32 0, %v3664
        %v3666 = vrot.slane %v3646, %v3665
        %v3667 = vmul.f32 %v3613, %v3654
        %v3668 = vmul.f32 %v3613, %v3658
        %v3669 = vmul.f32 %v3613, %v3662
        %v3670 = vmul.f32 %v3613, %v3666
        %v3671 = vmul.f32 %v3618, %v3654
        %v3672 = vmul.f32 %v3618, %v3658
        %v3673 = vmul.f32 %v3618, %v3662
        %v3674 = vmul.f32 %v3618, %v3666
        %v3675 = vmul.f32 %v3623, %v3654
        %v3676 = vmul.f32 %v3623, %v3658
        %v3677 = vmul.f32 %v3623, %v3662
        %v3678 = vmul.f32 %v3623, %v3666
        %v3679 = vmul.f32 %v3628, %v3654
        %v3680 = vmul.f32 %v3628, %v3658
        %v3681 = vmul.f32 %v3628, %v3662
        %v3682 = vmul.f32 %v3628, %v3666
        %v3683 = vadd.f32 %v3593, %v3667
        %v3684 = vadd.f32 %v3593, %v3668
        %v3685 = vadd.f32 %v3593, %v3669
        %v3686 = vadd.f32 %v3593, %v3670
        %v3687 = vadd.f32 %v3598, %v3671
        %v3688 = vadd.f32 %v3598, %v3672
        %v3689 = vadd.f32 %v3598, %v3673
        %v3690 = vadd.f32 %v3598, %v3674
        %v3691 = vadd.f32 %v3603, %v3675
        %v3692 = vadd.f32 %v3603, %v3676
        %v3693 = vadd.f32 %v3603, %v3677
        %v3694 = vadd.f32 %v3603, %v3678
        %v3695 = vadd.f32 %v3608, %v3679
        %v3696 = vadd.f32 %v3608, %v3680
        %v3697 = vadd.f32 %v3608, %v3681
        %v3698 = vadd.f32 %v3608, %v3682
        %3699 = vset.pattern.permute.xlu0 1
        %3700 = vperm.xlu0 %3699, %v3582
        %v3701 = vpop.permute.xlu0 %3700
        %3703 = vset.pattern.permute.xlu0 1
        %3704 = vperm.xlu0 %3703, %v3583
        %v3705 = vpop.permute.xlu0 %3704
        %3707 = vset.pattern.permute.xlu0 1
        %3708 = vperm.xlu0 %3707, %v3584
        %v3709 = vpop.permute.xlu0 %3708
        %3711 = vset.pattern.permute.xlu0 1
        %3712 = vperm.xlu0 %3711, %v3585
        %v3713 = vpop.permute.xlu0 %3712
        %v3715 = vlaneseq
        %v3716 = vshrl.u32 %v3715, 7
        %v3717 = vsub.s32 1, %v3716
        %v3718 = vrot.slane %v3581, %v3717
        %v3719 = vlaneseq
        %v3720 = vshrl.u32 %v3719, 7
        %v3721 = vsub.s32 3, %v3720
        %v3722 = vrot.slane %v3581, %v3721
        %v3723 = vlaneseq
        %v3724 = vshrl.u32 %v3723, 7
        %v3725 = vsub.s32 5, %v3724
        %v3726 = vrot.slane %v3581, %v3725
        %v3727 = vlaneseq
        %v3728 = vshrl.u32 %v3727, 7
        %v3729 = vsub.s32 7, %v3728
        %v3730 = vrot.slane %v3581, %v3729
        %v3735 = vlaneseq
        %v3736 = vshrl.u32 %v3735, 7
        %v3737 = vsub.s32 1, %v3736
        %v3738 = vrot.slane %v3718, %v3737
        %v3739 = vlaneseq
        %v3740 = vshrl.u32 %v3739, 7
        %v3741 = vsub.s32 1, %v3740
        %v3742 = vrot.slane %v3722, %v3741
        %v3743 = vlaneseq
        %v3744 = vshrl.u32 %v3743, 7
        %v3745 = vsub.s32 1, %v3744
        %v3746 = vrot.slane %v3726, %v3745
        %v3747 = vlaneseq
        %v3748 = vshrl.u32 %v3747, 7
        %v3749 = vsub.s32 1, %v3748
        %v3750 = vrot.slane %v3730, %v3749
        %v3751 = vmul.f32 %v3701, %v3738
        %v3752 = vmul.f32 %v3701, %v3742
        %v3753 = vmul.f32 %v3701, %v3746
        %v3754 = vmul.f32 %v3701, %v3750
        %v3755 = vmul.f32 %v3705, %v3738
        %v3756 = vmul.f32 %v3705, %v3742
        %v3757 = vmul.f32 %v3705, %v3746
        %v3758 = vmul.f32 %v3705, %v3750
        %v3759 = vmul.f32 %v3709, %v3738
        %v3760 = vmul.f32 %v3709, %v3742
        %v3761 = vmul.f32 %v3709, %v3746
        %v3762 = vmul.f32 %v3709, %v3750
        %v3763 = vmul.f32 %v3713, %v3738
        %v3764 = vmul.f32 %v3713, %v3742
        %v3765 = vmul.f32 %v3713, %v3746
        %v3766 = vmul.f32 %v3713, %v3750
        %v3767 = vadd.f32 %v3683, %v3751
        %v3768 = vadd.f32 %v3684, %v3752
        %v3769 = vadd.f32 %v3685, %v3753
        %v3770 = vadd.f32 %v3686, %v3754
        %v3771 = vadd.f32 %v3687, %v3755
        %v3772 = vadd.f32 %v3688, %v3756
        %v3773 = vadd.f32 %v3689, %v3757
        %v3774 = vadd.f32 %v3690, %v3758
        %v3775 = vadd.f32 %v3691, %v3759
        %v3776 = vadd.f32 %v3692, %v3760
        %v3777 = vadd.f32 %v3693, %v3761
        %v3778 = vadd.f32 %v3694, %v3762
        %v3779 = vadd.f32 %v3695, %v3763
        %v3780 = vadd.f32 %v3696, %v3764
        %v3781 = vadd.f32 %v3697, %v3765
        %v3782 = vadd.f32 %v3698, %v3766
        %v3783 = vtanh.pop %v3767
        %v3784 = vtanh.pop %v3768
        %v3785 = vtanh.pop %v3769
        %v3786 = vtanh.pop %v3770
        %v3787 = vtanh.pop %v3771
        %v3788 = vtanh.pop %v3772
        %v3789 = vtanh.pop %v3773
        %v3790 = vtanh.pop %v3774
        %v3791 = vtanh.pop %v3775
        %v3792 = vtanh.pop %v3776
        %v3793 = vtanh.pop %v3777
        %v3794 = vtanh.pop %v3778
        %v3795 = vtanh.pop %v3779
        %v3796 = vtanh.pop %v3780
        %v3797 = vtanh.pop %v3781
        %v3798 = vtanh.pop %v3782
        %v3799 = vld [vmem:[%s3] sm:$0xff]
        %v3800 = vld [vmem:[%s3 + $0x8] sm:$0xff]
        %v3801 = vld [vmem:[%s3 + $0x10] sm:$0xff]
        %v3802 = vld [vmem:[%s3 + $0x18] sm:$0xff]
        %v3803 = vld [vmem:[%s4] sm:$0xff]
        %v3804 = vld [vmem:[%s4 + $0x8] sm:$0xff]
        %v3805 = vld [vmem:[%s4 + $0x10] sm:$0xff]
        %v3806 = vld [vmem:[%s4 + $0x18] sm:$0xff]
        %3808 = vset.pattern.permute.xlu0 0
        %3809 = vperm.xlu0 %3808, %v3803
        %v3810 = vpop.permute.xlu0 %3809
        %3813 = vset.pattern.permute.xlu0 0
        %3814 = vperm.xlu0 %3813, %v3804
        %v3815 = vpop.permute.xlu0 %3814
        %3818 = vset.pattern.permute.xlu0 0
        %3819 = vperm.xlu0 %3818, %v3805
        %v3820 = vpop.permute.xlu0 %3819
        %3823 = vset.pattern.permute.xlu0 0
        %3824 = vperm.xlu0 %3823, %v3806
        %v3825 = vpop.permute.xlu0 %3824
        %v3828 = vsel %vm582, %v3799, 0
        %v3831 = vsel %vm582, %v3800, 0
        %v3834 = vsel %vm582, %v3801, 0
        %v3837 = vsel %vm582, %v3802, 0
        %v3839 = vand.u32 %v3784, 4294901760
        %3840 = vmatprep.subr.mxu0 %v3839
        %v3841 = vand.u32 %v3783, 4294901760
        %3842 = vmatpush1.msra.mxu0 %v3841
        %v3843 = vand.u32 %v3788, 4294901760
        %3844 = vmatprep.subr.mxu0 %v3843
        %v3845 = vand.u32 %v3787, 4294901760
        %3846 = vmatpush1.msra.mxu0 %v3845
        %v3847 = vand.u32 %v3792, 4294901760
        %3848 = vmatprep.subr.mxu0 %v3847
        %v3849 = vand.u32 %v3791, 4294901760
        %3850 = vmatpush1.msra.mxu0 %v3849
        %v3851 = vand.u32 %v3796, 4294901760
        %3852 = vmatprep.subr.mxu0 %v3851
        %v3853 = vand.u32 %v3795, 4294901760
        %3854 = vmatpush1.msra.mxu0 %v3853
        %3855 = vmatprep.subr.mxu0 0.0
        %3856 = vmatpush1.msra.mxu0 0.0
        %3857 = vmatprep.subr.mxu0 0.0
        %3858 = vmatpush1.msra.mxu0 0.0
        %3859 = vmatprep.subr.mxu0 0.0
        %3860 = vmatpush1.msra.mxu0 0.0
        %3861 = vmatprep.subr.mxu0 0.0
        %3862 = vmatpush1.msra.mxu0 0.0
        %3863 = vmatprep.subr.mxu0 0.0
        %3864 = vmatpush1.msra.mxu0 0.0
        %3865 = vmatprep.subr.mxu0 0.0
        %3866 = vmatpush1.msra.mxu0 0.0
        %3867 = vmatprep.subr.mxu0 0.0
        %3868 = vmatpush1.msra.mxu0 0.0
        %3869 = vmatprep.subr.mxu0 0.0
        %3870 = vmatpush1.msra.mxu0 0.0
        %3871 = vmatprep.subr.mxu0 0.0
        %3872 = vmatpush1.msra.mxu0 0.0
        %3873 = vmatprep.subr.mxu0 0.0
        %3874 = vmatpush1.msra.mxu0 0.0
        %3875 = vmatprep.subr.mxu0 0.0
        %3876 = vmatpush1.msra.mxu0 0.0
        %3877 = vmatprep.subr.mxu0 0.0
        %3878 = vmatpush1.msra.mxu0 0.0
        %3879 = vmatprep.subr.mxu0 0.0
        %3880 = vmatpush1.msra.mxu0 0.0
        %3881 = vmatprep.subr.mxu0 0.0
        %3882 = vmatpush1.msra.mxu0 0.0
        %3883 = vmatprep.subr.mxu0 0.0
        %3884 = vmatpush1.msra.mxu0 0.0
        %3885 = vmatprep.subr.mxu0 0.0
        %3886 = vmatpush1.msra.mxu0 0.0
        %3887 = vmatprep.subr.mxu0 0.0
        %3888 = vmatpush1.msra.mxu0 0.0
        %3889 = vmatprep.subr.mxu0 0.0
        %3890 = vmatpush1.msra.mxu0 0.0
        %3891 = vmatprep.subr.mxu0 0.0
        %3892 = vmatpush1.msra.mxu0 0.0
        %3893 = vmatprep.subr.mxu0 0.0
        %3894 = vmatpush1.msra.mxu0 0.0
        %3895 = vmatprep.subr.mxu0 0.0
        %3896 = vmatpush1.msra.mxu0 0.0
        %3897 = vmatprep.subr.mxu0 0.0
        %3898 = vmatpush1.msra.mxu0 0.0
        %3899 = vmatprep.subr.mxu0 0.0
        %3900 = vmatpush1.msra.mxu0 0.0
        %3901 = vmatprep.subr.mxu0 0.0
        %3902 = vmatpush1.msra.mxu0 0.0
        %3903 = vmatprep.subr.mxu0 0.0
        %3904 = vmatpush1.msra.mxu0 0.0
        %3905 = vmatprep.subr.mxu0 0.0
        %3906 = vmatpush1.msra.mxu0 0.0
        %3907 = vmatprep.subr.mxu0 0.0
        %3908 = vmatpush1.msra.mxu0 0.0
        %3909 = vmatprep.subr.mxu0 0.0
        %3910 = vmatpush1.msra.mxu0 0.0
        %3911 = vmatprep.mubr.f32.mxu0 0.0
        %v3912 = vand.u32 %v3828, 4294901760
        %v3913 = vsub.f32 %v3828, %v3912
        %v3914 = vand.u32 %v3913, 4294901760
        %v3915 = vsub.f32 %v3913, %v3914
        %v3916 = vand.u32 %v3915, 4294901760
        %3917 = vmatmul.mubr.f32.gmra.mrb[0].mxu0 %v3916
        %v3918 = vpop.f32.mrb[0].mxu0
        %v3919 = vadd.f32 %v3810, %v3918
        %v3920 = vpop.f32.mrb[0].mxu0
        %v3921 = vadd.f32 %v3810, %v3920
        %3922 = vmatprep.mubr.f32.mxu0 0.0
        %v3923 = vand.u32 %v3831, 4294901760
        %v3924 = vsub.f32 %v3831, %v3923
        %v3925 = vand.u32 %v3924, 4294901760
        %v3926 = vsub.f32 %v3924, %v3925
        %v3927 = vand.u32 %v3926, 4294901760
        %3928 = vmatmul.mubr.f32.gmra.mrb[0].mxu0 %v3927
        %v3929 = vpop.f32.mrb[0].mxu0
        %v3930 = vadd.f32 %v3815, %v3929
        %v3931 = vpop.f32.mrb[0].mxu0
        %v3932 = vadd.f32 %v3815, %v3931
        %3933 = vmatprep.mubr.f32.mxu0 0.0
        %v3934 = vand.u32 %v3834, 4294901760
        %v3935 = vsub.f32 %v3834, %v3934
        %v3936 = vand.u32 %v3935, 4294901760
        %v3937 = vsub.f32 %v3935, %v3936
        %v3938 = vand.u32 %v3937, 4294901760
        %3939 = vmatmul.mubr.f32.gmra.mrb[0].mxu0 %v3938
        %v3940 = vpop.f32.mrb[0].mxu0
        %v3941 = vadd.f32 %v3820, %v3940
        %v3942 = vpop.f32.mrb[0].mxu0
        %v3943 = vadd.f32 %v3820, %v3942
        %3944 = vmatprep.mubr.f32.mxu0 0.0
        %v3945 = vand.u32 %v3837, 4294901760
        %v3946 = vsub.f32 %v3837, %v3945
        %v3947 = vand.u32 %v3946, 4294901760
        %v3948 = vsub.f32 %v3946, %v3947
        %v3949 = vand.u32 %v3948, 4294901760
        %3950 = vmatmul.mubr.f32.gmra.mrb[0].mxu0 %v3949
        %v3951 = vpop.f32.mrb[0].mxu0
        %v3952 = vadd.f32 %v3825, %v3951
        %v3953 = vpop.f32.mrb[0].mxu0
        %v3954 = vadd.f32 %v3825, %v3953
        %3955 = vdwg.mxu0
        %v3956 = vand.u32 %v3784, 4294901760
        %v3957 = vsub.f32 %v3784, %v3956
        %v3958 = vand.u32 %v3957, 4294901760
        %v3959 = vsub.f32 %v3957, %v3958
        %v3960 = vand.u32 %v3959, 4294901760
        %3961 = vmatprep.subr.mxu0 %v3960
        %v3962 = vand.u32 %v3783, 4294901760
        %v3963 = vsub.f32 %v3783, %v3962
        %v3964 = vand.u32 %v3963, 4294901760
        %v3965 = vsub.f32 %v3963, %v3964
        %v3966 = vand.u32 %v3965, 4294901760
        %3967 = vmatpush1.msra.mxu0 %v3966
        %v3968 = vand.u32 %v3788, 4294901760
        %v3969 = vsub.f32 %v3788, %v3968
        %v3970 = vand.u32 %v3969, 4294901760
        %v3971 = vsub.f32 %v3969, %v3970
        %v3972 = vand.u32 %v3971, 4294901760
        %3973 = vmatprep.subr.mxu0 %v3972
        %v3974 = vand.u32 %v3787, 4294901760
        %v3975 = vsub.f32 %v3787, %v3974
        %v3976 = vand.u32 %v3975, 4294901760
        %v3977 = vsub.f32 %v3975, %v3976
        %v3978 = vand.u32 %v3977, 4294901760
        %3979 = vmatpush1.msra.mxu0 %v3978
        %v3980 = vand.u32 %v3792, 4294901760
        %v3981 = vsub.f32 %v3792, %v3980
        %v3982 = vand.u32 %v3981, 4294901760
        %v3983 = vsub.f32 %v3981, %v3982
        %v3984 = vand.u32 %v3983, 4294901760
        %3985 = vmatprep.subr.mxu0 %v3984
        %v3986 = vand.u32 %v3791, 4294901760
        %v3987 = vsub.f32 %v3791, %v3986
        %v3988 = vand.u32 %v3987, 4294901760
        %v3989 = vsub.f32 %v3987, %v3988
        %v3990 = vand.u32 %v3989, 4294901760
        %3991 = vmatpush1.msra.mxu0 %v3990
        %v3992 = vand.u32 %v3796, 4294901760
        %v3993 = vsub.f32 %v3796, %v3992
        %v3994 = vand.u32 %v3993, 4294901760
        %v3995 = vsub.f32 %v3993, %v3994
        %v3996 = vand.u32 %v3995, 4294901760
        %3997 = vmatprep.subr.mxu0 %v3996
        %v3998 = vand.u32 %v3795, 4294901760
        %v3999 = vsub.f32 %v3795, %v3998
        %v4000 = vand.u32 %v3999, 4294901760
        %v4001 = vsub.f32 %v3999, %v4000
        %v4002 = vand.u32 %v4001, 4294901760
        %4003 = vmatpush1.msra.mxu0 %v4002
        %4004 = vmatprep.subr.mxu0 0.0
        %4005 = vmatpush1.msra.mxu0 0.0
        %4006 = vmatprep.subr.mxu0 0.0
        %4007 = vmatpush1.msra.mxu0 0.0
        %4008 = vmatprep.subr.mxu0 0.0
        %4009 = vmatpush1.msra.mxu0 0.0
        %4010 = vmatprep.subr.mxu0 0.0
        %4011 = vmatpush1.msra.mxu0 0.0
        %4012 = vmatprep.subr.mxu0 0.0
        %4013 = vmatpush1.msra.mxu0 0.0
        %4014 = vmatprep.subr.mxu0 0.0
        %4015 = vmatpush1.msra.mxu0 0.0
        %4016 = vmatprep.subr.mxu0 0.0
        %4017 = vmatpush1.msra.mxu0 0.0
        %4018 = vmatprep.subr.mxu0 0.0
        %4019 = vmatpush1.msra.mxu0 0.0
        %4020 = vmatprep.subr.mxu0 0.0
        %4021 = vmatpush1.msra.mxu0 0.0
        %4022 = vmatprep.subr.mxu0 0.0
        %4023 = vmatpush1.msra.mxu0 0.0
        %4024 = vmatprep.subr.mxu0 0.0
        %4025 = vmatpush1.msra.mxu0 0.0
        %4026 = vmatprep.subr.mxu0 0.0
        %4027 = vmatpush1.msra.mxu0 0.0
        %4028 = vmatprep.subr.mxu0 0.0
        %4029 = vmatpush1.msra.mxu0 0.0
        %4030 = vmatprep.subr.mxu0 0.0
        %4031 = vmatpush1.msra.mxu0 0.0
        %4032 = vmatprep.subr.mxu0 0.0
        %4033 = vmatpush1.msra.mxu0 0.0
        %4034 = vmatprep.subr.mxu0 0.0
        %4035 = vmatpush1.msra.mxu0 0.0
        %4036 = vmatprep.subr.mxu0 0.0
        %4037 = vmatpush1.msra.mxu0 0.0
        %4038 = vmatprep.subr.mxu0 0.0
        %4039 = vmatpush1.msra.mxu0 0.0
        %4040 = vmatprep.subr.mxu0 0.0
        %4041 = vmatpush1.msra.mxu0 0.0
        %4042 = vmatprep.subr.mxu0 0.0
        %4043 = vmatpush1.msra.mxu0 0.0
        %4044 = vmatprep.subr.mxu0 0.0
        %4045 = vmatpush1.msra.mxu0 0.0
        %4046 = vmatprep.subr.mxu0 0.0
        %4047 = vmatpush1.msra.mxu0 0.0
        %4048 = vmatprep.subr.mxu0 0.0
        %4049 = vmatpush1.msra.mxu0 0.0
        %4050 = vmatprep.subr.mxu0 0.0
        %4051 = vmatpush1.msra.mxu0 0.0
        %4052 = vmatprep.subr.mxu0 0.0
        %4053 = vmatpush1.msra.mxu0 0.0
        %4054 = vmatprep.subr.mxu0 0.0
        %4055 = vmatpush1.msra.mxu0 0.0
        %4056 = vmatprep.subr.mxu0 0.0
        %4057 = vmatpush1.msra.mxu0 0.0
        %4058 = vmatprep.subr.mxu0 0.0
        %4059 = vmatpush1.msra.mxu0 0.0
        %4060 = vmatprep.mubr.f32.mxu0 0.0
        %v4061 = vand.u32 %v3828, 4294901760
        %4062 = vmatmul.mubr.f32.gmra.mrb[0].mxu0 %v4061
        %v4063 = vpop.f32.mrb[0].mxu0
        %v4064 = vadd.f32 %v3919, %v4063
        %v4065 = vpop.f32.mrb[0].mxu0
        %v4066 = vadd.f32 %v3921, %v4065
        %4067 = vmatprep.mubr.f32.mxu0 0.0
        %v4068 = vand.u32 %v3831, 4294901760
        %4069 = vmatmul.mubr.f32.gmra.mrb[0].mxu0 %v4068
        %v4070 = vpop.f32.mrb[0].mxu0
        %v4071 = vadd.f32 %v3930, %v4070
        %v4072 = vpop.f32.mrb[0].mxu0
        %v4073 = vadd.f32 %v3932, %v4072
        %4074 = vmatprep.mubr.f32.mxu0 0.0
        %v4075 = vand.u32 %v3834, 4294901760
        %4076 = vmatmul.mubr.f32.gmra.mrb[0].mxu0 %v4075
        %v4077 = vpop.f32.mrb[0].mxu0
        %v4078 = vadd.f32 %v3941, %v4077
        %v4079 = vpop.f32.mrb[0].mxu0
        %v4080 = vadd.f32 %v3943, %v4079
        %4081 = vmatprep.mubr.f32.mxu0 0.0
        %v4082 = vand.u32 %v3837, 4294901760
        %4083 = vmatmul.mubr.f32.gmra.mrb[0].mxu0 %v4082
        %v4084 = vpop.f32.mrb[0].mxu0
        %v4085 = vadd.f32 %v3952, %v4084
        %v4086 = vpop.f32.mrb[0].mxu0
        %v4087 = vadd.f32 %v3954, %v4086
        %4088 = vdwg.mxu0
        %v4089 = vand.u32 %v3784, 4294901760
        %v4090 = vsub.f32 %v3784, %v4089
        %4091 = vmatprep.subr.mxu0 %v4090
        %v4092 = vand.u32 %v3783, 4294901760
        %v4093 = vsub.f32 %v3783, %v4092
        %4094 = vmatpush1.msra.mxu0 %v4093
        %v4095 = vand.u32 %v3788, 4294901760
        %v4096 = vsub.f32 %v3788, %v4095
        %4097 = vmatprep.subr.mxu0 %v4096
        %v4098 = vand.u32 %v3787, 4294901760
        %v4099 = vsub.f32 %v3787, %v4098
        %4100 = vmatpush1.msra.mxu0 %v4099
        %v4101 = vand.u32 %v3792, 4294901760
        %v4102 = vsub.f32 %v3792, %v4101
        %4103 = vmatprep.subr.mxu0 %v4102
        %v4104 = vand.u32 %v3791, 4294901760
        %v4105 = vsub.f32 %v3791, %v4104
        %4106 = vmatpush1.msra.mxu0 %v4105
        %v4107 = vand.u32 %v3796, 4294901760
        %v4108 = vsub.f32 %v3796, %v4107
        %4109 = vmatprep.subr.mxu0 %v4108
        %v4110 = vand.u32 %v3795, 4294901760
        %v4111 = vsub.f32 %v3795, %v4110
        %4112 = vmatpush1.msra.mxu0 %v4111
        %4113 = vmatprep.subr.mxu0 0.0
        %4114 = vmatpush1.msra.mxu0 0.0
        %4115 = vmatprep.subr.mxu0 0.0
        %4116 = vmatpush1.msra.mxu0 0.0
        %4117 = vmatprep.subr.mxu0 0.0
        %4118 = vmatpush1.msra.mxu0 0.0
        %4119 = vmatprep.subr.mxu0 0.0
        %4120 = vmatpush1.msra.mxu0 0.0
        %4121 = vmatprep.subr.mxu0 0.0
        %4122 = vmatpush1.msra.mxu0 0.0
        %4123 = vmatprep.subr.mxu0 0.0
        %4124 = vmatpush1.msra.mxu0 0.0
        %4125 = vmatprep.subr.mxu0 0.0
        %4126 = vmatpush1.msra.mxu0 0.0
        %4127 = vmatprep.subr.mxu0 0.0
        %4128 = vmatpush1.msra.mxu0 0.0
        %4129 = vmatprep.subr.mxu0 0.0
        %4130 = vmatpush1.msra.mxu0 0.0
        %4131 = vmatprep.subr.mxu0 0.0
        %4132 = vmatpush1.msra.mxu0 0.0
        %4133 = vmatprep.subr.mxu0 0.0
        %4134 = vmatpush1.msra.mxu0 0.0
        %4135 = vmatprep.subr.mxu0 0.0
        %4136 = vmatpush1.msra.mxu0 0.0
        %4137 = vmatprep.subr.mxu0 0.0
        %4138 = vmatpush1.msra.mxu0 0.0
        %4139 = vmatprep.subr.mxu0 0.0
        %4140 = vmatpush1.msra.mxu0 0.0
        %4141 = vmatprep.subr.mxu0 0.0
        %4142 = vmatpush1.msra.mxu0 0.0
        %4143 = vmatprep.subr.mxu0 0.0
        %4144 = vmatpush1.msra.mxu0 0.0
        %4145 = vmatprep.subr.mxu0 0.0
        %4146 = vmatpush1.msra.mxu0 0.0
        %4147 = vmatprep.subr.mxu0 0.0
        %4148 = vmatpush1.msra.mxu0 0.0
        %4149 = vmatprep.subr.mxu0 0.0
        %4150 = vmatpush1.msra.mxu0 0.0
        %4151 = vmatprep.subr.mxu0 0.0
        %4152 = vmatpush1.msra.mxu0 0.0
        %4153 = vmatprep.subr.mxu0 0.0
        %4154 = vmatpush1.msra.mxu0 0.0
        %4155 = vmatprep.subr.mxu0 0.0
        %4156 = vmatpush1.msra.mxu0 0.0
        %4157 = vmatprep.subr.mxu0 0.0
        %4158 = vmatpush1.msra.mxu0 0.0
        %4159 = vmatprep.subr.mxu0 0.0
        %4160 = vmatpush1.msra.mxu0 0.0
        %4161 = vmatprep.subr.mxu0 0.0
        %4162 = vmatpush1.msra.mxu0 0.0
        %4163 = vmatprep.subr.mxu0 0.0
        %4164 = vmatpush1.msra.mxu0 0.0
        %4165 = vmatprep.subr.mxu0 0.0
        %4166 = vmatpush1.msra.mxu0 0.0
        %4167 = vmatprep.subr.mxu0 0.0
        %4168 = vmatpush1.msra.mxu0 0.0
        %4169 = vmatprep.mubr.f32.mxu0 0.0
        %v4170 = vand.u32 %v3828, 4294901760
        %v4171 = vsub.f32 %v3828, %v4170
        %4172 = vmatmul.mubr.f32.gmra.mrb[0].mxu0 %v4171
        %v4173 = vpop.f32.mrb[0].mxu0
        %v4174 = vadd.f32 %v4064, %v4173
        %v4175 = vpop.f32.mrb[0].mxu0
        %v4176 = vadd.f32 %v4066, %v4175
        %4177 = vmatprep.mubr.f32.mxu0 0.0
        %v4178 = vand.u32 %v3831, 4294901760
        %v4179 = vsub.f32 %v3831, %v4178
        %4180 = vmatmul.mubr.f32.gmra.mrb[0].mxu0 %v4179
        %v4181 = vpop.f32.mrb[0].mxu0
        %v4182 = vadd.f32 %v4071, %v4181
        %v4183 = vpop.f32.mrb[0].mxu0
        %v4184 = vadd.f32 %v4073, %v4183
        %4185 = vmatprep.mubr.f32.mxu0 0.0
        %v4186 = vand.u32 %v3834, 4294901760
        %v4187 = vsub.f32 %v3834, %v4186
        %4188 = vmatmul.mubr.f32.gmra.mrb[0].mxu0 %v4187
        %v4189 = vpop.f32.mrb[0].mxu0
        %v4190 = vadd.f32 %v4078, %v4189
        %v4191 = vpop.f32.mrb[0].mxu0
        %v4192 = vadd.f32 %v4080, %v4191
        %4193 = vmatprep.mubr.f32.mxu0 0.0
        %v4194 = vand.u32 %v3837, 4294901760
        %v4195 = vsub.f32 %v3837, %v4194
        %4196 = vmatmul.mubr.f32.gmra.mrb[0].mxu0 %v4195
        %v4197 = vpop.f32.mrb[0].mxu0
        %v4198 = vadd.f32 %v4085, %v4197
        %v4199 = vpop.f32.mrb[0].mxu0
        %v4200 = vadd.f32 %v4087, %v4199
        %4201 = vdwg.mxu0
        %v4202 = vand.u32 %v3784, 4294901760
        %4203 = vmatprep.subr.mxu0 %v4202
        %v4204 = vand.u32 %v3783, 4294901760
        %4205 = vmatpush1.msra.mxu0 %v4204
        %v4206 = vand.u32 %v3788, 4294901760
        %4207 = vmatprep.subr.mxu0 %v4206
        %v4208 = vand.u32 %v3787, 4294901760
        %4209 = vmatpush1.msra.mxu0 %v4208
        %v4210 = vand.u32 %v3792, 4294901760
        %4211 = vmatprep.subr.mxu0 %v4210
        %v4212 = vand.u32 %v3791, 4294901760
        %4213 = vmatpush1.msra.mxu0 %v4212
        %v4214 = vand.u32 %v3796, 4294901760
        %4215 = vmatprep.subr.mxu0 %v4214
        %v4216 = vand.u32 %v3795, 4294901760
        %4217 = vmatpush1.msra.mxu0 %v4216
        %4218 = vmatprep.subr.mxu0 0.0
        %4219 = vmatpush1.msra.mxu0 0.0
        %4220 = vmatprep.subr.mxu0 0.0
        %4221 = vmatpush1.msra.mxu0 0.0
        %4222 = vmatprep.subr.mxu0 0.0
        %4223 = vmatpush1.msra.mxu0 0.0
        %4224 = vmatprep.subr.mxu0 0.0
        %4225 = vmatpush1.msra.mxu0 0.0
        %4226 = vmatprep.subr.mxu0 0.0
        %4227 = vmatpush1.msra.mxu0 0.0
        %4228 = vmatprep.subr.mxu0 0.0
        %4229 = vmatpush1.msra.mxu0 0.0
        %4230 = vmatprep.subr.mxu0 0.0
        %4231 = vmatpush1.msra.mxu0 0.0
        %4232 = vmatprep.subr.mxu0 0.0
        %4233 = vmatpush1.msra.mxu0 0.0
        %4234 = vmatprep.subr.mxu0 0.0
        %4235 = vmatpush1.msra.mxu0 0.0
        %4236 = vmatprep.subr.mxu0 0.0
        %4237 = vmatpush1.msra.mxu0 0.0
        %4238 = vmatprep.subr.mxu0 0.0
        %4239 = vmatpush1.msra.mxu0 0.0
        %4240 = vmatprep.subr.mxu0 0.0
        %4241 = vmatpush1.msra.mxu0 0.0
        %4242 = vmatprep.subr.mxu0 0.0
        %4243 = vmatpush1.msra.mxu0 0.0
        %4244 = vmatprep.subr.mxu0 0.0
        %4245 = vmatpush1.msra.mxu0 0.0
        %4246 = vmatprep.subr.mxu0 0.0
        %4247 = vmatpush1.msra.mxu0 0.0
        %4248 = vmatprep.subr.mxu0 0.0
        %4249 = vmatpush1.msra.mxu0 0.0
        %4250 = vmatprep.subr.mxu0 0.0
        %4251 = vmatpush1.msra.mxu0 0.0
        %4252 = vmatprep.subr.mxu0 0.0
        %4253 = vmatpush1.msra.mxu0 0.0
        %4254 = vmatprep.subr.mxu0 0.0
        %4255 = vmatpush1.msra.mxu0 0.0
        %4256 = vmatprep.subr.mxu0 0.0
        %4257 = vmatpush1.msra.mxu0 0.0
        %4258 = vmatprep.subr.mxu0 0.0
        %4259 = vmatpush1.msra.mxu0 0.0
        %4260 = vmatprep.subr.mxu0 0.0
        %4261 = vmatpush1.msra.mxu0 0.0
        %4262 = vmatprep.subr.mxu0 0.0
        %4263 = vmatpush1.msra.mxu0 0.0
        %4264 = vmatprep.subr.mxu0 0.0
        %4265 = vmatpush1.msra.mxu0 0.0
        %4266 = vmatprep.subr.mxu0 0.0
        %4267 = vmatpush1.msra.mxu0 0.0
        %4268 = vmatprep.subr.mxu0 0.0
        %4269 = vmatpush1.msra.mxu0 0.0
        %4270 = vmatprep.subr.mxu0 0.0
        %4271 = vmatpush1.msra.mxu0 0.0
        %4272 = vmatprep.subr.mxu0 0.0
        %4273 = vmatpush1.msra.mxu0 0.0
        %4274 = vmatprep.mubr.f32.mxu0 0.0
        %v4275 = vand.u32 %v3828, 4294901760
        %v4276 = vsub.f32 %v3828, %v4275
        %v4277 = vand.u32 %v4276, 4294901760
        %4278 = vmatmul.mubr.f32.gmra.mrb[0].mxu0 %v4277
        %v4279 = vpop.f32.mrb[0].mxu0
        %v4280 = vadd.f32 %v4174, %v4279
        %v4281 = vpop.f32.mrb[0].mxu0
        %v4282 = vadd.f32 %v4176, %v4281
        %4283 = vmatprep.mubr.f32.mxu0 0.0
        %v4284 = vand.u32 %v3831, 4294901760
        %v4285 = vsub.f32 %v3831, %v4284
        %v4286 = vand.u32 %v4285, 4294901760
        %4287 = vmatmul.mubr.f32.gmra.mrb[0].mxu0 %v4286
        %v4288 = vpop.f32.mrb[0].mxu0
        %v4289 = vadd.f32 %v4182, %v4288
        %v4290 = vpop.f32.mrb[0].mxu0
        %v4291 = vadd.f32 %v4184, %v4290
        %4292 = vmatprep.mubr.f32.mxu0 0.0
        %v4293 = vand.u32 %v3834, 4294901760
        %v4294 = vsub.f32 %v3834, %v4293
        %v4295 = vand.u32 %v4294, 4294901760
        %4296 = vmatmul.mubr.f32.gmra.mrb[0].mxu0 %v4295
        %v4297 = vpop.f32.mrb[0].mxu0
        %v4298 = vadd.f32 %v4190, %v4297
        %v4299 = vpop.f32.mrb[0].mxu0
        %v4300 = vadd.f32 %v4192, %v4299
        %4301 = vmatprep.mubr.f32.mxu0 0.0
        %v4302 = vand.u32 %v3837, 4294901760
        %v4303 = vsub.f32 %v3837, %v4302
        %v4304 = vand.u32 %v4303, 4294901760
        %4305 = vmatmul.mubr.f32.gmra.mrb[0].mxu0 %v4304
        %v4306 = vpop.f32.mrb[0].mxu0
        %v4307 = vadd.f32 %v4198, %v4306
        %v4308 = vpop.f32.mrb[0].mxu0
        %v4309 = vadd.f32 %v4200, %v4308
        %4310 = vdwg.mxu0
        %v4311 = vand.u32 %v3784, 4294901760
        %v4312 = vsub.f32 %v3784, %v4311
        %v4313 = vand.u32 %v4312, 4294901760
        %4314 = vmatprep.subr.mxu0 %v4313
        %v4315 = vand.u32 %v3783, 4294901760
        %v4316 = vsub.f32 %v3783, %v4315
        %v4317 = vand.u32 %v4316, 4294901760
        %4318 = vmatpush1.msra.mxu0 %v4317
        %v4319 = vand.u32 %v3788, 4294901760
        %v4320 = vsub.f32 %v3788, %v4319
        %v4321 = vand.u32 %v4320, 4294901760
        %4322 = vmatprep.subr.mxu0 %v4321
        %v4323 = vand.u32 %v3787, 4294901760
        %v4324 = vsub.f32 %v3787, %v4323
        %v4325 = vand.u32 %v4324, 4294901760
        %4326 = vmatpush1.msra.mxu0 %v4325
        %v4327 = vand.u32 %v3792, 4294901760
        %v4328 = vsub.f32 %v3792, %v4327
        %v4329 = vand.u32 %v4328, 4294901760
        %4330 = vmatprep.subr.mxu0 %v4329
        %v4331 = vand.u32 %v3791, 4294901760
        %v4332 = vsub.f32 %v3791, %v4331
        %v4333 = vand.u32 %v4332, 4294901760
        %4334 = vmatpush1.msra.mxu0 %v4333
        %v4335 = vand.u32 %v3796, 4294901760
        %v4336 = vsub.f32 %v3796, %v4335
        %v4337 = vand.u32 %v4336, 4294901760
        %4338 = vmatprep.subr.mxu0 %v4337
        %v4339 = vand.u32 %v3795, 4294901760
        %v4340 = vsub.f32 %v3795, %v4339
        %v4341 = vand.u32 %v4340, 4294901760
        %4342 = vmatpush1.msra.mxu0 %v4341
        %4343 = vmatprep.subr.mxu0 0.0
        %4344 = vmatpush1.msra.mxu0 0.0
        %4345 = vmatprep.subr.mxu0 0.0
        %4346 = vmatpush1.msra.mxu0 0.0
        %4347 = vmatprep.subr.mxu0 0.0
        %4348 = vmatpush1.msra.mxu0 0.0
        %4349 = vmatprep.subr.mxu0 0.0
        %4350 = vmatpush1.msra.mxu0 0.0
        %4351 = vmatprep.subr.mxu0 0.0
        %4352 = vmatpush1.msra.mxu0 0.0
        %4353 = vmatprep.subr.mxu0 0.0
        %4354 = vmatpush1.msra.mxu0 0.0
        %4355 = vmatprep.subr.mxu0 0.0
        %4356 = vmatpush1.msra.mxu0 0.0
        %4357 = vmatprep.subr.mxu0 0.0
        %4358 = vmatpush1.msra.mxu0 0.0
        %4359 = vmatprep.subr.mxu0 0.0
        %4360 = vmatpush1.msra.mxu0 0.0
        %4361 = vmatprep.subr.mxu0 0.0
        %4362 = vmatpush1.msra.mxu0 0.0
        %4363 = vmatprep.subr.mxu0 0.0
        %4364 = vmatpush1.msra.mxu0 0.0
        %4365 = vmatprep.subr.mxu0 0.0
        %4366 = vmatpush1.msra.mxu0 0.0
        %4367 = vmatprep.subr.mxu0 0.0
        %4368 = vmatpush1.msra.mxu0 0.0
        %4369 = vmatprep.subr.mxu0 0.0
        %4370 = vmatpush1.msra.mxu0 0.0
        %4371 = vmatprep.subr.mxu0 0.0
        %4372 = vmatpush1.msra.mxu0 0.0
        %4373 = vmatprep.subr.mxu0 0.0
        %4374 = vmatpush1.msra.mxu0 0.0
        %4375 = vmatprep.subr.mxu0 0.0
        %4376 = vmatpush1.msra.mxu0 0.0
        %4377 = vmatprep.subr.mxu0 0.0
        %4378 = vmatpush1.msra.mxu0 0.0
        %4379 = vmatprep.subr.mxu0 0.0
        %4380 = vmatpush1.msra.mxu0 0.0
        %4381 = vmatprep.subr.mxu0 0.0
        %4382 = vmatpush1.msra.mxu0 0.0
        %4383 = vmatprep.subr.mxu0 0.0
        %4384 = vmatpush1.msra.mxu0 0.0
        %4385 = vmatprep.subr.mxu0 0.0
        %4386 = vmatpush1.msra.mxu0 0.0
        %4387 = vmatprep.subr.mxu0 0.0
        %4388 = vmatpush1.msra.mxu0 0.0
        %4389 = vmatprep.subr.mxu0 0.0
        %4390 = vmatpush1.msra.mxu0 0.0
        %4391 = vmatprep.subr.mxu0 0.0
        %4392 = vmatpush1.msra.mxu0 0.0
        %4393 = vmatprep.subr.mxu0 0.0
        %4394 = vmatpush1.msra.mxu0 0.0
        %4395 = vmatprep.subr.mxu0 0.0
        %4396 = vmatpush1.msra.mxu0 0.0
        %4397 = vmatprep.subr.mxu0 0.0
        %4398 = vmatpush1.msra.mxu0 0.0
        %4399 = vmatprep.mubr.f32.mxu0 0.0
        %v4400 = vand.u32 %v3828, 4294901760
        %4401 = vmatmul.mubr.f32.gmra.mrb[0].mxu0 %v4400
        %v4402 = vpop.f32.mrb[0].mxu0
        %v4403 = vadd.f32 %v4280, %v4402
        %v4404 = vpop.f32.mrb[0].mxu0
        %v4405 = vadd.f32 %v4282, %v4404
        %4406 = vmatprep.mubr.f32.mxu0 0.0
        %v4407 = vand.u32 %v3831, 4294901760
        %4408 = vmatmul.mubr.f32.gmra.mrb[0].mxu0 %v4407
        %v4409 = vpop.f32.mrb[0].mxu0
        %v4410 = vadd.f32 %v4289, %v4409
        %v4411 = vpop.f32.mrb[0].mxu0
        %v4412 = vadd.f32 %v4291, %v4411
        %4413 = vmatprep.mubr.f32.mxu0 0.0
        %v4414 = vand.u32 %v3834, 4294901760
        %4415 = vmatmul.mubr.f32.gmra.mrb[0].mxu0 %v4414
        %v4416 = vpop.f32.mrb[0].mxu0
        %v4417 = vadd.f32 %v4298, %v4416
        %v4418 = vpop.f32.mrb[0].mxu0
        %v4419 = vadd.f32 %v4300, %v4418
        %4420 = vmatprep.mubr.f32.mxu0 0.0
        %v4421 = vand.u32 %v3837, 4294901760
        %4422 = vmatmul.mubr.f32.gmra.mrb[0].mxu0 %v4421
        %v4423 = vpop.f32.mrb[0].mxu0
        %v4424 = vadd.f32 %v4307, %v4423
        %v4425 = vpop.f32.mrb[0].mxu0
        %v4426 = vadd.f32 %v4309, %v4425
        %4427 = vdwg.mxu0
        %v4428 = vand.u32 %v3784, 4294901760
        %4429 = vmatprep.subr.mxu0 %v4428
        %v4430 = vand.u32 %v3783, 4294901760
        %4431 = vmatpush1.msra.mxu0 %v4430
        %v4432 = vand.u32 %v3788, 4294901760
        %4433 = vmatprep.subr.mxu0 %v4432
        %v4434 = vand.u32 %v3787, 4294901760
        %4435 = vmatpush1.msra.mxu0 %v4434
        %v4436 = vand.u32 %v3792, 4294901760
        %4437 = vmatprep.subr.mxu0 %v4436
        %v4438 = vand.u32 %v3791, 4294901760
        %4439 = vmatpush1.msra.mxu0 %v4438
        %v4440 = vand.u32 %v3796, 4294901760
        %4441 = vmatprep.subr.mxu0 %v4440
        %v4442 = vand.u32 %v3795, 4294901760
        %4443 = vmatpush1.msra.mxu0 %v4442
        %4444 = vmatprep.subr.mxu0 0.0
        %4445 = vmatpush1.msra.mxu0 0.0
        %4446 = vmatprep.subr.mxu0 0.0
        %4447 = vmatpush1.msra.mxu0 0.0
        %4448 = vmatprep.subr.mxu0 0.0
        %4449 = vmatpush1.msra.mxu0 0.0
        %4450 = vmatprep.subr.mxu0 0.0
        %4451 = vmatpush1.msra.mxu0 0.0
        %4452 = vmatprep.subr.mxu0 0.0
        %4453 = vmatpush1.msra.mxu0 0.0
        %4454 = vmatprep.subr.mxu0 0.0
        %4455 = vmatpush1.msra.mxu0 0.0
        %4456 = vmatprep.subr.mxu0 0.0
        %4457 = vmatpush1.msra.mxu0 0.0
        %4458 = vmatprep.subr.mxu0 0.0
        %4459 = vmatpush1.msra.mxu0 0.0
        %4460 = vmatprep.subr.mxu0 0.0
        %4461 = vmatpush1.msra.mxu0 0.0
        %4462 = vmatprep.subr.mxu0 0.0
        %4463 = vmatpush1.msra.mxu0 0.0
        %4464 = vmatprep.subr.mxu0 0.0
        %4465 = vmatpush1.msra.mxu0 0.0
        %4466 = vmatprep.subr.mxu0 0.0
        %4467 = vmatpush1.msra.mxu0 0.0
        %4468 = vmatprep.subr.mxu0 0.0
        %4469 = vmatpush1.msra.mxu0 0.0
        %4470 = vmatprep.subr.mxu0 0.0
        %4471 = vmatpush1.msra.mxu0 0.0
        %4472 = vmatprep.subr.mxu0 0.0
        %4473 = vmatpush1.msra.mxu0 0.0
        %4474 = vmatprep.subr.mxu0 0.0
        %4475 = vmatpush1.msra.mxu0 0.0
        %4476 = vmatprep.subr.mxu0 0.0
        %4477 = vmatpush1.msra.mxu0 0.0
        %4478 = vmatprep.subr.mxu0 0.0
        %4479 = vmatpush1.msra.mxu0 0.0
        %4480 = vmatprep.subr.mxu0 0.0
        %4481 = vmatpush1.msra.mxu0 0.0
        %4482 = vmatprep.subr.mxu0 0.0
        %4483 = vmatpush1.msra.mxu0 0.0
        %4484 = vmatprep.subr.mxu0 0.0
        %4485 = vmatpush1.msra.mxu0 0.0
        %4486 = vmatprep.subr.mxu0 0.0
        %4487 = vmatpush1.msra.mxu0 0.0
        %4488 = vmatprep.subr.mxu0 0.0
        %4489 = vmatpush1.msra.mxu0 0.0
        %4490 = vmatprep.subr.mxu0 0.0
        %4491 = vmatpush1.msra.mxu0 0.0
        %4492 = vmatprep.subr.mxu0 0.0
        %4493 = vmatpush1.msra.mxu0 0.0
        %4494 = vmatprep.subr.mxu0 0.0
        %4495 = vmatpush1.msra.mxu0 0.0
        %4496 = vmatprep.subr.mxu0 0.0
        %4497 = vmatpush1.msra.mxu0 0.0
        %4498 = vmatprep.subr.mxu0 0.0
        %4499 = vmatpush1.msra.mxu0 0.0
        %4500 = vmatprep.mubr.f32.mxu0 0.0
        %v4501 = vand.u32 %v3828, 4294901760
        %4502 = vmatmul.mubr.f32.gmra.mrb[0].mxu0 %v4501
        %v4503 = vpop.f32.mrb[0].mxu0
        %v4504 = vadd.f32 %v4403, %v4503
        %v4505 = vpop.f32.mrb[0].mxu0
        %v4506 = vadd.f32 %v4405, %v4505
        %4507 = vmatprep.mubr.f32.mxu0 0.0
        %v4508 = vand.u32 %v3831, 4294901760
        %4509 = vmatmul.mubr.f32.gmra.mrb[0].mxu0 %v4508
        %v4510 = vpop.f32.mrb[0].mxu0
        %v4511 = vadd.f32 %v4410, %v4510
        %v4512 = vpop.f32.mrb[0].mxu0
        %v4513 = vadd.f32 %v4412, %v4512
        %4514 = vmatprep.mubr.f32.mxu0 0.0
        %v4515 = vand.u32 %v3834, 4294901760
        %4516 = vmatmul.mubr.f32.gmra.mrb[0].mxu0 %v4515
        %v4517 = vpop.f32.mrb[0].mxu0
        %v4518 = vadd.f32 %v4417, %v4517
        %v4519 = vpop.f32.mrb[0].mxu0
        %v4520 = vadd.f32 %v4419, %v4519
        %4521 = vmatprep.mubr.f32.mxu0 0.0
        %v4522 = vand.u32 %v3837, 4294901760
        %4523 = vmatmul.mubr.f32.gmra.mrb[0].mxu0 %v4522
        %v4524 = vpop.f32.mrb[0].mxu0
        %v4525 = vadd.f32 %v4424, %v4524
        %v4526 = vpop.f32.mrb[0].mxu0
        %v4527 = vadd.f32 %v4426, %v4526
        %4528 = vdwg.mxu0
        %v4529 = vand.u32 %v3786, 4294901760
        %4530 = vmatprep.subr.mxu0 %v4529
        %v4531 = vand.u32 %v3785, 4294901760
        %4532 = vmatpush1.msra.mxu0 %v4531
        %v4533 = vand.u32 %v3790, 4294901760
        %4534 = vmatprep.subr.mxu0 %v4533
        %v4535 = vand.u32 %v3789, 4294901760
        %4536 = vmatpush1.msra.mxu0 %v4535
        %v4537 = vand.u32 %v3794, 4294901760
        %4538 = vmatprep.subr.mxu0 %v4537
        %v4539 = vand.u32 %v3793, 4294901760
        %4540 = vmatpush1.msra.mxu0 %v4539
        %v4541 = vand.u32 %v3798, 4294901760
        %4542 = vmatprep.subr.mxu0 %v4541
        %v4543 = vand.u32 %v3797, 4294901760
        %4544 = vmatpush1.msra.mxu0 %v4543
        %4545 = vmatprep.subr.mxu0 0.0
        %4546 = vmatpush1.msra.mxu0 0.0
        %4547 = vmatprep.subr.mxu0 0.0
        %4548 = vmatpush1.msra.mxu0 0.0
        %4549 = vmatprep.subr.mxu0 0.0
        %4550 = vmatpush1.msra.mxu0 0.0
        %4551 = vmatprep.subr.mxu0 0.0
        %4552 = vmatpush1.msra.mxu0 0.0
        %4553 = vmatprep.subr.mxu0 0.0
        %4554 = vmatpush1.msra.mxu0 0.0
        %4555 = vmatprep.subr.mxu0 0.0
        %4556 = vmatpush1.msra.mxu0 0.0
        %4557 = vmatprep.subr.mxu0 0.0
        %4558 = vmatpush1.msra.mxu0 0.0
        %4559 = vmatprep.subr.mxu0 0.0
        %4560 = vmatpush1.msra.mxu0 0.0
        %4561 = vmatprep.subr.mxu0 0.0
        %4562 = vmatpush1.msra.mxu0 0.0
        %4563 = vmatprep.subr.mxu0 0.0
        %4564 = vmatpush1.msra.mxu0 0.0
        %4565 = vmatprep.subr.mxu0 0.0
        %4566 = vmatpush1.msra.mxu0 0.0
        %4567 = vmatprep.subr.mxu0 0.0
        %4568 = vmatpush1.msra.mxu0 0.0
        %4569 = vmatprep.subr.mxu0 0.0
        %4570 = vmatpush1.msra.mxu0 0.0
        %4571 = vmatprep.subr.mxu0 0.0
        %4572 = vmatpush1.msra.mxu0 0.0
        %4573 = vmatprep.subr.mxu0 0.0
        %4574 = vmatpush1.msra.mxu0 0.0
        %4575 = vmatprep.subr.mxu0 0.0
        %4576 = vmatpush1.msra.mxu0 0.0
        %4577 = vmatprep.subr.mxu0 0.0
        %4578 = vmatpush1.msra.mxu0 0.0
        %4579 = vmatprep.subr.mxu0 0.0
        %4580 = vmatpush1.msra.mxu0 0.0
        %4581 = vmatprep.subr.mxu0 0.0
        %4582 = vmatpush1.msra.mxu0 0.0
        %4583 = vmatprep.subr.mxu0 0.0
        %4584 = vmatpush1.msra.mxu0 0.0
        %4585 = vmatprep.subr.mxu0 0.0
        %4586 = vmatpush1.msra.mxu0 0.0
        %4587 = vmatprep.subr.mxu0 0.0
        %4588 = vmatpush1.msra.mxu0 0.0
        %4589 = vmatprep.subr.mxu0 0.0
        %4590 = vmatpush1.msra.mxu0 0.0
        %4591 = vmatprep.subr.mxu0 0.0
        %4592 = vmatpush1.msra.mxu0 0.0
        %4593 = vmatprep.subr.mxu0 0.0
        %4594 = vmatpush1.msra.mxu0 0.0
        %4595 = vmatprep.subr.mxu0 0.0
        %4596 = vmatpush1.msra.mxu0 0.0
        %4597 = vmatprep.subr.mxu0 0.0
        %4598 = vmatpush1.msra.mxu0 0.0
        %4599 = vmatprep.subr.mxu0 0.0
        %4600 = vmatpush1.msra.mxu0 0.0
        %4601 = vmatprep.mubr.f32.mxu0 0.0
        %v4602 = vand.u32 %v3828, 4294901760
        %v4603 = vsub.f32 %v3828, %v4602
        %v4604 = vand.u32 %v4603, 4294901760
        %v4605 = vsub.f32 %v4603, %v4604
        %v4606 = vand.u32 %v4605, 4294901760
        %4607 = vmatmul.mubr.f32.gmra.mrb[0].mxu0 %v4606
        %v4608 = vpop.f32.mrb[0].mxu0
        %v4609 = vadd.f32 %v3810, %v4608
        %v4610 = vpop.f32.mrb[0].mxu0
        %v4611 = vadd.f32 %v3810, %v4610
        %4612 = vmatprep.mubr.f32.mxu0 0.0
        %v4613 = vand.u32 %v3831, 4294901760
        %v4614 = vsub.f32 %v3831, %v4613
        %v4615 = vand.u32 %v4614, 4294901760
        %v4616 = vsub.f32 %v4614, %v4615
        %v4617 = vand.u32 %v4616, 4294901760
        %4618 = vmatmul.mubr.f32.gmra.mrb[0].mxu0 %v4617
        %v4619 = vpop.f32.mrb[0].mxu0
        %v4620 = vadd.f32 %v3815, %v4619
        %v4621 = vpop.f32.mrb[0].mxu0
        %v4622 = vadd.f32 %v3815, %v4621
        %4623 = vmatprep.mubr.f32.mxu0 0.0
        %v4624 = vand.u32 %v3834, 4294901760
        %v4625 = vsub.f32 %v3834, %v4624
        %v4626 = vand.u32 %v4625, 4294901760
        %v4627 = vsub.f32 %v4625, %v4626
        %v4628 = vand.u32 %v4627, 4294901760
        %4629 = vmatmul.mubr.f32.gmra.mrb[0].mxu0 %v4628
        %v4630 = vpop.f32.mrb[0].mxu0
        %v4631 = vadd.f32 %v3820, %v4630
        %v4632 = vpop.f32.mrb[0].mxu0
        %v4633 = vadd.f32 %v3820, %v4632
        %4634 = vmatprep.mubr.f32.mxu0 0.0
        %v4635 = vand.u32 %v3837, 4294901760
        %v4636 = vsub.f32 %v3837, %v4635
        %v4637 = vand.u32 %v4636, 4294901760
        %v4638 = vsub.f32 %v4636, %v4637
        %v4639 = vand.u32 %v4638, 4294901760
        %4640 = vmatmul.mubr.f32.gmra.mrb[0].mxu0 %v4639
        %v4641 = vpop.f32.mrb[0].mxu0
        %v4642 = vadd.f32 %v3825, %v4641
        %v4643 = vpop.f32.mrb[0].mxu0
        %v4644 = vadd.f32 %v3825, %v4643
        %4645 = vdwg.mxu0
        %v4646 = vand.u32 %v3786, 4294901760
        %v4647 = vsub.f32 %v3786, %v4646
        %v4648 = vand.u32 %v4647, 4294901760
        %v4649 = vsub.f32 %v4647, %v4648
        %v4650 = vand.u32 %v4649, 4294901760
        %4651 = vmatprep.subr.mxu0 %v4650
        %v4652 = vand.u32 %v3785, 4294901760
        %v4653 = vsub.f32 %v3785, %v4652
        %v4654 = vand.u32 %v4653, 4294901760
        %v4655 = vsub.f32 %v4653, %v4654
        %v4656 = vand.u32 %v4655, 4294901760
        %4657 = vmatpush1.msra.mxu0 %v4656
        %v4658 = vand.u32 %v3790, 4294901760
        %v4659 = vsub.f32 %v3790, %v4658
        %v4660 = vand.u32 %v4659, 4294901760
        %v4661 = vsub.f32 %v4659, %v4660
        %v4662 = vand.u32 %v4661, 4294901760
        %4663 = vmatprep.subr.mxu0 %v4662
        %v4664 = vand.u32 %v3789, 4294901760
        %v4665 = vsub.f32 %v3789, %v4664
        %v4666 = vand.u32 %v4665, 4294901760
        %v4667 = vsub.f32 %v4665, %v4666
        %v4668 = vand.u32 %v4667, 4294901760
        %4669 = vmatpush1.msra.mxu0 %v4668
        %v4670 = vand.u32 %v3794, 4294901760
        %v4671 = vsub.f32 %v3794, %v4670
        %v4672 = vand.u32 %v4671, 4294901760
        %v4673 = vsub.f32 %v4671, %v4672
        %v4674 = vand.u32 %v4673, 4294901760
        %4675 = vmatprep.subr.mxu0 %v4674
        %v4676 = vand.u32 %v3793, 4294901760
        %v4677 = vsub.f32 %v3793, %v4676
        %v4678 = vand.u32 %v4677, 4294901760
        %v4679 = vsub.f32 %v4677, %v4678
        %v4680 = vand.u32 %v4679, 4294901760
        %4681 = vmatpush1.msra.mxu0 %v4680
        %v4682 = vand.u32 %v3798, 4294901760
        %v4683 = vsub.f32 %v3798, %v4682
        %v4684 = vand.u32 %v4683, 4294901760
        %v4685 = vsub.f32 %v4683, %v4684
        %v4686 = vand.u32 %v4685, 4294901760
        %4687 = vmatprep.subr.mxu0 %v4686
        %v4688 = vand.u32 %v3797, 4294901760
        %v4689 = vsub.f32 %v3797, %v4688
        %v4690 = vand.u32 %v4689, 4294901760
        %v4691 = vsub.f32 %v4689, %v4690
        %v4692 = vand.u32 %v4691, 4294901760
        %4693 = vmatpush1.msra.mxu0 %v4692
        %4694 = vmatprep.subr.mxu0 0.0
        %4695 = vmatpush1.msra.mxu0 0.0
        %4696 = vmatprep.subr.mxu0 0.0
        %4697 = vmatpush1.msra.mxu0 0.0
        %4698 = vmatprep.subr.mxu0 0.0
        %4699 = vmatpush1.msra.mxu0 0.0
        %4700 = vmatprep.subr.mxu0 0.0
        %4701 = vmatpush1.msra.mxu0 0.0
        %4702 = vmatprep.subr.mxu0 0.0
        %4703 = vmatpush1.msra.mxu0 0.0
        %4704 = vmatprep.subr.mxu0 0.0
        %4705 = vmatpush1.msra.mxu0 0.0
        %4706 = vmatprep.subr.mxu0 0.0
        %4707 = vmatpush1.msra.mxu0 0.0
        %4708 = vmatprep.subr.mxu0 0.0
        %4709 = vmatpush1.msra.mxu0 0.0
        %4710 = vmatprep.subr.mxu0 0.0
        %4711 = vmatpush1.msra.mxu0 0.0
        %4712 = vmatprep.subr.mxu0 0.0
        %4713 = vmatpush1.msra.mxu0 0.0
        %4714 = vmatprep.subr.mxu0 0.0
        %4715 = vmatpush1.msra.mxu0 0.0
        %4716 = vmatprep.subr.mxu0 0.0
        %4717 = vmatpush1.msra.mxu0 0.0
        %4718 = vmatprep.subr.mxu0 0.0
        %4719 = vmatpush1.msra.mxu0 0.0
        %4720 = vmatprep.subr.mxu0 0.0
        %4721 = vmatpush1.msra.mxu0 0.0
        %4722 = vmatprep.subr.mxu0 0.0
        %4723 = vmatpush1.msra.mxu0 0.0
        %4724 = vmatprep.subr.mxu0 0.0
        %4725 = vmatpush1.msra.mxu0 0.0
        %4726 = vmatprep.subr.mxu0 0.0
        %4727 = vmatpush1.msra.mxu0 0.0
        %4728 = vmatprep.subr.mxu0 0.0
        %4729 = vmatpush1.msra.mxu0 0.0
        %4730 = vmatprep.subr.mxu0 0.0
        %4731 = vmatpush1.msra.mxu0 0.0
        %4732 = vmatprep.subr.mxu0 0.0
        %4733 = vmatpush1.msra.mxu0 0.0
        %4734 = vmatprep.subr.mxu0 0.0
        %4735 = vmatpush1.msra.mxu0 0.0
        %4736 = vmatprep.subr.mxu0 0.0
        %4737 = vmatpush1.msra.mxu0 0.0
        %4738 = vmatprep.subr.mxu0 0.0
        %4739 = vmatpush1.msra.mxu0 0.0
        %4740 = vmatprep.subr.mxu0 0.0
        %4741 = vmatpush1.msra.mxu0 0.0
        %4742 = vmatprep.subr.mxu0 0.0
        %4743 = vmatpush1.msra.mxu0 0.0
        %4744 = vmatprep.subr.mxu0 0.0
        %4745 = vmatpush1.msra.mxu0 0.0
        %4746 = vmatprep.subr.mxu0 0.0
        %4747 = vmatpush1.msra.mxu0 0.0
        %4748 = vmatprep.subr.mxu0 0.0
        %4749 = vmatpush1.msra.mxu0 0.0
        %4750 = vmatprep.mubr.f32.mxu0 0.0
        %v4751 = vand.u32 %v3828, 4294901760
        %4752 = vmatmul.mubr.f32.gmra.mrb[0].mxu0 %v4751
        %v4753 = vpop.f32.mrb[0].mxu0
        %v4754 = vadd.f32 %v4609, %v4753
        %v4755 = vpop.f32.mrb[0].mxu0
        %v4756 = vadd.f32 %v4611, %v4755
        %4757 = vmatprep.mubr.f32.mxu0 0.0
        %v4758 = vand.u32 %v3831, 4294901760
        %4759 = vmatmul.mubr.f32.gmra.mrb[0].mxu0 %v4758
        %v4760 = vpop.f32.mrb[0].mxu0
        %v4761 = vadd.f32 %v4620, %v4760
        %v4762 = vpop.f32.mrb[0].mxu0
        %v4763 = vadd.f32 %v4622, %v4762
        %4764 = vmatprep.mubr.f32.mxu0 0.0
        %v4765 = vand.u32 %v3834, 4294901760
        %4766 = vmatmul.mubr.f32.gmra.mrb[0].mxu0 %v4765
        %v4767 = vpop.f32.mrb[0].mxu0
        %v4768 = vadd.f32 %v4631, %v4767
        %v4769 = vpop.f32.mrb[0].mxu0
        %v4770 = vadd.f32 %v4633, %v4769
        %4771 = vmatprep.mubr.f32.mxu0 0.0
        %v4772 = vand.u32 %v3837, 4294901760
        %4773 = vmatmul.mubr.f32.gmra.mrb[0].mxu0 %v4772
        %v4774 = vpop.f32.mrb[0].mxu0
        %v4775 = vadd.f32 %v4642, %v4774
        %v4776 = vpop.f32.mrb[0].mxu0
        %v4777 = vadd.f32 %v4644, %v4776
        %4778 = vdwg.mxu0
        %v4779 = vand.u32 %v3786, 4294901760
        %v4780 = vsub.f32 %v3786, %v4779
        %4781 = vmatprep.subr.mxu0 %v4780
        %v4782 = vand.u32 %v3785, 4294901760
        %v4783 = vsub.f32 %v3785, %v4782
        %4784 = vmatpush1.msra.mxu0 %v4783
        %v4785 = vand.u32 %v3790, 4294901760
        %v4786 = vsub.f32 %v3790, %v4785
        %4787 = vmatprep.subr.mxu0 %v4786
        %v4788 = vand.u32 %v3789, 4294901760
        %v4789 = vsub.f32 %v3789, %v4788
        %4790 = vmatpush1.msra.mxu0 %v4789
        %v4791 = vand.u32 %v3794, 4294901760
        %v4792 = vsub.f32 %v3794, %v4791
        %4793 = vmatprep.subr.mxu0 %v4792
        %v4794 = vand.u32 %v3793, 4294901760
        %v4795 = vsub.f32 %v3793, %v4794
        %4796 = vmatpush1.msra.mxu0 %v4795
        %v4797 = vand.u32 %v3798, 4294901760
        %v4798 = vsub.f32 %v3798, %v4797
        %4799 = vmatprep.subr.mxu0 %v4798
        %v4800 = vand.u32 %v3797, 4294901760
        %v4801 = vsub.f32 %v3797, %v4800
        %4802 = vmatpush1.msra.mxu0 %v4801
        %4803 = vmatprep.subr.mxu0 0.0
        %4804 = vmatpush1.msra.mxu0 0.0
        %4805 = vmatprep.subr.mxu0 0.0
        %4806 = vmatpush1.msra.mxu0 0.0
        %4807 = vmatprep.subr.mxu0 0.0
        %4808 = vmatpush1.msra.mxu0 0.0
        %4809 = vmatprep.subr.mxu0 0.0
        %4810 = vmatpush1.msra.mxu0 0.0
        %4811 = vmatprep.subr.mxu0 0.0
        %4812 = vmatpush1.msra.mxu0 0.0
        %4813 = vmatprep.subr.mxu0 0.0
        %4814 = vmatpush1.msra.mxu0 0.0
        %4815 = vmatprep.subr.mxu0 0.0
        %4816 = vmatpush1.msra.mxu0 0.0
        %4817 = vmatprep.subr.mxu0 0.0
        %4818 = vmatpush1.msra.mxu0 0.0
        %4819 = vmatprep.subr.mxu0 0.0
        %4820 = vmatpush1.msra.mxu0 0.0
        %4821 = vmatprep.subr.mxu0 0.0
        %4822 = vmatpush1.msra.mxu0 0.0
        %4823 = vmatprep.subr.mxu0 0.0
        %4824 = vmatpush1.msra.mxu0 0.0
        %4825 = vmatprep.subr.mxu0 0.0
        %4826 = vmatpush1.msra.mxu0 0.0
        %4827 = vmatprep.subr.mxu0 0.0
        %4828 = vmatpush1.msra.mxu0 0.0
        %4829 = vmatprep.subr.mxu0 0.0
        %4830 = vmatpush1.msra.mxu0 0.0
        %4831 = vmatprep.subr.mxu0 0.0
        %4832 = vmatpush1.msra.mxu0 0.0
        %4833 = vmatprep.subr.mxu0 0.0
        %4834 = vmatpush1.msra.mxu0 0.0
        %4835 = vmatprep.subr.mxu0 0.0
        %4836 = vmatpush1.msra.mxu0 0.0
        %4837 = vmatprep.subr.mxu0 0.0
        %4838 = vmatpush1.msra.mxu0 0.0
        %4839 = vmatprep.subr.mxu0 0.0
        %4840 = vmatpush1.msra.mxu0 0.0
        %4841 = vmatprep.subr.mxu0 0.0
        %4842 = vmatpush1.msra.mxu0 0.0
        %4843 = vmatprep.subr.mxu0 0.0
        %4844 = vmatpush1.msra.mxu0 0.0
        %4845 = vmatprep.subr.mxu0 0.0
        %4846 = vmatpush1.msra.mxu0 0.0
        %4847 = vmatprep.subr.mxu0 0.0
        %4848 = vmatpush1.msra.mxu0 0.0
        %4849 = vmatprep.subr.mxu0 0.0
        %4850 = vmatpush1.msra.mxu0 0.0
        %4851 = vmatprep.subr.mxu0 0.0
        %4852 = vmatpush1.msra.mxu0 0.0
        %4853 = vmatprep.subr.mxu0 0.0
        %4854 = vmatpush1.msra.mxu0 0.0
        %4855 = vmatprep.subr.mxu0 0.0
        %4856 = vmatpush1.msra.mxu0 0.0
        %4857 = vmatprep.subr.mxu0 0.0
        %4858 = vmatpush1.msra.mxu0 0.0
        %4859 = vmatprep.mubr.f32.mxu0 0.0
        %v4860 = vand.u32 %v3828, 4294901760
        %v4861 = vsub.f32 %v3828, %v4860
        %4862 = vmatmul.mubr.f32.gmra.mrb[0].mxu0 %v4861
        %v4863 = vpop.f32.mrb[0].mxu0
        %v4864 = vadd.f32 %v4754, %v4863
        %v4865 = vpop.f32.mrb[0].mxu0
        %v4866 = vadd.f32 %v4756, %v4865
        %4867 = vmatprep.mubr.f32.mxu0 0.0
        %v4868 = vand.u32 %v3831, 4294901760
        %v4869 = vsub.f32 %v3831, %v4868
        %4870 = vmatmul.mubr.f32.gmra.mrb[0].mxu0 %v4869
        %v4871 = vpop.f32.mrb[0].mxu0
        %v4872 = vadd.f32 %v4761, %v4871
        %v4873 = vpop.f32.mrb[0].mxu0
        %v4874 = vadd.f32 %v4763, %v4873
        %4875 = vmatprep.mubr.f32.mxu0 0.0
        %v4876 = vand.u32 %v3834, 4294901760
        %v4877 = vsub.f32 %v3834, %v4876
        %4878 = vmatmul.mubr.f32.gmra.mrb[0].mxu0 %v4877
        %v4879 = vpop.f32.mrb[0].mxu0
        %v4880 = vadd.f32 %v4768, %v4879
        %v4881 = vpop.f32.mrb[0].mxu0
        %v4882 = vadd.f32 %v4770, %v4881
        %4883 = vmatprep.mubr.f32.mxu0 0.0
        %v4884 = vand.u32 %v3837, 4294901760
        %v4885 = vsub.f32 %v3837, %v4884
        %4886 = vmatmul.mubr.f32.gmra.mrb[0].mxu0 %v4885
        %v4887 = vpop.f32.mrb[0].mxu0
        %v4888 = vadd.f32 %v4775, %v4887
        %v4889 = vpop.f32.mrb[0].mxu0
        %v4890 = vadd.f32 %v4777, %v4889
        %4891 = vdwg.mxu0
        %v4892 = vand.u32 %v3786, 4294901760
        %4893 = vmatprep.subr.mxu0 %v4892
        %v4894 = vand.u32 %v3785, 4294901760
        %4895 = vmatpush1.msra.mxu0 %v4894
        %v4896 = vand.u32 %v3790, 4294901760
        %4897 = vmatprep.subr.mxu0 %v4896
        %v4898 = vand.u32 %v3789, 4294901760
        %4899 = vmatpush1.msra.mxu0 %v4898
        %v4900 = vand.u32 %v3794, 4294901760
        %4901 = vmatprep.subr.mxu0 %v4900
        %v4902 = vand.u32 %v3793, 4294901760
        %4903 = vmatpush1.msra.mxu0 %v4902
        %v4904 = vand.u32 %v3798, 4294901760
        %4905 = vmatprep.subr.mxu0 %v4904
        %v4906 = vand.u32 %v3797, 4294901760
        %4907 = vmatpush1.msra.mxu0 %v4906
        %4908 = vmatprep.subr.mxu0 0.0
        %4909 = vmatpush1.msra.mxu0 0.0
        %4910 = vmatprep.subr.mxu0 0.0
        %4911 = vmatpush1.msra.mxu0 0.0
        %4912 = vmatprep.subr.mxu0 0.0
        %4913 = vmatpush1.msra.mxu0 0.0
        %4914 = vmatprep.subr.mxu0 0.0
        %4915 = vmatpush1.msra.mxu0 0.0
        %4916 = vmatprep.subr.mxu0 0.0
        %4917 = vmatpush1.msra.mxu0 0.0
        %4918 = vmatprep.subr.mxu0 0.0
        %4919 = vmatpush1.msra.mxu0 0.0
        %4920 = vmatprep.subr.mxu0 0.0
        %4921 = vmatpush1.msra.mxu0 0.0
        %4922 = vmatprep.subr.mxu0 0.0
        %4923 = vmatpush1.msra.mxu0 0.0
        %4924 = vmatprep.subr.mxu0 0.0
        %4925 = vmatpush1.msra.mxu0 0.0
        %4926 = vmatprep.subr.mxu0 0.0
        %4927 = vmatpush1.msra.mxu0 0.0
        %4928 = vmatprep.subr.mxu0 0.0
        %4929 = vmatpush1.msra.mxu0 0.0
        %4930 = vmatprep.subr.mxu0 0.0
        %4931 = vmatpush1.msra.mxu0 0.0
        %4932 = vmatprep.subr.mxu0 0.0
        %4933 = vmatpush1.msra.mxu0 0.0
        %4934 = vmatprep.subr.mxu0 0.0
        %4935 = vmatpush1.msra.mxu0 0.0
        %4936 = vmatprep.subr.mxu0 0.0
        %4937 = vmatpush1.msra.mxu0 0.0
        %4938 = vmatprep.subr.mxu0 0.0
        %4939 = vmatpush1.msra.mxu0 0.0
        %4940 = vmatprep.subr.mxu0 0.0
        %4941 = vmatpush1.msra.mxu0 0.0
        %4942 = vmatprep.subr.mxu0 0.0
        %4943 = vmatpush1.msra.mxu0 0.0
        %4944 = vmatprep.subr.mxu0 0.0
        %4945 = vmatpush1.msra.mxu0 0.0
        %4946 = vmatprep.subr.mxu0 0.0
        %4947 = vmatpush1.msra.mxu0 0.0
        %4948 = vmatprep.subr.mxu0 0.0
        %4949 = vmatpush1.msra.mxu0 0.0
        %4950 = vmatprep.subr.mxu0 0.0
        %4951 = vmatpush1.msra.mxu0 0.0
        %4952 = vmatprep.subr.mxu0 0.0
        %4953 = vmatpush1.msra.mxu0 0.0
        %4954 = vmatprep.subr.mxu0 0.0
        %4955 = vmatpush1.msra.mxu0 0.0
        %4956 = vmatprep.subr.mxu0 0.0
        %4957 = vmatpush1.msra.mxu0 0.0
        %4958 = vmatprep.subr.mxu0 0.0
        %4959 = vmatpush1.msra.mxu0 0.0
        %4960 = vmatprep.subr.mxu0 0.0
        %4961 = vmatpush1.msra.mxu0 0.0
        %4962 = vmatprep.subr.mxu0 0.0
        %4963 = vmatpush1.msra.mxu0 0.0
        %4964 = vmatprep.mubr.f32.mxu0 0.0
        %v4965 = vand.u32 %v3828, 4294901760
        %v4966 = vsub.f32 %v3828, %v4965
        %v4967 = vand.u32 %v4966, 4294901760
        %4968 = vmatmul.mubr.f32.gmra.mrb[0].mxu0 %v4967
        %v4969 = vpop.f32.mrb[0].mxu0
        %v4970 = vadd.f32 %v4864, %v4969
        %v4971 = vpop.f32.mrb[0].mxu0
        %v4972 = vadd.f32 %v4866, %v4971
        %4973 = vmatprep.mubr.f32.mxu0 0.0
        %v4974 = vand.u32 %v3831, 4294901760
        %v4975 = vsub.f32 %v3831, %v4974
        %v4976 = vand.u32 %v4975, 4294901760
        %4977 = vmatmul.mubr.f32.gmra.mrb[0].mxu0 %v4976
        %v4978 = vpop.f32.mrb[0].mxu0
        %v4979 = vadd.f32 %v4872, %v4978
        %v4980 = vpop.f32.mrb[0].mxu0
        %v4981 = vadd.f32 %v4874, %v4980
        %4982 = vmatprep.mubr.f32.mxu0 0.0
        %v4983 = vand.u32 %v3834, 4294901760
        %v4984 = vsub.f32 %v3834, %v4983
        %v4985 = vand.u32 %v4984, 4294901760
        %4986 = vmatmul.mubr.f32.gmra.mrb[0].mxu0 %v4985
        %v4987 = vpop.f32.mrb[0].mxu0
        %v4988 = vadd.f32 %v4880, %v4987
        %v4989 = vpop.f32.mrb[0].mxu0
        %v4990 = vadd.f32 %v4882, %v4989
        %4991 = vmatprep.mubr.f32.mxu0 0.0
        %v4992 = vand.u32 %v3837, 4294901760
        %v4993 = vsub.f32 %v3837, %v4992
        %v4994 = vand.u32 %v4993, 4294901760
        %4995 = vmatmul.mubr.f32.gmra.mrb[0].mxu0 %v4994
        %v4996 = vpop.f32.mrb[0].mxu0
        %v4997 = vadd.f32 %v4888, %v4996
        %v4998 = vpop.f32.mrb[0].mxu0
        %v4999 = vadd.f32 %v4890, %v4998
        %5000 = vdwg.mxu0
        %v5001 = vand.u32 %v3786, 4294901760
        %v5002 = vsub.f32 %v3786, %v5001
        %v5003 = vand.u32 %v5002, 4294901760
        %5004 = vmatprep.subr.mxu0 %v5003
        %v5005 = vand.u32 %v3785, 4294901760
        %v5006 = vsub.f32 %v3785, %v5005
        %v5007 = vand.u32 %v5006, 4294901760
        %5008 = vmatpush1.msra.mxu0 %v5007
        %v5009 = vand.u32 %v3790, 4294901760
        %v5010 = vsub.f32 %v3790, %v5009
        %v5011 = vand.u32 %v5010, 4294901760
        %5012 = vmatprep.subr.mxu0 %v5011
        %v5013 = vand.u32 %v3789, 4294901760
        %v5014 = vsub.f32 %v3789, %v5013
        %v5015 = vand.u32 %v5014, 4294901760
        %5016 = vmatpush1.msra.mxu0 %v5015
        %v5017 = vand.u32 %v3794, 4294901760
        %v5018 = vsub.f32 %v3794, %v5017
        %v5019 = vand.u32 %v5018, 4294901760
        %5020 = vmatprep.subr.mxu0 %v5019
        %v5021 = vand.u32 %v3793, 4294901760
        %v5022 = vsub.f32 %v3793, %v5021
        %v5023 = vand.u32 %v5022, 4294901760
        %5024 = vmatpush1.msra.mxu0 %v5023
        %v5025 = vand.u32 %v3798, 4294901760
        %v5026 = vsub.f32 %v3798, %v5025
        %v5027 = vand.u32 %v5026, 4294901760
        %5028 = vmatprep.subr.mxu0 %v5027
        %v5029 = vand.u32 %v3797, 4294901760
        %v5030 = vsub.f32 %v3797, %v5029
        %v5031 = vand.u32 %v5030, 4294901760
        %5032 = vmatpush1.msra.mxu0 %v5031
        %5033 = vmatprep.subr.mxu0 0.0
        %5034 = vmatpush1.msra.mxu0 0.0
        %5035 = vmatprep.subr.mxu0 0.0
        %5036 = vmatpush1.msra.mxu0 0.0
        %5037 = vmatprep.subr.mxu0 0.0
        %5038 = vmatpush1.msra.mxu0 0.0
        %5039 = vmatprep.subr.mxu0 0.0
        %5040 = vmatpush1.msra.mxu0 0.0
        %5041 = vmatprep.subr.mxu0 0.0
        %5042 = vmatpush1.msra.mxu0 0.0
        %5043 = vmatprep.subr.mxu0 0.0
        %5044 = vmatpush1.msra.mxu0 0.0
        %5045 = vmatprep.subr.mxu0 0.0
        %5046 = vmatpush1.msra.mxu0 0.0
        %5047 = vmatprep.subr.mxu0 0.0
        %5048 = vmatpush1.msra.mxu0 0.0
        %5049 = vmatprep.subr.mxu0 0.0
        %5050 = vmatpush1.msra.mxu0 0.0
        %5051 = vmatprep.subr.mxu0 0.0
        %5052 = vmatpush1.msra.mxu0 0.0
        %5053 = vmatprep.subr.mxu0 0.0
        %5054 = vmatpush1.msra.mxu0 0.0
        %5055 = vmatprep.subr.mxu0 0.0
        %5056 = vmatpush1.msra.mxu0 0.0
        %5057 = vmatprep.subr.mxu0 0.0
        %5058 = vmatpush1.msra.mxu0 0.0
        %5059 = vmatprep.subr.mxu0 0.0
        %5060 = vmatpush1.msra.mxu0 0.0
        %5061 = vmatprep.subr.mxu0 0.0
        %5062 = vmatpush1.msra.mxu0 0.0
        %5063 = vmatprep.subr.mxu0 0.0
        %5064 = vmatpush1.msra.mxu0 0.0
        %5065 = vmatprep.subr.mxu0 0.0
        %5066 = vmatpush1.msra.mxu0 0.0
        %5067 = vmatprep.subr.mxu0 0.0
        %5068 = vmatpush1.msra.mxu0 0.0
        %5069 = vmatprep.subr.mxu0 0.0
        %5070 = vmatpush1.msra.mxu0 0.0
        %5071 = vmatprep.subr.mxu0 0.0
        %5072 = vmatpush1.msra.mxu0 0.0
        %5073 = vmatprep.subr.mxu0 0.0
        %5074 = vmatpush1.msra.mxu0 0.0
        %5075 = vmatprep.subr.mxu0 0.0
        %5076 = vmatpush1.msra.mxu0 0.0
        %5077 = vmatprep.subr.mxu0 0.0
        %5078 = vmatpush1.msra.mxu0 0.0
        %5079 = vmatprep.subr.mxu0 0.0
        %5080 = vmatpush1.msra.mxu0 0.0
        %5081 = vmatprep.subr.mxu0 0.0
        %5082 = vmatpush1.msra.mxu0 0.0
        %5083 = vmatprep.subr.mxu0 0.0
        %5084 = vmatpush1.msra.mxu0 0.0
        %5085 = vmatprep.subr.mxu0 0.0
        %5086 = vmatpush1.msra.mxu0 0.0
        %5087 = vmatprep.subr.mxu0 0.0
        %5088 = vmatpush1.msra.mxu0 0.0
        %5089 = vmatprep.mubr.f32.mxu0 0.0
        %v5090 = vand.u32 %v3828, 4294901760
        %5091 = vmatmul.mubr.f32.gmra.mrb[0].mxu0 %v5090
        %v5092 = vpop.f32.mrb[0].mxu0
        %v5093 = vadd.f32 %v4970, %v5092
        %v5094 = vpop.f32.mrb[0].mxu0
        %v5095 = vadd.f32 %v4972, %v5094
        %5096 = vmatprep.mubr.f32.mxu0 0.0
        %v5097 = vand.u32 %v3831, 4294901760
        %5098 = vmatmul.mubr.f32.gmra.mrb[0].mxu0 %v5097
        %v5099 = vpop.f32.mrb[0].mxu0
        %v5100 = vadd.f32 %v4979, %v5099
        %v5101 = vpop.f32.mrb[0].mxu0
        %v5102 = vadd.f32 %v4981, %v5101
        %5103 = vmatprep.mubr.f32.mxu0 0.0
        %v5104 = vand.u32 %v3834, 4294901760
        %5105 = vmatmul.mubr.f32.gmra.mrb[0].mxu0 %v5104
        %v5106 = vpop.f32.mrb[0].mxu0
        %v5107 = vadd.f32 %v4988, %v5106
        %v5108 = vpop.f32.mrb[0].mxu0
        %v5109 = vadd.f32 %v4990, %v5108
        %5110 = vmatprep.mubr.f32.mxu0 0.0
        %v5111 = vand.u32 %v3837, 4294901760
        %5112 = vmatmul.mubr.f32.gmra.mrb[0].mxu0 %v5111
        %v5113 = vpop.f32.mrb[0].mxu0
        %v5114 = vadd.f32 %v4997, %v5113
        %v5115 = vpop.f32.mrb[0].mxu0
        %v5116 = vadd.f32 %v4999, %v5115
        %5117 = vdwg.mxu0
        %v5118 = vand.u32 %v3786, 4294901760
        %5119 = vmatprep.subr.mxu0 %v5118
        %v5120 = vand.u32 %v3785, 4294901760
        %5121 = vmatpush1.msra.mxu0 %v5120
        %v5122 = vand.u32 %v3790, 4294901760
        %5123 = vmatprep.subr.mxu0 %v5122
        %v5124 = vand.u32 %v3789, 4294901760
        %5125 = vmatpush1.msra.mxu0 %v5124
        %v5126 = vand.u32 %v3794, 4294901760
        %5127 = vmatprep.subr.mxu0 %v5126
        %v5128 = vand.u32 %v3793, 4294901760
        %5129 = vmatpush1.msra.mxu0 %v5128
        %v5130 = vand.u32 %v3798, 4294901760
        %5131 = vmatprep.subr.mxu0 %v5130
        %v5132 = vand.u32 %v3797, 4294901760
        %5133 = vmatpush1.msra.mxu0 %v5132
        %5134 = vmatprep.subr.mxu0 0.0
        %5135 = vmatpush1.msra.mxu0 0.0
        %5136 = vmatprep.subr.mxu0 0.0
        %5137 = vmatpush1.msra.mxu0 0.0
        %5138 = vmatprep.subr.mxu0 0.0
        %5139 = vmatpush1.msra.mxu0 0.0
        %5140 = vmatprep.subr.mxu0 0.0
        %5141 = vmatpush1.msra.mxu0 0.0
        %5142 = vmatprep.subr.mxu0 0.0
        %5143 = vmatpush1.msra.mxu0 0.0
        %5144 = vmatprep.subr.mxu0 0.0
        %5145 = vmatpush1.msra.mxu0 0.0
        %5146 = vmatprep.subr.mxu0 0.0
        %5147 = vmatpush1.msra.mxu0 0.0
        %5148 = vmatprep.subr.mxu0 0.0
        %5149 = vmatpush1.msra.mxu0 0.0
        %5150 = vmatprep.subr.mxu0 0.0
        %5151 = vmatpush1.msra.mxu0 0.0
        %5152 = vmatprep.subr.mxu0 0.0
        %5153 = vmatpush1.msra.mxu0 0.0
        %5154 = vmatprep.subr.mxu0 0.0
        %5155 = vmatpush1.msra.mxu0 0.0
        %5156 = vmatprep.subr.mxu0 0.0
        %5157 = vmatpush1.msra.mxu0 0.0
        %5158 = vmatprep.subr.mxu0 0.0
        %5159 = vmatpush1.msra.mxu0 0.0
        %5160 = vmatprep.subr.mxu0 0.0
        %5161 = vmatpush1.msra.mxu0 0.0
        %5162 = vmatprep.subr.mxu0 0.0
        %5163 = vmatpush1.msra.mxu0 0.0
        %5164 = vmatprep.subr.mxu0 0.0
        %5165 = vmatpush1.msra.mxu0 0.0
        %5166 = vmatprep.subr.mxu0 0.0
        %5167 = vmatpush1.msra.mxu0 0.0
        %5168 = vmatprep.subr.mxu0 0.0
        %5169 = vmatpush1.msra.mxu0 0.0
        %5170 = vmatprep.subr.mxu0 0.0
        %5171 = vmatpush1.msra.mxu0 0.0
        %5172 = vmatprep.subr.mxu0 0.0
        %5173 = vmatpush1.msra.mxu0 0.0
        %5174 = vmatprep.subr.mxu0 0.0
        %5175 = vmatpush1.msra.mxu0 0.0
        %5176 = vmatprep.subr.mxu0 0.0
        %5177 = vmatpush1.msra.mxu0 0.0
        %5178 = vmatprep.subr.mxu0 0.0
        %5179 = vmatpush1.msra.mxu0 0.0
        %5180 = vmatprep.subr.mxu0 0.0
        %5181 = vmatpush1.msra.mxu0 0.0
        %5182 = vmatprep.subr.mxu0 0.0
        %5183 = vmatpush1.msra.mxu0 0.0
        %5184 = vmatprep.subr.mxu0 0.0
        %5185 = vmatpush1.msra.mxu0 0.0
        %5186 = vmatprep.subr.mxu0 0.0
        %5187 = vmatpush1.msra.mxu0 0.0
        %5188 = vmatprep.subr.mxu0 0.0
        %5189 = vmatpush1.msra.mxu0 0.0
        %5190 = vmatprep.mubr.f32.mxu0 0.0
        %v5191 = vand.u32 %v3828, 4294901760
        %5192 = vmatmul.mubr.f32.gmra.mrb[0].mxu0 %v5191
        %v5193 = vpop.f32.mrb[0].mxu0
        %v5194 = vadd.f32 %v5093, %v5193
        %v5195 = vpop.f32.mrb[0].mxu0
        %v5196 = vadd.f32 %v5095, %v5195
        %5197 = vmatprep.mubr.f32.mxu0 0.0
        %v5198 = vand.u32 %v3831, 4294901760
        %5199 = vmatmul.mubr.f32.gmra.mrb[0].mxu0 %v5198
        %v5200 = vpop.f32.mrb[0].mxu0
        %v5201 = vadd.f32 %v5100, %v5200
        %v5202 = vpop.f32.mrb[0].mxu0
        %v5203 = vadd.f32 %v5102, %v5202
        %5204 = vmatprep.mubr.f32.mxu0 0.0
        %v5205 = vand.u32 %v3834, 4294901760
        %5206 = vmatmul.mubr.f32.gmra.mrb[0].mxu0 %v5205
        %v5207 = vpop.f32.mrb[0].mxu0
        %v5208 = vadd.f32 %v5107, %v5207
        %v5209 = vpop.f32.mrb[0].mxu0
        %v5210 = vadd.f32 %v5109, %v5209
        %5211 = vmatprep.mubr.f32.mxu0 0.0
        %v5212 = vand.u32 %v3837, 4294901760
        %5213 = vmatmul.mubr.f32.gmra.mrb[0].mxu0 %v5212
        %v5214 = vpop.f32.mrb[0].mxu0
        %v5215 = vadd.f32 %v5114, %v5214
        %v5216 = vpop.f32.mrb[0].mxu0
        %v5217 = vadd.f32 %v5116, %v5216
        %5218 = vdwg.mxu0
        %v5219 = vtanh.pop %v4504
        %v5220 = vtanh.pop %v4506
        %v5221 = vtanh.pop %v5194
        %v5222 = vtanh.pop %v5196
        %v5223 = vtanh.pop %v4511
        %v5224 = vtanh.pop %v4513
        %v5225 = vtanh.pop %v5201
        %v5226 = vtanh.pop %v5203
        %v5227 = vtanh.pop %v4518
        %v5228 = vtanh.pop %v4520
        %v5229 = vtanh.pop %v5208
        %v5230 = vtanh.pop %v5210
        %v5231 = vtanh.pop %v4525
        %v5232 = vtanh.pop %v4527
        %v5233 = vtanh.pop %v5215
        %v5234 = vtanh.pop %v5217
        %v5235 = vld [vmem:[%s5] sm:$0xff]
        %v5236 = vld [vmem:[%s5 + $0x8] sm:$0xff]
        %v5237 = vld [vmem:[%s5 + $0x10] sm:$0xff]
        %v5238 = vld [vmem:[%s5 + $0x18] sm:$0xff]
        %v5239 = vld [vmem:[%s6] sm:$0xff]
        %v5240 = vld [vmem:[%s6 + $0x8] sm:$0xff]
        %v5241 = vld [vmem:[%s6 + $0x10] sm:$0xff]
        %v5242 = vld [vmem:[%s6 + $0x18] sm:$0xff]
        %5244 = vset.pattern.permute.xlu0 0
        %5245 = vperm.xlu0 %5244, %v5239
        %v5246 = vpop.permute.xlu0 %5245
        %5249 = vset.pattern.permute.xlu0 0
        %5250 = vperm.xlu0 %5249, %v5240
        %v5251 = vpop.permute.xlu0 %5250
        %5254 = vset.pattern.permute.xlu0 0
        %5255 = vperm.xlu0 %5254, %v5241
        %v5256 = vpop.permute.xlu0 %5255
        %5259 = vset.pattern.permute.xlu0 0
        %5260 = vperm.xlu0 %5259, %v5242
        %v5261 = vpop.permute.xlu0 %5260
        %v5264 = vsel %vm582, %v5235, 0
        %v5267 = vsel %vm582, %v5236, 0
        %v5270 = vsel %vm582, %v5237, 0
        %v5273 = vsel %vm582, %v5238, 0
        %v5275 = vand.u32 %v5220, 4294901760
        %5276 = vmatprep.subr.mxu0 %v5275
        %v5277 = vand.u32 %v5219, 4294901760
        %5278 = vmatpush1.msra.mxu0 %v5277
        %v5279 = vand.u32 %v5224, 4294901760
        %5280 = vmatprep.subr.mxu0 %v5279
        %v5281 = vand.u32 %v5223, 4294901760
        %5282 = vmatpush1.msra.mxu0 %v5281
        %v5283 = vand.u32 %v5228, 4294901760
        %5284 = vmatprep.subr.mxu0 %v5283
        %v5285 = vand.u32 %v5227, 4294901760
        %5286 = vmatpush1.msra.mxu0 %v5285
        %v5287 = vand.u32 %v5232, 4294901760
        %5288 = vmatprep.subr.mxu0 %v5287
        %v5289 = vand.u32 %v5231, 4294901760
        %5290 = vmatpush1.msra.mxu0 %v5289
        %5291 = vmatprep.subr.mxu0 0.0
        %5292 = vmatpush1.msra.mxu0 0.0
        %5293 = vmatprep.subr.mxu0 0.0
        %5294 = vmatpush1.msra.mxu0 0.0
        %5295 = vmatprep.subr.mxu0 0.0
        %5296 = vmatpush1.msra.mxu0 0.0
        %5297 = vmatprep.subr.mxu0 0.0
        %5298 = vmatpush1.msra.mxu0 0.0
        %5299 = vmatprep.subr.mxu0 0.0
        %5300 = vmatpush1.msra.mxu0 0.0
        %5301 = vmatprep.subr.mxu0 0.0
        %5302 = vmatpush1.msra.mxu0 0.0
        %5303 = vmatprep.subr.mxu0 0.0
        %5304 = vmatpush1.msra.mxu0 0.0
        %5305 = vmatprep.subr.mxu0 0.0
        %5306 = vmatpush1.msra.mxu0 0.0
        %5307 = vmatprep.subr.mxu0 0.0
        %5308 = vmatpush1.msra.mxu0 0.0
        %5309 = vmatprep.subr.mxu0 0.0
        %5310 = vmatpush1.msra.mxu0 0.0
        %5311 = vmatprep.subr.mxu0 0.0
        %5312 = vmatpush1.msra.mxu0 0.0
        %5313 = vmatprep.subr.mxu0 0.0
        %5314 = vmatpush1.msra.mxu0 0.0
        %5315 = vmatprep.subr.mxu0 0.0
        %5316 = vmatpush1.msra.mxu0 0.0
        %5317 = vmatprep.subr.mxu0 0.0
        %5318 = vmatpush1.msra.mxu0 0.0
        %5319 = vmatprep.subr.mxu0 0.0
        %5320 = vmatpush1.msra.mxu0 0.0
        %5321 = vmatprep.subr.mxu0 0.0
        %5322 = vmatpush1.msra.mxu0 0.0
        %5323 = vmatprep.subr.mxu0 0.0
        %5324 = vmatpush1.msra.mxu0 0.0
        %5325 = vmatprep.subr.mxu0 0.0
        %5326 = vmatpush1.msra.mxu0 0.0
        %5327 = vmatprep.subr.mxu0 0.0
        %5328 = vmatpush1.msra.mxu0 0.0
        %5329 = vmatprep.subr.mxu0 0.0
        %5330 = vmatpush1.msra.mxu0 0.0
        %5331 = vmatprep.subr.mxu0 0.0
        %5332 = vmatpush1.msra.mxu0 0.0
        %5333 = vmatprep.subr.mxu0 0.0
        %5334 = vmatpush1.msra.mxu0 0.0
        %5335 = vmatprep.subr.mxu0 0.0
        %5336 = vmatpush1.msra.mxu0 0.0
        %5337 = vmatprep.subr.mxu0 0.0
        %5338 = vmatpush1.msra.mxu0 0.0
        %5339 = vmatprep.subr.mxu0 0.0
        %5340 = vmatpush1.msra.mxu0 0.0
        %5341 = vmatprep.subr.mxu0 0.0
        %5342 = vmatpush1.msra.mxu0 0.0
        %5343 = vmatprep.subr.mxu0 0.0
        %5344 = vmatpush1.msra.mxu0 0.0
        %5345 = vmatprep.subr.mxu0 0.0
        %5346 = vmatpush1.msra.mxu0 0.0
        %5347 = vmatprep.mubr.f32.mxu0 0.0
        %v5348 = vand.u32 %v5264, 4294901760
        %v5349 = vsub.f32 %v5264, %v5348
        %v5350 = vand.u32 %v5349, 4294901760
        %v5351 = vsub.f32 %v5349, %v5350
        %v5352 = vand.u32 %v5351, 4294901760
        %5353 = vmatmul.mubr.f32.gmra.mrb[0].mxu0 %v5352
        %v5354 = vpop.f32.mrb[0].mxu0
        %v5355 = vadd.f32 %v5246, %v5354
        %v5356 = vpop.f32.mrb[0].mxu0
        %v5357 = vadd.f32 %v5246, %v5356
        %5358 = vmatprep.mubr.f32.mxu0 0.0
        %v5359 = vand.u32 %v5267, 4294901760
        %v5360 = vsub.f32 %v5267, %v5359
        %v5361 = vand.u32 %v5360, 4294901760
        %v5362 = vsub.f32 %v5360, %v5361
        %v5363 = vand.u32 %v5362, 4294901760
        %5364 = vmatmul.mubr.f32.gmra.mrb[0].mxu0 %v5363
        %v5365 = vpop.f32.mrb[0].mxu0
        %v5366 = vadd.f32 %v5251, %v5365
        %v5367 = vpop.f32.mrb[0].mxu0
        %v5368 = vadd.f32 %v5251, %v5367
        %5369 = vmatprep.mubr.f32.mxu0 0.0
        %v5370 = vand.u32 %v5270, 4294901760
        %v5371 = vsub.f32 %v5270, %v5370
        %v5372 = vand.u32 %v5371, 4294901760
        %v5373 = vsub.f32 %v5371, %v5372
        %v5374 = vand.u32 %v5373, 4294901760
        %5375 = vmatmul.mubr.f32.gmra.mrb[0].mxu0 %v5374
        %v5376 = vpop.f32.mrb[0].mxu0
        %v5377 = vadd.f32 %v5256, %v5376
        %v5378 = vpop.f32.mrb[0].mxu0
        %v5379 = vadd.f32 %v5256, %v5378
        %5380 = vmatprep.mubr.f32.mxu0 0.0
        %v5381 = vand.u32 %v5273, 4294901760
        %v5382 = vsub.f32 %v5273, %v5381
        %v5383 = vand.u32 %v5382, 4294901760
        %v5384 = vsub.f32 %v5382, %v5383
        %v5385 = vand.u32 %v5384, 4294901760
        %5386 = vmatmul.mubr.f32.gmra.mrb[0].mxu0 %v5385
        %v5387 = vpop.f32.mrb[0].mxu0
        %v5388 = vadd.f32 %v5261, %v5387
        %v5389 = vpop.f32.mrb[0].mxu0
        %v5390 = vadd.f32 %v5261, %v5389
        %5391 = vdwg.mxu0
        %v5392 = vand.u32 %v5220, 4294901760
        %v5393 = vsub.f32 %v5220, %v5392
        %v5394 = vand.u32 %v5393, 4294901760
        %v5395 = vsub.f32 %v5393, %v5394
        %v5396 = vand.u32 %v5395, 4294901760
        %5397 = vmatprep.subr.mxu0 %v5396
        %v5398 = vand.u32 %v5219, 4294901760
        %v5399 = vsub.f32 %v5219, %v5398
        %v5400 = vand.u32 %v5399, 4294901760
        %v5401 = vsub.f32 %v5399, %v5400
        %v5402 = vand.u32 %v5401, 4294901760
        %5403 = vmatpush1.msra.mxu0 %v5402
        %v5404 = vand.u32 %v5224, 4294901760
        %v5405 = vsub.f32 %v5224, %v5404
        %v5406 = vand.u32 %v5405, 4294901760
        %v5407 = vsub.f32 %v5405, %v5406
        %v5408 = vand.u32 %v5407, 4294901760
        %5409 = vmatprep.subr.mxu0 %v5408
        %v5410 = vand.u32 %v5223, 4294901760
        %v5411 = vsub.f32 %v5223, %v5410
        %v5412 = vand.u32 %v5411, 4294901760
        %v5413 = vsub.f32 %v5411, %v5412
        %v5414 = vand.u32 %v5413, 4294901760
        %5415 = vmatpush1.msra.mxu0 %v5414
        %v5416 = vand.u32 %v5228, 4294901760
        %v5417 = vsub.f32 %v5228, %v5416
        %v5418 = vand.u32 %v5417, 4294901760
        %v5419 = vsub.f32 %v5417, %v5418
        %v5420 = vand.u32 %v5419, 4294901760
        %5421 = vmatprep.subr.mxu0 %v5420
        %v5422 = vand.u32 %v5227, 4294901760
        %v5423 = vsub.f32 %v5227, %v5422
        %v5424 = vand.u32 %v5423, 4294901760
        %v5425 = vsub.f32 %v5423, %v5424
        %v5426 = vand.u32 %v5425, 4294901760
        %5427 = vmatpush1.msra.mxu0 %v5426
        %v5428 = vand.u32 %v5232, 4294901760
        %v5429 = vsub.f32 %v5232, %v5428
        %v5430 = vand.u32 %v5429, 4294901760
        %v5431 = vsub.f32 %v5429, %v5430
        %v5432 = vand.u32 %v5431, 4294901760
        %5433 = vmatprep.subr.mxu0 %v5432
        %v5434 = vand.u32 %v5231, 4294901760
        %v5435 = vsub.f32 %v5231, %v5434
        %v5436 = vand.u32 %v5435, 4294901760
        %v5437 = vsub.f32 %v5435, %v5436
        %v5438 = vand.u32 %v5437, 4294901760
        %5439 = vmatpush1.msra.mxu0 %v5438
        %5440 = vmatprep.subr.mxu0 0.0
        %5441 = vmatpush1.msra.mxu0 0.0
        %5442 = vmatprep.subr.mxu0 0.0
        %5443 = vmatpush1.msra.mxu0 0.0
        %5444 = vmatprep.subr.mxu0 0.0
        %5445 = vmatpush1.msra.mxu0 0.0
        %5446 = vmatprep.subr.mxu0 0.0
        %5447 = vmatpush1.msra.mxu0 0.0
        %5448 = vmatprep.subr.mxu0 0.0
        %5449 = vmatpush1.msra.mxu0 0.0
        %5450 = vmatprep.subr.mxu0 0.0
        %5451 = vmatpush1.msra.mxu0 0.0
        %5452 = vmatprep.subr.mxu0 0.0
        %5453 = vmatpush1.msra.mxu0 0.0
        %5454 = vmatprep.subr.mxu0 0.0
        %5455 = vmatpush1.msra.mxu0 0.0
        %5456 = vmatprep.subr.mxu0 0.0
        %5457 = vmatpush1.msra.mxu0 0.0
        %5458 = vmatprep.subr.mxu0 0.0
        %5459 = vmatpush1.msra.mxu0 0.0
        %5460 = vmatprep.subr.mxu0 0.0
        %5461 = vmatpush1.msra.mxu0 0.0
        %5462 = vmatprep.subr.mxu0 0.0
        %5463 = vmatpush1.msra.mxu0 0.0
        %5464 = vmatprep.subr.mxu0 0.0
        %5465 = vmatpush1.msra.mxu0 0.0
        %5466 = vmatprep.subr.mxu0 0.0
        %5467 = vmatpush1.msra.mxu0 0.0
        %5468 = vmatprep.subr.mxu0 0.0
        %5469 = vmatpush1.msra.mxu0 0.0
        %5470 = vmatprep.subr.mxu0 0.0
        %5471 = vmatpush1.msra.mxu0 0.0
        %5472 = vmatprep.subr.mxu0 0.0
        %5473 = vmatpush1.msra.mxu0 0.0
        %5474 = vmatprep.subr.mxu0 0.0
        %5475 = vmatpush1.msra.mxu0 0.0
        %5476 = vmatprep.subr.mxu0 0.0
        %5477 = vmatpush1.msra.mxu0 0.0
        %5478 = vmatprep.subr.mxu0 0.0
        %5479 = vmatpush1.msra.mxu0 0.0
        %5480 = vmatprep.subr.mxu0 0.0
        %5481 = vmatpush1.msra.mxu0 0.0
        %5482 = vmatprep.subr.mxu0 0.0
        %5483 = vmatpush1.msra.mxu0 0.0
        %5484 = vmatprep.subr.mxu0 0.0
        %5485 = vmatpush1.msra.mxu0 0.0
        %5486 = vmatprep.subr.mxu0 0.0
        %5487 = vmatpush1.msra.mxu0 0.0
        %5488 = vmatprep.subr.mxu0 0.0
        %5489 = vmatpush1.msra.mxu0 0.0
        %5490 = vmatprep.subr.mxu0 0.0
        %5491 = vmatpush1.msra.mxu0 0.0
        %5492 = vmatprep.subr.mxu0 0.0
        %5493 = vmatpush1.msra.mxu0 0.0
        %5494 = vmatprep.subr.mxu0 0.0
        %5495 = vmatpush1.msra.mxu0 0.0
        %5496 = vmatprep.mubr.f32.mxu0 0.0
        %v5497 = vand.u32 %v5264, 4294901760
        %5498 = vmatmul.mubr.f32.gmra.mrb[0].mxu0 %v5497
        %v5499 = vpop.f32.mrb[0].mxu0
        %v5500 = vadd.f32 %v5355, %v5499
        %v5501 = vpop.f32.mrb[0].mxu0
        %v5502 = vadd.f32 %v5357, %v5501
        %5503 = vmatprep.mubr.f32.mxu0 0.0
        %v5504 = vand.u32 %v5267, 4294901760
        %5505 = vmatmul.mubr.f32.gmra.mrb[0].mxu0 %v5504
        %v5506 = vpop.f32.mrb[0].mxu0
        %v5507 = vadd.f32 %v5366, %v5506
        %v5508 = vpop.f32.mrb[0].mxu0
        %v5509 = vadd.f32 %v5368, %v5508
        %5510 = vmatprep.mubr.f32.mxu0 0.0
        %v5511 = vand.u32 %v5270, 4294901760
        %5512 = vmatmul.mubr.f32.gmra.mrb[0].mxu0 %v5511
        %v5513 = vpop.f32.mrb[0].mxu0
        %v5514 = vadd.f32 %v5377, %v5513
        %v5515 = vpop.f32.mrb[0].mxu0
        %v5516 = vadd.f32 %v5379, %v5515
        %5517 = vmatprep.mubr.f32.mxu0 0.0
        %v5518 = vand.u32 %v5273, 4294901760
        %5519 = vmatmul.mubr.f32.gmra.mrb[0].mxu0 %v5518
        %v5520 = vpop.f32.mrb[0].mxu0
        %v5521 = vadd.f32 %v5388, %v5520
        %v5522 = vpop.f32.mrb[0].mxu0
        %v5523 = vadd.f32 %v5390, %v5522
        %5524 = vdwg.mxu0
        %v5525 = vand.u32 %v5220, 4294901760
        %v5526 = vsub.f32 %v5220, %v5525
        %5527 = vmatprep.subr.mxu0 %v5526
        %v5528 = vand.u32 %v5219, 4294901760
        %v5529 = vsub.f32 %v5219, %v5528
        %5530 = vmatpush1.msra.mxu0 %v5529
        %v5531 = vand.u32 %v5224, 4294901760
        %v5532 = vsub.f32 %v5224, %v5531
        %5533 = vmatprep.subr.mxu0 %v5532
        %v5534 = vand.u32 %v5223, 4294901760
        %v5535 = vsub.f32 %v5223, %v5534
        %5536 = vmatpush1.msra.mxu0 %v5535
        %v5537 = vand.u32 %v5228, 4294901760
        %v5538 = vsub.f32 %v5228, %v5537
        %5539 = vmatprep.subr.mxu0 %v5538
        %v5540 = vand.u32 %v5227, 4294901760
        %v5541 = vsub.f32 %v5227, %v5540
        %5542 = vmatpush1.msra.mxu0 %v5541
        %v5543 = vand.u32 %v5232, 4294901760
        %v5544 = vsub.f32 %v5232, %v5543
        %5545 = vmatprep.subr.mxu0 %v5544
        %v5546 = vand.u32 %v5231, 4294901760
        %v5547 = vsub.f32 %v5231, %v5546
        %5548 = vmatpush1.msra.mxu0 %v5547
        %5549 = vmatprep.subr.mxu0 0.0
        %5550 = vmatpush1.msra.mxu0 0.0
        %5551 = vmatprep.subr.mxu0 0.0
        %5552 = vmatpush1.msra.mxu0 0.0
        %5553 = vmatprep.subr.mxu0 0.0
        %5554 = vmatpush1.msra.mxu0 0.0
        %5555 = vmatprep.subr.mxu0 0.0
        %5556 = vmatpush1.msra.mxu0 0.0
        %5557 = vmatprep.subr.mxu0 0.0
        %5558 = vmatpush1.msra.mxu0 0.0
        %5559 = vmatprep.subr.mxu0 0.0
        %5560 = vmatpush1.msra.mxu0 0.0
        %5561 = vmatprep.subr.mxu0 0.0
        %5562 = vmatpush1.msra.mxu0 0.0
        %5563 = vmatprep.subr.mxu0 0.0
        %5564 = vmatpush1.msra.mxu0 0.0
        %5565 = vmatprep.subr.mxu0 0.0
        %5566 = vmatpush1.msra.mxu0 0.0
        %5567 = vmatprep.subr.mxu0 0.0
        %5568 = vmatpush1.msra.mxu0 0.0
        %5569 = vmatprep.subr.mxu0 0.0
        %5570 = vmatpush1.msra.mxu0 0.0
        %5571 = vmatprep.subr.mxu0 0.0
        %5572 = vmatpush1.msra.mxu0 0.0
        %5573 = vmatprep.subr.mxu0 0.0
        %5574 = vmatpush1.msra.mxu0 0.0
        %5575 = vmatprep.subr.mxu0 0.0
        %5576 = vmatpush1.msra.mxu0 0.0
        %5577 = vmatprep.subr.mxu0 0.0
        %5578 = vmatpush1.msra.mxu0 0.0
        %5579 = vmatprep.subr.mxu0 0.0
        %5580 = vmatpush1.msra.mxu0 0.0
        %5581 = vmatprep.subr.mxu0 0.0
        %5582 = vmatpush1.msra.mxu0 0.0
        %5583 = vmatprep.subr.mxu0 0.0
        %5584 = vmatpush1.msra.mxu0 0.0
        %5585 = vmatprep.subr.mxu0 0.0
        %5586 = vmatpush1.msra.mxu0 0.0
        %5587 = vmatprep.subr.mxu0 0.0
        %5588 = vmatpush1.msra.mxu0 0.0
        %5589 = vmatprep.subr.mxu0 0.0
        %5590 = vmatpush1.msra.mxu0 0.0
        %5591 = vmatprep.subr.mxu0 0.0
        %5592 = vmatpush1.msra.mxu0 0.0
        %5593 = vmatprep.subr.mxu0 0.0
        %5594 = vmatpush1.msra.mxu0 0.0
        %5595 = vmatprep.subr.mxu0 0.0
        %5596 = vmatpush1.msra.mxu0 0.0
        %5597 = vmatprep.subr.mxu0 0.0
        %5598 = vmatpush1.msra.mxu0 0.0
        %5599 = vmatprep.subr.mxu0 0.0
        %5600 = vmatpush1.msra.mxu0 0.0
        %5601 = vmatprep.subr.mxu0 0.0
        %5602 = vmatpush1.msra.mxu0 0.0
        %5603 = vmatprep.subr.mxu0 0.0
        %5604 = vmatpush1.msra.mxu0 0.0
        %5605 = vmatprep.mubr.f32.mxu0 0.0
        %v5606 = vand.u32 %v5264, 4294901760
        %v5607 = vsub.f32 %v5264, %v5606
        %5608 = vmatmul.mubr.f32.gmra.mrb[0].mxu0 %v5607
        %v5609 = vpop.f32.mrb[0].mxu0
        %v5610 = vadd.f32 %v5500, %v5609
        %v5611 = vpop.f32.mrb[0].mxu0
        %v5612 = vadd.f32 %v5502, %v5611
        %5613 = vmatprep.mubr.f32.mxu0 0.0
        %v5614 = vand.u32 %v5267, 4294901760
        %v5615 = vsub.f32 %v5267, %v5614
        %5616 = vmatmul.mubr.f32.gmra.mrb[0].mxu0 %v5615
        %v5617 = vpop.f32.mrb[0].mxu0
        %v5618 = vadd.f32 %v5507, %v5617
        %v5619 = vpop.f32.mrb[0].mxu0
        %v5620 = vadd.f32 %v5509, %v5619
        %5621 = vmatprep.mubr.f32.mxu0 0.0
        %v5622 = vand.u32 %v5270, 4294901760
        %v5623 = vsub.f32 %v5270, %v5622
        %5624 = vmatmul.mubr.f32.gmra.mrb[0].mxu0 %v5623
        %v5625 = vpop.f32.mrb[0].mxu0
        %v5626 = vadd.f32 %v5514, %v5625
        %v5627 = vpop.f32.mrb[0].mxu0
        %v5628 = vadd.f32 %v5516, %v5627
        %5629 = vmatprep.mubr.f32.mxu0 0.0
        %v5630 = vand.u32 %v5273, 4294901760
        %v5631 = vsub.f32 %v5273, %v5630
        %5632 = vmatmul.mubr.f32.gmra.mrb[0].mxu0 %v5631
        %v5633 = vpop.f32.mrb[0].mxu0
        %v5634 = vadd.f32 %v5521, %v5633
        %v5635 = vpop.f32.mrb[0].mxu0
        %v5636 = vadd.f32 %v5523, %v5635
        %5637 = vdwg.mxu0
        %v5638 = vand.u32 %v5220, 4294901760
        %5639 = vmatprep.subr.mxu0 %v5638
        %v5640 = vand.u32 %v5219, 4294901760
        %5641 = vmatpush1.msra.mxu0 %v5640
        %v5642 = vand.u32 %v5224, 4294901760
        %5643 = vmatprep.subr.mxu0 %v5642
        %v5644 = vand.u32 %v5223, 4294901760
        %5645 = vmatpush1.msra.mxu0 %v5644
        %v5646 = vand.u32 %v5228, 4294901760
        %5647 = vmatprep.subr.mxu0 %v5646
        %v5648 = vand.u32 %v5227, 4294901760
        %5649 = vmatpush1.msra.mxu0 %v5648
        %v5650 = vand.u32 %v5232, 4294901760
        %5651 = vmatprep.subr.mxu0 %v5650
        %v5652 = vand.u32 %v5231, 4294901760
        %5653 = vmatpush1.msra.mxu0 %v5652
        %5654 = vmatprep.subr.mxu0 0.0
        %5655 = vmatpush1.msra.mxu0 0.0
        %5656 = vmatprep.subr.mxu0 0.0
        %5657 = vmatpush1.msra.mxu0 0.0
        %5658 = vmatprep.subr.mxu0 0.0
        %5659 = vmatpush1.msra.mxu0 0.0
        %5660 = vmatprep.subr.mxu0 0.0
        %5661 = vmatpush1.msra.mxu0 0.0
        %5662 = vmatprep.subr.mxu0 0.0
        %5663 = vmatpush1.msra.mxu0 0.0
        %5664 = vmatprep.subr.mxu0 0.0
        %5665 = vmatpush1.msra.mxu0 0.0
        %5666 = vmatprep.subr.mxu0 0.0
        %5667 = vmatpush1.msra.mxu0 0.0
        %5668 = vmatprep.subr.mxu0 0.0
        %5669 = vmatpush1.msra.mxu0 0.0
        %5670 = vmatprep.subr.mxu0 0.0
        %5671 = vmatpush1.msra.mxu0 0.0
        %5672 = vmatprep.subr.mxu0 0.0
        %5673 = vmatpush1.msra.mxu0 0.0
        %5674 = vmatprep.subr.mxu0 0.0
        %5675 = vmatpush1.msra.mxu0 0.0
        %5676 = vmatprep.subr.mxu0 0.0
        %5677 = vmatpush1.msra.mxu0 0.0
        %5678 = vmatprep.subr.mxu0 0.0
        %5679 = vmatpush1.msra.mxu0 0.0
        %5680 = vmatprep.subr.mxu0 0.0
        %5681 = vmatpush1.msra.mxu0 0.0
        %5682 = vmatprep.subr.mxu0 0.0
        %5683 = vmatpush1.msra.mxu0 0.0
        %5684 = vmatprep.subr.mxu0 0.0
        %5685 = vmatpush1.msra.mxu0 0.0
        %5686 = vmatprep.subr.mxu0 0.0
        %5687 = vmatpush1.msra.mxu0 0.0
        %5688 = vmatprep.subr.mxu0 0.0
        %5689 = vmatpush1.msra.mxu0 0.0
        %5690 = vmatprep.subr.mxu0 0.0
        %5691 = vmatpush1.msra.mxu0 0.0
        %5692 = vmatprep.subr.mxu0 0.0
        %5693 = vmatpush1.msra.mxu0 0.0
        %5694 = vmatprep.subr.mxu0 0.0
        %5695 = vmatpush1.msra.mxu0 0.0
        %5696 = vmatprep.subr.mxu0 0.0
        %5697 = vmatpush1.msra.mxu0 0.0
        %5698 = vmatprep.subr.mxu0 0.0
        %5699 = vmatpush1.msra.mxu0 0.0
        %5700 = vmatprep.subr.mxu0 0.0
        %5701 = vmatpush1.msra.mxu0 0.0
        %5702 = vmatprep.subr.mxu0 0.0
        %5703 = vmatpush1.msra.mxu0 0.0
        %5704 = vmatprep.subr.mxu0 0.0
        %5705 = vmatpush1.msra.mxu0 0.0
        %5706 = vmatprep.subr.mxu0 0.0
        %5707 = vmatpush1.msra.mxu0 0.0
        %5708 = vmatprep.subr.mxu0 0.0
        %5709 = vmatpush1.msra.mxu0 0.0
        %5710 = vmatprep.mubr.f32.mxu0 0.0
        %v5711 = vand.u32 %v5264, 4294901760
        %v5712 = vsub.f32 %v5264, %v5711
        %v5713 = vand.u32 %v5712, 4294901760
        %5714 = vmatmul.mubr.f32.gmra.mrb[0].mxu0 %v5713
        %v5715 = vpop.f32.mrb[0].mxu0
        %v5716 = vadd.f32 %v5610, %v5715
        %v5717 = vpop.f32.mrb[0].mxu0
        %v5718 = vadd.f32 %v5612, %v5717
        %5719 = vmatprep.mubr.f32.mxu0 0.0
        %v5720 = vand.u32 %v5267, 4294901760
        %v5721 = vsub.f32 %v5267, %v5720
        %v5722 = vand.u32 %v5721, 4294901760
        %5723 = vmatmul.mubr.f32.gmra.mrb[0].mxu0 %v5722
        %v5724 = vpop.f32.mrb[0].mxu0
        %v5725 = vadd.f32 %v5618, %v5724
        %v5726 = vpop.f32.mrb[0].mxu0
        %v5727 = vadd.f32 %v5620, %v5726
        %5728 = vmatprep.mubr.f32.mxu0 0.0
        %v5729 = vand.u32 %v5270, 4294901760
        %v5730 = vsub.f32 %v5270, %v5729
        %v5731 = vand.u32 %v5730, 4294901760
        %5732 = vmatmul.mubr.f32.gmra.mrb[0].mxu0 %v5731
        %v5733 = vpop.f32.mrb[0].mxu0
        %v5734 = vadd.f32 %v5626, %v5733
        %v5735 = vpop.f32.mrb[0].mxu0
        %v5736 = vadd.f32 %v5628, %v5735
        %5737 = vmatprep.mubr.f32.mxu0 0.0
        %v5738 = vand.u32 %v5273, 4294901760
        %v5739 = vsub.f32 %v5273, %v5738
        %v5740 = vand.u32 %v5739, 4294901760
        %5741 = vmatmul.mubr.f32.gmra.mrb[0].mxu0 %v5740
        %v5742 = vpop.f32.mrb[0].mxu0
        %v5743 = vadd.f32 %v5634, %v5742
        %v5744 = vpop.f32.mrb[0].mxu0
        %v5745 = vadd.f32 %v5636, %v5744
        %5746 = vdwg.mxu0
        %v5747 = vand.u32 %v5220, 4294901760
        %v5748 = vsub.f32 %v5220, %v5747
        %v5749 = vand.u32 %v5748, 4294901760
        %5750 = vmatprep.subr.mxu0 %v5749
        %v5751 = vand.u32 %v5219, 4294901760
        %v5752 = vsub.f32 %v5219, %v5751
        %v5753 = vand.u32 %v5752, 4294901760
        %5754 = vmatpush1.msra.mxu0 %v5753
        %v5755 = vand.u32 %v5224, 4294901760
        %v5756 = vsub.f32 %v5224, %v5755
        %v5757 = vand.u32 %v5756, 4294901760
        %5758 = vmatprep.subr.mxu0 %v5757
        %v5759 = vand.u32 %v5223, 4294901760
        %v5760 = vsub.f32 %v5223, %v5759
        %v5761 = vand.u32 %v5760, 4294901760
        %5762 = vmatpush1.msra.mxu0 %v5761
        %v5763 = vand.u32 %v5228, 4294901760
        %v5764 = vsub.f32 %v5228, %v5763
        %v5765 = vand.u32 %v5764, 4294901760
        %5766 = vmatprep.subr.mxu0 %v5765
        %v5767 = vand.u32 %v5227, 4294901760
        %v5768 = vsub.f32 %v5227, %v5767
        %v5769 = vand.u32 %v5768, 4294901760
        %5770 = vmatpush1.msra.mxu0 %v5769
        %v5771 = vand.u32 %v5232, 4294901760
        %v5772 = vsub.f32 %v5232, %v5771
        %v5773 = vand.u32 %v5772, 4294901760
        %5774 = vmatprep.subr.mxu0 %v5773
        %v5775 = vand.u32 %v5231, 4294901760
        %v5776 = vsub.f32 %v5231, %v5775
        %v5777 = vand.u32 %v5776, 4294901760
        %5778 = vmatpush1.msra.mxu0 %v5777
        %5779 = vmatprep.subr.mxu0 0.0
        %5780 = vmatpush1.msra.mxu0 0.0
        %5781 = vmatprep.subr.mxu0 0.0
        %5782 = vmatpush1.msra.mxu0 0.0
        %5783 = vmatprep.subr.mxu0 0.0
        %5784 = vmatpush1.msra.mxu0 0.0
        %5785 = vmatprep.subr.mxu0 0.0
        %5786 = vmatpush1.msra.mxu0 0.0
        %5787 = vmatprep.subr.mxu0 0.0
        %5788 = vmatpush1.msra.mxu0 0.0
        %5789 = vmatprep.subr.mxu0 0.0
        %5790 = vmatpush1.msra.mxu0 0.0
        %5791 = vmatprep.subr.mxu0 0.0
        %5792 = vmatpush1.msra.mxu0 0.0
        %5793 = vmatprep.subr.mxu0 0.0
        %5794 = vmatpush1.msra.mxu0 0.0
        %5795 = vmatprep.subr.mxu0 0.0
        %5796 = vmatpush1.msra.mxu0 0.0
        %5797 = vmatprep.subr.mxu0 0.0
        %5798 = vmatpush1.msra.mxu0 0.0
        %5799 = vmatprep.subr.mxu0 0.0
        %5800 = vmatpush1.msra.mxu0 0.0
        %5801 = vmatprep.subr.mxu0 0.0
        %5802 = vmatpush1.msra.mxu0 0.0
        %5803 = vmatprep.subr.mxu0 0.0
        %5804 = vmatpush1.msra.mxu0 0.0
        %5805 = vmatprep.subr.mxu0 0.0
        %5806 = vmatpush1.msra.mxu0 0.0
        %5807 = vmatprep.subr.mxu0 0.0
        %5808 = vmatpush1.msra.mxu0 0.0
        %5809 = vmatprep.subr.mxu0 0.0
        %5810 = vmatpush1.msra.mxu0 0.0
        %5811 = vmatprep.subr.mxu0 0.0
        %5812 = vmatpush1.msra.mxu0 0.0
        %5813 = vmatprep.subr.mxu0 0.0
        %5814 = vmatpush1.msra.mxu0 0.0
        %5815 = vmatprep.subr.mxu0 0.0
        %5816 = vmatpush1.msra.mxu0 0.0
        %5817 = vmatprep.subr.mxu0 0.0
        %5818 = vmatpush1.msra.mxu0 0.0
        %5819 = vmatprep.subr.mxu0 0.0
        %5820 = vmatpush1.msra.mxu0 0.0
        %5821 = vmatprep.subr.mxu0 0.0
        %5822 = vmatpush1.msra.mxu0 0.0
        %5823 = vmatprep.subr.mxu0 0.0
        %5824 = vmatpush1.msra.mxu0 0.0
        %5825 = vmatprep.subr.mxu0 0.0
        %5826 = vmatpush1.msra.mxu0 0.0
        %5827 = vmatprep.subr.mxu0 0.0
        %5828 = vmatpush1.msra.mxu0 0.0
        %5829 = vmatprep.subr.mxu0 0.0
        %5830 = vmatpush1.msra.mxu0 0.0
        %5831 = vmatprep.subr.mxu0 0.0
        %5832 = vmatpush1.msra.mxu0 0.0
        %5833 = vmatprep.subr.mxu0 0.0
        %5834 = vmatpush1.msra.mxu0 0.0
        %5835 = vmatprep.mubr.f32.mxu0 0.0
        %v5836 = vand.u32 %v5264, 4294901760
        %5837 = vmatmul.mubr.f32.gmra.mrb[0].mxu0 %v5836
        %v5838 = vpop.f32.mrb[0].mxu0
        %v5839 = vadd.f32 %v5716, %v5838
        %v5840 = vpop.f32.mrb[0].mxu0
        %v5841 = vadd.f32 %v5718, %v5840
        %5842 = vmatprep.mubr.f32.mxu0 0.0
        %v5843 = vand.u32 %v5267, 4294901760
        %5844 = vmatmul.mubr.f32.gmra.mrb[0].mxu0 %v5843
        %v5845 = vpop.f32.mrb[0].mxu0
        %v5846 = vadd.f32 %v5725, %v5845
        %v5847 = vpop.f32.mrb[0].mxu0
        %v5848 = vadd.f32 %v5727, %v5847
        %5849 = vmatprep.mubr.f32.mxu0 0.0
        %v5850 = vand.u32 %v5270, 4294901760
        %5851 = vmatmul.mubr.f32.gmra.mrb[0].mxu0 %v5850
        %v5852 = vpop.f32.mrb[0].mxu0
        %v5853 = vadd.f32 %v5734, %v5852
        %v5854 = vpop.f32.mrb[0].mxu0
        %v5855 = vadd.f32 %v5736, %v5854
        %5856 = vmatprep.mubr.f32.mxu0 0.0
        %v5857 = vand.u32 %v5273, 4294901760
        %5858 = vmatmul.mubr.f32.gmra.mrb[0].mxu0 %v5857
        %v5859 = vpop.f32.mrb[0].mxu0
        %v5860 = vadd.f32 %v5743, %v5859
        %v5861 = vpop.f32.mrb[0].mxu0
        %v5862 = vadd.f32 %v5745, %v5861
        %5863 = vdwg.mxu0
        %v5864 = vand.u32 %v5220, 4294901760
        %5865 = vmatprep.subr.mxu0 %v5864
        %v5866 = vand.u32 %v5219, 4294901760
        %5867 = vmatpush1.msra.mxu0 %v5866
        %v5868 = vand.u32 %v5224, 4294901760
        %5869 = vmatprep.subr.mxu0 %v5868
        %v5870 = vand.u32 %v5223, 4294901760
        %5871 = vmatpush1.msra.mxu0 %v5870
        %v5872 = vand.u32 %v5228, 4294901760
        %5873 = vmatprep.subr.mxu0 %v5872
        %v5874 = vand.u32 %v5227, 4294901760
        %5875 = vmatpush1.msra.mxu0 %v5874
        %v5876 = vand.u32 %v5232, 4294901760
        %5877 = vmatprep.subr.mxu0 %v5876
        %v5878 = vand.u32 %v5231, 4294901760
        %5879 = vmatpush1.msra.mxu0 %v5878
        %5880 = vmatprep.subr.mxu0 0.0
        %5881 = vmatpush1.msra.mxu0 0.0
        %5882 = vmatprep.subr.mxu0 0.0
        %5883 = vmatpush1.msra.mxu0 0.0
        %5884 = vmatprep.subr.mxu0 0.0
        %5885 = vmatpush1.msra.mxu0 0.0
        %5886 = vmatprep.subr.mxu0 0.0
        %5887 = vmatpush1.msra.mxu0 0.0
        %5888 = vmatprep.subr.mxu0 0.0
        %5889 = vmatpush1.msra.mxu0 0.0
        %5890 = vmatprep.subr.mxu0 0.0
        %5891 = vmatpush1.msra.mxu0 0.0
        %5892 = vmatprep.subr.mxu0 0.0
        %5893 = vmatpush1.msra.mxu0 0.0
        %5894 = vmatprep.subr.mxu0 0.0
        %5895 = vmatpush1.msra.mxu0 0.0
        %5896 = vmatprep.subr.mxu0 0.0
        %5897 = vmatpush1.msra.mxu0 0.0
        %5898 = vmatprep.subr.mxu0 0.0
        %5899 = vmatpush1.msra.mxu0 0.0
        %5900 = vmatprep.subr.mxu0 0.0
        %5901 = vmatpush1.msra.mxu0 0.0
        %5902 = vmatprep.subr.mxu0 0.0
        %5903 = vmatpush1.msra.mxu0 0.0
        %5904 = vmatprep.subr.mxu0 0.0
        %5905 = vmatpush1.msra.mxu0 0.0
        %5906 = vmatprep.subr.mxu0 0.0
        %5907 = vmatpush1.msra.mxu0 0.0
        %5908 = vmatprep.subr.mxu0 0.0
        %5909 = vmatpush1.msra.mxu0 0.0
        %5910 = vmatprep.subr.mxu0 0.0
        %5911 = vmatpush1.msra.mxu0 0.0
        %5912 = vmatprep.subr.mxu0 0.0
        %5913 = vmatpush1.msra.mxu0 0.0
        %5914 = vmatprep.subr.mxu0 0.0
        %5915 = vmatpush1.msra.mxu0 0.0
        %5916 = vmatprep.subr.mxu0 0.0
        %5917 = vmatpush1.msra.mxu0 0.0
        %5918 = vmatprep.subr.mxu0 0.0
        %5919 = vmatpush1.msra.mxu0 0.0
        %5920 = vmatprep.subr.mxu0 0.0
        %5921 = vmatpush1.msra.mxu0 0.0
        %5922 = vmatprep.subr.mxu0 0.0
        %5923 = vmatpush1.msra.mxu0 0.0
        %5924 = vmatprep.subr.mxu0 0.0
        %5925 = vmatpush1.msra.mxu0 0.0
        %5926 = vmatprep.subr.mxu0 0.0
        %5927 = vmatpush1.msra.mxu0 0.0
        %5928 = vmatprep.subr.mxu0 0.0
        %5929 = vmatpush1.msra.mxu0 0.0
        %5930 = vmatprep.subr.mxu0 0.0
        %5931 = vmatpush1.msra.mxu0 0.0
        %5932 = vmatprep.subr.mxu0 0.0
        %5933 = vmatpush1.msra.mxu0 0.0
        %5934 = vmatprep.subr.mxu0 0.0
        %5935 = vmatpush1.msra.mxu0 0.0
        %5936 = vmatprep.mubr.f32.mxu0 0.0
        %v5937 = vand.u32 %v5264, 4294901760
        %5938 = vmatmul.mubr.f32.gmra.mrb[0].mxu0 %v5937
        %v5939 = vpop.f32.mrb[0].mxu0
        %v5940 = vadd.f32 %v5839, %v5939
        %v5941 = vpop.f32.mrb[0].mxu0
        %v5942 = vadd.f32 %v5841, %v5941
        %5943 = vmatprep.mubr.f32.mxu0 0.0
        %v5944 = vand.u32 %v5267, 4294901760
        %5945 = vmatmul.mubr.f32.gmra.mrb[0].mxu0 %v5944
        %v5946 = vpop.f32.mrb[0].mxu0
        %v5947 = vadd.f32 %v5846, %v5946
        %v5948 = vpop.f32.mrb[0].mxu0
        %v5949 = vadd.f32 %v5848, %v5948
        %5950 = vmatprep.mubr.f32.mxu0 0.0
        %v5951 = vand.u32 %v5270, 4294901760
        %5952 = vmatmul.mubr.f32.gmra.mrb[0].mxu0 %v5951
        %v5953 = vpop.f32.mrb[0].mxu0
        %v5954 = vadd.f32 %v5853, %v5953
        %v5955 = vpop.f32.mrb[0].mxu0
        %v5956 = vadd.f32 %v5855, %v5955
        %5957 = vmatprep.mubr.f32.mxu0 0.0
        %v5958 = vand.u32 %v5273, 4294901760
        %5959 = vmatmul.mubr.f32.gmra.mrb[0].mxu0 %v5958
        %v5960 = vpop.f32.mrb[0].mxu0
        %v5961 = vadd.f32 %v5860, %v5960
        %v5962 = vpop.f32.mrb[0].mxu0
        %v5963 = vadd.f32 %v5862, %v5962
        %5964 = vdwg.mxu0
        %v5965 = vand.u32 %v5222, 4294901760
        %5966 = vmatprep.subr.mxu0 %v5965
        %v5967 = vand.u32 %v5221, 4294901760
        %5968 = vmatpush1.msra.mxu0 %v5967
        %v5969 = vand.u32 %v5226, 4294901760
        %5970 = vmatprep.subr.mxu0 %v5969
        %v5971 = vand.u32 %v5225, 4294901760
        %5972 = vmatpush1.msra.mxu0 %v5971
        %v5973 = vand.u32 %v5230, 4294901760
        %5974 = vmatprep.subr.mxu0 %v5973
        %v5975 = vand.u32 %v5229, 4294901760
        %5976 = vmatpush1.msra.mxu0 %v5975
        %v5977 = vand.u32 %v5234, 4294901760
        %5978 = vmatprep.subr.mxu0 %v5977
        %v5979 = vand.u32 %v5233, 4294901760
        %5980 = vmatpush1.msra.mxu0 %v5979
        %5981 = vmatprep.subr.mxu0 0.0
        %5982 = vmatpush1.msra.mxu0 0.0
        %5983 = vmatprep.subr.mxu0 0.0
        %5984 = vmatpush1.msra.mxu0 0.0
        %5985 = vmatprep.subr.mxu0 0.0
        %5986 = vmatpush1.msra.mxu0 0.0
        %5987 = vmatprep.subr.mxu0 0.0
        %5988 = vmatpush1.msra.mxu0 0.0
        %5989 = vmatprep.subr.mxu0 0.0
        %5990 = vmatpush1.msra.mxu0 0.0
        %5991 = vmatprep.subr.mxu0 0.0
        %5992 = vmatpush1.msra.mxu0 0.0
        %5993 = vmatprep.subr.mxu0 0.0
        %5994 = vmatpush1.msra.mxu0 0.0
        %5995 = vmatprep.subr.mxu0 0.0
        %5996 = vmatpush1.msra.mxu0 0.0
        %5997 = vmatprep.subr.mxu0 0.0
        %5998 = vmatpush1.msra.mxu0 0.0
        %5999 = vmatprep.subr.mxu0 0.0
        %6000 = vmatpush1.msra.mxu0 0.0
        %6001 = vmatprep.subr.mxu0 0.0
        %6002 = vmatpush1.msra.mxu0 0.0
        %6003 = vmatprep.subr.mxu0 0.0
        %6004 = vmatpush1.msra.mxu0 0.0
        %6005 = vmatprep.subr.mxu0 0.0
        %6006 = vmatpush1.msra.mxu0 0.0
        %6007 = vmatprep.subr.mxu0 0.0
        %6008 = vmatpush1.msra.mxu0 0.0
        %6009 = vmatprep.subr.mxu0 0.0
        %6010 = vmatpush1.msra.mxu0 0.0
        %6011 = vmatprep.subr.mxu0 0.0
        %6012 = vmatpush1.msra.mxu0 0.0
        %6013 = vmatprep.subr.mxu0 0.0
        %6014 = vmatpush1.msra.mxu0 0.0
        %6015 = vmatprep.subr.mxu0 0.0
        %6016 = vmatpush1.msra.mxu0 0.0
        %6017 = vmatprep.subr.mxu0 0.0
        %6018 = vmatpush1.msra.mxu0 0.0
        %6019 = vmatprep.subr.mxu0 0.0
        %6020 = vmatpush1.msra.mxu0 0.0
        %6021 = vmatprep.subr.mxu0 0.0
        %6022 = vmatpush1.msra.mxu0 0.0
        %6023 = vmatprep.subr.mxu0 0.0
        %6024 = vmatpush1.msra.mxu0 0.0
        %6025 = vmatprep.subr.mxu0 0.0
        %6026 = vmatpush1.msra.mxu0 0.0
        %6027 = vmatprep.subr.mxu0 0.0
        %6028 = vmatpush1.msra.mxu0 0.0
        %6029 = vmatprep.subr.mxu0 0.0
        %6030 = vmatpush1.msra.mxu0 0.0
        %6031 = vmatprep.subr.mxu0 0.0
        %6032 = vmatpush1.msra.mxu0 0.0
        %6033 = vmatprep.subr.mxu0 0.0
        %6034 = vmatpush1.msra.mxu0 0.0
        %6035 = vmatprep.subr.mxu0 0.0
        %6036 = vmatpush1.msra.mxu0 0.0
        %6037 = vmatprep.mubr.f32.mxu0 0.0
        %v6038 = vand.u32 %v5264, 4294901760
        %v6039 = vsub.f32 %v5264, %v6038
        %v6040 = vand.u32 %v6039, 4294901760
        %v6041 = vsub.f32 %v6039, %v6040
        %v6042 = vand.u32 %v6041, 4294901760
        %6043 = vmatmul.mubr.f32.gmra.mrb[0].mxu0 %v6042
        %v6044 = vpop.f32.mrb[0].mxu0
        %v6045 = vadd.f32 %v5246, %v6044
        %v6046 = vpop.f32.mrb[0].mxu0
        %v6047 = vadd.f32 %v5246, %v6046
        %6048 = vmatprep.mubr.f32.mxu0 0.0
        %v6049 = vand.u32 %v5267, 4294901760
        %v6050 = vsub.f32 %v5267, %v6049
        %v6051 = vand.u32 %v6050, 4294901760
        %v6052 = vsub.f32 %v6050, %v6051
        %v6053 = vand.u32 %v6052, 4294901760
        %6054 = vmatmul.mubr.f32.gmra.mrb[0].mxu0 %v6053
        %v6055 = vpop.f32.mrb[0].mxu0
        %v6056 = vadd.f32 %v5251, %v6055
        %v6057 = vpop.f32.mrb[0].mxu0
        %v6058 = vadd.f32 %v5251, %v6057
        %6059 = vmatprep.mubr.f32.mxu0 0.0
        %v6060 = vand.u32 %v5270, 4294901760
        %v6061 = vsub.f32 %v5270, %v6060
        %v6062 = vand.u32 %v6061, 4294901760
        %v6063 = vsub.f32 %v6061, %v6062
        %v6064 = vand.u32 %v6063, 4294901760
        %6065 = vmatmul.mubr.f32.gmra.mrb[0].mxu0 %v6064
        %v6066 = vpop.f32.mrb[0].mxu0
        %v6067 = vadd.f32 %v5256, %v6066
        %v6068 = vpop.f32.mrb[0].mxu0
        %v6069 = vadd.f32 %v5256, %v6068
        %6070 = vmatprep.mubr.f32.mxu0 0.0
        %v6071 = vand.u32 %v5273, 4294901760
        %v6072 = vsub.f32 %v5273, %v6071
        %v6073 = vand.u32 %v6072, 4294901760
        %v6074 = vsub.f32 %v6072, %v6073
        %v6075 = vand.u32 %v6074, 4294901760
        %6076 = vmatmul.mubr.f32.gmra.mrb[0].mxu0 %v6075
        %v6077 = vpop.f32.mrb[0].mxu0
        %v6078 = vadd.f32 %v5261, %v6077
        %v6079 = vpop.f32.mrb[0].mxu0
        %v6080 = vadd.f32 %v5261, %v6079
        %6081 = vdwg.mxu0
        %v6082 = vand.u32 %v5222, 4294901760
        %v6083 = vsub.f32 %v5222, %v6082
        %v6084 = vand.u32 %v6083, 4294901760
        %v6085 = vsub.f32 %v6083, %v6084
        %v6086 = vand.u32 %v6085, 4294901760
        %6087 = vmatprep.subr.mxu0 %v6086
        %v6088 = vand.u32 %v5221, 4294901760
        %v6089 = vsub.f32 %v5221, %v6088
        %v6090 = vand.u32 %v6089, 4294901760
        %v6091 = vsub.f32 %v6089, %v6090
        %v6092 = vand.u32 %v6091, 4294901760
        %6093 = vmatpush1.msra.mxu0 %v6092
        %v6094 = vand.u32 %v5226, 4294901760
        %v6095 = vsub.f32 %v5226, %v6094
        %v6096 = vand.u32 %v6095, 4294901760
        %v6097 = vsub.f32 %v6095, %v6096
        %v6098 = vand.u32 %v6097, 4294901760
        %6099 = vmatprep.subr.mxu0 %v6098
        %v6100 = vand.u32 %v5225, 4294901760
        %v6101 = vsub.f32 %v5225, %v6100
        %v6102 = vand.u32 %v6101, 4294901760
        %v6103 = vsub.f32 %v6101, %v6102
        %v6104 = vand.u32 %v6103, 4294901760
        %6105 = vmatpush1.msra.mxu0 %v6104
        %v6106 = vand.u32 %v5230, 4294901760
        %v6107 = vsub.f32 %v5230, %v6106
        %v6108 = vand.u32 %v6107, 4294901760
        %v6109 = vsub.f32 %v6107, %v6108
        %v6110 = vand.u32 %v6109, 4294901760
        %6111 = vmatprep.subr.mxu0 %v6110
        %v6112 = vand.u32 %v5229, 4294901760
        %v6113 = vsub.f32 %v5229, %v6112
        %v6114 = vand.u32 %v6113, 4294901760
        %v6115 = vsub.f32 %v6113, %v6114
        %v6116 = vand.u32 %v6115, 4294901760
        %6117 = vmatpush1.msra.mxu0 %v6116
        %v6118 = vand.u32 %v5234, 4294901760
        %v6119 = vsub.f32 %v5234, %v6118
        %v6120 = vand.u32 %v6119, 4294901760
        %v6121 = vsub.f32 %v6119, %v6120
        %v6122 = vand.u32 %v6121, 4294901760
        %6123 = vmatprep.subr.mxu0 %v6122
        %v6124 = vand.u32 %v5233, 4294901760
        %v6125 = vsub.f32 %v5233, %v6124
        %v6126 = vand.u32 %v6125, 4294901760
        %v6127 = vsub.f32 %v6125, %v6126
        %v6128 = vand.u32 %v6127, 4294901760
        %6129 = vmatpush1.msra.mxu0 %v6128
        %6130 = vmatprep.subr.mxu0 0.0
        %6131 = vmatpush1.msra.mxu0 0.0
        %6132 = vmatprep.subr.mxu0 0.0
        %6133 = vmatpush1.msra.mxu0 0.0
        %6134 = vmatprep.subr.mxu0 0.0
        %6135 = vmatpush1.msra.mxu0 0.0
        %6136 = vmatprep.subr.mxu0 0.0
        %6137 = vmatpush1.msra.mxu0 0.0
        %6138 = vmatprep.subr.mxu0 0.0
        %6139 = vmatpush1.msra.mxu0 0.0
        %6140 = vmatprep.subr.mxu0 0.0
        %6141 = vmatpush1.msra.mxu0 0.0
        %6142 = vmatprep.subr.mxu0 0.0
        %6143 = vmatpush1.msra.mxu0 0.0
        %6144 = vmatprep.subr.mxu0 0.0
        %6145 = vmatpush1.msra.mxu0 0.0
        %6146 = vmatprep.subr.mxu0 0.0
        %6147 = vmatpush1.msra.mxu0 0.0
        %6148 = vmatprep.subr.mxu0 0.0
        %6149 = vmatpush1.msra.mxu0 0.0
        %6150 = vmatprep.subr.mxu0 0.0
        %6151 = vmatpush1.msra.mxu0 0.0
        %6152 = vmatprep.subr.mxu0 0.0
        %6153 = vmatpush1.msra.mxu0 0.0
        %6154 = vmatprep.subr.mxu0 0.0
        %6155 = vmatpush1.msra.mxu0 0.0
        %6156 = vmatprep.subr.mxu0 0.0
        %6157 = vmatpush1.msra.mxu0 0.0
        %6158 = vmatprep.subr.mxu0 0.0
        %6159 = vmatpush1.msra.mxu0 0.0
        %6160 = vmatprep.subr.mxu0 0.0
        %6161 = vmatpush1.msra.mxu0 0.0
        %6162 = vmatprep.subr.mxu0 0.0
        %6163 = vmatpush1.msra.mxu0 0.0
        %6164 = vmatprep.subr.mxu0 0.0
        %6165 = vmatpush1.msra.mxu0 0.0
        %6166 = vmatprep.subr.mxu0 0.0
        %6167 = vmatpush1.msra.mxu0 0.0
        %6168 = vmatprep.subr.mxu0 0.0
        %6169 = vmatpush1.msra.mxu0 0.0
        %6170 = vmatprep.subr.mxu0 0.0
        %6171 = vmatpush1.msra.mxu0 0.0
        %6172 = vmatprep.subr.mxu0 0.0
        %6173 = vmatpush1.msra.mxu0 0.0
        %6174 = vmatprep.subr.mxu0 0.0
        %6175 = vmatpush1.msra.mxu0 0.0
        %6176 = vmatprep.subr.mxu0 0.0
        %6177 = vmatpush1.msra.mxu0 0.0
        %6178 = vmatprep.subr.mxu0 0.0
        %6179 = vmatpush1.msra.mxu0 0.0
        %6180 = vmatprep.subr.mxu0 0.0
        %6181 = vmatpush1.msra.mxu0 0.0
        %6182 = vmatprep.subr.mxu0 0.0
        %6183 = vmatpush1.msra.mxu0 0.0
        %6184 = vmatprep.subr.mxu0 0.0
        %6185 = vmatpush1.msra.mxu0 0.0
        %6186 = vmatprep.mubr.f32.mxu0 0.0
        %v6187 = vand.u32 %v5264, 4294901760
        %6188 = vmatmul.mubr.f32.gmra.mrb[0].mxu0 %v6187
        %v6189 = vpop.f32.mrb[0].mxu0
        %v6190 = vadd.f32 %v6045, %v6189
        %v6191 = vpop.f32.mrb[0].mxu0
        %v6192 = vadd.f32 %v6047, %v6191
        %6193 = vmatprep.mubr.f32.mxu0 0.0
        %v6194 = vand.u32 %v5267, 4294901760
        %6195 = vmatmul.mubr.f32.gmra.mrb[0].mxu0 %v6194
        %v6196 = vpop.f32.mrb[0].mxu0
        %v6197 = vadd.f32 %v6056, %v6196
        %v6198 = vpop.f32.mrb[0].mxu0
        %v6199 = vadd.f32 %v6058, %v6198
        %6200 = vmatprep.mubr.f32.mxu0 0.0
        %v6201 = vand.u32 %v5270, 4294901760
        %6202 = vmatmul.mubr.f32.gmra.mrb[0].mxu0 %v6201
        %v6203 = vpop.f32.mrb[0].mxu0
        %v6204 = vadd.f32 %v6067, %v6203
        %v6205 = vpop.f32.mrb[0].mxu0
        %v6206 = vadd.f32 %v6069, %v6205
        %6207 = vmatprep.mubr.f32.mxu0 0.0
        %v6208 = vand.u32 %v5273, 4294901760
        %6209 = vmatmul.mubr.f32.gmra.mrb[0].mxu0 %v6208
        %v6210 = vpop.f32.mrb[0].mxu0
        %v6211 = vadd.f32 %v6078, %v6210
        %v6212 = vpop.f32.mrb[0].mxu0
        %v6213 = vadd.f32 %v6080, %v6212
        %6214 = vdwg.mxu0
        %v6215 = vand.u32 %v5222, 4294901760
        %v6216 = vsub.f32 %v5222, %v6215
        %6217 = vmatprep.subr.mxu0 %v6216
        %v6218 = vand.u32 %v5221, 4294901760
        %v6219 = vsub.f32 %v5221, %v6218
        %6220 = vmatpush1.msra.mxu0 %v6219
        %v6221 = vand.u32 %v5226, 4294901760
        %v6222 = vsub.f32 %v5226, %v6221
        %6223 = vmatprep.subr.mxu0 %v6222
        %v6224 = vand.u32 %v5225, 4294901760
        %v6225 = vsub.f32 %v5225, %v6224
        %6226 = vmatpush1.msra.mxu0 %v6225
        %v6227 = vand.u32 %v5230, 4294901760
        %v6228 = vsub.f32 %v5230, %v6227
        %6229 = vmatprep.subr.mxu0 %v6228
        %v6230 = vand.u32 %v5229, 4294901760
        %v6231 = vsub.f32 %v5229, %v6230
        %6232 = vmatpush1.msra.mxu0 %v6231
        %v6233 = vand.u32 %v5234, 4294901760
        %v6234 = vsub.f32 %v5234, %v6233
        %6235 = vmatprep.subr.mxu0 %v6234
        %v6236 = vand.u32 %v5233, 4294901760
        %v6237 = vsub.f32 %v5233, %v6236
        %6238 = vmatpush1.msra.mxu0 %v6237
        %6239 = vmatprep.subr.mxu0 0.0
        %6240 = vmatpush1.msra.mxu0 0.0
        %6241 = vmatprep.subr.mxu0 0.0
        %6242 = vmatpush1.msra.mxu0 0.0
        %6243 = vmatprep.subr.mxu0 0.0
        %6244 = vmatpush1.msra.mxu0 0.0
        %6245 = vmatprep.subr.mxu0 0.0
        %6246 = vmatpush1.msra.mxu0 0.0
        %6247 = vmatprep.subr.mxu0 0.0
        %6248 = vmatpush1.msra.mxu0 0.0
        %6249 = vmatprep.subr.mxu0 0.0
        %6250 = vmatpush1.msra.mxu0 0.0
        %6251 = vmatprep.subr.mxu0 0.0
        %6252 = vmatpush1.msra.mxu0 0.0
        %6253 = vmatprep.subr.mxu0 0.0
        %6254 = vmatpush1.msra.mxu0 0.0
        %6255 = vmatprep.subr.mxu0 0.0
        %6256 = vmatpush1.msra.mxu0 0.0
        %6257 = vmatprep.subr.mxu0 0.0
        %6258 = vmatpush1.msra.mxu0 0.0
        %6259 = vmatprep.subr.mxu0 0.0
        %6260 = vmatpush1.msra.mxu0 0.0
        %6261 = vmatprep.subr.mxu0 0.0
        %6262 = vmatpush1.msra.mxu0 0.0
        %6263 = vmatprep.subr.mxu0 0.0
        %6264 = vmatpush1.msra.mxu0 0.0
        %6265 = vmatprep.subr.mxu0 0.0
        %6266 = vmatpush1.msra.mxu0 0.0
        %6267 = vmatprep.subr.mxu0 0.0
        %6268 = vmatpush1.msra.mxu0 0.0
        %6269 = vmatprep.subr.mxu0 0.0
        %6270 = vmatpush1.msra.mxu0 0.0
        %6271 = vmatprep.subr.mxu0 0.0
        %6272 = vmatpush1.msra.mxu0 0.0
        %6273 = vmatprep.subr.mxu0 0.0
        %6274 = vmatpush1.msra.mxu0 0.0
        %6275 = vmatprep.subr.mxu0 0.0
        %6276 = vmatpush1.msra.mxu0 0.0
        %6277 = vmatprep.subr.mxu0 0.0
        %6278 = vmatpush1.msra.mxu0 0.0
        %6279 = vmatprep.subr.mxu0 0.0
        %6280 = vmatpush1.msra.mxu0 0.0
        %6281 = vmatprep.subr.mxu0 0.0
        %6282 = vmatpush1.msra.mxu0 0.0
        %6283 = vmatprep.subr.mxu0 0.0
        %6284 = vmatpush1.msra.mxu0 0.0
        %6285 = vmatprep.subr.mxu0 0.0
        %6286 = vmatpush1.msra.mxu0 0.0
        %6287 = vmatprep.subr.mxu0 0.0
        %6288 = vmatpush1.msra.mxu0 0.0
        %6289 = vmatprep.subr.mxu0 0.0
        %6290 = vmatpush1.msra.mxu0 0.0
        %6291 = vmatprep.subr.mxu0 0.0
        %6292 = vmatpush1.msra.mxu0 0.0
        %6293 = vmatprep.subr.mxu0 0.0
        %6294 = vmatpush1.msra.mxu0 0.0
        %6295 = vmatprep.mubr.f32.mxu0 0.0
        %v6296 = vand.u32 %v5264, 4294901760
        %v6297 = vsub.f32 %v5264, %v6296
        %6298 = vmatmul.mubr.f32.gmra.mrb[0].mxu0 %v6297
        %v6299 = vpop.f32.mrb[0].mxu0
        %v6300 = vadd.f32 %v6190, %v6299
        %v6301 = vpop.f32.mrb[0].mxu0
        %v6302 = vadd.f32 %v6192, %v6301
        %6303 = vmatprep.mubr.f32.mxu0 0.0
        %v6304 = vand.u32 %v5267, 4294901760
        %v6305 = vsub.f32 %v5267, %v6304
        %6306 = vmatmul.mubr.f32.gmra.mrb[0].mxu0 %v6305
        %v6307 = vpop.f32.mrb[0].mxu0
        %v6308 = vadd.f32 %v6197, %v6307
        %v6309 = vpop.f32.mrb[0].mxu0
        %v6310 = vadd.f32 %v6199, %v6309
        %6311 = vmatprep.mubr.f32.mxu0 0.0
        %v6312 = vand.u32 %v5270, 4294901760
        %v6313 = vsub.f32 %v5270, %v6312
        %6314 = vmatmul.mubr.f32.gmra.mrb[0].mxu0 %v6313
        %v6315 = vpop.f32.mrb[0].mxu0
        %v6316 = vadd.f32 %v6204, %v6315
        %v6317 = vpop.f32.mrb[0].mxu0
        %v6318 = vadd.f32 %v6206, %v6317
        %6319 = vmatprep.mubr.f32.mxu0 0.0
        %v6320 = vand.u32 %v5273, 4294901760
        %v6321 = vsub.f32 %v5273, %v6320
        %6322 = vmatmul.mubr.f32.gmra.mrb[0].mxu0 %v6321
        %v6323 = vpop.f32.mrb[0].mxu0
        %v6324 = vadd.f32 %v6211, %v6323
        %v6325 = vpop.f32.mrb[0].mxu0
        %v6326 = vadd.f32 %v6213, %v6325
        %6327 = vdwg.mxu0
        %v6328 = vand.u32 %v5222, 4294901760
        %6329 = vmatprep.subr.mxu0 %v6328
        %v6330 = vand.u32 %v5221, 4294901760
        %6331 = vmatpush1.msra.mxu0 %v6330
        %v6332 = vand.u32 %v5226, 4294901760
        %6333 = vmatprep.subr.mxu0 %v6332
        %v6334 = vand.u32 %v5225, 4294901760
        %6335 = vmatpush1.msra.mxu0 %v6334
        %v6336 = vand.u32 %v5230, 4294901760
        %6337 = vmatprep.subr.mxu0 %v6336
        %v6338 = vand.u32 %v5229, 4294901760
        %6339 = vmatpush1.msra.mxu0 %v6338
        %v6340 = vand.u32 %v5234, 4294901760
        %6341 = vmatprep.subr.mxu0 %v6340
        %v6342 = vand.u32 %v5233, 4294901760
        %6343 = vmatpush1.msra.mxu0 %v6342
        %6344 = vmatprep.subr.mxu0 0.0
        %6345 = vmatpush1.msra.mxu0 0.0
        %6346 = vmatprep.subr.mxu0 0.0
        %6347 = vmatpush1.msra.mxu0 0.0
        %6348 = vmatprep.subr.mxu0 0.0
        %6349 = vmatpush1.msra.mxu0 0.0
        %6350 = vmatprep.subr.mxu0 0.0
        %6351 = vmatpush1.msra.mxu0 0.0
        %6352 = vmatprep.subr.mxu0 0.0
        %6353 = vmatpush1.msra.mxu0 0.0
        %6354 = vmatprep.subr.mxu0 0.0
        %6355 = vmatpush1.msra.mxu0 0.0
        %6356 = vmatprep.subr.mxu0 0.0
        %6357 = vmatpush1.msra.mxu0 0.0
        %6358 = vmatprep.subr.mxu0 0.0
        %6359 = vmatpush1.msra.mxu0 0.0
        %6360 = vmatprep.subr.mxu0 0.0
        %6361 = vmatpush1.msra.mxu0 0.0
        %6362 = vmatprep.subr.mxu0 0.0
        %6363 = vmatpush1.msra.mxu0 0.0
        %6364 = vmatprep.subr.mxu0 0.0
        %6365 = vmatpush1.msra.mxu0 0.0
        %6366 = vmatprep.subr.mxu0 0.0
        %6367 = vmatpush1.msra.mxu0 0.0
        %6368 = vmatprep.subr.mxu0 0.0
        %6369 = vmatpush1.msra.mxu0 0.0
        %6370 = vmatprep.subr.mxu0 0.0
        %6371 = vmatpush1.msra.mxu0 0.0
        %6372 = vmatprep.subr.mxu0 0.0
        %6373 = vmatpush1.msra.mxu0 0.0
        %6374 = vmatprep.subr.mxu0 0.0
        %6375 = vmatpush1.msra.mxu0 0.0
        %6376 = vmatprep.subr.mxu0 0.0
        %6377 = vmatpush1.msra.mxu0 0.0
        %6378 = vmatprep.subr.mxu0 0.0
        %6379 = vmatpush1.msra.mxu0 0.0
        %6380 = vmatprep.subr.mxu0 0.0
        %6381 = vmatpush1.msra.mxu0 0.0
        %6382 = vmatprep.subr.mxu0 0.0
        %6383 = vmatpush1.msra.mxu0 0.0
        %6384 = vmatprep.subr.mxu0 0.0
        %6385 = vmatpush1.msra.mxu0 0.0
        %6386 = vmatprep.subr.mxu0 0.0
        %6387 = vmatpush1.msra.mxu0 0.0
        %6388 = vmatprep.subr.mxu0 0.0
        %6389 = vmatpush1.msra.mxu0 0.0
        %6390 = vmatprep.subr.mxu0 0.0
        %6391 = vmatpush1.msra.mxu0 0.0
        %6392 = vmatprep.subr.mxu0 0.0
        %6393 = vmatpush1.msra.mxu0 0.0
        %6394 = vmatprep.subr.mxu0 0.0
        %6395 = vmatpush1.msra.mxu0 0.0
        %6396 = vmatprep.subr.mxu0 0.0
        %6397 = vmatpush1.msra.mxu0 0.0
        %6398 = vmatprep.subr.mxu0 0.0
        %6399 = vmatpush1.msra.mxu0 0.0
        %6400 = vmatprep.mubr.f32.mxu0 0.0
        %v6401 = vand.u32 %v5264, 4294901760
        %v6402 = vsub.f32 %v5264, %v6401
        %v6403 = vand.u32 %v6402, 4294901760
        %6404 = vmatmul.mubr.f32.gmra.mrb[0].mxu0 %v6403
        %v6405 = vpop.f32.mrb[0].mxu0
        %v6406 = vadd.f32 %v6300, %v6405
        %v6407 = vpop.f32.mrb[0].mxu0
        %v6408 = vadd.f32 %v6302, %v6407
        %6409 = vmatprep.mubr.f32.mxu0 0.0
        %v6410 = vand.u32 %v5267, 4294901760
        %v6411 = vsub.f32 %v5267, %v6410
        %v6412 = vand.u32 %v6411, 4294901760
        %6413 = vmatmul.mubr.f32.gmra.mrb[0].mxu0 %v6412
        %v6414 = vpop.f32.mrb[0].mxu0
        %v6415 = vadd.f32 %v6308, %v6414
        %v6416 = vpop.f32.mrb[0].mxu0
        %v6417 = vadd.f32 %v6310, %v6416
        %6418 = vmatprep.mubr.f32.mxu0 0.0
        %v6419 = vand.u32 %v5270, 4294901760
        %v6420 = vsub.f32 %v5270, %v6419
        %v6421 = vand.u32 %v6420, 4294901760
        %6422 = vmatmul.mubr.f32.gmra.mrb[0].mxu0 %v6421
        %v6423 = vpop.f32.mrb[0].mxu0
        %v6424 = vadd.f32 %v6316, %v6423
        %v6425 = vpop.f32.mrb[0].mxu0
        %v6426 = vadd.f32 %v6318, %v6425
        %6427 = vmatprep.mubr.f32.mxu0 0.0
        %v6428 = vand.u32 %v5273, 4294901760
        %v6429 = vsub.f32 %v5273, %v6428
        %v6430 = vand.u32 %v6429, 4294901760
        %6431 = vmatmul.mubr.f32.gmra.mrb[0].mxu0 %v6430
        %v6432 = vpop.f32.mrb[0].mxu0
        %v6433 = vadd.f32 %v6324, %v6432
        %v6434 = vpop.f32.mrb[0].mxu0
        %v6435 = vadd.f32 %v6326, %v6434
        %6436 = vdwg.mxu0
        %v6437 = vand.u32 %v5222, 4294901760
        %v6438 = vsub.f32 %v5222, %v6437
        %v6439 = vand.u32 %v6438, 4294901760
        %6440 = vmatprep.subr.mxu0 %v6439
        %v6441 = vand.u32 %v5221, 4294901760
        %v6442 = vsub.f32 %v5221, %v6441
        %v6443 = vand.u32 %v6442, 4294901760
        %6444 = vmatpush1.msra.mxu0 %v6443
        %v6445 = vand.u32 %v5226, 4294901760
        %v6446 = vsub.f32 %v5226, %v6445
        %v6447 = vand.u32 %v6446, 4294901760
        %6448 = vmatprep.subr.mxu0 %v6447
        %v6449 = vand.u32 %v5225, 4294901760
        %v6450 = vsub.f32 %v5225, %v6449
        %v6451 = vand.u32 %v6450, 4294901760
        %6452 = vmatpush1.msra.mxu0 %v6451
        %v6453 = vand.u32 %v5230, 4294901760
        %v6454 = vsub.f32 %v5230, %v6453
        %v6455 = vand.u32 %v6454, 4294901760
        %6456 = vmatprep.subr.mxu0 %v6455
        %v6457 = vand.u32 %v5229, 4294901760
        %v6458 = vsub.f32 %v5229, %v6457
        %v6459 = vand.u32 %v6458, 4294901760
        %6460 = vmatpush1.msra.mxu0 %v6459
        %v6461 = vand.u32 %v5234, 4294901760
        %v6462 = vsub.f32 %v5234, %v6461
        %v6463 = vand.u32 %v6462, 4294901760
        %6464 = vmatprep.subr.mxu0 %v6463
        %v6465 = vand.u32 %v5233, 4294901760
        %v6466 = vsub.f32 %v5233, %v6465
        %v6467 = vand.u32 %v6466, 4294901760
        %6468 = vmatpush1.msra.mxu0 %v6467
        %6469 = vmatprep.subr.mxu0 0.0
        %6470 = vmatpush1.msra.mxu0 0.0
        %6471 = vmatprep.subr.mxu0 0.0
        %6472 = vmatpush1.msra.mxu0 0.0
        %6473 = vmatprep.subr.mxu0 0.0
        %6474 = vmatpush1.msra.mxu0 0.0
        %6475 = vmatprep.subr.mxu0 0.0
        %6476 = vmatpush1.msra.mxu0 0.0
        %6477 = vmatprep.subr.mxu0 0.0
        %6478 = vmatpush1.msra.mxu0 0.0
        %6479 = vmatprep.subr.mxu0 0.0
        %6480 = vmatpush1.msra.mxu0 0.0
        %6481 = vmatprep.subr.mxu0 0.0
        %6482 = vmatpush1.msra.mxu0 0.0
        %6483 = vmatprep.subr.mxu0 0.0
        %6484 = vmatpush1.msra.mxu0 0.0
        %6485 = vmatprep.subr.mxu0 0.0
        %6486 = vmatpush1.msra.mxu0 0.0
        %6487 = vmatprep.subr.mxu0 0.0
        %6488 = vmatpush1.msra.mxu0 0.0
        %6489 = vmatprep.subr.mxu0 0.0
        %6490 = vmatpush1.msra.mxu0 0.0
        %6491 = vmatprep.subr.mxu0 0.0
        %6492 = vmatpush1.msra.mxu0 0.0
        %6493 = vmatprep.subr.mxu0 0.0
        %6494 = vmatpush1.msra.mxu0 0.0
        %6495 = vmatprep.subr.mxu0 0.0
        %6496 = vmatpush1.msra.mxu0 0.0
        %6497 = vmatprep.subr.mxu0 0.0
        %6498 = vmatpush1.msra.mxu0 0.0
        %6499 = vmatprep.subr.mxu0 0.0
        %6500 = vmatpush1.msra.mxu0 0.0
        %6501 = vmatprep.subr.mxu0 0.0
        %6502 = vmatpush1.msra.mxu0 0.0
        %6503 = vmatprep.subr.mxu0 0.0
        %6504 = vmatpush1.msra.mxu0 0.0
        %6505 = vmatprep.subr.mxu0 0.0
        %6506 = vmatpush1.msra.mxu0 0.0
        %6507 = vmatprep.subr.mxu0 0.0
        %6508 = vmatpush1.msra.mxu0 0.0
        %6509 = vmatprep.subr.mxu0 0.0
        %6510 = vmatpush1.msra.mxu0 0.0
        %6511 = vmatprep.subr.mxu0 0.0
        %6512 = vmatpush1.msra.mxu0 0.0
        %6513 = vmatprep.subr.mxu0 0.0
        %6514 = vmatpush1.msra.mxu0 0.0
        %6515 = vmatprep.subr.mxu0 0.0
        %6516 = vmatpush1.msra.mxu0 0.0
        %6517 = vmatprep.subr.mxu0 0.0
        %6518 = vmatpush1.msra.mxu0 0.0
        %6519 = vmatprep.subr.mxu0 0.0
        %6520 = vmatpush1.msra.mxu0 0.0
        %6521 = vmatprep.subr.mxu0 0.0
        %6522 = vmatpush1.msra.mxu0 0.0
        %6523 = vmatprep.subr.mxu0 0.0
        %6524 = vmatpush1.msra.mxu0 0.0
        %6525 = vmatprep.mubr.f32.mxu0 0.0
        %v6526 = vand.u32 %v5264, 4294901760
        %6527 = vmatmul.mubr.f32.gmra.mrb[0].mxu0 %v6526
        %v6528 = vpop.f32.mrb[0].mxu0
        %v6529 = vadd.f32 %v6406, %v6528
        %v6530 = vpop.f32.mrb[0].mxu0
        %v6531 = vadd.f32 %v6408, %v6530
        %6532 = vmatprep.mubr.f32.mxu0 0.0
        %v6533 = vand.u32 %v5267, 4294901760
        %6534 = vmatmul.mubr.f32.gmra.mrb[0].mxu0 %v6533
        %v6535 = vpop.f32.mrb[0].mxu0
        %v6536 = vadd.f32 %v6415, %v6535
        %v6537 = vpop.f32.mrb[0].mxu0
        %v6538 = vadd.f32 %v6417, %v6537
        %6539 = vmatprep.mubr.f32.mxu0 0.0
        %v6540 = vand.u32 %v5270, 4294901760
        %6541 = vmatmul.mubr.f32.gmra.mrb[0].mxu0 %v6540
        %v6542 = vpop.f32.mrb[0].mxu0
        %v6543 = vadd.f32 %v6424, %v6542
        %v6544 = vpop.f32.mrb[0].mxu0
        %v6545 = vadd.f32 %v6426, %v6544
        %6546 = vmatprep.mubr.f32.mxu0 0.0
        %v6547 = vand.u32 %v5273, 4294901760
        %6548 = vmatmul.mubr.f32.gmra.mrb[0].mxu0 %v6547
        %v6549 = vpop.f32.mrb[0].mxu0
        %v6550 = vadd.f32 %v6433, %v6549
        %v6551 = vpop.f32.mrb[0].mxu0
        %v6552 = vadd.f32 %v6435, %v6551
        %6553 = vdwg.mxu0
        %v6554 = vand.u32 %v5222, 4294901760
        %6555 = vmatprep.subr.mxu0 %v6554
        %v6556 = vand.u32 %v5221, 4294901760
        %6557 = vmatpush1.msra.mxu0 %v6556
        %v6558 = vand.u32 %v5226, 4294901760
        %6559 = vmatprep.subr.mxu0 %v6558
        %v6560 = vand.u32 %v5225, 4294901760
        %6561 = vmatpush1.msra.mxu0 %v6560
        %v6562 = vand.u32 %v5230, 4294901760
        %6563 = vmatprep.subr.mxu0 %v6562
        %v6564 = vand.u32 %v5229, 4294901760
        %6565 = vmatpush1.msra.mxu0 %v6564
        %v6566 = vand.u32 %v5234, 4294901760
        %6567 = vmatprep.subr.mxu0 %v6566
        %v6568 = vand.u32 %v5233, 4294901760
        %6569 = vmatpush1.msra.mxu0 %v6568
        %6570 = vmatprep.subr.mxu0 0.0
        %6571 = vmatpush1.msra.mxu0 0.0
        %6572 = vmatprep.subr.mxu0 0.0
        %6573 = vmatpush1.msra.mxu0 0.0
        %6574 = vmatprep.subr.mxu0 0.0
        %6575 = vmatpush1.msra.mxu0 0.0
        %6576 = vmatprep.subr.mxu0 0.0
        %6577 = vmatpush1.msra.mxu0 0.0
        %6578 = vmatprep.subr.mxu0 0.0
        %6579 = vmatpush1.msra.mxu0 0.0
        %6580 = vmatprep.subr.mxu0 0.0
        %6581 = vmatpush1.msra.mxu0 0.0
        %6582 = vmatprep.subr.mxu0 0.0
        %6583 = vmatpush1.msra.mxu0 0.0
        %6584 = vmatprep.subr.mxu0 0.0
        %6585 = vmatpush1.msra.mxu0 0.0
        %6586 = vmatprep.subr.mxu0 0.0
        %6587 = vmatpush1.msra.mxu0 0.0
        %6588 = vmatprep.subr.mxu0 0.0
        %6589 = vmatpush1.msra.mxu0 0.0
        %6590 = vmatprep.subr.mxu0 0.0
        %6591 = vmatpush1.msra.mxu0 0.0
        %6592 = vmatprep.subr.mxu0 0.0
        %6593 = vmatpush1.msra.mxu0 0.0
        %6594 = vmatprep.subr.mxu0 0.0
        %6595 = vmatpush1.msra.mxu0 0.0
        %6596 = vmatprep.subr.mxu0 0.0
        %6597 = vmatpush1.msra.mxu0 0.0
        %6598 = vmatprep.subr.mxu0 0.0
        %6599 = vmatpush1.msra.mxu0 0.0
        %6600 = vmatprep.subr.mxu0 0.0
        %6601 = vmatpush1.msra.mxu0 0.0
        %6602 = vmatprep.subr.mxu0 0.0
        %6603 = vmatpush1.msra.mxu0 0.0
        %6604 = vmatprep.subr.mxu0 0.0
        %6605 = vmatpush1.msra.mxu0 0.0
        %6606 = vmatprep.subr.mxu0 0.0
        %6607 = vmatpush1.msra.mxu0 0.0
        %6608 = vmatprep.subr.mxu0 0.0
        %6609 = vmatpush1.msra.mxu0 0.0
        %6610 = vmatprep.subr.mxu0 0.0
        %6611 = vmatpush1.msra.mxu0 0.0
        %6612 = vmatprep.subr.mxu0 0.0
        %6613 = vmatpush1.msra.mxu0 0.0
        %6614 = vmatprep.subr.mxu0 0.0
        %6615 = vmatpush1.msra.mxu0 0.0
        %6616 = vmatprep.subr.mxu0 0.0
        %6617 = vmatpush1.msra.mxu0 0.0
        %6618 = vmatprep.subr.mxu0 0.0
        %6619 = vmatpush1.msra.mxu0 0.0
        %6620 = vmatprep.subr.mxu0 0.0
        %6621 = vmatpush1.msra.mxu0 0.0
        %6622 = vmatprep.subr.mxu0 0.0
        %6623 = vmatpush1.msra.mxu0 0.0
        %6624 = vmatprep.subr.mxu0 0.0
        %6625 = vmatpush1.msra.mxu0 0.0
        %6626 = vmatprep.mubr.f32.mxu0 0.0
        %v6627 = vand.u32 %v5264, 4294901760
        %6628 = vmatmul.mubr.f32.gmra.mrb[0].mxu0 %v6627
        %v6629 = vpop.f32.mrb[0].mxu0
        %v6630 = vadd.f32 %v6529, %v6629
        %v6631 = vpop.f32.mrb[0].mxu0
        %v6632 = vadd.f32 %v6531, %v6631
        %6633 = vmatprep.mubr.f32.mxu0 0.0
        %v6634 = vand.u32 %v5267, 4294901760
        %6635 = vmatmul.mubr.f32.gmra.mrb[0].mxu0 %v6634
        %v6636 = vpop.f32.mrb[0].mxu0
        %v6637 = vadd.f32 %v6536, %v6636
        %v6638 = vpop.f32.mrb[0].mxu0
        %v6639 = vadd.f32 %v6538, %v6638
        %6640 = vmatprep.mubr.f32.mxu0 0.0
        %v6641 = vand.u32 %v5270, 4294901760
        %6642 = vmatmul.mubr.f32.gmra.mrb[0].mxu0 %v6641
        %v6643 = vpop.f32.mrb[0].mxu0
        %v6644 = vadd.f32 %v6543, %v6643
        %v6645 = vpop.f32.mrb[0].mxu0
        %v6646 = vadd.f32 %v6545, %v6645
        %6647 = vmatprep.mubr.f32.mxu0 0.0
        %v6648 = vand.u32 %v5273, 4294901760
        %6649 = vmatmul.mubr.f32.gmra.mrb[0].mxu0 %v6648
        %v6650 = vpop.f32.mrb[0].mxu0
        %v6651 = vadd.f32 %v6550, %v6650
        %v6652 = vpop.f32.mrb[0].mxu0
        %v6653 = vadd.f32 %v6552, %v6652
        %6654 = vdwg.mxu0
        %v6655 = vtanh.pop %v5940
        %v6656 = vtanh.pop %v5942
        %v6657 = vtanh.pop %v6630
        %v6658 = vtanh.pop %v6632
        %v6659 = vtanh.pop %v5947
        %v6660 = vtanh.pop %v5949
        %v6661 = vtanh.pop %v6637
        %v6662 = vtanh.pop %v6639
        %v6663 = vtanh.pop %v5954
        %v6664 = vtanh.pop %v5956
        %v6665 = vtanh.pop %v6644
        %v6666 = vtanh.pop %v6646
        %v6667 = vtanh.pop %v5961
        %v6668 = vtanh.pop %v5963
        %v6669 = vtanh.pop %v6651
        %v6670 = vtanh.pop %v6653
        %v6671 = vld [vmem:[%s7] sm:$0x1]
        %v6672 = vld [vmem:[#allocation2] sm:$0x1]
        %6673 = vxpose.xlu0.b32.start [1/16] %v6671, 128
        %6674 = vxpose.xlu0.b32.cont [2/16] 0.0, 128
        %6675 = vxpose.xlu0.b32.cont [3/16] 0.0, 128
        %6676 = vxpose.xlu0.b32.cont [4/16] 0.0, 128
        %6677 = vxpose.xlu0.b32.cont [5/16] 0.0, 128
        %6678 = vxpose.xlu0.b32.cont [6/16] 0.0, 128
        %6679 = vxpose.xlu0.b32.cont [7/16] 0.0, 128
        %6680 = vxpose.xlu0.b32.cont [8/16] 0.0, 128
        %6681 = vxpose.xlu0.b32.cont [9/16] 0.0, 128
        %6682 = vxpose.xlu0.b32.cont [10/16] 0.0, 128
        %6683 = vxpose.xlu0.b32.cont [11/16] 0.0, 128
        %6684 = vxpose.xlu0.b32.cont [12/16] 0.0, 128
        %6685 = vxpose.xlu0.b32.cont [13/16] 0.0, 128
        %6686 = vxpose.xlu0.b32.cont [14/16] 0.0, 128
        %6687 = vxpose.xlu0.b32.cont [15/16] 0.0, 128
        %6688 = vxpose.xlu0.b32.end [16/16] 0.0, 128
        %v6689 = vpop.trf.xlu0
        %v6690 = vpop.trf.xlu0
        %v6691 = vpop.trf.xlu0
        %v6692 = vpop.trf.xlu0
        %v6693 = vpop.trf.xlu0
        %v6694 = vpop.trf.xlu0
        %v6695 = vpop.trf.xlu0
        %v6696 = vpop.trf.xlu0
        %v6697 = vpop.trf.xlu0
        %v6698 = vpop.trf.xlu0
        %v6699 = vpop.trf.xlu0
        %v6700 = vpop.trf.xlu0
        %v6701 = vpop.trf.xlu0
        %v6702 = vpop.trf.xlu0
        %v6703 = vpop.trf.xlu0
        %v6704 = vpop.trf.xlu0
        %6706 = vset.pattern.permute.xlu0 0
        %6707 = vperm.xlu0 %6706, %v6689
        %v6708 = vpop.permute.xlu0 %6707
        %6711 = vset.pattern.permute.xlu0 0
        %6712 = vperm.xlu0 %6711, %v6690
        %v6713 = vpop.permute.xlu0 %6712
        %6716 = vset.pattern.permute.xlu0 0
        %6717 = vperm.xlu0 %6716, %v6691
        %v6718 = vpop.permute.xlu0 %6717
        %6721 = vset.pattern.permute.xlu0 0
        %6722 = vperm.xlu0 %6721, %v6692
        %v6723 = vpop.permute.xlu0 %6722
        %v6725 = vmul.f32 %v6708, %v6655
        %v6726 = vmul.f32 %v6708, %v6656
        %v6727 = vmul.f32 %v6708, %v6657
        %v6728 = vmul.f32 %v6708, %v6658
        %v6729 = vmul.f32 %v6713, %v6659
        %v6730 = vmul.f32 %v6713, %v6660
        %v6731 = vmul.f32 %v6713, %v6661
        %v6732 = vmul.f32 %v6713, %v6662
        %v6733 = vmul.f32 %v6718, %v6663
        %v6734 = vmul.f32 %v6718, %v6664
        %v6735 = vmul.f32 %v6718, %v6665
        %v6736 = vmul.f32 %v6718, %v6666
        %v6737 = vmul.f32 %v6723, %v6667
        %v6738 = vmul.f32 %v6723, %v6668
        %v6739 = vmul.f32 %v6723, %v6669
        %v6740 = vmul.f32 %v6723, %v6670
        %v6741 = vadd.f32 %v6725, %v6729
        %v6742 = vadd.f32 %v6741, %v6733
        %v6743 = vadd.f32 %v6742, %v6737
        %v6744 = vrot.slane %v6743, 4
        %v6745 = vadd.f32 %v6743, %v6744
        %v6746 = vrot.slane %v6745, 2
        %v6747 = vadd.f32 %v6745, %v6746
        %v6748 = vrot.slane %v6747, 1
        %v6749 = vadd.f32 %v6747, %v6748
        %v6750 = vadd.f32 %v6726, %v6730
        %v6751 = vadd.f32 %v6750, %v6734
        %v6752 = vadd.f32 %v6751, %v6738
        %v6753 = vrot.slane %v6752, 4
        %v6754 = vadd.f32 %v6752, %v6753
        %v6755 = vrot.slane %v6754, 2
        %v6756 = vadd.f32 %v6754, %v6755
        %v6757 = vrot.slane %v6756, 1
        %v6758 = vadd.f32 %v6756, %v6757
        %v6759 = vadd.f32 %v6727, %v6731
        %v6760 = vadd.f32 %v6759, %v6735
        %v6761 = vadd.f32 %v6760, %v6739
        %v6762 = vrot.slane %v6761, 4
        %v6763 = vadd.f32 %v6761, %v6762
        %v6764 = vrot.slane %v6763, 2
        %v6765 = vadd.f32 %v6763, %v6764
        %v6766 = vrot.slane %v6765, 1
        %v6767 = vadd.f32 %v6765, %v6766
        %v6768 = vadd.f32 %v6728, %v6732
        %v6769 = vadd.f32 %v6768, %v6736
        %v6770 = vadd.f32 %v6769, %v6740
        %v6771 = vrot.slane %v6770, 4
        %v6772 = vadd.f32 %v6770, %v6771
        %v6773 = vrot.slane %v6772, 2
        %v6774 = vadd.f32 %v6772, %v6773
        %v6775 = vrot.slane %v6774, 1
        %v6776 = vadd.f32 %v6774, %v6775
        %6778 = vset.pattern.permute.xlu0 0
        %6779 = vperm.xlu0 %6778, %v6672
        %v6780 = vpop.permute.xlu0 %6779
        %v6782 = vlaneseq
        %v6783 = vshrl.u32 %v6782, 7
        %v6784 = vsub.s32 0, %v6783
        %v6785 = vrot.slane %v6780, %v6784
        %v6786 = vadd.f32 %v6749, %v6785
        %v6787 = vadd.f32 %v6758, %v6785
        %v6788 = vadd.f32 %v6767, %v6785
        %v6789 = vadd.f32 %v6776, %v6785
        %v6794 = vcombine.low %v6786, %v6787
        %v6795 = vcombine.low %v6788, %v6789
        %v6797 = vunpack.c.l.s4 1966171168
        %v6798 = vunpack.c.0.s8 %v6797
        %v6799 = vlaneseq
        %v6800 = vshrl.u32 %v6799, 7
        %v6801 = vsub.s32 %v6798, %v6800
        %v6802 = vrot.slane %v6794, %v6801
        %v6804 = vunpack.c.l.s4 1966171168
        %v6805 = vunpack.c.0.s8 %v6804
        %v6806 = vlaneseq
        %v6807 = vshrl.u32 %v6806, 7
        %v6808 = vsub.s32 %v6805, %v6807
        %v6809 = vrot.slane %v6795, %v6808
        %v6810 = vcombine.low %v6802, %v6809
        %v6812 = vunpack.c.l.s4 1966171168
        %v6813 = vunpack.c.0.s8 %v6812
        %v6814 = vlaneseq
        %v6815 = vshrl.u32 %v6814, 7
        %v6816 = vsub.s32 %v6813, %v6815
        %v6817 = vrot.slane %v6810, %v6816
        %s6819 = scalar_lea.vmem %s328, 4 [#allocation3]
        %6820 = vst.msk [vmem:[%s6819] sm:$0xf] %vm3578, %v6817
        %s6821 = sand.u32 %s227, 1
        %s6822 = scalar_lea.sflag [#allocation4], %s6821
        %s6823 = sand.u32 %s227, 1
        %s6824 = smul.addr %s6823, 8
        %s6825 = scalar_lea.vmem [#allocation3], %s6824
        // Predicated region
        $region57: #{tpu_custom_call.1} parent=55 // pred_check
          %p6826 = pneg %p237
        $region58: #{tpu_custom_call.1} parent=55 // pred_check_branch
          %6828 = sbr.rel (%p6826) target = $region60
        $region59: #{tpu_custom_call.1} parent=55 // pred_region
          %s6829 = smul.u32 8, %s25
          %s6831 = ssub.s32 128, 128
          %6832 = vsyncadd %s6822, %s6831
          %s6833 = smul.addr %s6829, 16
          %s6834 = scalar_lea.hbm %s9, %s6833
          %s6836 = sshll.u32 %s6825, 4
          %s6837 = int_to_ptr.vmem [resolvable:$true] %s6836
          %6839 = dma.vmem_to_hbm [thread:$0]  %s6837, 128, %s6834, %s6822
        $region60: #{tpu_custom_call.1} parent=55 // pred_fallthru
          _
      $region56: #{tpu_custom_call.1} parent=5 // pred_fallthru
        _
      %p6840 = scmp.le.s32.totalorder 2, %s20
      // Predicated region
      $region61: #{tpu_custom_call.1} parent=5 // pred_check
        %p6841 = pneg %p6840
      $region62: #{tpu_custom_call.1} parent=5 // pred_check_branch
        %6843 = sbr.rel (%p6841) target = $region64
      $region63: #{tpu_custom_call.1} parent=5 // pred_region
        %s6844 = ssub.s32 %s20, 2
        // Predicated region
        $region65: #{tpu_custom_call.1} parent=63 // pred_check
          %p6845 = pneg %p243
        $region66: #{tpu_custom_call.1} parent=63 // pred_check_branch
          %6847 = sbr.rel (%p6845) target = $region68
        $region67: #{tpu_custom_call.1} parent=63 // pred_region
          %s6848 = sand.u32 %s228, 1
          %s6849 = scalar_lea.sflag [#allocation4], %s6848
          %s6850 = sand.u32 %s228, 1
          %s6851 = smul.addr %s6850, 8
          %s6852 = scalar_lea.vmem [#allocation3], %s6851
          %6853 = dma.done %s6849, 128
        $region68: #{tpu_custom_call.1} parent=63 // pred_fallthru
          _
      $region64: #{tpu_custom_call.1} parent=5 // pred_fallthru
        _
    $region6: #{tpu_custom_call.1} parent=1 // loop_footer
      %s24 = sadd.s32 1, %s20
    $region7: #{tpu_custom_call.1} parent=1 // loop_footer_branch
      %19 = sbr.rel target = $region3
    $region8: #{tpu_custom_call.1} parent=1 // loop_exit
      _
    %6854 = vsyncpa [#allocation4], 1
    %s6855 = scalar_lea.sflag [#allocation4], 1
    %6856 = vsyncpa %s6855, 1

</llo_original>
